<compile_context>
chip_gen: v7x
topology: tpu7x:2x2x1
jax: 0.10.0
libtpu: 0.0.40
codegen_flags: <defaults>
</compile_context>

<pallas_src>
import functools

import jax
import jax.numpy as jnp
from jax.experimental import pallas as pl
from jax.experimental.pallas import tpu as pltpu


DEFAULT_TILE_N = 1664        # multiple of 128; 6600 -> 6656 = 4 tiles (even)
VMEM_LIMIT_BYTES = 48 << 20  # safe on v5e/v6e (128 MiB) and v7x (64 MiB/TC)


def _round_up(x, m):
    return (x + m - 1) // m * m


# ---------------------------------------------------------------------------
# Fused kernel
# ---------------------------------------------------------------------------

def _mlp_fused_kernel(x_ref, w1_ref, b1_ref, w2_ref, b2_ref, w3_ref, b3_ref,
                      o_ref):
    """One fc3 output tile of the full MLP.

    x/W1/b1/W2/b2 are resident (constant index_maps); h2 is recomputed per
    grid step and hidden under the dominant bf16 W3-tile DMA.
    """
    h1 = jnp.dot(x_ref[...], w1_ref[...],
                 preferred_element_type=jnp.float32) + b1_ref[...]
    h1 = jnp.maximum(h1, 0.0)
    h2 = jnp.dot(h1.astype(w2_ref.dtype), w2_ref[...],
                 preferred_element_type=jnp.float32) + b2_ref[...]
    h2 = jnp.maximum(h2, 0.0)
    out = jnp.dot(h2.astype(w3_ref.dtype), w3_ref[...],
                  preferred_element_type=jnp.float32) + b3_ref[...]
    o_ref[...] = out.astype(o_ref.dtype)


# ---------------------------------------------------------------------------
# Parameter preparation (run ONCE, outside the hot path)
# ---------------------------------------------------------------------------

def prepare_params(w1, b1, w2, b2, w3, b3, *, tile_n=DEFAULT_TILE_N,
                   weight_dtype=jnp.bfloat16):
    """Pad + cast + pre-block raw (in, out)-layout params once.

    - hidden dim 1028 -> 1152 (multiple of 128): pad W2 cols, b2, W3 rows.
    - fc3 output dim 6600 -> multiple of tile_n: pad W3 cols, b3.
    - W3 reshaped to (num_tiles, h2_pad, tile_n) so each tile DMA is one
      contiguous HBM read.
    - W2/W3 cast to bf16 (the streamed weights); W1 and biases stay f32.
    Zero padding is exact: padded h2 lanes are relu(0 + 0) = 0 and padded W3
    rows multiply those zeros.
    """
    d_in, h1_dim = w1.shape
    h2_dim = w2.shape[1]
    motion_dim = w3.shape[1]

    h2_pad = _round_up(h2_dim, 128)
    n_pad = _round_up(motion_dim, tile_n)
    num_tiles = n_pad // tile_n

    w1p = w1.astype(jnp.float32)
    b1p = b1.astype(jnp.float32).reshape(1, h1_dim)
    w2p = jnp.pad(w2, ((0, 0), (0, h2_pad - h2_dim))).astype(weight_dtype)
    b2p = jnp.pad(b2, ((0, h2_pad - h2_dim),)).astype(jnp.float32).reshape(1, h2_pad)
    w3p = jnp.pad(w3, ((0, h2_pad - h2_dim),
                       (0, n_pad - motion_dim))).astype(weight_dtype)
    # Pre-block: (h2_pad, n_pad) -> (num_tiles, h2_pad, tile_n), contiguous per tile.
    w3p = w3p.reshape(h2_pad, num_tiles, tile_n).transpose(1, 0, 2)
    b3p = jnp.pad(b3, ((0, n_pad - motion_dim),)).astype(jnp.float32).reshape(1, n_pad)
    return w1p, b1p, w2p, b2p, w3p, b3p


# ---------------------------------------------------------------------------
# Forward
# ---------------------------------------------------------------------------

@functools.partial(jax.jit, static_argnames=("motion_dim",))
def mlp_forward(x, w1, b1, w2, b2, w3, b3, *, motion_dim):
    """x: (B, text_embed_dim) f32; params from prepare_params.

    Returns (B, motion_dim) f32."""
    B, d_in = x.shape
    h1_dim = w1.shape[1]
    h2_pad = w2.shape[1]                 # 1152
    num_tiles, _, tile_n = w3.shape      # (4, 1152, 1664)
    n_pad = num_tiles * tile_n

    flops = (2 * B * h2_pad * n_pad
             + num_tiles * (2 * B * d_in * h1_dim + 2 * B * h1_dim * h2_pad))
    bytes_accessed = (w3.size * w3.dtype.itemsize      # dominant bf16 stream
                      + w2.size * w2.dtype.itemsize
                      + w1.size * w1.dtype.itemsize
                      + x.size * x.dtype.itemsize
                      + B * n_pad * 4)

    out_padded = pl.pallas_call(
        _mlp_fused_kernel,
        out_shape=jax.ShapeDtypeStruct((B, n_pad), jnp.float32),
        grid_spec=pltpu.PrefetchScalarGridSpec(
            num_scalar_prefetch=0,
            grid=(num_tiles,),
            in_specs=[
                pl.BlockSpec((B, d_in), lambda j: (0, 0)),           # x  (resident)
                pl.BlockSpec((d_in, h1_dim), lambda j: (0, 0)),      # W1 (resident)
                pl.BlockSpec((1, h1_dim), lambda j: (0, 0)),         # b1 (resident)
                pl.BlockSpec((h1_dim, h2_pad), lambda j: (0, 0)),    # W2 (resident, bf16)
                pl.BlockSpec((1, h2_pad), lambda j: (0, 0)),         # b2 (resident)
                pl.BlockSpec((None, h2_pad, tile_n),
                             lambda j: (j, 0, 0)),                   # W3 tile (bf16, contiguous)
                pl.BlockSpec((1, tile_n), lambda j: (0, j)),         # b3 tile
            ],
            out_specs=pl.BlockSpec((B, tile_n), lambda j: (0, j)),
        ),
        compiler_params=pltpu.CompilerParams(
            dimension_semantics=("parallel",),   # even tile count -> v7x 2-TC split
            vmem_limit_bytes=VMEM_LIMIT_BYTES,
        ),
        cost_estimate=pl.CostEstimate(flops=flops, transcendentals=0,
                                      bytes_accessed=bytes_accessed),
    )(x, w1, b1, w2, b2, w3, b3)

    return out_padded[:, :motion_dim]


# ---------------------------------------------------------------------------
# Init / reference / test
# ---------------------------------------------------------------------------

def init_mlp_params(key, text_embed_dim=32, motion_dim=6600):
    """Deterministic init mimicking nn.Linear default (U[-1/sqrt(fan_in), ...]).

    Weights stored as (in_features, out_features)."""
    dims = [(text_embed_dim, 512), (512, 1028), (1028, motion_dim)]
    params = []
    for i, (fan_in, fan_out) in enumerate(dims):
        kw, kb = jax.random.split(jax.random.fold_in(key, i))
        bound = 1.0 / (fan_in ** 0.5)
        w = jax.random.uniform(kw, (fan_in, fan_out), jnp.float32, -bound, bound)
        b = jax.random.uniform(kb, (fan_out,), jnp.float32, -bound, bound)
        params += [w, b]
    return tuple(params)


def mlp_reference(x, w1, b1, w2, b2, w3, b3):
    h1 = jnp.maximum(x @ w1 + b1, 0.0)
    h2 = jnp.maximum(h1 @ w2 + b2, 0.0)
    return h2 @ w3 + b3


if __name__ == "__main__":
    key = jax.random.PRNGKey(0)
    batch_size = 2
    text_embed_dim = 32
    motion_dim = 6600

    kx, kp = jax.random.split(key)
    x = jax.random.normal(kx, (batch_size, text_embed_dim), jnp.float32)
    w1, b1, w2, b2, w3, b3 = init_mlp_params(kp, text_embed_dim, motion_dim)

    # One-time padding + bf16 cast + W3 pre-blocking (outside the hot path).
    pw1, pb1, pw2, pb2, pw3, pb3 = prepare_params(w1, b1, w2, b2, w3, b3)

    out = mlp_forward(x, pw1, pb1, pw2, pb2, pw3, pb3, motion_dim=motion_dim)
    out = jax.block_until_ready(out)

    # f32 reference; tolerance loosened because W2/W3 and the fc3 LHS (h2)
    # are computed/streamed in bf16.
    ref = mlp_reference(x, w1, b1, w2, b2, w3, b3)
    assert out.shape == (batch_size, motion_dim)
    assert jnp.allclose(out, ref, atol=2e-2, rtol=2e-2), (
        float(jnp.max(jnp.abs(out - ref))))

    print("KERNEL_OK")
</pallas_src>

<mosaic_0001>
module attributes {stable_mosaic.version = 11 : i64} {
  func.func @_mlp_fused_kernel(%arg0: i32, %arg1: memref<2x32xf32, #tpu.memory_space<vmem>>, %arg2: memref<32x512xf32, #tpu.memory_space<vmem>>, %arg3: memref<1x512xf32, #tpu.memory_space<vmem>>, %arg4: memref<512x1152xbf16, #tpu.memory_space<vmem>>, %arg5: memref<1x1152xf32, #tpu.memory_space<vmem>>, %arg6: memref<1x1152x1664xbf16, #tpu.memory_space<vmem>>, %arg7: memref<1x1664xf32, #tpu.memory_space<vmem>>, %arg8: memref<2x1664xf32, #tpu.memory_space<vmem>>) attributes {dimension_semantics = [#tpu.dimension_semantics<parallel>], iteration_bounds = array<i64: 4>, scalar_prefetch = 0 : i64, scratch_operands = 0 : i64, tpu.core_type = #tpu.core_type<tc>, window_params = [{pipeline_mode = #tpu.pipeline_mode<synchronous>, transform_indices = @transform_0, window_bounds = array<i64: 2, 32>}, {pipeline_mode = #tpu.pipeline_mode<synchronous>, transform_indices = @transform_1, window_bounds = array<i64: 32, 512>}, {pipeline_mode = #tpu.pipeline_mode<synchronous>, transform_indices = @transform_2, window_bounds = array<i64: 1, 512>}, {pipeline_mode = #tpu.pipeline_mode<synchronous>, transform_indices = @transform_3, window_bounds = array<i64: 512, 1152>}, {pipeline_mode = #tpu.pipeline_mode<synchronous>, transform_indices = @transform_4, window_bounds = array<i64: 1, 1152>}, {transform_indices = @transform_5, window_bounds = array<i64: 1, 1152, 1664>}, {transform_indices = @transform_6, window_bounds = array<i64: 1, 1664>}, {transform_indices = @transform_7, window_bounds = array<i64: 2, 1664>}]} {
    %c0 = arith.constant 0 : index
    %c0_0 = arith.constant 0 : index
    %0 = vector.load %arg1[%c0, %c0_0] : memref<2x32xf32, #tpu.memory_space<vmem>>, vector<2x32xf32>
    %c0_1 = arith.constant 0 : index
    %c0_2 = arith.constant 0 : index
    %1 = vector.load %arg2[%c0_1, %c0_2] : memref<32x512xf32, #tpu.memory_space<vmem>>, vector<32x512xf32>
    %cst = arith.constant dense<0.000000e+00> : vector<2x512xf32>
    %2 = tpu.matmul %0, %1, %cst {dimension_numbers = #tpu.dot_dimension_numbers<[1], [0], [0], [1], [0, 0, 1, 1], [], []>} : vector<2x32xf32>, vector<32x512xf32>, vector<2x512xf32> -> vector<2x512xf32>
    %c0_3 = arith.constant 0 : index
    %c0_4 = arith.constant 0 : index
    %3 = vector.load %arg3[%c0_3, %c0_4] : memref<1x512xf32, #tpu.memory_space<vmem>>, vector<1x512xf32>
    %4 = vector.broadcast %3 : vector<1x512xf32> to vector<2x512xf32>
    %5 = arith.addf %2, %4 : vector<2x512xf32>
    %cst_5 = arith.constant 0.000000e+00 : f32
    %6 = vector.broadcast %cst_5 : f32 to vector<2x512xf32>
    %7 = arith.maximumf %5, %6 : vector<2x512xf32>
    %8 = arith.truncf %7 : vector<2x512xf32> to vector<2x512xbf16>
    %c0_6 = arith.constant 0 : index
    %c0_7 = arith.constant 0 : index
    %9 = vector.load %arg4[%c0_6, %c0_7] : memref<512x1152xbf16, #tpu.memory_space<vmem>>, vector<512x1152xbf16>
    %cst_8 = arith.constant dense<0.000000e+00> : vector<2x1152xf32>
    %10 = tpu.matmul %8, %9, %cst_8 {dimension_numbers = #tpu.dot_dimension_numbers<[1], [0], [0], [1], [0, 0, 1, 1], [], []>} : vector<2x512xbf16>, vector<512x1152xbf16>, vector<2x1152xf32> -> vector<2x1152xf32>
    %c0_9 = arith.constant 0 : index
    %c0_10 = arith.constant 0 : index
    %11 = vector.load %arg5[%c0_9, %c0_10] : memref<1x1152xf32, #tpu.memory_space<vmem>>, vector<1x1152xf32>
    %12 = vector.broadcast %11 : vector<1x1152xf32> to vector<2x1152xf32>
    %13 = arith.addf %10, %12 : vector<2x1152xf32>
    %cst_11 = arith.constant 0.000000e+00 : f32
    %14 = vector.broadcast %cst_11 : f32 to vector<2x1152xf32>
    %15 = arith.maximumf %13, %14 : vector<2x1152xf32>
    %16 = arith.truncf %15 : vector<2x1152xf32> to vector<2x1152xbf16>
    %c0_12 = arith.constant 0 : index
    %c0_13 = arith.constant 0 : index
    %c0_14 = arith.constant 0 : index
    %17 = vector.load %arg6[%c0_12, %c0_13, %c0_14] : memref<1x1152x1664xbf16, #tpu.memory_space<vmem>>, vector<1x1152x1664xbf16>
    %18 = vector.shape_cast %17 : vector<1x1152x1664xbf16> to vector<1152x1664xbf16>
    %cst_15 = arith.constant dense<0.000000e+00> : vector<2x1664xf32>
    %19 = tpu.matmul %16, %18, %cst_15 {dimension_numbers = #tpu.dot_dimension_numbers<[1], [0], [0], [1], [0, 0, 1, 1], [], []>} : vector<2x1152xbf16>, vector<1152x1664xbf16>, vector<2x1664xf32> -> vector<2x1664xf32>
    %c0_16 = arith.constant 0 : index
    %c0_17 = arith.constant 0 : index
    %20 = vector.load %arg7[%c0_16, %c0_17] : memref<1x1664xf32, #tpu.memory_space<vmem>>, vector<1x1664xf32>
    %21 = vector.broadcast %20 : vector<1x1664xf32> to vector<2x1664xf32>
    %22 = arith.addf %19, %21 : vector<2x1664xf32>
    %c0_18 = arith.constant 0 : index
    %c0_19 = arith.constant 0 : index
    %23 = vector.load %arg8[%c0_18, %c0_19] : memref<2x1664xf32, #tpu.memory_space<vmem>>, vector<2x1664xf32>
    tpu.vector_store %arg8[%c0_18, %c0_19], %22 {strides = array<i32>} : memref<2x1664xf32, #tpu.memory_space<vmem>>, vector<2x1664xf32>,
    return
  }
  func.func @transform_0(%arg0: i32) -> (i32, i32) {
    %c0_i32 = arith.constant 0 : i32
    %c0_i32_0 = arith.constant 0 : i32
    %c0_i32_1 = arith.constant 0 : i32
    return %c0_i32, %c0_i32_0 : i32, i32
  }
  func.func @transform_1(%arg0: i32) -> (i32, i32) {
    %c0_i32 = arith.constant 0 : i32
    %c0_i32_0 = arith.constant 0 : i32
    %c0_i32_1 = arith.constant 0 : i32
    return %c0_i32, %c0_i32_0 : i32, i32
  }
  func.func @transform_2(%arg0: i32) -> (i32, i32) {
    %c0_i32 = arith.constant 0 : i32
    %c0_i32_0 = arith.constant 0 : i32
    %c0_i32_1 = arith.constant 0 : i32
    return %c0_i32, %c0_i32_0 : i32, i32
  }
  func.func @transform_3(%arg0: i32) -> (i32, i32) {
    %c0_i32 = arith.constant 0 : i32
    %c0_i32_0 = arith.constant 0 : i32
    %c0_i32_1 = arith.constant 0 : i32
    return %c0_i32, %c0_i32_0 : i32, i32
  }
  func.func @transform_4(%arg0: i32) -> (i32, i32) {
    %c0_i32 = arith.constant 0 : i32
    %c0_i32_0 = arith.constant 0 : i32
    %c0_i32_1 = arith.constant 0 : i32
    return %c0_i32, %c0_i32_0 : i32, i32
  }
  func.func @transform_5(%arg0: i32) -> (i32, i32, i32) {
    %c0_i32 = arith.constant 0 : i32
    %c0_i32_0 = arith.constant 0 : i32
    %c0_i32_1 = arith.constant 0 : i32
    return %arg0, %c0_i32, %c0_i32_0 : i32, i32, i32
  }
  func.func @transform_6(%arg0: i32) -> (i32, i32) {
    %c0_i32 = arith.constant 0 : i32
    %c0_i32_0 = arith.constant 0 : i32
    return %c0_i32, %arg0 : i32, i32
  }
  func.func @transform_7(%arg0: i32) -> (i32, i32) {
    %c0_i32 = arith.constant 0 : i32
    %c0_i32_0 = arith.constant 0 : i32
    return %c0_i32, %arg0 : i32, i32
  }
}

</mosaic_0001>

<llo_original>
// kernel: mlp_forward.1
$region0: #{mlp_forward.1}
  #allocation0 [shape = 'u32[]', space=smem, size = 0x4, offset = 0x4, fixed_abs, tag = 'smem constant byte address 0x4 - core index']
  #allocation1 [shape = 'u32[144,128]{1,0:T(1,128)}', space=vmem, size = 0x12000, scoped, tag = 'internal scratch']
  %s0 = inlined_call_operand.hbm [shape: f32[2,32], index: 0, kind: input, shape index: {}]
  %s1 = inlined_call_operand.hbm [shape: f32[32,512], index: 1, kind: input, shape index: {}]
  %s2 = inlined_call_operand.hbm [shape: f32[1,512], index: 2, kind: input, shape index: {}]
  %s3 = inlined_call_operand.hbm [shape: bf16[512,1152], index: 3, kind: input, shape index: {}]
  %s4 = inlined_call_operand.hbm [shape: f32[1,1152], index: 4, kind: input, shape index: {}]
  %s5 = inlined_call_operand.hbm [shape: bf16[4,1152,1664], index: 5, kind: input, shape index: {}]
  %s6 = inlined_call_operand.hbm [shape: f32[1,6656], index: 6, kind: input, shape index: {}]
  %s7 = inlined_call_operand.hbm [shape: f32[2,6656], index: 7, kind: output, shape index: {}]
  %s8 = sld [smem:[#allocation0]]
  $region89: #{mlp_forward.1} parent=0
    _
  %s10 = ssub.s32 1, %s8
  %s11 = scalar_select 0, %s10, %s8
  $region1: #{mlp_forward.1} parent=0
    #allocation2 [shape = 'u8[1024]{0}', space=vmem, size = 0x400, scoped, tag = 'input window, operand 0, single buffered']
    #allocation3 [shape = 's32[2]{0}', space=sflag, size = 0x8, scoped, tag = 'scoped memory for mlp_forward.1']
    #allocation4 [shape = 's32[2]{0}', space=sflag, size = 0x8, scoped, tag = 'scoped memory for mlp_forward.1']
    #allocation5 [shape = 'u8[65536]{0}', space=vmem, size = 0x10000, scoped, tag = 'input window, operand 1, single buffered']
    #allocation6 [shape = 's32[1]{0}', space=sflag, size = 0x4, scoped, tag = 'scoped memory for mlp_forward.1']
    #allocation7 [shape = 'u8[2048]{0}', space=vmem, size = 0x800, scoped, tag = 'input window, operand 2, single buffered']
    #allocation8 [shape = 'u8[1179648]{0}', space=vmem, size = 0x120000, scoped, tag = 'input window, operand 3, single buffered']
    #allocation9 [shape = 's32[1]{0}', space=sflag, size = 0x4, scoped, tag = 'scoped memory for mlp_forward.1']
    #allocation10 [shape = 'u8[4608]{0}', space=vmem, size = 0x1400, scoped, tag = 'input window, operand 4, single buffered']
    #allocation11 [shape = 'u8[7667712]{0}', space=vmem, size = 0x750000, scoped, tag = 'input window, operand 5']
    #allocation12 [shape = 's32[2]{0}', space=sflag, size = 0x8, scoped, tag = 'scoped memory for mlp_forward.1']
    #allocation13 [shape = 'u8[13312]{0}', space=vmem, size = 0x3400, scoped, tag = 'input window, operand 6']
    #allocation14 [shape = 'u8[26624]{0}', space=vmem, size = 0x6800, scoped, tag = 'output window, operand 0']
    %12 = vsyncpa [#allocation3], 0
    %13 = vsyncpa [#allocation6], 0
    %14 = vsyncpa [#allocation9], 0
    %15 = vsyncpa [#allocation12], 0
    %s16 = scalar_lea.sflag [#allocation12], 1
    %17 = vsyncpa %s16, 0
    %18 = vsyncpa [#allocation4], 0
    %s19 = scalar_lea.sflag [#allocation4], 1
    %20 = vsyncpa %s19, 0
    loop: start=0, step=1, limit=6
    $region2: #{mlp_forward.1} parent=1 // loop_pre_header
      _
    $region3: #{mlp_forward.1} parent=1 // loop_header
      %s22 = sphi 0, %s26
      %p23 = scmp.ge.s32.totalorder %s22, 6
      %s30 = sphi 0, %s30
      %s32 = sphi 0, %s30
      %s33 = sphi 0, %s32
      %s47 = sphi 0, %s33
      %s51 = sphi 0, %s51
      %s53 = sphi 0, %s51
      %s54 = sphi 0, %s53
      %s68 = sphi 0, %s54
      %s72 = sphi 0, %s72
      %s74 = sphi 0, %s72
      %s75 = sphi 0, %s74
      %s89 = sphi 0, %s75
      %s93 = sphi 0, %s93
      %s95 = sphi 0, %s93
      %s96 = sphi 0, %s95
      %s110 = sphi 0, %s96
      %s114 = sphi 0, %s114
      %s116 = sphi 0, %s114
      %s117 = sphi 0, %s116
      %s131 = sphi 0, %s117
      %s137 = sphi 0, %s139
      %s140 = sphi 0, %s137
      %s141 = sphi 0, %s140
      %s157 = sphi 0, %s141
      %s163 = sphi 0, %s165
      %s166 = sphi 0, %s163
      %s167 = sphi 0, %s166
      %s183 = sphi 0, %s167
      %s189 = sphi 0, %s191
      %s192 = sphi 0, %s189
      %s193 = sphi 0, %s192
      %s209 = sphi 0, %s193
    $region4: #{mlp_forward.1} parent=1 // loop_header_branch
      %25 = sbr.rel (%p23) target = $region8
    $region5: #{mlp_forward.1} parent=1 // loop_body
      %s27 = ssub.s32 %s22, 1
      %s28 = ssub.s32 %s22, 2
      %s29 = sadd.s32 %s22, 1
      %s31 = sadd.s32 %s30, 1
      %p34 = scmp.eq.s32.totalorder %s22, 3
      %p35 = scmp.ne.s32.totalorder %s30, %s32
      %p36 = scmp.eq.s32.totalorder %s22, 0
      %p37 = por %p35, %p36
      %p38 = scmp.ne.s32.totalorder %s30, %s32
      %p39 = scmp.eq.s32.totalorder %s27, 3
      %p40 = por %p38, %p39
      %p41 = scmp.ne.s32.totalorder %s32, %s33
      %p42 = scmp.eq.s32.totalorder %s27, 0
      %p43 = por %p41, %p42
      %p44 = scmp.ne.s32.totalorder %s32, %s33
      %p45 = scmp.eq.s32.totalorder %s28, 3
      %p46 = por %p44, %p45
      %p48 = scmp.ne.s32.totalorder %s33, %s47
      %p49 = scmp.eq.s32.totalorder %s28, 0
      %p50 = por %p48, %p49
      %s52 = sadd.s32 %s51, 1
      %p55 = scmp.eq.s32.totalorder %s22, 3
      %p56 = scmp.ne.s32.totalorder %s51, %s53
      %p57 = scmp.eq.s32.totalorder %s22, 0
      %p58 = por %p56, %p57
      %p59 = scmp.ne.s32.totalorder %s51, %s53
      %p60 = scmp.eq.s32.totalorder %s27, 3
      %p61 = por %p59, %p60
      %p62 = scmp.ne.s32.totalorder %s53, %s54
      %p63 = scmp.eq.s32.totalorder %s27, 0
      %p64 = por %p62, %p63
      %p65 = scmp.ne.s32.totalorder %s53, %s54
      %p66 = scmp.eq.s32.totalorder %s28, 3
      %p67 = por %p65, %p66
      %p69 = scmp.ne.s32.totalorder %s54, %s68
      %p70 = scmp.eq.s32.totalorder %s28, 0
      %p71 = por %p69, %p70
      %s73 = sadd.s32 %s72, 1
      %p76 = scmp.eq.s32.totalorder %s22, 3
      %p77 = scmp.ne.s32.totalorder %s72, %s74
      %p78 = scmp.eq.s32.totalorder %s22, 0
      %p79 = por %p77, %p78
      %p80 = scmp.ne.s32.totalorder %s72, %s74
      %p81 = scmp.eq.s32.totalorder %s27, 3
      %p82 = por %p80, %p81
      %p83 = scmp.ne.s32.totalorder %s74, %s75
      %p84 = scmp.eq.s32.totalorder %s27, 0
      %p85 = por %p83, %p84
      %p86 = scmp.ne.s32.totalorder %s74, %s75
      %p87 = scmp.eq.s32.totalorder %s28, 3
      %p88 = por %p86, %p87
      %p90 = scmp.ne.s32.totalorder %s75, %s89
      %p91 = scmp.eq.s32.totalorder %s28, 0
      %p92 = por %p90, %p91
      %s94 = sadd.s32 %s93, 1
      %p97 = scmp.eq.s32.totalorder %s22, 3
      %p98 = scmp.ne.s32.totalorder %s93, %s95
      %p99 = scmp.eq.s32.totalorder %s22, 0
      %p100 = por %p98, %p99
      %p101 = scmp.ne.s32.totalorder %s93, %s95
      %p102 = scmp.eq.s32.totalorder %s27, 3
      %p103 = por %p101, %p102
      %p104 = scmp.ne.s32.totalorder %s95, %s96
      %p105 = scmp.eq.s32.totalorder %s27, 0
      %p106 = por %p104, %p105
      %p107 = scmp.ne.s32.totalorder %s95, %s96
      %p108 = scmp.eq.s32.totalorder %s28, 3
      %p109 = por %p107, %p108
      %p111 = scmp.ne.s32.totalorder %s96, %s110
      %p112 = scmp.eq.s32.totalorder %s28, 0
      %p113 = por %p111, %p112
      %s115 = sadd.s32 %s114, 1
      %p118 = scmp.eq.s32.totalorder %s22, 3
      %p119 = scmp.ne.s32.totalorder %s114, %s116
      %p120 = scmp.eq.s32.totalorder %s22, 0
      %p121 = por %p119, %p120
      %p122 = scmp.ne.s32.totalorder %s114, %s116
      %p123 = scmp.eq.s32.totalorder %s27, 3
      %p124 = por %p122, %p123
      %p125 = scmp.ne.s32.totalorder %s116, %s117
      %p126 = scmp.eq.s32.totalorder %s27, 0
      %p127 = por %p125, %p126
      %p128 = scmp.ne.s32.totalorder %s116, %s117
      %p129 = scmp.eq.s32.totalorder %s28, 3
      %p130 = por %p128, %p129
      %p132 = scmp.ne.s32.totalorder %s117, %s131
      %p133 = scmp.eq.s32.totalorder %s28, 0
      %p134 = por %p132, %p133
      %s135 = ssub.s32 %s22, %s29
      %p136 = scmp.eq.s32.totalorder %s135, 0
      %s138 = sadd.s32 %s137, 1
      %s139 = scalar_select %p136, %s137, %s138
      %p142 = pneg %p136
      %p143 = scmp.eq.s32.totalorder %s22, 3
      %p144 = por %p142, %p143
      %p145 = scmp.ne.s32.totalorder %s137, %s140
      %p146 = scmp.eq.s32.totalorder %s22, 0
      %p147 = por %p145, %p146
      %p148 = scmp.ne.s32.totalorder %s137, %s140
      %p149 = scmp.eq.s32.totalorder %s27, 3
      %p150 = por %p148, %p149
      %p151 = scmp.ne.s32.totalorder %s140, %s141
      %p152 = scmp.eq.s32.totalorder %s27, 0
      %p153 = por %p151, %p152
      %p154 = scmp.ne.s32.totalorder %s140, %s141
      %p155 = scmp.eq.s32.totalorder %s28, 3
      %p156 = por %p154, %p155
      %p158 = scmp.ne.s32.totalorder %s141, %s157
      %p159 = scmp.eq.s32.totalorder %s28, 0
      %p160 = por %p158, %p159
      %s161 = ssub.s32 %s22, %s29
      %p162 = scmp.eq.s32.totalorder %s161, 0
      %s164 = sadd.s32 %s163, 1
      %s165 = scalar_select %p162, %s163, %s164
      %p168 = pneg %p162
      %p169 = scmp.eq.s32.totalorder %s22, 3
      %p170 = por %p168, %p169
      %p171 = scmp.ne.s32.totalorder %s163, %s166
      %p172 = scmp.eq.s32.totalorder %s22, 0
      %p173 = por %p171, %p172
      %p174 = scmp.ne.s32.totalorder %s163, %s166
      %p175 = scmp.eq.s32.totalorder %s27, 3
      %p176 = por %p174, %p175
      %p177 = scmp.ne.s32.totalorder %s166, %s167
      %p178 = scmp.eq.s32.totalorder %s27, 0
      %p179 = por %p177, %p178
      %p180 = scmp.ne.s32.totalorder %s166, %s167
      %p181 = scmp.eq.s32.totalorder %s28, 3
      %p182 = por %p180, %p181
      %p184 = scmp.ne.s32.totalorder %s167, %s183
      %p185 = scmp.eq.s32.totalorder %s28, 0
      %p186 = por %p184, %p185
      %s187 = ssub.s32 %s22, %s29
      %p188 = scmp.eq.s32.totalorder %s187, 0
      %s190 = sadd.s32 %s189, 1
      %s191 = scalar_select %p188, %s189, %s190
      %p194 = pneg %p188
      %p195 = scmp.eq.s32.totalorder %s22, 3
      %p196 = por %p194, %p195
      %p197 = scmp.ne.s32.totalorder %s189, %s192
      %p198 = scmp.eq.s32.totalorder %s22, 0
      %p199 = por %p197, %p198
      %p200 = scmp.ne.s32.totalorder %s189, %s192
      %p201 = scmp.eq.s32.totalorder %s27, 3
      %p202 = por %p200, %p201
      %p203 = scmp.ne.s32.totalorder %s192, %s193
      %p204 = scmp.eq.s32.totalorder %s27, 0
      %p205 = por %p203, %p204
      %p206 = scmp.ne.s32.totalorder %s192, %s193
      %p207 = scmp.eq.s32.totalorder %s28, 3
      %p208 = por %p206, %p207
      %p210 = scmp.ne.s32.totalorder %s193, %s209
      %p211 = scmp.eq.s32.totalorder %s28, 0
      %p212 = por %p210, %p211
      %p213 = scmp.le.s32.totalorder 1, %s22
      %p214 = scmp.lt.s32.totalorder %s22, 5
      %p215 = pnand %p213, %p214
      %p216 = pneg %p215
      // Predicated region
      $region9: #{mlp_forward.1} parent=5 // pred_check
        _
      $region10: #{mlp_forward.1} parent=5 // pred_check_branch
        %218 = sbr.rel (%p215) target = $region12
      $region11: #{mlp_forward.1} parent=5 // pred_region
        %s219 = ssub.s32 %s22, 1
        // Predicated region
        $region13: #{mlp_forward.1} parent=11 // pred_check
          %p220 = pneg %p43
        $region14: #{mlp_forward.1} parent=11 // pred_check_branch
          %222 = sbr.rel (%p220) target = $region16
        $region15: #{mlp_forward.1} parent=11 // pred_region
          %s224 = ssub.s32 32, 32
          %225 = vsyncadd [#allocation3], %s224
          %s227 = sshll.u32 [#allocation2], 4
          %s228 = int_to_ptr.vmem [resolvable:$true] %s227
          %230 = dma.hbm_to_vmem [thread:$0]  %s0, 32, %s228, [#allocation3]
        $region16: #{mlp_forward.1} parent=11 // pred_fallthru
          _
        // Predicated region
        $region17: #{mlp_forward.1} parent=11 // pred_check
          %p231 = pneg %p64
        $region18: #{mlp_forward.1} parent=11 // pred_check_branch
          %233 = sbr.rel (%p231) target = $region20
        $region19: #{mlp_forward.1} parent=11 // pred_region
          %s235 = ssub.s32 2048, 2048
          %236 = vsyncadd [#allocation6], %s235
          %s237 = sshll.u32 [#allocation5], 4
          %s238 = int_to_ptr.vmem [resolvable:$true] %s237
          %243 = dma.hbm_to_vmem [thread:$0]  %s1, 2048, %s238, [#allocation6], 512, 512, 32
        $region20: #{mlp_forward.1} parent=11 // pred_fallthru
          _
        // Predicated region
        $region21: #{mlp_forward.1} parent=11 // pred_check
          %p244 = pneg %p85
        $region22: #{mlp_forward.1} parent=11 // pred_check_branch
          %246 = sbr.rel (%p244) target = $region24
        $region23: #{mlp_forward.1} parent=11 // pred_region
          %s248 = ssub.s32 64, 64
          %249 = vsyncadd [#allocation6], %s248
          %s251 = sshll.u32 [#allocation7], 4
          %s252 = int_to_ptr.vmem [resolvable:$true] %s251
          %254 = dma.hbm_to_vmem [thread:$0]  %s2, 64, %s252, [#allocation6]
        $region24: #{mlp_forward.1} parent=11 // pred_fallthru
          _
        // Predicated region
        $region25: #{mlp_forward.1} parent=11 // pred_check
          %p255 = pneg %p106
        $region26: #{mlp_forward.1} parent=11 // pred_check_branch
          %257 = sbr.rel (%p255) target = $region28
        $region27: #{mlp_forward.1} parent=11 // pred_region
          %s259 = ssub.s32 36864, 36864
          %260 = vsyncadd [#allocation9], %s259
          %s261 = sshll.u32 [#allocation8], 4
          %s262 = int_to_ptr.vmem [resolvable:$true] %s261
          %267 = dma.hbm_to_vmem [thread:$0]  %s3, 36864, %s262, [#allocation9], 576, 576, 36
        $region28: #{mlp_forward.1} parent=11 // pred_fallthru
          _
        // Predicated region
        $region29: #{mlp_forward.1} parent=11 // pred_check
          %p268 = pneg %p127
        $region30: #{mlp_forward.1} parent=11 // pred_check_branch
          %270 = sbr.rel (%p268) target = $region32
        $region31: #{mlp_forward.1} parent=11 // pred_region
          %s272 = ssub.s32 144, 144
          %273 = vsyncadd [#allocation9], %s272
          %s275 = sshll.u32 [#allocation10], 4
          %s276 = int_to_ptr.vmem [resolvable:$true] %s275
          %278 = dma.hbm_to_vmem [thread:$0]  %s4, 144, %s276, [#allocation9]
        $region32: #{mlp_forward.1} parent=11 // pred_fallthru
          _
      $region12: #{mlp_forward.1} parent=5 // pred_fallthru
        _
      %p279 = scmp.lt.s32.totalorder %s22, 4
      // Predicated region
      $region33: #{mlp_forward.1} parent=5 // pred_check
        %p280 = pneg %p279
      $region34: #{mlp_forward.1} parent=5 // pred_check_branch
        %282 = sbr.rel (%p280) target = $region36
      $region35: #{mlp_forward.1} parent=5 // pred_region
        // Predicated region
        $region37: #{mlp_forward.1} parent=35 // pred_check
          %p283 = pneg %p147
        $region38: #{mlp_forward.1} parent=35 // pred_check_branch
          %285 = sbr.rel (%p283) target = $region40
        $region39: #{mlp_forward.1} parent=35 // pred_region
          %s286 = sand.u32 %s22, 1
          %s287 = scalar_lea.sflag [#allocation12], %s286
          %s288 = sand.u32 %s137, 1
          %s289 = smul.addr %s288, 7488
          %s290 = scalar_lea.vmem [#allocation11], %s289
          %s292 = ssub.s32 119808, 119808
          %293 = vsyncadd %s287, %s292
          %s294 = smul.addr %s22, 1872
          %s295 = smul.addr %s294, 64
          %s296 = scalar_lea.hbm %s5, %s295
          %s297 = sshll.u32 %s290, 4
          %s298 = int_to_ptr.vmem [resolvable:$true] %s297
          %303 = dma.hbm_to_vmem [thread:$0]  %s296, 119808, %s298, %s287, 832, 832, 52
        $region40: #{mlp_forward.1} parent=35 // pred_fallthru
          _
        // Predicated region
        $region41: #{mlp_forward.1} parent=35 // pred_check
          %p304 = pneg %p173
        $region42: #{mlp_forward.1} parent=35 // pred_check_branch
          %306 = sbr.rel (%p304) target = $region44
        $region43: #{mlp_forward.1} parent=35 // pred_region
          %s307 = sand.u32 %s22, 1
          %s308 = scalar_lea.sflag [#allocation12], %s307
          %s309 = sand.u32 %s163, 1
          %s310 = smul.addr %s309, 13
          %s311 = scalar_lea.vmem [#allocation13], %s310
          %s312 = smul.u32 13, %s22
          %s314 = ssub.s32 208, 208
          %315 = vsyncadd %s308, %s314
          %s316 = smul.addr %s312, 16
          %s317 = scalar_lea.hbm %s6, %s316
          %s319 = sshll.u32 %s311, 4
          %s320 = int_to_ptr.vmem [resolvable:$true] %s319
          %322 = dma.hbm_to_vmem [thread:$0]  %s317, 208, %s320, %s308
        $region44: #{mlp_forward.1} parent=35 // pred_fallthru
          _
      $region36: #{mlp_forward.1} parent=5 // pred_fallthru
        _
      %p323 = scmp.le.s32.totalorder 1, %s22
      %p324 = scmp.lt.s32.totalorder %s22, 5
      %p325 = pnand %p323, %p324
      %p326 = pneg %p325
      // Predicated region
      $region45: #{mlp_forward.1} parent=5 // pred_check
        _
      $region46: #{mlp_forward.1} parent=5 // pred_check_branch
        %328 = sbr.rel (%p325) target = $region48
      $region47: #{mlp_forward.1} parent=5 // pred_region
        %s329 = ssub.s32 %s22, 1
        // Predicated region
        $region49: #{mlp_forward.1} parent=47 // pred_check
          %p330 = pneg %p43
        $region50: #{mlp_forward.1} parent=47 // pred_check_branch
          %332 = sbr.rel (%p330) target = $region52
        $region51: #{mlp_forward.1} parent=47 // pred_region
          %333 = dma.done [#allocation3], 32
        $region52: #{mlp_forward.1} parent=47 // pred_fallthru
          _
        // Predicated region
        $region53: #{mlp_forward.1} parent=47 // pred_check
          %p334 = pneg %p64
        $region54: #{mlp_forward.1} parent=47 // pred_check_branch
          %336 = sbr.rel (%p334) target = $region56
        $region55: #{mlp_forward.1} parent=47 // pred_region
          %337 = dma.done [#allocation6], 2048
        $region56: #{mlp_forward.1} parent=47 // pred_fallthru
          _
        // Predicated region
        $region57: #{mlp_forward.1} parent=47 // pred_check
          %p338 = pneg %p85
        $region58: #{mlp_forward.1} parent=47 // pred_check_branch
          %340 = sbr.rel (%p338) target = $region60
        $region59: #{mlp_forward.1} parent=47 // pred_region
          %341 = dma.done [#allocation6], 64
        $region60: #{mlp_forward.1} parent=47 // pred_fallthru
          _
        // Predicated region
        $region61: #{mlp_forward.1} parent=47 // pred_check
          %p342 = pneg %p106
        $region62: #{mlp_forward.1} parent=47 // pred_check_branch
          %344 = sbr.rel (%p342) target = $region64
        $region63: #{mlp_forward.1} parent=47 // pred_region
          %345 = dma.done [#allocation9], 36864
        $region64: #{mlp_forward.1} parent=47 // pred_fallthru
          _
        // Predicated region
        $region65: #{mlp_forward.1} parent=47 // pred_check
          %p346 = pneg %p127
        $region66: #{mlp_forward.1} parent=47 // pred_check_branch
          %348 = sbr.rel (%p346) target = $region68
        $region67: #{mlp_forward.1} parent=47 // pred_region
          %349 = dma.done [#allocation9], 144
        $region68: #{mlp_forward.1} parent=47 // pred_fallthru
          _
        %s350 = sand.u32 %s27, 1
        %s351 = scalar_lea.sflag [#allocation12], %s350
        %s352 = sand.u32 %s140, 1
        %s353 = smul.addr %s352, 7488
        %s354 = scalar_lea.vmem [#allocation11], %s353
        // Predicated region
        $region69: #{mlp_forward.1} parent=47 // pred_check
          %p355 = pneg %p153
        $region70: #{mlp_forward.1} parent=47 // pred_check_branch
          %357 = sbr.rel (%p355) target = $region72
        $region71: #{mlp_forward.1} parent=47 // pred_region
          %358 = dma.done %s351, 119808
        $region72: #{mlp_forward.1} parent=47 // pred_fallthru
          _
        %s359 = sand.u32 %s27, 1
        %s360 = scalar_lea.sflag [#allocation12], %s359
        %s361 = sand.u32 %s166, 1
        %s362 = smul.addr %s361, 13
        %s363 = scalar_lea.vmem [#allocation13], %s362
        // Predicated region
        $region73: #{mlp_forward.1} parent=47 // pred_check
          %p364 = pneg %p179
        $region74: #{mlp_forward.1} parent=47 // pred_check_branch
          %366 = sbr.rel (%p364) target = $region76
        $region75: #{mlp_forward.1} parent=47 // pred_region
          %367 = dma.done %s360, 208
        $region76: #{mlp_forward.1} parent=47 // pred_fallthru
          _
        %p368 = pneg %p43
        %p369 = pneg %p40
        %p370 = pneg %p64
        %p371 = pneg %p61
        %p372 = pneg %p85
        %p373 = pneg %p82
        %p374 = pneg %p106
        %p375 = pneg %p103
        %p376 = pneg %p127
        %p377 = pneg %p124
        %s378 = sand.u32 %s27, 1
        %s379 = scalar_lea.sflag [#allocation12], %s378
        %s380 = sand.u32 %s140, 1
        %s381 = smul.addr %s380, 7488
        %s382 = scalar_lea.vmem [#allocation11], %s381
        %p383 = pneg %p153
        %p384 = pneg %p150
        %s385 = sand.u32 %s27, 1
        %s386 = scalar_lea.sflag [#allocation12], %s385
        %s387 = sand.u32 %s166, 1
        %s388 = smul.addr %s387, 13
        %s389 = scalar_lea.vmem [#allocation13], %s388
        %p390 = pneg %p179
        %p391 = pneg %p176
        %p392 = pneg %p205
        %p393 = pneg %p202
        %s394 = sand.u32 %s192, 1
        %s395 = scalar_lea.sflag [#allocation4], %s394
        %s396 = sand.u32 %s192, 1
        %s397 = smul.addr %s396, 26
        %s398 = scalar_lea.vmem [#allocation14], %s397
        %s399 = smul.u32 13, %s27
        %s400 = smul.u32 13, %s27
        %v402 = vld [vmem:[#allocation2] sm:$0x3]
        %v403 = vld [vmem:[#allocation5] sm:$0xff]
        %v404 = vld [vmem:[#allocation5 + $0x8] sm:$0xff]
        %v405 = vld [vmem:[#allocation5 + $0x10] sm:$0xff]
        %v406 = vld [vmem:[#allocation5 + $0x18] sm:$0xff]
        %v407 = vld [vmem:[#allocation5 + $0x20] sm:$0xff]
        %v408 = vld [vmem:[#allocation5 + $0x28] sm:$0xff]
        %v409 = vld [vmem:[#allocation5 + $0x30] sm:$0xff]
        %v410 = vld [vmem:[#allocation5 + $0x38] sm:$0xff]
        %v411 = vld [vmem:[#allocation5 + $0x40] sm:$0xff]
        %v412 = vld [vmem:[#allocation5 + $0x48] sm:$0xff]
        %v413 = vld [vmem:[#allocation5 + $0x50] sm:$0xff]
        %v414 = vld [vmem:[#allocation5 + $0x58] sm:$0xff]
        %v415 = vld [vmem:[#allocation5 + $0x60] sm:$0xff]
        %v416 = vld [vmem:[#allocation5 + $0x68] sm:$0xff]
        %v417 = vld [vmem:[#allocation5 + $0x70] sm:$0xff]
        %v418 = vld [vmem:[#allocation5 + $0x78] sm:$0xff]
        %v419 = vld [vmem:[#allocation7] sm:$0xf]
        %v421 = vlaneseq
        %v422 = vshrl.u32 %v421, 7
        %v423 = vsub.s32 0, %v422
        %v424 = vrot.slane %v419, %v423
        %v425 = vlaneseq
        %v426 = vshrl.u32 %v425, 7
        %v427 = vsub.s32 1, %v426
        %v428 = vrot.slane %v419, %v427
        %v429 = vlaneseq
        %v430 = vshrl.u32 %v429, 7
        %v431 = vsub.s32 2, %v430
        %v432 = vrot.slane %v419, %v431
        %v433 = vlaneseq
        %v434 = vshrl.u32 %v433, 7
        %v435 = vsub.s32 3, %v434
        %v436 = vrot.slane %v419, %v435
        %vm441 = vcmask 261120
        %v443 = vsel %vm441, %v402, 0
        %445 = vmatprep.subr.mxu0 %v404
        %446 = vmatpush1.msra.mxu0 %v403
        %447 = vmatprep.subr.mxu0 %v408
        %448 = vmatpush1.msra.mxu0 %v407
        %449 = vmatprep.subr.mxu0 %v412
        %450 = vmatpush1.msra.mxu0 %v411
        %451 = vmatprep.subr.mxu0 %v416
        %452 = vmatpush1.msra.mxu0 %v415
        %453 = vmatprep.subr.mxu0 0.0
        %454 = vmatpush1.msra.mxu0 0.0
        %455 = vmatprep.subr.mxu0 0.0
        %456 = vmatpush1.msra.mxu0 0.0
        %457 = vmatprep.subr.mxu0 0.0
        %458 = vmatpush1.msra.mxu0 0.0
        %459 = vmatprep.subr.mxu0 0.0
        %460 = vmatpush1.msra.mxu0 0.0
        %461 = vmatprep.subr.mxu0 0.0
        %462 = vmatpush1.msra.mxu0 0.0
        %463 = vmatprep.subr.mxu0 0.0
        %464 = vmatpush1.msra.mxu0 0.0
        %465 = vmatprep.subr.mxu0 0.0
        %466 = vmatpush1.msra.mxu0 0.0
        %467 = vmatprep.subr.mxu0 0.0
        %468 = vmatpush1.msra.mxu0 0.0
        %469 = vmatprep.subr.mxu0 0.0
        %470 = vmatpush1.msra.mxu0 0.0
        %471 = vmatprep.subr.mxu0 0.0
        %472 = vmatpush1.msra.mxu0 0.0
        %473 = vmatprep.subr.mxu0 0.0
        %474 = vmatpush1.msra.mxu0 0.0
        %475 = vmatprep.subr.mxu0 0.0
        %476 = vmatpush1.msra.mxu0 0.0
        %477 = vmatprep.subr.mxu0 0.0
        %478 = vmatpush1.msra.mxu0 0.0
        %479 = vmatprep.subr.mxu0 0.0
        %480 = vmatpush1.msra.mxu0 0.0
        %481 = vmatprep.subr.mxu0 0.0
        %482 = vmatpush1.msra.mxu0 0.0
        %483 = vmatprep.subr.mxu0 0.0
        %484 = vmatpush1.msra.mxu0 0.0
        %485 = vmatprep.subr.mxu0 0.0
        %486 = vmatpush1.msra.mxu0 0.0
        %487 = vmatprep.subr.mxu0 0.0
        %488 = vmatpush1.msra.mxu0 0.0
        %489 = vmatprep.subr.mxu0 0.0
        %490 = vmatpush1.msra.mxu0 0.0
        %491 = vmatprep.subr.mxu0 0.0
        %492 = vmatpush1.msra.mxu0 0.0
        %493 = vmatprep.subr.mxu0 0.0
        %494 = vmatpush1.msra.mxu0 0.0
        %495 = vmatprep.subr.mxu0 0.0
        %496 = vmatpush1.msra.mxu0 0.0
        %497 = vmatprep.subr.mxu0 0.0
        %498 = vmatpush1.msra.mxu0 0.0
        %499 = vmatprep.subr.mxu0 0.0
        %500 = vmatpush1.msra.mxu0 0.0
        %501 = vmatprep.subr.mxu0 0.0
        %502 = vmatpush1.msra.mxu0 0.0
        %503 = vmatprep.subr.mxu0 0.0
        %504 = vmatpush1.msra.mxu0 0.0
        %505 = vmatprep.subr.mxu0 0.0
        %506 = vmatpush1.msra.mxu0 0.0
        %507 = vmatprep.subr.mxu0 0.0
        %508 = vmatpush1.msra.mxu0 0.0
        %509 = vmatprep.mubr.f32.mxu0 0.0
        %510 = vmatmul.mubr.f32.gmra.mrb[0].mxu0 %v443
        %v511 = vpop.f32.mrb[0].mxu0
        %v512 = vadd.f32 %v424, %v511
        %v513 = vpop.f32.mrb[0].mxu0
        %v514 = vadd.f32 %v428, %v513
        %515 = vdwg.mxu0
        %516 = vmatprep.subr.mxu0 %v406
        %517 = vmatpush1.msra.mxu0 %v405
        %518 = vmatprep.subr.mxu0 %v410
        %519 = vmatpush1.msra.mxu0 %v409
        %520 = vmatprep.subr.mxu0 %v414
        %521 = vmatpush1.msra.mxu0 %v413
        %522 = vmatprep.subr.mxu0 %v418
        %523 = vmatpush1.msra.mxu0 %v417
        %524 = vmatprep.subr.mxu0 0.0
        %525 = vmatpush1.msra.mxu0 0.0
        %526 = vmatprep.subr.mxu0 0.0
        %527 = vmatpush1.msra.mxu0 0.0
        %528 = vmatprep.subr.mxu0 0.0
        %529 = vmatpush1.msra.mxu0 0.0
        %530 = vmatprep.subr.mxu0 0.0
        %531 = vmatpush1.msra.mxu0 0.0
        %532 = vmatprep.subr.mxu0 0.0
        %533 = vmatpush1.msra.mxu0 0.0
        %534 = vmatprep.subr.mxu0 0.0
        %535 = vmatpush1.msra.mxu0 0.0
        %536 = vmatprep.subr.mxu0 0.0
        %537 = vmatpush1.msra.mxu0 0.0
        %538 = vmatprep.subr.mxu0 0.0
        %539 = vmatpush1.msra.mxu0 0.0
        %540 = vmatprep.subr.mxu0 0.0
        %541 = vmatpush1.msra.mxu0 0.0
        %542 = vmatprep.subr.mxu0 0.0
        %543 = vmatpush1.msra.mxu0 0.0
        %544 = vmatprep.subr.mxu0 0.0
        %545 = vmatpush1.msra.mxu0 0.0
        %546 = vmatprep.subr.mxu0 0.0
        %547 = vmatpush1.msra.mxu0 0.0
        %548 = vmatprep.subr.mxu0 0.0
        %549 = vmatpush1.msra.mxu0 0.0
        %550 = vmatprep.subr.mxu0 0.0
        %551 = vmatpush1.msra.mxu0 0.0
        %552 = vmatprep.subr.mxu0 0.0
        %553 = vmatpush1.msra.mxu0 0.0
        %554 = vmatprep.subr.mxu0 0.0
        %555 = vmatpush1.msra.mxu0 0.0
        %556 = vmatprep.subr.mxu0 0.0
        %557 = vmatpush1.msra.mxu0 0.0
        %558 = vmatprep.subr.mxu0 0.0
        %559 = vmatpush1.msra.mxu0 0.0
        %560 = vmatprep.subr.mxu0 0.0
        %561 = vmatpush1.msra.mxu0 0.0
        %562 = vmatprep.subr.mxu0 0.0
        %563 = vmatpush1.msra.mxu0 0.0
        %564 = vmatprep.subr.mxu0 0.0
        %565 = vmatpush1.msra.mxu0 0.0
        %566 = vmatprep.subr.mxu0 0.0
        %567 = vmatpush1.msra.mxu0 0.0
        %568 = vmatprep.subr.mxu0 0.0
        %569 = vmatpush1.msra.mxu0 0.0
        %570 = vmatprep.subr.mxu0 0.0
        %571 = vmatpush1.msra.mxu0 0.0
        %572 = vmatprep.subr.mxu0 0.0
        %573 = vmatpush1.msra.mxu0 0.0
        %574 = vmatprep.subr.mxu0 0.0
        %575 = vmatpush1.msra.mxu0 0.0
        %576 = vmatprep.subr.mxu0 0.0
        %577 = vmatpush1.msra.mxu0 0.0
        %578 = vmatprep.subr.mxu0 0.0
        %579 = vmatpush1.msra.mxu0 0.0
        %580 = vmatprep.mubr.f32.mxu0 0.0
        %581 = vmatmul.mubr.f32.gmra.mrb[0].mxu0 %v443
        %v582 = vpop.f32.mrb[0].mxu0
        %v583 = vadd.f32 %v432, %v582
        %v584 = vpop.f32.mrb[0].mxu0
        %v585 = vadd.f32 %v436, %v584
        %586 = vdwg.mxu0
        %v587 = vmax.f32 %v512, 0.0
        %v588 = vmax.f32 %v514, 0.0
        %v589 = vmax.f32 %v583, 0.0
        %v590 = vmax.f32 %v585, 0.0
        %v591 = vpack.c.bf16 %v587, %v587
        %v592 = vpack.c.bf16 %v588, %v588
        %v593 = vpack.c.bf16 %v589, %v589
        %v594 = vpack.c.bf16 %v590, %v590
        %v595 = vld [vmem:[#allocation8] sm:$0xff]
        %v596 = vld [vmem:[#allocation8 + $0x8] sm:$0xff]
        %v597 = vld [vmem:[#allocation8 + $0x10] sm:$0xff]
        %v598 = vld [vmem:[#allocation8 + $0x18] sm:$0xff]
        %v599 = vld [vmem:[#allocation8 + $0x20] sm:$0xf]
        %v600 = vld [vmem:[#allocation8 + $0x24] sm:$0xff]
        %v601 = vld [vmem:[#allocation8 + $0x2c] sm:$0xff]
        %v602 = vld [vmem:[#allocation8 + $0x34] sm:$0xff]
        %v603 = vld [vmem:[#allocation8 + $0x3c] sm:$0xff]
        %v604 = vld [vmem:[#allocation8 + $0x44] sm:$0xf]
        %v605 = vld [vmem:[#allocation8 + $0x48] sm:$0xff]
        %v606 = vld [vmem:[#allocation8 + $0x50] sm:$0xff]
        %v607 = vld [vmem:[#allocation8 + $0x58] sm:$0xff]
        %v608 = vld [vmem:[#allocation8 + $0x60] sm:$0xff]
        %v609 = vld [vmem:[#allocation8 + $0x68] sm:$0xf]
        %v610 = vld [vmem:[#allocation8 + $0x6c] sm:$0xff]
        %v611 = vld [vmem:[#allocation8 + $0x74] sm:$0xff]
        %v612 = vld [vmem:[#allocation8 + $0x7c] sm:$0xff]
        %v613 = vld [vmem:[#allocation8 + $0x84] sm:$0xff]
        %v614 = vld [vmem:[#allocation8 + $0x8c] sm:$0xf]
        %v615 = vld [vmem:[#allocation8 + $0x90] sm:$0xff]
        %v616 = vld [vmem:[#allocation8 + $0x98] sm:$0xff]
        %v617 = vld [vmem:[#allocation8 + $0xa0] sm:$0xff]
        %v618 = vld [vmem:[#allocation8 + $0xa8] sm:$0xff]
        %v619 = vld [vmem:[#allocation8 + $0xb0] sm:$0xf]
        %v620 = vld [vmem:[#allocation8 + $0xb4] sm:$0xff]
        %v621 = vld [vmem:[#allocation8 + $0xbc] sm:$0xff]
        %v622 = vld [vmem:[#allocation8 + $0xc4] sm:$0xff]
        %v623 = vld [vmem:[#allocation8 + $0xcc] sm:$0xff]
        %v624 = vld [vmem:[#allocation8 + $0xd4] sm:$0xf]
        %v625 = vld [vmem:[#allocation8 + $0xd8] sm:$0xff]
        %v626 = vld [vmem:[#allocation8 + $0xe0] sm:$0xff]
        %v627 = vld [vmem:[#allocation8 + $0xe8] sm:$0xff]
        %v628 = vld [vmem:[#allocation8 + $0xf0] sm:$0xff]
        %v629 = vld [vmem:[#allocation8 + $0xf8] sm:$0xf]
        %v630 = vld [vmem:[#allocation8 + $0xfc] sm:$0xff]
        %v631 = vld [vmem:[#allocation8 + $0x104] sm:$0xff]
        %v632 = vld [vmem:[#allocation8 + $0x10c] sm:$0xff]
        %v633 = vld [vmem:[#allocation8 + $0x114] sm:$0xff]
        %v634 = vld [vmem:[#allocation8 + $0x11c] sm:$0xf]
        %v635 = vld [vmem:[#allocation8 + $0x120] sm:$0xff]
        %v636 = vld [vmem:[#allocation8 + $0x128] sm:$0xff]
        %v637 = vld [vmem:[#allocation8 + $0x130] sm:$0xff]
        %v638 = vld [vmem:[#allocation8 + $0x138] sm:$0xff]
        %v639 = vld [vmem:[#allocation8 + $0x140] sm:$0xf]
        %v640 = vld [vmem:[#allocation8 + $0x144] sm:$0xff]
        %v641 = vld [vmem:[#allocation8 + $0x14c] sm:$0xff]
        %v642 = vld [vmem:[#allocation8 + $0x154] sm:$0xff]
        %v643 = vld [vmem:[#allocation8 + $0x15c] sm:$0xff]
        %v644 = vld [vmem:[#allocation8 + $0x164] sm:$0xf]
        %v645 = vld [vmem:[#allocation8 + $0x168] sm:$0xff]
        %v646 = vld [vmem:[#allocation8 + $0x170] sm:$0xff]
        %v647 = vld [vmem:[#allocation8 + $0x178] sm:$0xff]
        %v648 = vld [vmem:[#allocation8 + $0x180] sm:$0xff]
        %v649 = vld [vmem:[#allocation8 + $0x188] sm:$0xf]
        %v650 = vld [vmem:[#allocation8 + $0x18c] sm:$0xff]
        %v651 = vld [vmem:[#allocation8 + $0x194] sm:$0xff]
        %v652 = vld [vmem:[#allocation8 + $0x19c] sm:$0xff]
        %v653 = vld [vmem:[#allocation8 + $0x1a4] sm:$0xff]
        %v654 = vld [vmem:[#allocation8 + $0x1ac] sm:$0xf]
        %v655 = vld [vmem:[#allocation8 + $0x1b0] sm:$0xff]
        %v656 = vld [vmem:[#allocation8 + $0x1b8] sm:$0xff]
        %v657 = vld [vmem:[#allocation8 + $0x1c0] sm:$0xff]
        %v658 = vld [vmem:[#allocation8 + $0x1c8] sm:$0xff]
        %v659 = vld [vmem:[#allocation8 + $0x1d0] sm:$0xf]
        %v660 = vld [vmem:[#allocation8 + $0x1d4] sm:$0xff]
        %v661 = vld [vmem:[#allocation8 + $0x1dc] sm:$0xff]
        %v662 = vld [vmem:[#allocation8 + $0x1e4] sm:$0xff]
        %v663 = vld [vmem:[#allocation8 + $0x1ec] sm:$0xff]
        %v664 = vld [vmem:[#allocation8 + $0x1f4] sm:$0xf]
        %v665 = vld [vmem:[#allocation8 + $0x1f8] sm:$0xff]
        %v666 = vld [vmem:[#allocation8 + $0x200] sm:$0xff]
        %v667 = vld [vmem:[#allocation8 + $0x208] sm:$0xff]
        %v668 = vld [vmem:[#allocation8 + $0x210] sm:$0xff]
        %v669 = vld [vmem:[#allocation8 + $0x218] sm:$0xf]
        %v670 = vld [vmem:[#allocation8 + $0x21c] sm:$0xff]
        %v671 = vld [vmem:[#allocation8 + $0x224] sm:$0xff]
        %v672 = vld [vmem:[#allocation8 + $0x22c] sm:$0xff]
        %v673 = vld [vmem:[#allocation8 + $0x234] sm:$0xff]
        %v674 = vld [vmem:[#allocation8 + $0x23c] sm:$0xf]
        %v675 = vld [vmem:[#allocation8 + $0x240] sm:$0xff]
        %v676 = vld [vmem:[#allocation8 + $0x248] sm:$0xff]
        %v677 = vld [vmem:[#allocation8 + $0x250] sm:$0xff]
        %v678 = vld [vmem:[#allocation8 + $0x258] sm:$0xff]
        %v679 = vld [vmem:[#allocation8 + $0x260] sm:$0xf]
        %v680 = vld [vmem:[#allocation8 + $0x264] sm:$0xff]
        %v681 = vld [vmem:[#allocation8 + $0x26c] sm:$0xff]
        %v682 = vld [vmem:[#allocation8 + $0x274] sm:$0xff]
        %v683 = vld [vmem:[#allocation8 + $0x27c] sm:$0xff]
        %v684 = vld [vmem:[#allocation8 + $0x284] sm:$0xf]
        %v685 = vld [vmem:[#allocation8 + $0x288] sm:$0xff]
        %v686 = vld [vmem:[#allocation8 + $0x290] sm:$0xff]
        %v687 = vld [vmem:[#allocation8 + $0x298] sm:$0xff]
        %v688 = vld [vmem:[#allocation8 + $0x2a0] sm:$0xff]
        %v689 = vld [vmem:[#allocation8 + $0x2a8] sm:$0xf]
        %v690 = vld [vmem:[#allocation8 + $0x2ac] sm:$0xff]
        %v691 = vld [vmem:[#allocation8 + $0x2b4] sm:$0xff]
        %v692 = vld [vmem:[#allocation8 + $0x2bc] sm:$0xff]
        %v693 = vld [vmem:[#allocation8 + $0x2c4] sm:$0xff]
        %v694 = vld [vmem:[#allocation8 + $0x2cc] sm:$0xf]
        %v695 = vld [vmem:[#allocation8 + $0x2d0] sm:$0xff]
        %v696 = vld [vmem:[#allocation8 + $0x2d8] sm:$0xff]
        %v697 = vld [vmem:[#allocation8 + $0x2e0] sm:$0xff]
        %v698 = vld [vmem:[#allocation8 + $0x2e8] sm:$0xff]
        %v699 = vld [vmem:[#allocation8 + $0x2f0] sm:$0xf]
        %v700 = vld [vmem:[#allocation8 + $0x2f4] sm:$0xff]
        %v701 = vld [vmem:[#allocation8 + $0x2fc] sm:$0xff]
        %v702 = vld [vmem:[#allocation8 + $0x304] sm:$0xff]
        %v703 = vld [vmem:[#allocation8 + $0x30c] sm:$0xff]
        %v704 = vld [vmem:[#allocation8 + $0x314] sm:$0xf]
        %v705 = vld [vmem:[#allocation8 + $0x318] sm:$0xff]
        %v706 = vld [vmem:[#allocation8 + $0x320] sm:$0xff]
        %v707 = vld [vmem:[#allocation8 + $0x328] sm:$0xff]
        %v708 = vld [vmem:[#allocation8 + $0x330] sm:$0xff]
        %v709 = vld [vmem:[#allocation8 + $0x338] sm:$0xf]
        %v710 = vld [vmem:[#allocation8 + $0x33c] sm:$0xff]
        %v711 = vld [vmem:[#allocation8 + $0x344] sm:$0xff]
        %v712 = vld [vmem:[#allocation8 + $0x34c] sm:$0xff]
        %v713 = vld [vmem:[#allocation8 + $0x354] sm:$0xff]
        %v714 = vld [vmem:[#allocation8 + $0x35c] sm:$0xf]
        %v715 = vld [vmem:[#allocation8 + $0x360] sm:$0xff]
        %v716 = vld [vmem:[#allocation8 + $0x368] sm:$0xff]
        %v717 = vld [vmem:[#allocation8 + $0x370] sm:$0xff]
        %v718 = vld [vmem:[#allocation8 + $0x378] sm:$0xff]
        %v719 = vld [vmem:[#allocation8 + $0x380] sm:$0xf]
        %v720 = vld [vmem:[#allocation8 + $0x384] sm:$0xff]
        %v721 = vld [vmem:[#allocation8 + $0x38c] sm:$0xff]
        %v722 = vld [vmem:[#allocation8 + $0x394] sm:$0xff]
        %v723 = vld [vmem:[#allocation8 + $0x39c] sm:$0xff]
        %v724 = vld [vmem:[#allocation8 + $0x3a4] sm:$0xf]
        %v725 = vld [vmem:[#allocation8 + $0x3a8] sm:$0xff]
        %v726 = vld [vmem:[#allocation8 + $0x3b0] sm:$0xff]
        %v727 = vld [vmem:[#allocation8 + $0x3b8] sm:$0xff]
        %v728 = vld [vmem:[#allocation8 + $0x3c0] sm:$0xff]
        %v729 = vld [vmem:[#allocation8 + $0x3c8] sm:$0xf]
        %v730 = vld [vmem:[#allocation8 + $0x3cc] sm:$0xff]
        %v731 = vld [vmem:[#allocation8 + $0x3d4] sm:$0xff]
        %v732 = vld [vmem:[#allocation8 + $0x3dc] sm:$0xff]
        %v733 = vld [vmem:[#allocation8 + $0x3e4] sm:$0xff]
        %v734 = vld [vmem:[#allocation8 + $0x3ec] sm:$0xf]
        %v735 = vld [vmem:[#allocation8 + $0x3f0] sm:$0xff]
        %v736 = vld [vmem:[#allocation8 + $0x3f8] sm:$0xff]
        %v737 = vld [vmem:[#allocation8 + $0x400] sm:$0xff]
        %v738 = vld [vmem:[#allocation8 + $0x408] sm:$0xff]
        %v739 = vld [vmem:[#allocation8 + $0x410] sm:$0xf]
        %v740 = vld [vmem:[#allocation8 + $0x414] sm:$0xff]
        %v741 = vld [vmem:[#allocation8 + $0x41c] sm:$0xff]
        %v742 = vld [vmem:[#allocation8 + $0x424] sm:$0xff]
        %v743 = vld [vmem:[#allocation8 + $0x42c] sm:$0xff]
        %v744 = vld [vmem:[#allocation8 + $0x434] sm:$0xf]
        %v745 = vld [vmem:[#allocation8 + $0x438] sm:$0xff]
        %v746 = vld [vmem:[#allocation8 + $0x440] sm:$0xff]
        %v747 = vld [vmem:[#allocation8 + $0x448] sm:$0xff]
        %v748 = vld [vmem:[#allocation8 + $0x450] sm:$0xff]
        %v749 = vld [vmem:[#allocation8 + $0x458] sm:$0xf]
        %v750 = vld [vmem:[#allocation8 + $0x45c] sm:$0xff]
        %v751 = vld [vmem:[#allocation8 + $0x464] sm:$0xff]
        %v752 = vld [vmem:[#allocation8 + $0x46c] sm:$0xff]
        %v753 = vld [vmem:[#allocation8 + $0x474] sm:$0xff]
        %v754 = vld [vmem:[#allocation8 + $0x47c] sm:$0xf]
        %v755 = vld [vmem:[#allocation8 + $0x480] sm:$0xff]
        %v756 = vld [vmem:[#allocation8 + $0x488] sm:$0xff]
        %v757 = vld [vmem:[#allocation8 + $0x490] sm:$0xff]
        %v758 = vld [vmem:[#allocation8 + $0x498] sm:$0xff]
        %v759 = vld [vmem:[#allocation8 + $0x4a0] sm:$0xf]
        %v760 = vld [vmem:[#allocation8 + $0x4a4] sm:$0xff]
        %v761 = vld [vmem:[#allocation8 + $0x4ac] sm:$0xff]
        %v762 = vld [vmem:[#allocation8 + $0x4b4] sm:$0xff]
        %v763 = vld [vmem:[#allocation8 + $0x4bc] sm:$0xff]
        %v764 = vld [vmem:[#allocation8 + $0x4c4] sm:$0xf]
        %v765 = vld [vmem:[#allocation8 + $0x4c8] sm:$0xff]
        %v766 = vld [vmem:[#allocation8 + $0x4d0] sm:$0xff]
        %v767 = vld [vmem:[#allocation8 + $0x4d8] sm:$0xff]
        %v768 = vld [vmem:[#allocation8 + $0x4e0] sm:$0xff]
        %v769 = vld [vmem:[#allocation8 + $0x4e8] sm:$0xf]
        %v770 = vld [vmem:[#allocation8 + $0x4ec] sm:$0xff]
        %v771 = vld [vmem:[#allocation8 + $0x4f4] sm:$0xff]
        %v772 = vld [vmem:[#allocation8 + $0x4fc] sm:$0xff]
        %v773 = vld [vmem:[#allocation8 + $0x504] sm:$0xff]
        %v774 = vld [vmem:[#allocation8 + $0x50c] sm:$0xf]
        %v775 = vld [vmem:[#allocation8 + $0x510] sm:$0xff]
        %v776 = vld [vmem:[#allocation8 + $0x518] sm:$0xff]
        %v777 = vld [vmem:[#allocation8 + $0x520] sm:$0xff]
        %v778 = vld [vmem:[#allocation8 + $0x528] sm:$0xff]
        %v779 = vld [vmem:[#allocation8 + $0x530] sm:$0xf]
        %v780 = vld [vmem:[#allocation8 + $0x534] sm:$0xff]
        %v781 = vld [vmem:[#allocation8 + $0x53c] sm:$0xff]
        %v782 = vld [vmem:[#allocation8 + $0x544] sm:$0xff]
        %v783 = vld [vmem:[#allocation8 + $0x54c] sm:$0xff]
        %v784 = vld [vmem:[#allocation8 + $0x554] sm:$0xf]
        %v785 = vld [vmem:[#allocation8 + $0x558] sm:$0xff]
        %v786 = vld [vmem:[#allocation8 + $0x560] sm:$0xff]
        %v787 = vld [vmem:[#allocation8 + $0x568] sm:$0xff]
        %v788 = vld [vmem:[#allocation8 + $0x570] sm:$0xff]
        %v789 = vld [vmem:[#allocation8 + $0x578] sm:$0xf]
        %v790 = vld [vmem:[#allocation8 + $0x57c] sm:$0xff]
        %v791 = vld [vmem:[#allocation8 + $0x584] sm:$0xff]
        %v792 = vld [vmem:[#allocation8 + $0x58c] sm:$0xff]
        %v793 = vld [vmem:[#allocation8 + $0x594] sm:$0xff]
        %v794 = vld [vmem:[#allocation8 + $0x59c] sm:$0xf]
        %v795 = vld [vmem:[#allocation8 + $0x5a0] sm:$0xff]
        %v796 = vld [vmem:[#allocation8 + $0x5a8] sm:$0xff]
        %v797 = vld [vmem:[#allocation8 + $0x5b0] sm:$0xff]
        %v798 = vld [vmem:[#allocation8 + $0x5b8] sm:$0xff]
        %v799 = vld [vmem:[#allocation8 + $0x5c0] sm:$0xf]
        %v800 = vld [vmem:[#allocation8 + $0x5c4] sm:$0xff]
        %v801 = vld [vmem:[#allocation8 + $0x5cc] sm:$0xff]
        %v802 = vld [vmem:[#allocation8 + $0x5d4] sm:$0xff]
        %v803 = vld [vmem:[#allocation8 + $0x5dc] sm:$0xff]
        %v804 = vld [vmem:[#allocation8 + $0x5e4] sm:$0xf]
        %v805 = vld [vmem:[#allocation8 + $0x5e8] sm:$0xff]
        %v806 = vld [vmem:[#allocation8 + $0x5f0] sm:$0xff]
        %v807 = vld [vmem:[#allocation8 + $0x5f8] sm:$0xff]
        %v808 = vld [vmem:[#allocation8 + $0x600] sm:$0xff]
        %v809 = vld [vmem:[#allocation8 + $0x608] sm:$0xf]
        %v810 = vld [vmem:[#allocation8 + $0x60c] sm:$0xff]
        %v811 = vld [vmem:[#allocation8 + $0x614] sm:$0xff]
        %v812 = vld [vmem:[#allocation8 + $0x61c] sm:$0xff]
        %v813 = vld [vmem:[#allocation8 + $0x624] sm:$0xff]
        %v814 = vld [vmem:[#allocation8 + $0x62c] sm:$0xf]
        %v815 = vld [vmem:[#allocation8 + $0x630] sm:$0xff]
        %v816 = vld [vmem:[#allocation8 + $0x638] sm:$0xff]
        %v817 = vld [vmem:[#allocation8 + $0x640] sm:$0xff]
        %v818 = vld [vmem:[#allocation8 + $0x648] sm:$0xff]
        %v819 = vld [vmem:[#allocation8 + $0x650] sm:$0xf]
        %v820 = vld [vmem:[#allocation8 + $0x654] sm:$0xff]
        %v821 = vld [vmem:[#allocation8 + $0x65c] sm:$0xff]
        %v822 = vld [vmem:[#allocation8 + $0x664] sm:$0xff]
        %v823 = vld [vmem:[#allocation8 + $0x66c] sm:$0xff]
        %v824 = vld [vmem:[#allocation8 + $0x674] sm:$0xf]
        %v825 = vld [vmem:[#allocation8 + $0x678] sm:$0xff]
        %v826 = vld [vmem:[#allocation8 + $0x680] sm:$0xff]
        %v827 = vld [vmem:[#allocation8 + $0x688] sm:$0xff]
        %v828 = vld [vmem:[#allocation8 + $0x690] sm:$0xff]
        %v829 = vld [vmem:[#allocation8 + $0x698] sm:$0xf]
        %v830 = vld [vmem:[#allocation8 + $0x69c] sm:$0xff]
        %v831 = vld [vmem:[#allocation8 + $0x6a4] sm:$0xff]
        %v832 = vld [vmem:[#allocation8 + $0x6ac] sm:$0xff]
        %v833 = vld [vmem:[#allocation8 + $0x6b4] sm:$0xff]
        %v834 = vld [vmem:[#allocation8 + $0x6bc] sm:$0xf]
        %v835 = vld [vmem:[#allocation8 + $0x6c0] sm:$0xff]
        %v836 = vld [vmem:[#allocation8 + $0x6c8] sm:$0xff]
        %v837 = vld [vmem:[#allocation8 + $0x6d0] sm:$0xff]
        %v838 = vld [vmem:[#allocation8 + $0x6d8] sm:$0xff]
        %v839 = vld [vmem:[#allocation8 + $0x6e0] sm:$0xf]
        %v840 = vld [vmem:[#allocation8 + $0x6e4] sm:$0xff]
        %v841 = vld [vmem:[#allocation8 + $0x6ec] sm:$0xff]
        %v842 = vld [vmem:[#allocation8 + $0x6f4] sm:$0xff]
        %v843 = vld [vmem:[#allocation8 + $0x6fc] sm:$0xff]
        %v844 = vld [vmem:[#allocation8 + $0x704] sm:$0xf]
        %v845 = vld [vmem:[#allocation8 + $0x708] sm:$0xff]
        %v846 = vld [vmem:[#allocation8 + $0x710] sm:$0xff]
        %v847 = vld [vmem:[#allocation8 + $0x718] sm:$0xff]
        %v848 = vld [vmem:[#allocation8 + $0x720] sm:$0xff]
        %v849 = vld [vmem:[#allocation8 + $0x728] sm:$0xf]
        %v850 = vld [vmem:[#allocation8 + $0x72c] sm:$0xff]
        %v851 = vld [vmem:[#allocation8 + $0x734] sm:$0xff]
        %v852 = vld [vmem:[#allocation8 + $0x73c] sm:$0xff]
        %v853 = vld [vmem:[#allocation8 + $0x744] sm:$0xff]
        %v854 = vld [vmem:[#allocation8 + $0x74c] sm:$0xf]
        %v855 = vld [vmem:[#allocation8 + $0x750] sm:$0xff]
        %v856 = vld [vmem:[#allocation8 + $0x758] sm:$0xff]
        %v857 = vld [vmem:[#allocation8 + $0x760] sm:$0xff]
        %v858 = vld [vmem:[#allocation8 + $0x768] sm:$0xff]
        %v859 = vld [vmem:[#allocation8 + $0x770] sm:$0xf]
        %v860 = vld [vmem:[#allocation8 + $0x774] sm:$0xff]
        %v861 = vld [vmem:[#allocation8 + $0x77c] sm:$0xff]
        %v862 = vld [vmem:[#allocation8 + $0x784] sm:$0xff]
        %v863 = vld [vmem:[#allocation8 + $0x78c] sm:$0xff]
        %v864 = vld [vmem:[#allocation8 + $0x794] sm:$0xf]
        %v865 = vld [vmem:[#allocation8 + $0x798] sm:$0xff]
        %v866 = vld [vmem:[#allocation8 + $0x7a0] sm:$0xff]
        %v867 = vld [vmem:[#allocation8 + $0x7a8] sm:$0xff]
        %v868 = vld [vmem:[#allocation8 + $0x7b0] sm:$0xff]
        %v869 = vld [vmem:[#allocation8 + $0x7b8] sm:$0xf]
        %v870 = vld [vmem:[#allocation8 + $0x7bc] sm:$0xff]
        %v871 = vld [vmem:[#allocation8 + $0x7c4] sm:$0xff]
        %v872 = vld [vmem:[#allocation8 + $0x7cc] sm:$0xff]
        %v873 = vld [vmem:[#allocation8 + $0x7d4] sm:$0xff]
        %v874 = vld [vmem:[#allocation8 + $0x7dc] sm:$0xf]
        %v875 = vld [vmem:[#allocation8 + $0x7e0] sm:$0xff]
        %v876 = vld [vmem:[#allocation8 + $0x7e8] sm:$0xff]
        %v877 = vld [vmem:[#allocation8 + $0x7f0] sm:$0xff]
        %v878 = vld [vmem:[#allocation8 + $0x7f8] sm:$0xff]
        %v879 = vld [vmem:[#allocation8 + $0x800] sm:$0xf]
        %v880 = vld [vmem:[#allocation8 + $0x804] sm:$0xff]
        %v881 = vld [vmem:[#allocation8 + $0x80c] sm:$0xff]
        %v882 = vld [vmem:[#allocation8 + $0x814] sm:$0xff]
        %v883 = vld [vmem:[#allocation8 + $0x81c] sm:$0xff]
        %v884 = vld [vmem:[#allocation8 + $0x824] sm:$0xf]
        %v885 = vld [vmem:[#allocation8 + $0x828] sm:$0xff]
        %v886 = vld [vmem:[#allocation8 + $0x830] sm:$0xff]
        %v887 = vld [vmem:[#allocation8 + $0x838] sm:$0xff]
        %v888 = vld [vmem:[#allocation8 + $0x840] sm:$0xff]
        %v889 = vld [vmem:[#allocation8 + $0x848] sm:$0xf]
        %v890 = vld [vmem:[#allocation8 + $0x84c] sm:$0xff]
        %v891 = vld [vmem:[#allocation8 + $0x854] sm:$0xff]
        %v892 = vld [vmem:[#allocation8 + $0x85c] sm:$0xff]
        %v893 = vld [vmem:[#allocation8 + $0x864] sm:$0xff]
        %v894 = vld [vmem:[#allocation8 + $0x86c] sm:$0xf]
        %v895 = vld [vmem:[#allocation8 + $0x870] sm:$0xff]
        %v896 = vld [vmem:[#allocation8 + $0x878] sm:$0xff]
        %v897 = vld [vmem:[#allocation8 + $0x880] sm:$0xff]
        %v898 = vld [vmem:[#allocation8 + $0x888] sm:$0xff]
        %v899 = vld [vmem:[#allocation8 + $0x890] sm:$0xf]
        %v900 = vld [vmem:[#allocation8 + $0x894] sm:$0xff]
        %v901 = vld [vmem:[#allocation8 + $0x89c] sm:$0xff]
        %v902 = vld [vmem:[#allocation8 + $0x8a4] sm:$0xff]
        %v903 = vld [vmem:[#allocation8 + $0x8ac] sm:$0xff]
        %v904 = vld [vmem:[#allocation8 + $0x8b4] sm:$0xf]
        %v905 = vld [vmem:[#allocation8 + $0x8b8] sm:$0xff]
        %v906 = vld [vmem:[#allocation8 + $0x8c0] sm:$0xff]
        %v907 = vld [vmem:[#allocation8 + $0x8c8] sm:$0xff]
        %v908 = vld [vmem:[#allocation8 + $0x8d0] sm:$0xff]
        %v909 = vld [vmem:[#allocation8 + $0x8d8] sm:$0xf]
        %v910 = vld [vmem:[#allocation8 + $0x8dc] sm:$0xff]
        %v911 = vld [vmem:[#allocation8 + $0x8e4] sm:$0xff]
        %v912 = vld [vmem:[#allocation8 + $0x8ec] sm:$0xff]
        %v913 = vld [vmem:[#allocation8 + $0x8f4] sm:$0xff]
        %v914 = vld [vmem:[#allocation8 + $0x8fc] sm:$0xf]
        %v915 = vld [vmem:[#allocation10] sm:$0xff]
        %v916 = vld [vmem:[#allocation10 + $0x8] sm:$0x1]
        %v919 = vlaneseq
        %v920 = vshrl.u32 %v919, 7
        %v921 = vsub.s32 0, %v920
        %v922 = vrot.slane %v915, %v921
        %v923 = vlaneseq
        %v924 = vshrl.u32 %v923, 7
        %v925 = vsub.s32 1, %v924
        %v926 = vrot.slane %v915, %v925
        %v927 = vlaneseq
        %v928 = vshrl.u32 %v927, 7
        %v929 = vsub.s32 2, %v928
        %v930 = vrot.slane %v915, %v929
        %v931 = vlaneseq
        %v932 = vshrl.u32 %v931, 7
        %v933 = vsub.s32 3, %v932
        %v934 = vrot.slane %v915, %v933
        %v935 = vlaneseq
        %v936 = vshrl.u32 %v935, 7
        %v937 = vsub.s32 4, %v936
        %v938 = vrot.slane %v915, %v937
        %v939 = vlaneseq
        %v940 = vshrl.u32 %v939, 7
        %v941 = vsub.s32 5, %v940
        %v942 = vrot.slane %v915, %v941
        %v943 = vlaneseq
        %v944 = vshrl.u32 %v943, 7
        %v945 = vsub.s32 6, %v944
        %v946 = vrot.slane %v915, %v945
        %v947 = vlaneseq
        %v948 = vshrl.u32 %v947, 7
        %v949 = vsub.s32 7, %v948
        %v950 = vrot.slane %v915, %v949
        %v951 = vlaneseq
        %v952 = vshrl.u32 %v951, 7
        %v953 = vsub.s32 0, %v952
        %v954 = vrot.slane %v916, %v953
        %v1284 = vunpack.c.l.b16 %v595
        %v1285 = vunpack.c.h.b16 %v595
        %v1286 = vunpack.c.l.b16 %v596
        %v1287 = vunpack.c.h.b16 %v596
        %v1288 = vunpack.c.l.b16 %v597
        %v1289 = vunpack.c.h.b16 %v597
        %v1290 = vunpack.c.l.b16 %v598
        %v1291 = vunpack.c.h.b16 %v598
        %v1292 = vunpack.c.l.b16 %v599
        %v1293 = vunpack.c.l.b16 %v600
        %v1294 = vunpack.c.h.b16 %v600
        %v1295 = vunpack.c.l.b16 %v601
        %v1296 = vunpack.c.h.b16 %v601
        %v1297 = vunpack.c.l.b16 %v602
        %v1298 = vunpack.c.h.b16 %v602
        %v1299 = vunpack.c.l.b16 %v603
        %v1300 = vunpack.c.h.b16 %v603
        %v1301 = vunpack.c.l.b16 %v604
        %v1302 = vunpack.c.l.b16 %v605
        %v1303 = vunpack.c.h.b16 %v605
        %v1304 = vunpack.c.l.b16 %v606
        %v1305 = vunpack.c.h.b16 %v606
        %v1306 = vunpack.c.l.b16 %v607
        %v1307 = vunpack.c.h.b16 %v607
        %v1308 = vunpack.c.l.b16 %v608
        %v1309 = vunpack.c.h.b16 %v608
        %v1310 = vunpack.c.l.b16 %v609
        %v1311 = vunpack.c.l.b16 %v610
        %v1312 = vunpack.c.h.b16 %v610
        %v1313 = vunpack.c.l.b16 %v611
        %v1314 = vunpack.c.h.b16 %v611
        %v1315 = vunpack.c.l.b16 %v612
        %v1316 = vunpack.c.h.b16 %v612
        %v1317 = vunpack.c.l.b16 %v613
        %v1318 = vunpack.c.h.b16 %v613
        %v1319 = vunpack.c.l.b16 %v614
        %v1320 = vunpack.c.l.b16 %v615
        %v1321 = vunpack.c.h.b16 %v615
        %v1322 = vunpack.c.l.b16 %v616
        %v1323 = vunpack.c.h.b16 %v616
        %v1324 = vunpack.c.l.b16 %v617
        %v1325 = vunpack.c.h.b16 %v617
        %v1326 = vunpack.c.l.b16 %v618
        %v1327 = vunpack.c.h.b16 %v618
        %v1328 = vunpack.c.l.b16 %v619
        %v1329 = vunpack.c.l.b16 %v620
        %v1330 = vunpack.c.h.b16 %v620
        %v1331 = vunpack.c.l.b16 %v621
        %v1332 = vunpack.c.h.b16 %v621
        %v1333 = vunpack.c.l.b16 %v622
        %v1334 = vunpack.c.h.b16 %v622
        %v1335 = vunpack.c.l.b16 %v623
        %v1336 = vunpack.c.h.b16 %v623
        %v1337 = vunpack.c.l.b16 %v624
        %v1338 = vunpack.c.l.b16 %v625
        %v1339 = vunpack.c.h.b16 %v625
        %v1340 = vunpack.c.l.b16 %v626
        %v1341 = vunpack.c.h.b16 %v626
        %v1342 = vunpack.c.l.b16 %v627
        %v1343 = vunpack.c.h.b16 %v627
        %v1344 = vunpack.c.l.b16 %v628
        %v1345 = vunpack.c.h.b16 %v628
        %v1346 = vunpack.c.l.b16 %v629
        %v1347 = vunpack.c.l.b16 %v630
        %v1348 = vunpack.c.h.b16 %v630
        %v1349 = vunpack.c.l.b16 %v631
        %v1350 = vunpack.c.h.b16 %v631
        %v1351 = vunpack.c.l.b16 %v632
        %v1352 = vunpack.c.h.b16 %v632
        %v1353 = vunpack.c.l.b16 %v633
        %v1354 = vunpack.c.h.b16 %v633
        %v1355 = vunpack.c.l.b16 %v634
        %v1356 = vunpack.c.l.b16 %v635
        %v1357 = vunpack.c.h.b16 %v635
        %v1358 = vunpack.c.l.b16 %v636
        %v1359 = vunpack.c.h.b16 %v636
        %v1360 = vunpack.c.l.b16 %v637
        %v1361 = vunpack.c.h.b16 %v637
        %v1362 = vunpack.c.l.b16 %v638
        %v1363 = vunpack.c.h.b16 %v638
        %v1364 = vunpack.c.l.b16 %v639
        %v1365 = vunpack.c.l.b16 %v640
        %v1366 = vunpack.c.h.b16 %v640
        %v1367 = vunpack.c.l.b16 %v641
        %v1368 = vunpack.c.h.b16 %v641
        %v1369 = vunpack.c.l.b16 %v642
        %v1370 = vunpack.c.h.b16 %v642
        %v1371 = vunpack.c.l.b16 %v643
        %v1372 = vunpack.c.h.b16 %v643
        %v1373 = vunpack.c.l.b16 %v644
        %v1374 = vunpack.c.l.b16 %v645
        %v1375 = vunpack.c.h.b16 %v645
        %v1376 = vunpack.c.l.b16 %v646
        %v1377 = vunpack.c.h.b16 %v646
        %v1378 = vunpack.c.l.b16 %v647
        %v1379 = vunpack.c.h.b16 %v647
        %v1380 = vunpack.c.l.b16 %v648
        %v1381 = vunpack.c.h.b16 %v648
        %v1382 = vunpack.c.l.b16 %v649
        %v1383 = vunpack.c.l.b16 %v650
        %v1384 = vunpack.c.h.b16 %v650
        %v1385 = vunpack.c.l.b16 %v651
        %v1386 = vunpack.c.h.b16 %v651
        %v1387 = vunpack.c.l.b16 %v652
        %v1388 = vunpack.c.h.b16 %v652
        %v1389 = vunpack.c.l.b16 %v653
        %v1390 = vunpack.c.h.b16 %v653
        %v1391 = vunpack.c.l.b16 %v654
        %v1392 = vunpack.c.l.b16 %v655
        %v1393 = vunpack.c.h.b16 %v655
        %v1394 = vunpack.c.l.b16 %v656
        %v1395 = vunpack.c.h.b16 %v656
        %v1396 = vunpack.c.l.b16 %v657
        %v1397 = vunpack.c.h.b16 %v657
        %v1398 = vunpack.c.l.b16 %v658
        %v1399 = vunpack.c.h.b16 %v658
        %v1400 = vunpack.c.l.b16 %v659
        %v1401 = vunpack.c.l.b16 %v660
        %v1402 = vunpack.c.h.b16 %v660
        %v1403 = vunpack.c.l.b16 %v661
        %v1404 = vunpack.c.h.b16 %v661
        %v1405 = vunpack.c.l.b16 %v662
        %v1406 = vunpack.c.h.b16 %v662
        %v1407 = vunpack.c.l.b16 %v663
        %v1408 = vunpack.c.h.b16 %v663
        %v1409 = vunpack.c.l.b16 %v664
        %v1410 = vunpack.c.l.b16 %v665
        %v1411 = vunpack.c.h.b16 %v665
        %v1412 = vunpack.c.l.b16 %v666
        %v1413 = vunpack.c.h.b16 %v666
        %v1414 = vunpack.c.l.b16 %v667
        %v1415 = vunpack.c.h.b16 %v667
        %v1416 = vunpack.c.l.b16 %v668
        %v1417 = vunpack.c.h.b16 %v668
        %v1418 = vunpack.c.l.b16 %v669
        %v1419 = vunpack.c.l.b16 %v670
        %v1420 = vunpack.c.h.b16 %v670
        %v1421 = vunpack.c.l.b16 %v671
        %v1422 = vunpack.c.h.b16 %v671
        %v1423 = vunpack.c.l.b16 %v672
        %v1424 = vunpack.c.h.b16 %v672
        %v1425 = vunpack.c.l.b16 %v673
        %v1426 = vunpack.c.h.b16 %v673
        %v1427 = vunpack.c.l.b16 %v674
        %v1428 = vunpack.c.l.b16 %v675
        %v1429 = vunpack.c.h.b16 %v675
        %v1430 = vunpack.c.l.b16 %v676
        %v1431 = vunpack.c.h.b16 %v676
        %v1432 = vunpack.c.l.b16 %v677
        %v1433 = vunpack.c.h.b16 %v677
        %v1434 = vunpack.c.l.b16 %v678
        %v1435 = vunpack.c.h.b16 %v678
        %v1436 = vunpack.c.l.b16 %v679
        %v1437 = vunpack.c.l.b16 %v680
        %v1438 = vunpack.c.h.b16 %v680
        %v1439 = vunpack.c.l.b16 %v681
        %v1440 = vunpack.c.h.b16 %v681
        %v1441 = vunpack.c.l.b16 %v682
        %v1442 = vunpack.c.h.b16 %v682
        %v1443 = vunpack.c.l.b16 %v683
        %v1444 = vunpack.c.h.b16 %v683
        %v1445 = vunpack.c.l.b16 %v684
        %v1446 = vunpack.c.l.b16 %v685
        %v1447 = vunpack.c.h.b16 %v685
        %v1448 = vunpack.c.l.b16 %v686
        %v1449 = vunpack.c.h.b16 %v686
        %v1450 = vunpack.c.l.b16 %v687
        %v1451 = vunpack.c.h.b16 %v687
        %v1452 = vunpack.c.l.b16 %v688
        %v1453 = vunpack.c.h.b16 %v688
        %v1454 = vunpack.c.l.b16 %v689
        %v1455 = vunpack.c.l.b16 %v690
        %v1456 = vunpack.c.h.b16 %v690
        %v1457 = vunpack.c.l.b16 %v691
        %v1458 = vunpack.c.h.b16 %v691
        %v1459 = vunpack.c.l.b16 %v692
        %v1460 = vunpack.c.h.b16 %v692
        %v1461 = vunpack.c.l.b16 %v693
        %v1462 = vunpack.c.h.b16 %v693
        %v1463 = vunpack.c.l.b16 %v694
        %v1464 = vunpack.c.l.b16 %v695
        %v1465 = vunpack.c.h.b16 %v695
        %v1466 = vunpack.c.l.b16 %v696
        %v1467 = vunpack.c.h.b16 %v696
        %v1468 = vunpack.c.l.b16 %v697
        %v1469 = vunpack.c.h.b16 %v697
        %v1470 = vunpack.c.l.b16 %v698
        %v1471 = vunpack.c.h.b16 %v698
        %v1472 = vunpack.c.l.b16 %v699
        %v1473 = vunpack.c.l.b16 %v700
        %v1474 = vunpack.c.h.b16 %v700
        %v1475 = vunpack.c.l.b16 %v701
        %v1476 = vunpack.c.h.b16 %v701
        %v1477 = vunpack.c.l.b16 %v702
        %v1478 = vunpack.c.h.b16 %v702
        %v1479 = vunpack.c.l.b16 %v703
        %v1480 = vunpack.c.h.b16 %v703
        %v1481 = vunpack.c.l.b16 %v704
        %v1482 = vunpack.c.l.b16 %v705
        %v1483 = vunpack.c.h.b16 %v705
        %v1484 = vunpack.c.l.b16 %v706
        %v1485 = vunpack.c.h.b16 %v706
        %v1486 = vunpack.c.l.b16 %v707
        %v1487 = vunpack.c.h.b16 %v707
        %v1488 = vunpack.c.l.b16 %v708
        %v1489 = vunpack.c.h.b16 %v708
        %v1490 = vunpack.c.l.b16 %v709
        %v1491 = vunpack.c.l.b16 %v710
        %v1492 = vunpack.c.h.b16 %v710
        %v1493 = vunpack.c.l.b16 %v711
        %v1494 = vunpack.c.h.b16 %v711
        %v1495 = vunpack.c.l.b16 %v712
        %v1496 = vunpack.c.h.b16 %v712
        %v1497 = vunpack.c.l.b16 %v713
        %v1498 = vunpack.c.h.b16 %v713
        %v1499 = vunpack.c.l.b16 %v714
        %v1500 = vunpack.c.l.b16 %v715
        %v1501 = vunpack.c.h.b16 %v715
        %v1502 = vunpack.c.l.b16 %v716
        %v1503 = vunpack.c.h.b16 %v716
        %v1504 = vunpack.c.l.b16 %v717
        %v1505 = vunpack.c.h.b16 %v717
        %v1506 = vunpack.c.l.b16 %v718
        %v1507 = vunpack.c.h.b16 %v718
        %v1508 = vunpack.c.l.b16 %v719
        %v1509 = vunpack.c.l.b16 %v720
        %v1510 = vunpack.c.h.b16 %v720
        %v1511 = vunpack.c.l.b16 %v721
        %v1512 = vunpack.c.h.b16 %v721
        %v1513 = vunpack.c.l.b16 %v722
        %v1514 = vunpack.c.h.b16 %v722
        %v1515 = vunpack.c.l.b16 %v723
        %v1516 = vunpack.c.h.b16 %v723
        %v1517 = vunpack.c.l.b16 %v724
        %v1518 = vunpack.c.l.b16 %v725
        %v1519 = vunpack.c.h.b16 %v725
        %v1520 = vunpack.c.l.b16 %v726
        %v1521 = vunpack.c.h.b16 %v726
        %v1522 = vunpack.c.l.b16 %v727
        %v1523 = vunpack.c.h.b16 %v727
        %v1524 = vunpack.c.l.b16 %v728
        %v1525 = vunpack.c.h.b16 %v728
        %v1526 = vunpack.c.l.b16 %v729
        %v1527 = vunpack.c.l.b16 %v730
        %v1528 = vunpack.c.h.b16 %v730
        %v1529 = vunpack.c.l.b16 %v731
        %v1530 = vunpack.c.h.b16 %v731
        %v1531 = vunpack.c.l.b16 %v732
        %v1532 = vunpack.c.h.b16 %v732
        %v1533 = vunpack.c.l.b16 %v733
        %v1534 = vunpack.c.h.b16 %v733
        %v1535 = vunpack.c.l.b16 %v734
        %v1536 = vunpack.c.l.b16 %v735
        %v1537 = vunpack.c.h.b16 %v735
        %v1538 = vunpack.c.l.b16 %v736
        %v1539 = vunpack.c.h.b16 %v736
        %v1540 = vunpack.c.l.b16 %v737
        %v1541 = vunpack.c.h.b16 %v737
        %v1542 = vunpack.c.l.b16 %v738
        %v1543 = vunpack.c.h.b16 %v738
        %v1544 = vunpack.c.l.b16 %v739
        %v1545 = vunpack.c.l.b16 %v740
        %v1546 = vunpack.c.h.b16 %v740
        %v1547 = vunpack.c.l.b16 %v741
        %v1548 = vunpack.c.h.b16 %v741
        %v1549 = vunpack.c.l.b16 %v742
        %v1550 = vunpack.c.h.b16 %v742
        %v1551 = vunpack.c.l.b16 %v743
        %v1552 = vunpack.c.h.b16 %v743
        %v1553 = vunpack.c.l.b16 %v744
        %v1554 = vunpack.c.l.b16 %v745
        %v1555 = vunpack.c.h.b16 %v745
        %v1556 = vunpack.c.l.b16 %v746
        %v1557 = vunpack.c.h.b16 %v746
        %v1558 = vunpack.c.l.b16 %v747
        %v1559 = vunpack.c.h.b16 %v747
        %v1560 = vunpack.c.l.b16 %v748
        %v1561 = vunpack.c.h.b16 %v748
        %v1562 = vunpack.c.l.b16 %v749
        %v1563 = vunpack.c.l.b16 %v750
        %v1564 = vunpack.c.h.b16 %v750
        %v1565 = vunpack.c.l.b16 %v751
        %v1566 = vunpack.c.h.b16 %v751
        %v1567 = vunpack.c.l.b16 %v752
        %v1568 = vunpack.c.h.b16 %v752
        %v1569 = vunpack.c.l.b16 %v753
        %v1570 = vunpack.c.h.b16 %v753
        %v1571 = vunpack.c.l.b16 %v754
        %v1572 = vunpack.c.l.b16 %v755
        %v1573 = vunpack.c.h.b16 %v755
        %v1574 = vunpack.c.l.b16 %v756
        %v1575 = vunpack.c.h.b16 %v756
        %v1576 = vunpack.c.l.b16 %v757
        %v1577 = vunpack.c.h.b16 %v757
        %v1578 = vunpack.c.l.b16 %v758
        %v1579 = vunpack.c.h.b16 %v758
        %v1580 = vunpack.c.l.b16 %v759
        %v1581 = vunpack.c.l.b16 %v760
        %v1582 = vunpack.c.h.b16 %v760
        %v1583 = vunpack.c.l.b16 %v761
        %v1584 = vunpack.c.h.b16 %v761
        %v1585 = vunpack.c.l.b16 %v762
        %v1586 = vunpack.c.h.b16 %v762
        %v1587 = vunpack.c.l.b16 %v763
        %v1588 = vunpack.c.h.b16 %v763
        %v1589 = vunpack.c.l.b16 %v764
        %v1590 = vunpack.c.l.b16 %v765
        %v1591 = vunpack.c.h.b16 %v765
        %v1592 = vunpack.c.l.b16 %v766
        %v1593 = vunpack.c.h.b16 %v766
        %v1594 = vunpack.c.l.b16 %v767
        %v1595 = vunpack.c.h.b16 %v767
        %v1596 = vunpack.c.l.b16 %v768
        %v1597 = vunpack.c.h.b16 %v768
        %v1598 = vunpack.c.l.b16 %v769
        %v1599 = vunpack.c.l.b16 %v770
        %v1600 = vunpack.c.h.b16 %v770
        %v1601 = vunpack.c.l.b16 %v771
        %v1602 = vunpack.c.h.b16 %v771
        %v1603 = vunpack.c.l.b16 %v772
        %v1604 = vunpack.c.h.b16 %v772
        %v1605 = vunpack.c.l.b16 %v773
        %v1606 = vunpack.c.h.b16 %v773
        %v1607 = vunpack.c.l.b16 %v774
        %v1608 = vunpack.c.l.b16 %v775
        %v1609 = vunpack.c.h.b16 %v775
        %v1610 = vunpack.c.l.b16 %v776
        %v1611 = vunpack.c.h.b16 %v776
        %v1612 = vunpack.c.l.b16 %v777
        %v1613 = vunpack.c.h.b16 %v777
        %v1614 = vunpack.c.l.b16 %v778
        %v1615 = vunpack.c.h.b16 %v778
        %v1616 = vunpack.c.l.b16 %v779
        %v1617 = vunpack.c.l.b16 %v780
        %v1618 = vunpack.c.h.b16 %v780
        %v1619 = vunpack.c.l.b16 %v781
        %v1620 = vunpack.c.h.b16 %v781
        %v1621 = vunpack.c.l.b16 %v782
        %v1622 = vunpack.c.h.b16 %v782
        %v1623 = vunpack.c.l.b16 %v783
        %v1624 = vunpack.c.h.b16 %v783
        %v1625 = vunpack.c.l.b16 %v784
        %v1626 = vunpack.c.l.b16 %v785
        %v1627 = vunpack.c.h.b16 %v785
        %v1628 = vunpack.c.l.b16 %v786
        %v1629 = vunpack.c.h.b16 %v786
        %v1630 = vunpack.c.l.b16 %v787
        %v1631 = vunpack.c.h.b16 %v787
        %v1632 = vunpack.c.l.b16 %v788
        %v1633 = vunpack.c.h.b16 %v788
        %v1634 = vunpack.c.l.b16 %v789
        %v1635 = vunpack.c.l.b16 %v790
        %v1636 = vunpack.c.h.b16 %v790
        %v1637 = vunpack.c.l.b16 %v791
        %v1638 = vunpack.c.h.b16 %v791
        %v1639 = vunpack.c.l.b16 %v792
        %v1640 = vunpack.c.h.b16 %v792
        %v1641 = vunpack.c.l.b16 %v793
        %v1642 = vunpack.c.h.b16 %v793
        %v1643 = vunpack.c.l.b16 %v794
        %v1644 = vunpack.c.l.b16 %v795
        %v1645 = vunpack.c.h.b16 %v795
        %v1646 = vunpack.c.l.b16 %v796
        %v1647 = vunpack.c.h.b16 %v796
        %v1648 = vunpack.c.l.b16 %v797
        %v1649 = vunpack.c.h.b16 %v797
        %v1650 = vunpack.c.l.b16 %v798
        %v1651 = vunpack.c.h.b16 %v798
        %v1652 = vunpack.c.l.b16 %v799
        %v1653 = vunpack.c.l.b16 %v800
        %v1654 = vunpack.c.h.b16 %v800
        %v1655 = vunpack.c.l.b16 %v801
        %v1656 = vunpack.c.h.b16 %v801
        %v1657 = vunpack.c.l.b16 %v802
        %v1658 = vunpack.c.h.b16 %v802
        %v1659 = vunpack.c.l.b16 %v803
        %v1660 = vunpack.c.h.b16 %v803
        %v1661 = vunpack.c.l.b16 %v804
        %v1662 = vunpack.c.l.b16 %v805
        %v1663 = vunpack.c.h.b16 %v805
        %v1664 = vunpack.c.l.b16 %v806
        %v1665 = vunpack.c.h.b16 %v806
        %v1666 = vunpack.c.l.b16 %v807
        %v1667 = vunpack.c.h.b16 %v807
        %v1668 = vunpack.c.l.b16 %v808
        %v1669 = vunpack.c.h.b16 %v808
        %v1670 = vunpack.c.l.b16 %v809
        %v1671 = vunpack.c.l.b16 %v810
        %v1672 = vunpack.c.h.b16 %v810
        %v1673 = vunpack.c.l.b16 %v811
        %v1674 = vunpack.c.h.b16 %v811
        %v1675 = vunpack.c.l.b16 %v812
        %v1676 = vunpack.c.h.b16 %v812
        %v1677 = vunpack.c.l.b16 %v813
        %v1678 = vunpack.c.h.b16 %v813
        %v1679 = vunpack.c.l.b16 %v814
        %v1680 = vunpack.c.l.b16 %v815
        %v1681 = vunpack.c.h.b16 %v815
        %v1682 = vunpack.c.l.b16 %v816
        %v1683 = vunpack.c.h.b16 %v816
        %v1684 = vunpack.c.l.b16 %v817
        %v1685 = vunpack.c.h.b16 %v817
        %v1686 = vunpack.c.l.b16 %v818
        %v1687 = vunpack.c.h.b16 %v818
        %v1688 = vunpack.c.l.b16 %v819
        %v1689 = vunpack.c.l.b16 %v820
        %v1690 = vunpack.c.h.b16 %v820
        %v1691 = vunpack.c.l.b16 %v821
        %v1692 = vunpack.c.h.b16 %v821
        %v1693 = vunpack.c.l.b16 %v822
        %v1694 = vunpack.c.h.b16 %v822
        %v1695 = vunpack.c.l.b16 %v823
        %v1696 = vunpack.c.h.b16 %v823
        %v1697 = vunpack.c.l.b16 %v824
        %v1698 = vunpack.c.l.b16 %v825
        %v1699 = vunpack.c.h.b16 %v825
        %v1700 = vunpack.c.l.b16 %v826
        %v1701 = vunpack.c.h.b16 %v826
        %v1702 = vunpack.c.l.b16 %v827
        %v1703 = vunpack.c.h.b16 %v827
        %v1704 = vunpack.c.l.b16 %v828
        %v1705 = vunpack.c.h.b16 %v828
        %v1706 = vunpack.c.l.b16 %v829
        %v1707 = vunpack.c.l.b16 %v830
        %v1708 = vunpack.c.h.b16 %v830
        %v1709 = vunpack.c.l.b16 %v831
        %v1710 = vunpack.c.h.b16 %v831
        %v1711 = vunpack.c.l.b16 %v832
        %v1712 = vunpack.c.h.b16 %v832
        %v1713 = vunpack.c.l.b16 %v833
        %v1714 = vunpack.c.h.b16 %v833
        %v1715 = vunpack.c.l.b16 %v834
        %v1716 = vunpack.c.l.b16 %v835
        %v1717 = vunpack.c.h.b16 %v835
        %v1718 = vunpack.c.l.b16 %v836
        %v1719 = vunpack.c.h.b16 %v836
        %v1720 = vunpack.c.l.b16 %v837
        %v1721 = vunpack.c.h.b16 %v837
        %v1722 = vunpack.c.l.b16 %v838
        %v1723 = vunpack.c.h.b16 %v838
        %v1724 = vunpack.c.l.b16 %v839
        %v1725 = vunpack.c.l.b16 %v840
        %v1726 = vunpack.c.h.b16 %v840
        %v1727 = vunpack.c.l.b16 %v841
        %v1728 = vunpack.c.h.b16 %v841
        %v1729 = vunpack.c.l.b16 %v842
        %v1730 = vunpack.c.h.b16 %v842
        %v1731 = vunpack.c.l.b16 %v843
        %v1732 = vunpack.c.h.b16 %v843
        %v1733 = vunpack.c.l.b16 %v844
        %v1734 = vunpack.c.l.b16 %v845
        %v1735 = vunpack.c.h.b16 %v845
        %v1736 = vunpack.c.l.b16 %v846
        %v1737 = vunpack.c.h.b16 %v846
        %v1738 = vunpack.c.l.b16 %v847
        %v1739 = vunpack.c.h.b16 %v847
        %v1740 = vunpack.c.l.b16 %v848
        %v1741 = vunpack.c.h.b16 %v848
        %v1742 = vunpack.c.l.b16 %v849
        %v1743 = vunpack.c.l.b16 %v850
        %v1744 = vunpack.c.h.b16 %v850
        %v1745 = vunpack.c.l.b16 %v851
        %v1746 = vunpack.c.h.b16 %v851
        %v1747 = vunpack.c.l.b16 %v852
        %v1748 = vunpack.c.h.b16 %v852
        %v1749 = vunpack.c.l.b16 %v853
        %v1750 = vunpack.c.h.b16 %v853
        %v1751 = vunpack.c.l.b16 %v854
        %v1752 = vunpack.c.l.b16 %v855
        %v1753 = vunpack.c.h.b16 %v855
        %v1754 = vunpack.c.l.b16 %v856
        %v1755 = vunpack.c.h.b16 %v856
        %v1756 = vunpack.c.l.b16 %v857
        %v1757 = vunpack.c.h.b16 %v857
        %v1758 = vunpack.c.l.b16 %v858
        %v1759 = vunpack.c.h.b16 %v858
        %v1760 = vunpack.c.l.b16 %v859
        %v1761 = vunpack.c.l.b16 %v860
        %v1762 = vunpack.c.h.b16 %v860
        %v1763 = vunpack.c.l.b16 %v861
        %v1764 = vunpack.c.h.b16 %v861
        %v1765 = vunpack.c.l.b16 %v862
        %v1766 = vunpack.c.h.b16 %v862
        %v1767 = vunpack.c.l.b16 %v863
        %v1768 = vunpack.c.h.b16 %v863
        %v1769 = vunpack.c.l.b16 %v864
        %v1770 = vunpack.c.l.b16 %v865
        %v1771 = vunpack.c.h.b16 %v865
        %v1772 = vunpack.c.l.b16 %v866
        %v1773 = vunpack.c.h.b16 %v866
        %v1774 = vunpack.c.l.b16 %v867
        %v1775 = vunpack.c.h.b16 %v867
        %v1776 = vunpack.c.l.b16 %v868
        %v1777 = vunpack.c.h.b16 %v868
        %v1778 = vunpack.c.l.b16 %v869
        %v1779 = vunpack.c.l.b16 %v870
        %v1780 = vunpack.c.h.b16 %v870
        %v1781 = vunpack.c.l.b16 %v871
        %v1782 = vunpack.c.h.b16 %v871
        %v1783 = vunpack.c.l.b16 %v872
        %v1784 = vunpack.c.h.b16 %v872
        %v1785 = vunpack.c.l.b16 %v873
        %v1786 = vunpack.c.h.b16 %v873
        %v1787 = vunpack.c.l.b16 %v874
        %v1788 = vunpack.c.l.b16 %v875
        %v1789 = vunpack.c.h.b16 %v875
        %v1790 = vunpack.c.l.b16 %v876
        %v1791 = vunpack.c.h.b16 %v876
        %v1792 = vunpack.c.l.b16 %v877
        %v1793 = vunpack.c.h.b16 %v877
        %v1794 = vunpack.c.l.b16 %v878
        %v1795 = vunpack.c.h.b16 %v878
        %v1796 = vunpack.c.l.b16 %v879
        %v1797 = vunpack.c.l.b16 %v880
        %v1798 = vunpack.c.h.b16 %v880
        %v1799 = vunpack.c.l.b16 %v881
        %v1800 = vunpack.c.h.b16 %v881
        %v1801 = vunpack.c.l.b16 %v882
        %v1802 = vunpack.c.h.b16 %v882
        %v1803 = vunpack.c.l.b16 %v883
        %v1804 = vunpack.c.h.b16 %v883
        %v1805 = vunpack.c.l.b16 %v884
        %v1806 = vunpack.c.l.b16 %v885
        %v1807 = vunpack.c.h.b16 %v885
        %v1808 = vunpack.c.l.b16 %v886
        %v1809 = vunpack.c.h.b16 %v886
        %v1810 = vunpack.c.l.b16 %v887
        %v1811 = vunpack.c.h.b16 %v887
        %v1812 = vunpack.c.l.b16 %v888
        %v1813 = vunpack.c.h.b16 %v888
        %v1814 = vunpack.c.l.b16 %v889
        %v1815 = vunpack.c.l.b16 %v890
        %v1816 = vunpack.c.h.b16 %v890
        %v1817 = vunpack.c.l.b16 %v891
        %v1818 = vunpack.c.h.b16 %v891
        %v1819 = vunpack.c.l.b16 %v892
        %v1820 = vunpack.c.h.b16 %v892
        %v1821 = vunpack.c.l.b16 %v893
        %v1822 = vunpack.c.h.b16 %v893
        %v1823 = vunpack.c.l.b16 %v894
        %v1824 = vunpack.c.l.b16 %v895
        %v1825 = vunpack.c.h.b16 %v895
        %v1826 = vunpack.c.l.b16 %v896
        %v1827 = vunpack.c.h.b16 %v896
        %v1828 = vunpack.c.l.b16 %v897
        %v1829 = vunpack.c.h.b16 %v897
        %v1830 = vunpack.c.l.b16 %v898
        %v1831 = vunpack.c.h.b16 %v898
        %v1832 = vunpack.c.l.b16 %v899
        %v1833 = vunpack.c.l.b16 %v900
        %v1834 = vunpack.c.h.b16 %v900
        %v1835 = vunpack.c.l.b16 %v901
        %v1836 = vunpack.c.h.b16 %v901
        %v1837 = vunpack.c.l.b16 %v902
        %v1838 = vunpack.c.h.b16 %v902
        %v1839 = vunpack.c.l.b16 %v903
        %v1840 = vunpack.c.h.b16 %v903
        %v1841 = vunpack.c.l.b16 %v904
        %v1842 = vunpack.c.l.b16 %v905
        %v1843 = vunpack.c.h.b16 %v905
        %v1844 = vunpack.c.l.b16 %v906
        %v1845 = vunpack.c.h.b16 %v906
        %v1846 = vunpack.c.l.b16 %v907
        %v1847 = vunpack.c.h.b16 %v907
        %v1848 = vunpack.c.l.b16 %v908
        %v1849 = vunpack.c.h.b16 %v908
        %v1850 = vunpack.c.l.b16 %v909
        %v1851 = vunpack.c.l.b16 %v910
        %v1852 = vunpack.c.h.b16 %v910
        %v1853 = vunpack.c.l.b16 %v911
        %v1854 = vunpack.c.h.b16 %v911
        %v1855 = vunpack.c.l.b16 %v912
        %v1856 = vunpack.c.h.b16 %v912
        %v1857 = vunpack.c.l.b16 %v913
        %v1858 = vunpack.c.h.b16 %v913
        %v1859 = vunpack.c.l.b16 %v914
        %v1860 = vpack.c.b16 %v1293, %v1284
        %v1861 = vpack.c.b16 %v1294, %v1285
        %v1862 = vpack.c.b16 %v1295, %v1286
        %v1863 = vpack.c.b16 %v1296, %v1287
        %v1864 = vpack.c.b16 %v1297, %v1288
        %v1865 = vpack.c.b16 %v1298, %v1289
        %v1866 = vpack.c.b16 %v1299, %v1290
        %v1867 = vpack.c.b16 %v1300, %v1291
        %v1868 = vpack.c.b16 %v1301, %v1292
        %v1869 = vpack.c.b16 %v1311, %v1302
        %v1870 = vpack.c.b16 %v1312, %v1303
        %v1871 = vpack.c.b16 %v1313, %v1304
        %v1872 = vpack.c.b16 %v1314, %v1305
        %v1873 = vpack.c.b16 %v1315, %v1306
        %v1874 = vpack.c.b16 %v1316, %v1307
        %v1875 = vpack.c.b16 %v1317, %v1308
        %v1876 = vpack.c.b16 %v1318, %v1309
        %v1877 = vpack.c.b16 %v1319, %v1310
        %v1878 = vpack.c.b16 %v1329, %v1320
        %v1879 = vpack.c.b16 %v1330, %v1321
        %v1880 = vpack.c.b16 %v1331, %v1322
        %v1881 = vpack.c.b16 %v1332, %v1323
        %v1882 = vpack.c.b16 %v1333, %v1324
        %v1883 = vpack.c.b16 %v1334, %v1325
        %v1884 = vpack.c.b16 %v1335, %v1326
        %v1885 = vpack.c.b16 %v1336, %v1327
        %v1886 = vpack.c.b16 %v1337, %v1328
        %v1887 = vpack.c.b16 %v1347, %v1338
        %v1888 = vpack.c.b16 %v1348, %v1339
        %v1889 = vpack.c.b16 %v1349, %v1340
        %v1890 = vpack.c.b16 %v1350, %v1341
        %v1891 = vpack.c.b16 %v1351, %v1342
        %v1892 = vpack.c.b16 %v1352, %v1343
        %v1893 = vpack.c.b16 %v1353, %v1344
        %v1894 = vpack.c.b16 %v1354, %v1345
        %v1895 = vpack.c.b16 %v1355, %v1346
        %v1896 = vpack.c.b16 %v1365, %v1356
        %v1897 = vpack.c.b16 %v1366, %v1357
        %v1898 = vpack.c.b16 %v1367, %v1358
        %v1899 = vpack.c.b16 %v1368, %v1359
        %v1900 = vpack.c.b16 %v1369, %v1360
        %v1901 = vpack.c.b16 %v1370, %v1361
        %v1902 = vpack.c.b16 %v1371, %v1362
        %v1903 = vpack.c.b16 %v1372, %v1363
        %v1904 = vpack.c.b16 %v1373, %v1364
        %v1905 = vpack.c.b16 %v1383, %v1374
        %v1906 = vpack.c.b16 %v1384, %v1375
        %v1907 = vpack.c.b16 %v1385, %v1376
        %v1908 = vpack.c.b16 %v1386, %v1377
        %v1909 = vpack.c.b16 %v1387, %v1378
        %v1910 = vpack.c.b16 %v1388, %v1379
        %v1911 = vpack.c.b16 %v1389, %v1380
        %v1912 = vpack.c.b16 %v1390, %v1381
        %v1913 = vpack.c.b16 %v1391, %v1382
        %v1914 = vpack.c.b16 %v1401, %v1392
        %v1915 = vpack.c.b16 %v1402, %v1393
        %v1916 = vpack.c.b16 %v1403, %v1394
        %v1917 = vpack.c.b16 %v1404, %v1395
        %v1918 = vpack.c.b16 %v1405, %v1396
        %v1919 = vpack.c.b16 %v1406, %v1397
        %v1920 = vpack.c.b16 %v1407, %v1398
        %v1921 = vpack.c.b16 %v1408, %v1399
        %v1922 = vpack.c.b16 %v1409, %v1400
        %v1923 = vpack.c.b16 %v1419, %v1410
        %v1924 = vpack.c.b16 %v1420, %v1411
        %v1925 = vpack.c.b16 %v1421, %v1412
        %v1926 = vpack.c.b16 %v1422, %v1413
        %v1927 = vpack.c.b16 %v1423, %v1414
        %v1928 = vpack.c.b16 %v1424, %v1415
        %v1929 = vpack.c.b16 %v1425, %v1416
        %v1930 = vpack.c.b16 %v1426, %v1417
        %v1931 = vpack.c.b16 %v1427, %v1418
        %v1932 = vpack.c.b16 %v1437, %v1428
        %v1933 = vpack.c.b16 %v1438, %v1429
        %v1934 = vpack.c.b16 %v1439, %v1430
        %v1935 = vpack.c.b16 %v1440, %v1431
        %v1936 = vpack.c.b16 %v1441, %v1432
        %v1937 = vpack.c.b16 %v1442, %v1433
        %v1938 = vpack.c.b16 %v1443, %v1434
        %v1939 = vpack.c.b16 %v1444, %v1435
        %v1940 = vpack.c.b16 %v1445, %v1436
        %v1941 = vpack.c.b16 %v1455, %v1446
        %v1942 = vpack.c.b16 %v1456, %v1447
        %v1943 = vpack.c.b16 %v1457, %v1448
        %v1944 = vpack.c.b16 %v1458, %v1449
        %v1945 = vpack.c.b16 %v1459, %v1450
        %v1946 = vpack.c.b16 %v1460, %v1451
        %v1947 = vpack.c.b16 %v1461, %v1452
        %v1948 = vpack.c.b16 %v1462, %v1453
        %v1949 = vpack.c.b16 %v1463, %v1454
        %v1950 = vpack.c.b16 %v1473, %v1464
        %v1951 = vpack.c.b16 %v1474, %v1465
        %v1952 = vpack.c.b16 %v1475, %v1466
        %v1953 = vpack.c.b16 %v1476, %v1467
        %v1954 = vpack.c.b16 %v1477, %v1468
        %v1955 = vpack.c.b16 %v1478, %v1469
        %v1956 = vpack.c.b16 %v1479, %v1470
        %v1957 = vpack.c.b16 %v1480, %v1471
        %v1958 = vpack.c.b16 %v1481, %v1472
        %v1959 = vpack.c.b16 %v1491, %v1482
        %v1960 = vpack.c.b16 %v1492, %v1483
        %v1961 = vpack.c.b16 %v1493, %v1484
        %v1962 = vpack.c.b16 %v1494, %v1485
        %v1963 = vpack.c.b16 %v1495, %v1486
        %v1964 = vpack.c.b16 %v1496, %v1487
        %v1965 = vpack.c.b16 %v1497, %v1488
        %v1966 = vpack.c.b16 %v1498, %v1489
        %v1967 = vpack.c.b16 %v1499, %v1490
        %v1968 = vpack.c.b16 %v1509, %v1500
        %v1969 = vpack.c.b16 %v1510, %v1501
        %v1970 = vpack.c.b16 %v1511, %v1502
        %v1971 = vpack.c.b16 %v1512, %v1503
        %v1972 = vpack.c.b16 %v1513, %v1504
        %v1973 = vpack.c.b16 %v1514, %v1505
        %v1974 = vpack.c.b16 %v1515, %v1506
        %v1975 = vpack.c.b16 %v1516, %v1507
        %v1976 = vpack.c.b16 %v1517, %v1508
        %v1977 = vpack.c.b16 %v1527, %v1518
        %v1978 = vpack.c.b16 %v1528, %v1519
        %v1979 = vpack.c.b16 %v1529, %v1520
        %v1980 = vpack.c.b16 %v1530, %v1521
        %v1981 = vpack.c.b16 %v1531, %v1522
        %v1982 = vpack.c.b16 %v1532, %v1523
        %v1983 = vpack.c.b16 %v1533, %v1524
        %v1984 = vpack.c.b16 %v1534, %v1525
        %v1985 = vpack.c.b16 %v1535, %v1526
        %v1986 = vpack.c.b16 %v1545, %v1536
        %v1987 = vpack.c.b16 %v1546, %v1537
        %v1988 = vpack.c.b16 %v1547, %v1538
        %v1989 = vpack.c.b16 %v1548, %v1539
        %v1990 = vpack.c.b16 %v1549, %v1540
        %v1991 = vpack.c.b16 %v1550, %v1541
        %v1992 = vpack.c.b16 %v1551, %v1542
        %v1993 = vpack.c.b16 %v1552, %v1543
        %v1994 = vpack.c.b16 %v1553, %v1544
        %v1995 = vpack.c.b16 %v1563, %v1554
        %v1996 = vpack.c.b16 %v1564, %v1555
        %v1997 = vpack.c.b16 %v1565, %v1556
        %v1998 = vpack.c.b16 %v1566, %v1557
        %v1999 = vpack.c.b16 %v1567, %v1558
        %v2000 = vpack.c.b16 %v1568, %v1559
        %v2001 = vpack.c.b16 %v1569, %v1560
        %v2002 = vpack.c.b16 %v1570, %v1561
        %v2003 = vpack.c.b16 %v1571, %v1562
        %v2004 = vpack.c.b16 %v1581, %v1572
        %v2005 = vpack.c.b16 %v1582, %v1573
        %v2006 = vpack.c.b16 %v1583, %v1574
        %v2007 = vpack.c.b16 %v1584, %v1575
        %v2008 = vpack.c.b16 %v1585, %v1576
        %v2009 = vpack.c.b16 %v1586, %v1577
        %v2010 = vpack.c.b16 %v1587, %v1578
        %v2011 = vpack.c.b16 %v1588, %v1579
        %v2012 = vpack.c.b16 %v1589, %v1580
        %v2013 = vpack.c.b16 %v1599, %v1590
        %v2014 = vpack.c.b16 %v1600, %v1591
        %v2015 = vpack.c.b16 %v1601, %v1592
        %v2016 = vpack.c.b16 %v1602, %v1593
        %v2017 = vpack.c.b16 %v1603, %v1594
        %v2018 = vpack.c.b16 %v1604, %v1595
        %v2019 = vpack.c.b16 %v1605, %v1596
        %v2020 = vpack.c.b16 %v1606, %v1597
        %v2021 = vpack.c.b16 %v1607, %v1598
        %v2022 = vpack.c.b16 %v1617, %v1608
        %v2023 = vpack.c.b16 %v1618, %v1609
        %v2024 = vpack.c.b16 %v1619, %v1610
        %v2025 = vpack.c.b16 %v1620, %v1611
        %v2026 = vpack.c.b16 %v1621, %v1612
        %v2027 = vpack.c.b16 %v1622, %v1613
        %v2028 = vpack.c.b16 %v1623, %v1614
        %v2029 = vpack.c.b16 %v1624, %v1615
        %v2030 = vpack.c.b16 %v1625, %v1616
        %v2031 = vpack.c.b16 %v1635, %v1626
        %v2032 = vpack.c.b16 %v1636, %v1627
        %v2033 = vpack.c.b16 %v1637, %v1628
        %v2034 = vpack.c.b16 %v1638, %v1629
        %v2035 = vpack.c.b16 %v1639, %v1630
        %v2036 = vpack.c.b16 %v1640, %v1631
        %v2037 = vpack.c.b16 %v1641, %v1632
        %v2038 = vpack.c.b16 %v1642, %v1633
        %v2039 = vpack.c.b16 %v1643, %v1634
        %v2040 = vpack.c.b16 %v1653, %v1644
        %v2041 = vpack.c.b16 %v1654, %v1645
        %v2042 = vpack.c.b16 %v1655, %v1646
        %v2043 = vpack.c.b16 %v1656, %v1647
        %v2044 = vpack.c.b16 %v1657, %v1648
        %v2045 = vpack.c.b16 %v1658, %v1649
        %v2046 = vpack.c.b16 %v1659, %v1650
        %v2047 = vpack.c.b16 %v1660, %v1651
        %v2048 = vpack.c.b16 %v1661, %v1652
        %v2049 = vpack.c.b16 %v1671, %v1662
        %v2050 = vpack.c.b16 %v1672, %v1663
        %v2051 = vpack.c.b16 %v1673, %v1664
        %v2052 = vpack.c.b16 %v1674, %v1665
        %v2053 = vpack.c.b16 %v1675, %v1666
        %v2054 = vpack.c.b16 %v1676, %v1667
        %v2055 = vpack.c.b16 %v1677, %v1668
        %v2056 = vpack.c.b16 %v1678, %v1669
        %v2057 = vpack.c.b16 %v1679, %v1670
        %v2058 = vpack.c.b16 %v1689, %v1680
        %v2059 = vpack.c.b16 %v1690, %v1681
        %v2060 = vpack.c.b16 %v1691, %v1682
        %v2061 = vpack.c.b16 %v1692, %v1683
        %v2062 = vpack.c.b16 %v1693, %v1684
        %v2063 = vpack.c.b16 %v1694, %v1685
        %v2064 = vpack.c.b16 %v1695, %v1686
        %v2065 = vpack.c.b16 %v1696, %v1687
        %v2066 = vpack.c.b16 %v1697, %v1688
        %v2067 = vpack.c.b16 %v1707, %v1698
        %v2068 = vpack.c.b16 %v1708, %v1699
        %v2069 = vpack.c.b16 %v1709, %v1700
        %v2070 = vpack.c.b16 %v1710, %v1701
        %v2071 = vpack.c.b16 %v1711, %v1702
        %v2072 = vpack.c.b16 %v1712, %v1703
        %v2073 = vpack.c.b16 %v1713, %v1704
        %v2074 = vpack.c.b16 %v1714, %v1705
        %v2075 = vpack.c.b16 %v1715, %v1706
        %v2076 = vpack.c.b16 %v1725, %v1716
        %v2077 = vpack.c.b16 %v1726, %v1717
        %v2078 = vpack.c.b16 %v1727, %v1718
        %v2079 = vpack.c.b16 %v1728, %v1719
        %v2080 = vpack.c.b16 %v1729, %v1720
        %v2081 = vpack.c.b16 %v1730, %v1721
        %v2082 = vpack.c.b16 %v1731, %v1722
        %v2083 = vpack.c.b16 %v1732, %v1723
        %v2084 = vpack.c.b16 %v1733, %v1724
        %v2085 = vpack.c.b16 %v1743, %v1734
        %v2086 = vpack.c.b16 %v1744, %v1735
        %v2087 = vpack.c.b16 %v1745, %v1736
        %v2088 = vpack.c.b16 %v1746, %v1737
        %v2089 = vpack.c.b16 %v1747, %v1738
        %v2090 = vpack.c.b16 %v1748, %v1739
        %v2091 = vpack.c.b16 %v1749, %v1740
        %v2092 = vpack.c.b16 %v1750, %v1741
        %v2093 = vpack.c.b16 %v1751, %v1742
        %v2094 = vpack.c.b16 %v1761, %v1752
        %v2095 = vpack.c.b16 %v1762, %v1753
        %v2096 = vpack.c.b16 %v1763, %v1754
        %v2097 = vpack.c.b16 %v1764, %v1755
        %v2098 = vpack.c.b16 %v1765, %v1756
        %v2099 = vpack.c.b16 %v1766, %v1757
        %v2100 = vpack.c.b16 %v1767, %v1758
        %v2101 = vpack.c.b16 %v1768, %v1759
        %v2102 = vpack.c.b16 %v1769, %v1760
        %v2103 = vpack.c.b16 %v1779, %v1770
        %v2104 = vpack.c.b16 %v1780, %v1771
        %v2105 = vpack.c.b16 %v1781, %v1772
        %v2106 = vpack.c.b16 %v1782, %v1773
        %v2107 = vpack.c.b16 %v1783, %v1774
        %v2108 = vpack.c.b16 %v1784, %v1775
        %v2109 = vpack.c.b16 %v1785, %v1776
        %v2110 = vpack.c.b16 %v1786, %v1777
        %v2111 = vpack.c.b16 %v1787, %v1778
        %v2112 = vpack.c.b16 %v1797, %v1788
        %v2113 = vpack.c.b16 %v1798, %v1789
        %v2114 = vpack.c.b16 %v1799, %v1790
        %v2115 = vpack.c.b16 %v1800, %v1791
        %v2116 = vpack.c.b16 %v1801, %v1792
        %v2117 = vpack.c.b16 %v1802, %v1793
        %v2118 = vpack.c.b16 %v1803, %v1794
        %v2119 = vpack.c.b16 %v1804, %v1795
        %v2120 = vpack.c.b16 %v1805, %v1796
        %v2121 = vpack.c.b16 %v1815, %v1806
        %v2122 = vpack.c.b16 %v1816, %v1807
        %v2123 = vpack.c.b16 %v1817, %v1808
        %v2124 = vpack.c.b16 %v1818, %v1809
        %v2125 = vpack.c.b16 %v1819, %v1810
        %v2126 = vpack.c.b16 %v1820, %v1811
        %v2127 = vpack.c.b16 %v1821, %v1812
        %v2128 = vpack.c.b16 %v1822, %v1813
        %v2129 = vpack.c.b16 %v1823, %v1814
        %v2130 = vpack.c.b16 %v1833, %v1824
        %v2131 = vpack.c.b16 %v1834, %v1825
        %v2132 = vpack.c.b16 %v1835, %v1826
        %v2133 = vpack.c.b16 %v1836, %v1827
        %v2134 = vpack.c.b16 %v1837, %v1828
        %v2135 = vpack.c.b16 %v1838, %v1829
        %v2136 = vpack.c.b16 %v1839, %v1830
        %v2137 = vpack.c.b16 %v1840, %v1831
        %v2138 = vpack.c.b16 %v1841, %v1832
        %v2139 = vpack.c.b16 %v1851, %v1842
        %v2140 = vpack.c.b16 %v1852, %v1843
        %v2141 = vpack.c.b16 %v1853, %v1844
        %v2142 = vpack.c.b16 %v1854, %v1845
        %v2143 = vpack.c.b16 %v1855, %v1846
        %v2144 = vpack.c.b16 %v1856, %v1847
        %v2145 = vpack.c.b16 %v1857, %v1848
        %v2146 = vpack.c.b16 %v1858, %v1849
        %v2147 = vpack.c.b16 %v1859, %v1850
        %2436 = vmatprep.subr.bf16.mxu0 %v1861
        %2437 = vmatpush1.bf16.msra.mxu0 %v1860
        %2438 = vmatprep.subr.bf16.mxu0 %v1870
        %2439 = vmatpush1.bf16.msra.mxu0 %v1869
        %2440 = vmatprep.subr.bf16.mxu0 %v1879
        %2441 = vmatpush1.bf16.msra.mxu0 %v1878
        %2442 = vmatprep.subr.bf16.mxu0 %v1888
        %2443 = vmatpush1.bf16.msra.mxu0 %v1887
        %2444 = vmatprep.subr.bf16.mxu0 %v1897
        %2445 = vmatpush1.bf16.msra.mxu0 %v1896
        %2446 = vmatprep.subr.bf16.mxu0 %v1906
        %2447 = vmatpush1.bf16.msra.mxu0 %v1905
        %2448 = vmatprep.subr.bf16.mxu0 %v1915
        %2449 = vmatpush1.bf16.msra.mxu0 %v1914
        %2450 = vmatprep.subr.bf16.mxu0 %v1924
        %2451 = vmatpush1.bf16.msra.mxu0 %v1923
        %2452 = vmatprep.subr.bf16.mxu0 %v1933
        %2453 = vmatpush1.bf16.msra.mxu0 %v1932
        %2454 = vmatprep.subr.bf16.mxu0 %v1942
        %2455 = vmatpush1.bf16.msra.mxu0 %v1941
        %2456 = vmatprep.subr.bf16.mxu0 %v1951
        %2457 = vmatpush1.bf16.msra.mxu0 %v1950
        %2458 = vmatprep.subr.bf16.mxu0 %v1960
        %2459 = vmatpush1.bf16.msra.mxu0 %v1959
        %2460 = vmatprep.subr.bf16.mxu0 %v1969
        %2461 = vmatpush1.bf16.msra.mxu0 %v1968
        %2462 = vmatprep.subr.bf16.mxu0 %v1978
        %2463 = vmatpush1.bf16.msra.mxu0 %v1977
        %2464 = vmatprep.subr.bf16.mxu0 %v1987
        %2465 = vmatpush1.bf16.msra.mxu0 %v1986
        %2466 = vmatprep.subr.bf16.mxu0 %v1996
        %2467 = vmatpush1.bf16.msra.mxu0 %v1995
        %2468 = vmatprep.mubr.bf16.mxu0 %v592
        %2469 = vmatmul.mubr.bf16.gmra.mrb[0].mxu0 %v591
        %v2470 = vpop.f32.mrb[0].mxu0
        %v2471 = vadd.f32 %v922, %v2470
        %v2472 = vpop.f32.mrb[0].mxu0
        %v2473 = vadd.f32 %v926, %v2472
        %v2474 = vpop.f32.mrb[0].mxu0
        %v2475 = vpop.f32.mrb[0].mxu0
        %2476 = vdwg.mxu0
        %2477 = vmatprep.subr.bf16.mxu0 %v2005
        %2478 = vmatpush1.bf16.msra.mxu0 %v2004
        %2479 = vmatprep.subr.bf16.mxu0 %v2014
        %2480 = vmatpush1.bf16.msra.mxu0 %v2013
        %2481 = vmatprep.subr.bf16.mxu0 %v2023
        %2482 = vmatpush1.bf16.msra.mxu0 %v2022
        %2483 = vmatprep.subr.bf16.mxu0 %v2032
        %2484 = vmatpush1.bf16.msra.mxu0 %v2031
        %2485 = vmatprep.subr.bf16.mxu0 %v2041
        %2486 = vmatpush1.bf16.msra.mxu0 %v2040
        %2487 = vmatprep.subr.bf16.mxu0 %v2050
        %2488 = vmatpush1.bf16.msra.mxu0 %v2049
        %2489 = vmatprep.subr.bf16.mxu0 %v2059
        %2490 = vmatpush1.bf16.msra.mxu0 %v2058
        %2491 = vmatprep.subr.bf16.mxu0 %v2068
        %2492 = vmatpush1.bf16.msra.mxu0 %v2067
        %2493 = vmatprep.subr.bf16.mxu0 %v2077
        %2494 = vmatpush1.bf16.msra.mxu0 %v2076
        %2495 = vmatprep.subr.bf16.mxu0 %v2086
        %2496 = vmatpush1.bf16.msra.mxu0 %v2085
        %2497 = vmatprep.subr.bf16.mxu0 %v2095
        %2498 = vmatpush1.bf16.msra.mxu0 %v2094
        %2499 = vmatprep.subr.bf16.mxu0 %v2104
        %2500 = vmatpush1.bf16.msra.mxu0 %v2103
        %2501 = vmatprep.subr.bf16.mxu0 %v2113
        %2502 = vmatpush1.bf16.msra.mxu0 %v2112
        %2503 = vmatprep.subr.bf16.mxu0 %v2122
        %2504 = vmatpush1.bf16.msra.mxu0 %v2121
        %2505 = vmatprep.subr.bf16.mxu0 %v2131
        %2506 = vmatpush1.bf16.msra.mxu0 %v2130
        %2507 = vmatprep.subr.bf16.mxu0 %v2140
        %2508 = vmatpush1.bf16.msra.mxu0 %v2139
        %2509 = vmatprep.mubr.bf16.mxu0 %v594
        %2510 = vmatmul.mubr.bf16.gmra.mrb[0].mxu0 %v593
        %v2511 = vpop.f32.mrb[0].mxu0
        %v2512 = vadd.f32 %v2471, %v2511
        %v2513 = vpop.f32.mrb[0].mxu0
        %v2514 = vadd.f32 %v2473, %v2513
        %v2515 = vpop.f32.mrb[0].mxu0
        %v2516 = vpop.f32.mrb[0].mxu0
        %2517 = vdwg.mxu0
        %2518 = vmatprep.subr.bf16.mxu0 %v1863
        %2519 = vmatpush1.bf16.msra.mxu0 %v1862
        %2520 = vmatprep.subr.bf16.mxu0 %v1872
        %2521 = vmatpush1.bf16.msra.mxu0 %v1871
        %2522 = vmatprep.subr.bf16.mxu0 %v1881
        %2523 = vmatpush1.bf16.msra.mxu0 %v1880
        %2524 = vmatprep.subr.bf16.mxu0 %v1890
        %2525 = vmatpush1.bf16.msra.mxu0 %v1889
        %2526 = vmatprep.subr.bf16.mxu0 %v1899
        %2527 = vmatpush1.bf16.msra.mxu0 %v1898
        %2528 = vmatprep.subr.bf16.mxu0 %v1908
        %2529 = vmatpush1.bf16.msra.mxu0 %v1907
        %2530 = vmatprep.subr.bf16.mxu0 %v1917
        %2531 = vmatpush1.bf16.msra.mxu0 %v1916
        %2532 = vmatprep.subr.bf16.mxu0 %v1926
        %2533 = vmatpush1.bf16.msra.mxu0 %v1925
        %2534 = vmatprep.subr.bf16.mxu0 %v1935
        %2535 = vmatpush1.bf16.msra.mxu0 %v1934
        %2536 = vmatprep.subr.bf16.mxu0 %v1944
        %2537 = vmatpush1.bf16.msra.mxu0 %v1943
        %2538 = vmatprep.subr.bf16.mxu0 %v1953
        %2539 = vmatpush1.bf16.msra.mxu0 %v1952
        %2540 = vmatprep.subr.bf16.mxu0 %v1962
        %2541 = vmatpush1.bf16.msra.mxu0 %v1961
        %2542 = vmatprep.subr.bf16.mxu0 %v1971
        %2543 = vmatpush1.bf16.msra.mxu0 %v1970
        %2544 = vmatprep.subr.bf16.mxu0 %v1980
        %2545 = vmatpush1.bf16.msra.mxu0 %v1979
        %2546 = vmatprep.subr.bf16.mxu0 %v1989
        %2547 = vmatpush1.bf16.msra.mxu0 %v1988
        %2548 = vmatprep.subr.bf16.mxu0 %v1998
        %2549 = vmatpush1.bf16.msra.mxu0 %v1997
        %2550 = vmatprep.mubr.bf16.mxu0 %v592
        %2551 = vmatmul.mubr.bf16.gmra.mrb[0].mxu0 %v591
        %v2552 = vpop.f32.mrb[0].mxu0
        %v2553 = vadd.f32 %v930, %v2552
        %v2554 = vpop.f32.mrb[0].mxu0
        %v2555 = vadd.f32 %v934, %v2554
        %v2556 = vpop.f32.mrb[0].mxu0
        %v2557 = vpop.f32.mrb[0].mxu0
        %2558 = vdwg.mxu0
        %2559 = vmatprep.subr.bf16.mxu0 %v2007
        %2560 = vmatpush1.bf16.msra.mxu0 %v2006
        %2561 = vmatprep.subr.bf16.mxu0 %v2016
        %2562 = vmatpush1.bf16.msra.mxu0 %v2015
        %2563 = vmatprep.subr.bf16.mxu0 %v2025
        %2564 = vmatpush1.bf16.msra.mxu0 %v2024
        %2565 = vmatprep.subr.bf16.mxu0 %v2034
        %2566 = vmatpush1.bf16.msra.mxu0 %v2033
        %2567 = vmatprep.subr.bf16.mxu0 %v2043
        %2568 = vmatpush1.bf16.msra.mxu0 %v2042
        %2569 = vmatprep.subr.bf16.mxu0 %v2052
        %2570 = vmatpush1.bf16.msra.mxu0 %v2051
        %2571 = vmatprep.subr.bf16.mxu0 %v2061
        %2572 = vmatpush1.bf16.msra.mxu0 %v2060
        %2573 = vmatprep.subr.bf16.mxu0 %v2070
        %2574 = vmatpush1.bf16.msra.mxu0 %v2069
        %2575 = vmatprep.subr.bf16.mxu0 %v2079
        %2576 = vmatpush1.bf16.msra.mxu0 %v2078
        %2577 = vmatprep.subr.bf16.mxu0 %v2088
        %2578 = vmatpush1.bf16.msra.mxu0 %v2087
        %2579 = vmatprep.subr.bf16.mxu0 %v2097
        %2580 = vmatpush1.bf16.msra.mxu0 %v2096
        %2581 = vmatprep.subr.bf16.mxu0 %v2106
        %2582 = vmatpush1.bf16.msra.mxu0 %v2105
        %2583 = vmatprep.subr.bf16.mxu0 %v2115
        %2584 = vmatpush1.bf16.msra.mxu0 %v2114
        %2585 = vmatprep.subr.bf16.mxu0 %v2124
        %2586 = vmatpush1.bf16.msra.mxu0 %v2123
        %2587 = vmatprep.subr.bf16.mxu0 %v2133
        %2588 = vmatpush1.bf16.msra.mxu0 %v2132
        %2589 = vmatprep.subr.bf16.mxu0 %v2142
        %2590 = vmatpush1.bf16.msra.mxu0 %v2141
        %2591 = vmatprep.mubr.bf16.mxu0 %v594
        %2592 = vmatmul.mubr.bf16.gmra.mrb[0].mxu0 %v593
        %v2593 = vpop.f32.mrb[0].mxu0
        %v2594 = vadd.f32 %v2553, %v2593
        %v2595 = vpop.f32.mrb[0].mxu0
        %v2596 = vadd.f32 %v2555, %v2595
        %v2597 = vpop.f32.mrb[0].mxu0
        %v2598 = vpop.f32.mrb[0].mxu0
        %2599 = vdwg.mxu0
        %2600 = vmatprep.subr.bf16.mxu0 %v1865
        %2601 = vmatpush1.bf16.msra.mxu0 %v1864
        %2602 = vmatprep.subr.bf16.mxu0 %v1874
        %2603 = vmatpush1.bf16.msra.mxu0 %v1873
        %2604 = vmatprep.subr.bf16.mxu0 %v1883
        %2605 = vmatpush1.bf16.msra.mxu0 %v1882
        %2606 = vmatprep.subr.bf16.mxu0 %v1892
        %2607 = vmatpush1.bf16.msra.mxu0 %v1891
        %2608 = vmatprep.subr.bf16.mxu0 %v1901
        %2609 = vmatpush1.bf16.msra.mxu0 %v1900
        %2610 = vmatprep.subr.bf16.mxu0 %v1910
        %2611 = vmatpush1.bf16.msra.mxu0 %v1909
        %2612 = vmatprep.subr.bf16.mxu0 %v1919
        %2613 = vmatpush1.bf16.msra.mxu0 %v1918
        %2614 = vmatprep.subr.bf16.mxu0 %v1928
        %2615 = vmatpush1.bf16.msra.mxu0 %v1927
        %2616 = vmatprep.subr.bf16.mxu0 %v1937
        %2617 = vmatpush1.bf16.msra.mxu0 %v1936
        %2618 = vmatprep.subr.bf16.mxu0 %v1946
        %2619 = vmatpush1.bf16.msra.mxu0 %v1945
        %2620 = vmatprep.subr.bf16.mxu0 %v1955
        %2621 = vmatpush1.bf16.msra.mxu0 %v1954
        %2622 = vmatprep.subr.bf16.mxu0 %v1964
        %2623 = vmatpush1.bf16.msra.mxu0 %v1963
        %2624 = vmatprep.subr.bf16.mxu0 %v1973
        %2625 = vmatpush1.bf16.msra.mxu0 %v1972
        %2626 = vmatprep.subr.bf16.mxu0 %v1982
        %2627 = vmatpush1.bf16.msra.mxu0 %v1981
        %2628 = vmatprep.subr.bf16.mxu0 %v1991
        %2629 = vmatpush1.bf16.msra.mxu0 %v1990
        %2630 = vmatprep.subr.bf16.mxu0 %v2000
        %2631 = vmatpush1.bf16.msra.mxu0 %v1999
        %2632 = vmatprep.mubr.bf16.mxu0 %v592
        %2633 = vmatmul.mubr.bf16.gmra.mrb[0].mxu0 %v591
        %v2634 = vpop.f32.mrb[0].mxu0
        %v2635 = vadd.f32 %v938, %v2634
        %v2636 = vpop.f32.mrb[0].mxu0
        %v2637 = vadd.f32 %v942, %v2636
        %v2638 = vpop.f32.mrb[0].mxu0
        %v2639 = vpop.f32.mrb[0].mxu0
        %2640 = vdwg.mxu0
        %2641 = vmatprep.subr.bf16.mxu0 %v2009
        %2642 = vmatpush1.bf16.msra.mxu0 %v2008
        %2643 = vmatprep.subr.bf16.mxu0 %v2018
        %2644 = vmatpush1.bf16.msra.mxu0 %v2017
        %2645 = vmatprep.subr.bf16.mxu0 %v2027
        %2646 = vmatpush1.bf16.msra.mxu0 %v2026
        %2647 = vmatprep.subr.bf16.mxu0 %v2036
        %2648 = vmatpush1.bf16.msra.mxu0 %v2035
        %2649 = vmatprep.subr.bf16.mxu0 %v2045
        %2650 = vmatpush1.bf16.msra.mxu0 %v2044
        %2651 = vmatprep.subr.bf16.mxu0 %v2054
        %2652 = vmatpush1.bf16.msra.mxu0 %v2053
        %2653 = vmatprep.subr.bf16.mxu0 %v2063
        %2654 = vmatpush1.bf16.msra.mxu0 %v2062
        %2655 = vmatprep.subr.bf16.mxu0 %v2072
        %2656 = vmatpush1.bf16.msra.mxu0 %v2071
        %2657 = vmatprep.subr.bf16.mxu0 %v2081
        %2658 = vmatpush1.bf16.msra.mxu0 %v2080
        %2659 = vmatprep.subr.bf16.mxu0 %v2090
        %2660 = vmatpush1.bf16.msra.mxu0 %v2089
        %2661 = vmatprep.subr.bf16.mxu0 %v2099
        %2662 = vmatpush1.bf16.msra.mxu0 %v2098
        %2663 = vmatprep.subr.bf16.mxu0 %v2108
        %2664 = vmatpush1.bf16.msra.mxu0 %v2107
        %2665 = vmatprep.subr.bf16.mxu0 %v2117
        %2666 = vmatpush1.bf16.msra.mxu0 %v2116
        %2667 = vmatprep.subr.bf16.mxu0 %v2126
        %2668 = vmatpush1.bf16.msra.mxu0 %v2125
        %2669 = vmatprep.subr.bf16.mxu0 %v2135
        %2670 = vmatpush1.bf16.msra.mxu0 %v2134
        %2671 = vmatprep.subr.bf16.mxu0 %v2144
        %2672 = vmatpush1.bf16.msra.mxu0 %v2143
        %2673 = vmatprep.mubr.bf16.mxu0 %v594
        %2674 = vmatmul.mubr.bf16.gmra.mrb[0].mxu0 %v593
        %v2675 = vpop.f32.mrb[0].mxu0
        %v2676 = vadd.f32 %v2635, %v2675
        %v2677 = vpop.f32.mrb[0].mxu0
        %v2678 = vadd.f32 %v2637, %v2677
        %v2679 = vpop.f32.mrb[0].mxu0
        %v2680 = vpop.f32.mrb[0].mxu0
        %2681 = vdwg.mxu0
        %2682 = vmatprep.subr.bf16.mxu0 %v1867
        %2683 = vmatpush1.bf16.msra.mxu0 %v1866
        %2684 = vmatprep.subr.bf16.mxu0 %v1876
        %2685 = vmatpush1.bf16.msra.mxu0 %v1875
        %2686 = vmatprep.subr.bf16.mxu0 %v1885
        %2687 = vmatpush1.bf16.msra.mxu0 %v1884
        %2688 = vmatprep.subr.bf16.mxu0 %v1894
        %2689 = vmatpush1.bf16.msra.mxu0 %v1893
        %2690 = vmatprep.subr.bf16.mxu0 %v1903
        %2691 = vmatpush1.bf16.msra.mxu0 %v1902
        %2692 = vmatprep.subr.bf16.mxu0 %v1912
        %2693 = vmatpush1.bf16.msra.mxu0 %v1911
        %2694 = vmatprep.subr.bf16.mxu0 %v1921
        %2695 = vmatpush1.bf16.msra.mxu0 %v1920
        %2696 = vmatprep.subr.bf16.mxu0 %v1930
        %2697 = vmatpush1.bf16.msra.mxu0 %v1929
        %2698 = vmatprep.subr.bf16.mxu0 %v1939
        %2699 = vmatpush1.bf16.msra.mxu0 %v1938
        %2700 = vmatprep.subr.bf16.mxu0 %v1948
        %2701 = vmatpush1.bf16.msra.mxu0 %v1947
        %2702 = vmatprep.subr.bf16.mxu0 %v1957
        %2703 = vmatpush1.bf16.msra.mxu0 %v1956
        %2704 = vmatprep.subr.bf16.mxu0 %v1966
        %2705 = vmatpush1.bf16.msra.mxu0 %v1965
        %2706 = vmatprep.subr.bf16.mxu0 %v1975
        %2707 = vmatpush1.bf16.msra.mxu0 %v1974
        %2708 = vmatprep.subr.bf16.mxu0 %v1984
        %2709 = vmatpush1.bf16.msra.mxu0 %v1983
        %2710 = vmatprep.subr.bf16.mxu0 %v1993
        %2711 = vmatpush1.bf16.msra.mxu0 %v1992
        %2712 = vmatprep.subr.bf16.mxu0 %v2002
        %2713 = vmatpush1.bf16.msra.mxu0 %v2001
        %2714 = vmatprep.mubr.bf16.mxu0 %v592
        %2715 = vmatmul.mubr.bf16.gmra.mrb[0].mxu0 %v591
        %v2716 = vpop.f32.mrb[0].mxu0
        %v2717 = vadd.f32 %v946, %v2716
        %v2718 = vpop.f32.mrb[0].mxu0
        %v2719 = vadd.f32 %v950, %v2718
        %v2720 = vpop.f32.mrb[0].mxu0
        %v2721 = vpop.f32.mrb[0].mxu0
        %2722 = vdwg.mxu0
        %2723 = vmatprep.subr.bf16.mxu0 %v2011
        %2724 = vmatpush1.bf16.msra.mxu0 %v2010
        %2725 = vmatprep.subr.bf16.mxu0 %v2020
        %2726 = vmatpush1.bf16.msra.mxu0 %v2019
        %2727 = vmatprep.subr.bf16.mxu0 %v2029
        %2728 = vmatpush1.bf16.msra.mxu0 %v2028
        %2729 = vmatprep.subr.bf16.mxu0 %v2038
        %2730 = vmatpush1.bf16.msra.mxu0 %v2037
        %2731 = vmatprep.subr.bf16.mxu0 %v2047
        %2732 = vmatpush1.bf16.msra.mxu0 %v2046
        %2733 = vmatprep.subr.bf16.mxu0 %v2056
        %2734 = vmatpush1.bf16.msra.mxu0 %v2055
        %2735 = vmatprep.subr.bf16.mxu0 %v2065
        %2736 = vmatpush1.bf16.msra.mxu0 %v2064
        %2737 = vmatprep.subr.bf16.mxu0 %v2074
        %2738 = vmatpush1.bf16.msra.mxu0 %v2073
        %2739 = vmatprep.subr.bf16.mxu0 %v2083
        %2740 = vmatpush1.bf16.msra.mxu0 %v2082
        %2741 = vmatprep.subr.bf16.mxu0 %v2092
        %2742 = vmatpush1.bf16.msra.mxu0 %v2091
        %2743 = vmatprep.subr.bf16.mxu0 %v2101
        %2744 = vmatpush1.bf16.msra.mxu0 %v2100
        %2745 = vmatprep.subr.bf16.mxu0 %v2110
        %2746 = vmatpush1.bf16.msra.mxu0 %v2109
        %2747 = vmatprep.subr.bf16.mxu0 %v2119
        %2748 = vmatpush1.bf16.msra.mxu0 %v2118
        %2749 = vmatprep.subr.bf16.mxu0 %v2128
        %2750 = vmatpush1.bf16.msra.mxu0 %v2127
        %2751 = vmatprep.subr.bf16.mxu0 %v2137
        %2752 = vmatpush1.bf16.msra.mxu0 %v2136
        %2753 = vmatprep.subr.bf16.mxu0 %v2146
        %2754 = vmatpush1.bf16.msra.mxu0 %v2145
        %2755 = vmatprep.mubr.bf16.mxu0 %v594
        %2756 = vmatmul.mubr.bf16.gmra.mrb[0].mxu0 %v593
        %v2757 = vpop.f32.mrb[0].mxu0
        %v2758 = vadd.f32 %v2717, %v2757
        %v2759 = vpop.f32.mrb[0].mxu0
        %v2760 = vadd.f32 %v2719, %v2759
        %v2761 = vpop.f32.mrb[0].mxu0
        %v2762 = vpop.f32.mrb[0].mxu0
        %2763 = vdwg.mxu0
        %2764 = vmatprep.subr.bf16.mxu0 0
        %2765 = vmatpush1.bf16.msra.mxu0 %v1868
        %2766 = vmatprep.subr.bf16.mxu0 0
        %2767 = vmatpush1.bf16.msra.mxu0 %v1877
        %2768 = vmatprep.subr.bf16.mxu0 0
        %2769 = vmatpush1.bf16.msra.mxu0 %v1886
        %2770 = vmatprep.subr.bf16.mxu0 0
        %2771 = vmatpush1.bf16.msra.mxu0 %v1895
        %2772 = vmatprep.subr.bf16.mxu0 0
        %2773 = vmatpush1.bf16.msra.mxu0 %v1904
        %2774 = vmatprep.subr.bf16.mxu0 0
        %2775 = vmatpush1.bf16.msra.mxu0 %v1913
        %2776 = vmatprep.subr.bf16.mxu0 0
        %2777 = vmatpush1.bf16.msra.mxu0 %v1922
        %2778 = vmatprep.subr.bf16.mxu0 0
        %2779 = vmatpush1.bf16.msra.mxu0 %v1931
        %2780 = vmatprep.subr.bf16.mxu0 0
        %2781 = vmatpush1.bf16.msra.mxu0 %v1940
        %2782 = vmatprep.subr.bf16.mxu0 0
        %2783 = vmatpush1.bf16.msra.mxu0 %v1949
        %2784 = vmatprep.subr.bf16.mxu0 0
        %2785 = vmatpush1.bf16.msra.mxu0 %v1958
        %2786 = vmatprep.subr.bf16.mxu0 0
        %2787 = vmatpush1.bf16.msra.mxu0 %v1967
        %2788 = vmatprep.subr.bf16.mxu0 0
        %2789 = vmatpush1.bf16.msra.mxu0 %v1976
        %2790 = vmatprep.subr.bf16.mxu0 0
        %2791 = vmatpush1.bf16.msra.mxu0 %v1985
        %2792 = vmatprep.subr.bf16.mxu0 0
        %2793 = vmatpush1.bf16.msra.mxu0 %v1994
        %2794 = vmatprep.subr.bf16.mxu0 0
        %2795 = vmatpush1.bf16.msra.mxu0 %v2003
        %2796 = vmatprep.mubr.bf16.mxu0 %v592
        %2797 = vmatmul.mubr.bf16.gmra.mrb[0].mxu0 %v591
        %v2798 = vpop.f32.mrb[0].mxu0
        %v2799 = vadd.f32 %v954, %v2798
        %v2800 = vpop.f32.mrb[0].mxu0
        %v2801 = vpop.f32.mrb[0].mxu0
        %v2802 = vpop.f32.mrb[0].mxu0
        %2803 = vdwg.mxu0
        %2804 = vmatprep.subr.bf16.mxu0 0
        %2805 = vmatpush1.bf16.msra.mxu0 %v2012
        %2806 = vmatprep.subr.bf16.mxu0 0
        %2807 = vmatpush1.bf16.msra.mxu0 %v2021
        %2808 = vmatprep.subr.bf16.mxu0 0
        %2809 = vmatpush1.bf16.msra.mxu0 %v2030
        %2810 = vmatprep.subr.bf16.mxu0 0
        %2811 = vmatpush1.bf16.msra.mxu0 %v2039
        %2812 = vmatprep.subr.bf16.mxu0 0
        %2813 = vmatpush1.bf16.msra.mxu0 %v2048
        %2814 = vmatprep.subr.bf16.mxu0 0
        %2815 = vmatpush1.bf16.msra.mxu0 %v2057
        %2816 = vmatprep.subr.bf16.mxu0 0
        %2817 = vmatpush1.bf16.msra.mxu0 %v2066
        %2818 = vmatprep.subr.bf16.mxu0 0
        %2819 = vmatpush1.bf16.msra.mxu0 %v2075
        %2820 = vmatprep.subr.bf16.mxu0 0
        %2821 = vmatpush1.bf16.msra.mxu0 %v2084
        %2822 = vmatprep.subr.bf16.mxu0 0
        %2823 = vmatpush1.bf16.msra.mxu0 %v2093
        %2824 = vmatprep.subr.bf16.mxu0 0
        %2825 = vmatpush1.bf16.msra.mxu0 %v2102
        %2826 = vmatprep.subr.bf16.mxu0 0
        %2827 = vmatpush1.bf16.msra.mxu0 %v2111
        %2828 = vmatprep.subr.bf16.mxu0 0
        %2829 = vmatpush1.bf16.msra.mxu0 %v2120
        %2830 = vmatprep.subr.bf16.mxu0 0
        %2831 = vmatpush1.bf16.msra.mxu0 %v2129
        %2832 = vmatprep.subr.bf16.mxu0 0
        %2833 = vmatpush1.bf16.msra.mxu0 %v2138
        %2834 = vmatprep.subr.bf16.mxu0 0
        %2835 = vmatpush1.bf16.msra.mxu0 %v2147
        %2836 = vmatprep.mubr.bf16.mxu0 %v594
        %2837 = vmatmul.mubr.bf16.gmra.mrb[0].mxu0 %v593
        %v2838 = vpop.f32.mrb[0].mxu0
        %v2839 = vadd.f32 %v2799, %v2838
        %v2840 = vpop.f32.mrb[0].mxu0
        %v2841 = vpop.f32.mrb[0].mxu0
        %v2842 = vpop.f32.mrb[0].mxu0
        %2843 = vdwg.mxu0
        %v2844 = vmax.f32 %v2512, 0.0
        %v2845 = vmax.f32 %v2514, 0.0
        %v2846 = vmax.f32 %v2594, 0.0
        %v2847 = vmax.f32 %v2596, 0.0
        %v2848 = vmax.f32 %v2676, 0.0
        %v2849 = vmax.f32 %v2678, 0.0
        %v2850 = vmax.f32 %v2758, 0.0
        %v2851 = vmax.f32 %v2760, 0.0
        %v2852 = vmax.f32 %v2839, 0.0
        %v2853 = vpack.c.bf16 %v2844, %v2844
        %v2854 = vpack.c.bf16 %v2845, %v2845
        %v2855 = vpack.c.bf16 %v2846, %v2846
        %v2856 = vpack.c.bf16 %v2847, %v2847
        %v2857 = vpack.c.bf16 %v2848, %v2848
        %v2858 = vpack.c.bf16 %v2849, %v2849
        %v2859 = vpack.c.bf16 %v2850, %v2850
        %v2860 = vpack.c.bf16 %v2851, %v2851
        %v2861 = vpack.c.bf16 %v2852, %v2852
        %v2862 = vld [vmem:[%s354] sm:$0xff]
        %v2863 = vld [vmem:[%s354 + $0x8] sm:$0xff]
        %v2864 = vld [vmem:[%s354 + $0x10] sm:$0xff]
        %v2865 = vld [vmem:[%s354 + $0x18] sm:$0xff]
        %v2866 = vld [vmem:[%s354 + $0x20] sm:$0xff]
        %v2867 = vld [vmem:[%s354 + $0x28] sm:$0xff]
        %v2868 = vld [vmem:[%s354 + $0x30] sm:$0xf]
        %v2869 = vld [vmem:[%s354 + $0x34] sm:$0xff]
        %v2870 = vld [vmem:[%s354 + $0x3c] sm:$0xff]
        %v2871 = vld [vmem:[%s354 + $0x44] sm:$0xff]
        %v2872 = vld [vmem:[%s354 + $0x4c] sm:$0xff]
        %v2873 = vld [vmem:[%s354 + $0x54] sm:$0xff]
        %v2874 = vld [vmem:[%s354 + $0x5c] sm:$0xff]
        %v2875 = vld [vmem:[%s354 + $0x64] sm:$0xf]
        %v2876 = vld [vmem:[%s354 + $0x68] sm:$0xff]
        %v2877 = vld [vmem:[%s354 + $0x70] sm:$0xff]
        %v2878 = vld [vmem:[%s354 + $0x78] sm:$0xff]
        %v2879 = vld [vmem:[%s354 + $0x80] sm:$0xff]
        %v2880 = vld [vmem:[%s354 + $0x88] sm:$0xff]
        %v2881 = vld [vmem:[%s354 + $0x90] sm:$0xff]
        %v2882 = vld [vmem:[%s354 + $0x98] sm:$0xf]
        %v2883 = vld [vmem:[%s354 + $0x9c] sm:$0xff]
        %v2884 = vld [vmem:[%s354 + $0xa4] sm:$0xff]
        %v2885 = vld [vmem:[%s354 + $0xac] sm:$0xff]
        %v2886 = vld [vmem:[%s354 + $0xb4] sm:$0xff]
        %v2887 = vld [vmem:[%s354 + $0xbc] sm:$0xff]
        %v2888 = vld [vmem:[%s354 + $0xc4] sm:$0xff]
        %v2889 = vld [vmem:[%s354 + $0xcc] sm:$0xf]
        %v2890 = vld [vmem:[%s354 + $0xd0] sm:$0xff]
        %v2891 = vld [vmem:[%s354 + $0xd8] sm:$0xff]
        %v2892 = vld [vmem:[%s354 + $0xe0] sm:$0xff]
        %v2893 = vld [vmem:[%s354 + $0xe8] sm:$0xff]
        %v2894 = vld [vmem:[%s354 + $0xf0] sm:$0xff]
        %v2895 = vld [vmem:[%s354 + $0xf8] sm:$0xff]
        %v2896 = vld [vmem:[%s354 + $0x100] sm:$0xf]
        %v2897 = vld [vmem:[%s354 + $0x104] sm:$0xff]
        %v2898 = vld [vmem:[%s354 + $0x10c] sm:$0xff]
        %v2899 = vld [vmem:[%s354 + $0x114] sm:$0xff]
        %v2900 = vld [vmem:[%s354 + $0x11c] sm:$0xff]
        %v2901 = vld [vmem:[%s354 + $0x124] sm:$0xff]
        %v2902 = vld [vmem:[%s354 + $0x12c] sm:$0xff]
        %v2903 = vld [vmem:[%s354 + $0x134] sm:$0xf]
        %v2904 = vld [vmem:[%s354 + $0x138] sm:$0xff]
        %v2905 = vld [vmem:[%s354 + $0x140] sm:$0xff]
        %v2906 = vld [vmem:[%s354 + $0x148] sm:$0xff]
        %v2907 = vld [vmem:[%s354 + $0x150] sm:$0xff]
        %v2908 = vld [vmem:[%s354 + $0x158] sm:$0xff]
        %v2909 = vld [vmem:[%s354 + $0x160] sm:$0xff]
        %v2910 = vld [vmem:[%s354 + $0x168] sm:$0xf]
        %v2911 = vld [vmem:[%s354 + $0x16c] sm:$0xff]
        %v2912 = vld [vmem:[%s354 + $0x174] sm:$0xff]
        %v2913 = vld [vmem:[%s354 + $0x17c] sm:$0xff]
        %v2914 = vld [vmem:[%s354 + $0x184] sm:$0xff]
        %v2915 = vld [vmem:[%s354 + $0x18c] sm:$0xff]
        %v2916 = vld [vmem:[%s354 + $0x194] sm:$0xff]
        %v2917 = vld [vmem:[%s354 + $0x19c] sm:$0xf]
        %v2918 = vld [vmem:[%s354 + $0x1a0] sm:$0xff]
        %v2919 = vld [vmem:[%s354 + $0x1a8] sm:$0xff]
        %v2920 = vld [vmem:[%s354 + $0x1b0] sm:$0xff]
        %v2921 = vld [vmem:[%s354 + $0x1b8] sm:$0xff]
        %v2922 = vld [vmem:[%s354 + $0x1c0] sm:$0xff]
        %v2923 = vld [vmem:[%s354 + $0x1c8] sm:$0xff]
        %v2924 = vld [vmem:[%s354 + $0x1d0] sm:$0xf]
        %v2925 = vld [vmem:[%s354 + $0x1d4] sm:$0xff]
        %v2926 = vld [vmem:[%s354 + $0x1dc] sm:$0xff]
        %v2927 = vld [vmem:[%s354 + $0x1e4] sm:$0xff]
        %v2928 = vld [vmem:[%s354 + $0x1ec] sm:$0xff]
        %v2929 = vld [vmem:[%s354 + $0x1f4] sm:$0xff]
        %v2930 = vld [vmem:[%s354 + $0x1fc] sm:$0xff]
        %v2931 = vld [vmem:[%s354 + $0x204] sm:$0xf]
        %v2932 = vld [vmem:[%s354 + $0x208] sm:$0xff]
        %v2933 = vld [vmem:[%s354 + $0x210] sm:$0xff]
        %v2934 = vld [vmem:[%s354 + $0x218] sm:$0xff]
        %v2935 = vld [vmem:[%s354 + $0x220] sm:$0xff]
        %v2936 = vld [vmem:[%s354 + $0x228] sm:$0xff]
        %v2937 = vld [vmem:[%s354 + $0x230] sm:$0xff]
        %v2938 = vld [vmem:[%s354 + $0x238] sm:$0xf]
        %v2939 = vld [vmem:[%s354 + $0x23c] sm:$0xff]
        %v2940 = vld [vmem:[%s354 + $0x244] sm:$0xff]
        %v2941 = vld [vmem:[%s354 + $0x24c] sm:$0xff]
        %v2942 = vld [vmem:[%s354 + $0x254] sm:$0xff]
        %v2943 = vld [vmem:[%s354 + $0x25c] sm:$0xff]
        %v2944 = vld [vmem:[%s354 + $0x264] sm:$0xff]
        %v2945 = vld [vmem:[%s354 + $0x26c] sm:$0xf]
        %v2946 = vld [vmem:[%s354 + $0x270] sm:$0xff]
        %v2947 = vld [vmem:[%s354 + $0x278] sm:$0xff]
        %v2948 = vld [vmem:[%s354 + $0x280] sm:$0xff]
        %v2949 = vld [vmem:[%s354 + $0x288] sm:$0xff]
        %v2950 = vld [vmem:[%s354 + $0x290] sm:$0xff]
        %v2951 = vld [vmem:[%s354 + $0x298] sm:$0xff]
        %v2952 = vld [vmem:[%s354 + $0x2a0] sm:$0xf]
        %v2953 = vld [vmem:[%s354 + $0x2a4] sm:$0xff]
        %v2954 = vld [vmem:[%s354 + $0x2ac] sm:$0xff]
        %v2955 = vld [vmem:[%s354 + $0x2b4] sm:$0xff]
        %v2956 = vld [vmem:[%s354 + $0x2bc] sm:$0xff]
        %v2957 = vld [vmem:[%s354 + $0x2c4] sm:$0xff]
        %v2958 = vld [vmem:[%s354 + $0x2cc] sm:$0xff]
        %v2959 = vld [vmem:[%s354 + $0x2d4] sm:$0xf]
        %v2960 = vld [vmem:[%s354 + $0x2d8] sm:$0xff]
        %v2961 = vld [vmem:[%s354 + $0x2e0] sm:$0xff]
        %v2962 = vld [vmem:[%s354 + $0x2e8] sm:$0xff]
        %v2963 = vld [vmem:[%s354 + $0x2f0] sm:$0xff]
        %v2964 = vld [vmem:[%s354 + $0x2f8] sm:$0xff]
        %v2965 = vld [vmem:[%s354 + $0x300] sm:$0xff]
        %v2966 = vld [vmem:[%s354 + $0x308] sm:$0xf]
        %v2967 = vld [vmem:[%s354 + $0x30c] sm:$0xff]
        %v2968 = vld [vmem:[%s354 + $0x314] sm:$0xff]
        %v2969 = vld [vmem:[%s354 + $0x31c] sm:$0xff]
        %v2970 = vld [vmem:[%s354 + $0x324] sm:$0xff]
        %v2971 = vld [vmem:[%s354 + $0x32c] sm:$0xff]
        %v2972 = vld [vmem:[%s354 + $0x334] sm:$0xff]
        %v2973 = vld [vmem:[%s354 + $0x33c] sm:$0xf]
        %v2974 = vld [vmem:[%s354 + $0x340] sm:$0xff]
        %v2975 = vld [vmem:[%s354 + $0x348] sm:$0xff]
        %v2976 = vld [vmem:[%s354 + $0x350] sm:$0xff]
        %v2977 = vld [vmem:[%s354 + $0x358] sm:$0xff]
        %v2978 = vld [vmem:[%s354 + $0x360] sm:$0xff]
        %v2979 = vld [vmem:[%s354 + $0x368] sm:$0xff]
        %v2980 = vld [vmem:[%s354 + $0x370] sm:$0xf]
        %v2981 = vld [vmem:[%s354 + $0x374] sm:$0xff]
        %v2982 = vld [vmem:[%s354 + $0x37c] sm:$0xff]
        %v2983 = vld [vmem:[%s354 + $0x384] sm:$0xff]
        %v2984 = vld [vmem:[%s354 + $0x38c] sm:$0xff]
        %v2985 = vld [vmem:[%s354 + $0x394] sm:$0xff]
        %v2986 = vld [vmem:[%s354 + $0x39c] sm:$0xff]
        %v2987 = vld [vmem:[%s354 + $0x3a4] sm:$0xf]
        %v2988 = vld [vmem:[%s354 + $0x3a8] sm:$0xff]
        %v2989 = vld [vmem:[%s354 + $0x3b0] sm:$0xff]
        %v2990 = vld [vmem:[%s354 + $0x3b8] sm:$0xff]
        %v2991 = vld [vmem:[%s354 + $0x3c0] sm:$0xff]
        %v2992 = vld [vmem:[%s354 + $0x3c8] sm:$0xff]
        %v2993 = vld [vmem:[%s354 + $0x3d0] sm:$0xff]
        %v2994 = vld [vmem:[%s354 + $0x3d8] sm:$0xf]
        %v2995 = vld [vmem:[%s354 + $0x3dc] sm:$0xff]
        %v2996 = vld [vmem:[%s354 + $0x3e4] sm:$0xff]
        %v2997 = vld [vmem:[%s354 + $0x3ec] sm:$0xff]
        %v2998 = vld [vmem:[%s354 + $0x3f4] sm:$0xff]
        %v2999 = vld [vmem:[%s354 + $0x3fc] sm:$0xff]
        %v3000 = vld [vmem:[%s354 + $0x404] sm:$0xff]
        %v3001 = vld [vmem:[%s354 + $0x40c] sm:$0xf]
        %v3002 = vld [vmem:[%s354 + $0x410] sm:$0xff]
        %v3003 = vld [vmem:[%s354 + $0x418] sm:$0xff]
        %v3004 = vld [vmem:[%s354 + $0x420] sm:$0xff]
        %v3005 = vld [vmem:[%s354 + $0x428] sm:$0xff]
        %v3006 = vld [vmem:[%s354 + $0x430] sm:$0xff]
        %v3007 = vld [vmem:[%s354 + $0x438] sm:$0xff]
        %v3008 = vld [vmem:[%s354 + $0x440] sm:$0xf]
        %v3009 = vld [vmem:[%s354 + $0x444] sm:$0xff]
        %v3010 = vld [vmem:[%s354 + $0x44c] sm:$0xff]
        %v3011 = vld [vmem:[%s354 + $0x454] sm:$0xff]
        %v3012 = vld [vmem:[%s354 + $0x45c] sm:$0xff]
        %v3013 = vld [vmem:[%s354 + $0x464] sm:$0xff]
        %v3014 = vld [vmem:[%s354 + $0x46c] sm:$0xff]
        %v3015 = vld [vmem:[%s354 + $0x474] sm:$0xf]
        %v3016 = vld [vmem:[%s354 + $0x478] sm:$0xff]
        %v3017 = vld [vmem:[%s354 + $0x480] sm:$0xff]
        %v3018 = vld [vmem:[%s354 + $0x488] sm:$0xff]
        %v3019 = vld [vmem:[%s354 + $0x490] sm:$0xff]
        %v3020 = vld [vmem:[%s354 + $0x498] sm:$0xff]
        %v3021 = vld [vmem:[%s354 + $0x4a0] sm:$0xff]
        %v3022 = vld [vmem:[%s354 + $0x4a8] sm:$0xf]
        %v3023 = vld [vmem:[%s354 + $0x4ac] sm:$0xff]
        %v3024 = vld [vmem:[%s354 + $0x4b4] sm:$0xff]
        %v3025 = vld [vmem:[%s354 + $0x4bc] sm:$0xff]
        %v3026 = vld [vmem:[%s354 + $0x4c4] sm:$0xff]
        %v3027 = vld [vmem:[%s354 + $0x4cc] sm:$0xff]
        %v3028 = vld [vmem:[%s354 + $0x4d4] sm:$0xff]
        %v3029 = vld [vmem:[%s354 + $0x4dc] sm:$0xf]
        %v3030 = vld [vmem:[%s354 + $0x4e0] sm:$0xff]
        %v3031 = vld [vmem:[%s354 + $0x4e8] sm:$0xff]
        %v3032 = vld [vmem:[%s354 + $0x4f0] sm:$0xff]
        %v3033 = vld [vmem:[%s354 + $0x4f8] sm:$0xff]
        %v3034 = vld [vmem:[%s354 + $0x500] sm:$0xff]
        %v3035 = vld [vmem:[%s354 + $0x508] sm:$0xff]
        %v3036 = vld [vmem:[%s354 + $0x510] sm:$0xf]
        %v3037 = vld [vmem:[%s354 + $0x514] sm:$0xff]
        %v3038 = vld [vmem:[%s354 + $0x51c] sm:$0xff]
        %v3039 = vld [vmem:[%s354 + $0x524] sm:$0xff]
        %v3040 = vld [vmem:[%s354 + $0x52c] sm:$0xff]
        %v3041 = vld [vmem:[%s354 + $0x534] sm:$0xff]
        %v3042 = vld [vmem:[%s354 + $0x53c] sm:$0xff]
        %v3043 = vld [vmem:[%s354 + $0x544] sm:$0xf]
        %v3044 = vld [vmem:[%s354 + $0x548] sm:$0xff]
        %v3045 = vld [vmem:[%s354 + $0x550] sm:$0xff]
        %v3046 = vld [vmem:[%s354 + $0x558] sm:$0xff]
        %v3047 = vld [vmem:[%s354 + $0x560] sm:$0xff]
        %v3048 = vld [vmem:[%s354 + $0x568] sm:$0xff]
        %v3049 = vld [vmem:[%s354 + $0x570] sm:$0xff]
        %v3050 = vld [vmem:[%s354 + $0x578] sm:$0xf]
        %v3051 = vld [vmem:[%s354 + $0x57c] sm:$0xff]
        %v3052 = vld [vmem:[%s354 + $0x584] sm:$0xff]
        %v3053 = vld [vmem:[%s354 + $0x58c] sm:$0xff]
        %v3054 = vld [vmem:[%s354 + $0x594] sm:$0xff]
        %v3055 = vld [vmem:[%s354 + $0x59c] sm:$0xff]
        %v3056 = vld [vmem:[%s354 + $0x5a4] sm:$0xff]
        %v3057 = vld [vmem:[%s354 + $0x5ac] sm:$0xf]
        %v3058 = vld [vmem:[%s354 + $0x5b0] sm:$0xff]
        %v3059 = vld [vmem:[%s354 + $0x5b8] sm:$0xff]
        %v3060 = vld [vmem:[%s354 + $0x5c0] sm:$0xff]
        %v3061 = vld [vmem:[%s354 + $0x5c8] sm:$0xff]
        %v3062 = vld [vmem:[%s354 + $0x5d0] sm:$0xff]
        %v3063 = vld [vmem:[%s354 + $0x5d8] sm:$0xff]
        %v3064 = vld [vmem:[%s354 + $0x5e0] sm:$0xf]
        %v3065 = vld [vmem:[%s354 + $0x5e4] sm:$0xff]
        %v3066 = vld [vmem:[%s354 + $0x5ec] sm:$0xff]
        %v3067 = vld [vmem:[%s354 + $0x5f4] sm:$0xff]
        %v3068 = vld [vmem:[%s354 + $0x5fc] sm:$0xff]
        %v3069 = vld [vmem:[%s354 + $0x604] sm:$0xff]
        %v3070 = vld [vmem:[%s354 + $0x60c] sm:$0xff]
        %v3071 = vld [vmem:[%s354 + $0x614] sm:$0xf]
        %v3072 = vld [vmem:[%s354 + $0x618] sm:$0xff]
        %v3073 = vld [vmem:[%s354 + $0x620] sm:$0xff]
        %v3074 = vld [vmem:[%s354 + $0x628] sm:$0xff]
        %v3075 = vld [vmem:[%s354 + $0x630] sm:$0xff]
        %v3076 = vld [vmem:[%s354 + $0x638] sm:$0xff]
        %v3077 = vld [vmem:[%s354 + $0x640] sm:$0xff]
        %v3078 = vld [vmem:[%s354 + $0x648] sm:$0xf]
        %v3079 = vld [vmem:[%s354 + $0x64c] sm:$0xff]
        %v3080 = vld [vmem:[%s354 + $0x654] sm:$0xff]
        %v3081 = vld [vmem:[%s354 + $0x65c] sm:$0xff]
        %v3082 = vld [vmem:[%s354 + $0x664] sm:$0xff]
        %v3083 = vld [vmem:[%s354 + $0x66c] sm:$0xff]
        %v3084 = vld [vmem:[%s354 + $0x674] sm:$0xff]
        %v3085 = vld [vmem:[%s354 + $0x67c] sm:$0xf]
        %v3086 = vld [vmem:[%s354 + $0x680] sm:$0xff]
        %v3087 = vld [vmem:[%s354 + $0x688] sm:$0xff]
        %v3088 = vld [vmem:[%s354 + $0x690] sm:$0xff]
        %v3089 = vld [vmem:[%s354 + $0x698] sm:$0xff]
        %v3090 = vld [vmem:[%s354 + $0x6a0] sm:$0xff]
        %v3091 = vld [vmem:[%s354 + $0x6a8] sm:$0xff]
        %v3092 = vld [vmem:[%s354 + $0x6b0] sm:$0xf]
        %v3093 = vld [vmem:[%s354 + $0x6b4] sm:$0xff]
        %v3094 = vld [vmem:[%s354 + $0x6bc] sm:$0xff]
        %v3095 = vld [vmem:[%s354 + $0x6c4] sm:$0xff]
        %v3096 = vld [vmem:[%s354 + $0x6cc] sm:$0xff]
        %v3097 = vld [vmem:[%s354 + $0x6d4] sm:$0xff]
        %v3098 = vld [vmem:[%s354 + $0x6dc] sm:$0xff]
        %v3099 = vld [vmem:[%s354 + $0x6e4] sm:$0xf]
        %v3100 = vld [vmem:[%s354 + $0x6e8] sm:$0xff]
        %v3101 = vld [vmem:[%s354 + $0x6f0] sm:$0xff]
        %v3102 = vld [vmem:[%s354 + $0x6f8] sm:$0xff]
        %v3103 = vld [vmem:[%s354 + $0x700] sm:$0xff]
        %v3104 = vld [vmem:[%s354 + $0x708] sm:$0xff]
        %v3105 = vld [vmem:[%s354 + $0x710] sm:$0xff]
        %v3106 = vld [vmem:[%s354 + $0x718] sm:$0xf]
        %v3107 = vld [vmem:[%s354 + $0x71c] sm:$0xff]
        %v3108 = vld [vmem:[%s354 + $0x724] sm:$0xff]
        %v3109 = vld [vmem:[%s354 + $0x72c] sm:$0xff]
        %v3110 = vld [vmem:[%s354 + $0x734] sm:$0xff]
        %v3111 = vld [vmem:[%s354 + $0x73c] sm:$0xff]
        %v3112 = vld [vmem:[%s354 + $0x744] sm:$0xff]
        %v3113 = vld [vmem:[%s354 + $0x74c] sm:$0xf]
        %v3114 = vld [vmem:[%s354 + $0x750] sm:$0xff]
        %v3115 = vld [vmem:[%s354 + $0x758] sm:$0xff]
        %v3116 = vld [vmem:[%s354 + $0x760] sm:$0xff]
        %v3117 = vld [vmem:[%s354 + $0x768] sm:$0xff]
        %v3118 = vld [vmem:[%s354 + $0x770] sm:$0xff]
        %v3119 = vld [vmem:[%s354 + $0x778] sm:$0xff]
        %v3120 = vld [vmem:[%s354 + $0x780] sm:$0xf]
        %v3121 = vld [vmem:[%s354 + $0x784] sm:$0xff]
        %v3122 = vld [vmem:[%s354 + $0x78c] sm:$0xff]
        %v3123 = vld [vmem:[%s354 + $0x794] sm:$0xff]
        %v3124 = vld [vmem:[%s354 + $0x79c] sm:$0xff]
        %v3125 = vld [vmem:[%s354 + $0x7a4] sm:$0xff]
        %v3126 = vld [vmem:[%s354 + $0x7ac] sm:$0xff]
        %v3127 = vld [vmem:[%s354 + $0x7b4] sm:$0xf]
        %v3128 = vld [vmem:[%s354 + $0x7b8] sm:$0xff]
        %v3129 = vld [vmem:[%s354 + $0x7c0] sm:$0xff]
        %v3130 = vld [vmem:[%s354 + $0x7c8] sm:$0xff]
        %v3131 = vld [vmem:[%s354 + $0x7d0] sm:$0xff]
        %v3132 = vld [vmem:[%s354 + $0x7d8] sm:$0xff]
        %v3133 = vld [vmem:[%s354 + $0x7e0] sm:$0xff]
        %v3134 = vld [vmem:[%s354 + $0x7e8] sm:$0xf]
        %v3135 = vld [vmem:[%s354 + $0x7ec] sm:$0xff]
        %v3136 = vld [vmem:[%s354 + $0x7f4] sm:$0xff]
        %v3137 = vld [vmem:[%s354 + $0x7fc] sm:$0xff]
        %v3138 = vld [vmem:[%s354 + $0x804] sm:$0xff]
        %v3139 = vld [vmem:[%s354 + $0x80c] sm:$0xff]
        %v3140 = vld [vmem:[%s354 + $0x814] sm:$0xff]
        %v3141 = vld [vmem:[%s354 + $0x81c] sm:$0xf]
        %v3142 = vld [vmem:[%s354 + $0x820] sm:$0xff]
        %v3143 = vld [vmem:[%s354 + $0x828] sm:$0xff]
        %v3144 = vld [vmem:[%s354 + $0x830] sm:$0xff]
        %v3145 = vld [vmem:[%s354 + $0x838] sm:$0xff]
        %v3146 = vld [vmem:[%s354 + $0x840] sm:$0xff]
        %v3147 = vld [vmem:[%s354 + $0x848] sm:$0xff]
        %v3148 = vld [vmem:[%s354 + $0x850] sm:$0xf]
        %v3149 = vld [vmem:[%s354 + $0x854] sm:$0xff]
        %v3150 = vld [vmem:[%s354 + $0x85c] sm:$0xff]
        %v3151 = vld [vmem:[%s354 + $0x864] sm:$0xff]
        %v3152 = vld [vmem:[%s354 + $0x86c] sm:$0xff]
        %v3153 = vld [vmem:[%s354 + $0x874] sm:$0xff]
        %v3154 = vld [vmem:[%s354 + $0x87c] sm:$0xff]
        %v3155 = vld [vmem:[%s354 + $0x884] sm:$0xf]
        %v3156 = vld [vmem:[%s354 + $0x888] sm:$0xff]
        %v3157 = vld [vmem:[%s354 + $0x890] sm:$0xff]
        %v3158 = vld [vmem:[%s354 + $0x898] sm:$0xff]
        %v3159 = vld [vmem:[%s354 + $0x8a0] sm:$0xff]
        %v3160 = vld [vmem:[%s354 + $0x8a8] sm:$0xff]
        %v3161 = vld [vmem:[%s354 + $0x8b0] sm:$0xff]
        %v3162 = vld [vmem:[%s354 + $0x8b8] sm:$0xf]
        %v3163 = vld [vmem:[%s354 + $0x8bc] sm:$0xff]
        %v3164 = vld [vmem:[%s354 + $0x8c4] sm:$0xff]
        %v3165 = vld [vmem:[%s354 + $0x8cc] sm:$0xff]
        %v3166 = vld [vmem:[%s354 + $0x8d4] sm:$0xff]
        %v3167 = vld [vmem:[%s354 + $0x8dc] sm:$0xff]
        %v3168 = vld [vmem:[%s354 + $0x8e4] sm:$0xff]
        %v3169 = vld [vmem:[%s354 + $0x8ec] sm:$0xf]
        %v3170 = vld [vmem:[%s354 + $0x8f0] sm:$0xff]
        %v3171 = vld [vmem:[%s354 + $0x8f8] sm:$0xff]
        %v3172 = vld [vmem:[%s354 + $0x900] sm:$0xff]
        %v3173 = vld [vmem:[%s354 + $0x908] sm:$0xff]
        %v3174 = vld [vmem:[%s354 + $0x910] sm:$0xff]
        %v3175 = vld [vmem:[%s354 + $0x918] sm:$0xff]
        %v3176 = vld [vmem:[%s354 + $0x920] sm:$0xf]
        %v3177 = vld [vmem:[%s354 + $0x924] sm:$0xff]
        %v3178 = vld [vmem:[%s354 + $0x92c] sm:$0xff]
        %v3179 = vld [vmem:[%s354 + $0x934] sm:$0xff]
        %v3180 = vld [vmem:[%s354 + $0x93c] sm:$0xff]
        %v3181 = vld [vmem:[%s354 + $0x944] sm:$0xff]
        %v3182 = vld [vmem:[%s354 + $0x94c] sm:$0xff]
        %v3183 = vld [vmem:[%s354 + $0x954] sm:$0xf]
        %v3184 = vld [vmem:[%s354 + $0x958] sm:$0xff]
        %v3185 = vld [vmem:[%s354 + $0x960] sm:$0xff]
        %v3186 = vld [vmem:[%s354 + $0x968] sm:$0xff]
        %v3187 = vld [vmem:[%s354 + $0x970] sm:$0xff]
        %v3188 = vld [vmem:[%s354 + $0x978] sm:$0xff]
        %v3189 = vld [vmem:[%s354 + $0x980] sm:$0xff]
        %v3190 = vld [vmem:[%s354 + $0x988] sm:$0xf]
        %v3191 = vld [vmem:[%s354 + $0x98c] sm:$0xff]
        %v3192 = vld [vmem:[%s354 + $0x994] sm:$0xff]
        %v3193 = vld [vmem:[%s354 + $0x99c] sm:$0xff]
        %v3194 = vld [vmem:[%s354 + $0x9a4] sm:$0xff]
        %v3195 = vld [vmem:[%s354 + $0x9ac] sm:$0xff]
        %v3196 = vld [vmem:[%s354 + $0x9b4] sm:$0xff]
        %v3197 = vld [vmem:[%s354 + $0x9bc] sm:$0xf]
        %v3198 = vld [vmem:[%s354 + $0x9c0] sm:$0xff]
        %v3199 = vld [vmem:[%s354 + $0x9c8] sm:$0xff]
        %v3200 = vld [vmem:[%s354 + $0x9d0] sm:$0xff]
        %v3201 = vld [vmem:[%s354 + $0x9d8] sm:$0xff]
        %v3202 = vld [vmem:[%s354 + $0x9e0] sm:$0xff]
        %v3203 = vld [vmem:[%s354 + $0x9e8] sm:$0xff]
        %v3204 = vld [vmem:[%s354 + $0x9f0] sm:$0xf]
        %v3205 = vld [vmem:[%s354 + $0x9f4] sm:$0xff]
        %v3206 = vld [vmem:[%s354 + $0x9fc] sm:$0xff]
        %v3207 = vld [vmem:[%s354 + $0xa04] sm:$0xff]
        %v3208 = vld [vmem:[%s354 + $0xa0c] sm:$0xff]
        %v3209 = vld [vmem:[%s354 + $0xa14] sm:$0xff]
        %v3210 = vld [vmem:[%s354 + $0xa1c] sm:$0xff]
        %v3211 = vld [vmem:[%s354 + $0xa24] sm:$0xf]
        %v3212 = vld [vmem:[%s354 + $0xa28] sm:$0xff]
        %v3213 = vld [vmem:[%s354 + $0xa30] sm:$0xff]
        %v3214 = vld [vmem:[%s354 + $0xa38] sm:$0xff]
        %v3215 = vld [vmem:[%s354 + $0xa40] sm:$0xff]
        %v3216 = vld [vmem:[%s354 + $0xa48] sm:$0xff]
        %v3217 = vld [vmem:[%s354 + $0xa50] sm:$0xff]
        %v3218 = vld [vmem:[%s354 + $0xa58] sm:$0xf]
        %v3219 = vld [vmem:[%s354 + $0xa5c] sm:$0xff]
        %v3220 = vld [vmem:[%s354 + $0xa64] sm:$0xff]
        %v3221 = vld [vmem:[%s354 + $0xa6c] sm:$0xff]
        %v3222 = vld [vmem:[%s354 + $0xa74] sm:$0xff]
        %v3223 = vld [vmem:[%s354 + $0xa7c] sm:$0xff]
        %v3224 = vld [vmem:[%s354 + $0xa84] sm:$0xff]
        %v3225 = vld [vmem:[%s354 + $0xa8c] sm:$0xf]
        %v3226 = vld [vmem:[%s354 + $0xa90] sm:$0xff]
        %v3227 = vld [vmem:[%s354 + $0xa98] sm:$0xff]
        %v3228 = vld [vmem:[%s354 + $0xaa0] sm:$0xff]
        %v3229 = vld [vmem:[%s354 + $0xaa8] sm:$0xff]
        %v3230 = vld [vmem:[%s354 + $0xab0] sm:$0xff]
        %v3231 = vld [vmem:[%s354 + $0xab8] sm:$0xff]
        %v3232 = vld [vmem:[%s354 + $0xac0] sm:$0xf]
        %v3233 = vld [vmem:[%s354 + $0xac4] sm:$0xff]
        %v3234 = vld [vmem:[%s354 + $0xacc] sm:$0xff]
        %v3235 = vld [vmem:[%s354 + $0xad4] sm:$0xff]
        %v3236 = vld [vmem:[%s354 + $0xadc] sm:$0xff]
        %v3237 = vld [vmem:[%s354 + $0xae4] sm:$0xff]
        %v3238 = vld [vmem:[%s354 + $0xaec] sm:$0xff]
        %v3239 = vld [vmem:[%s354 + $0xaf4] sm:$0xf]
        %v3240 = vld [vmem:[%s354 + $0xaf8] sm:$0xff]
        %v3241 = vld [vmem:[%s354 + $0xb00] sm:$0xff]
        %v3242 = vld [vmem:[%s354 + $0xb08] sm:$0xff]
        %v3243 = vld [vmem:[%s354 + $0xb10] sm:$0xff]
        %v3244 = vld [vmem:[%s354 + $0xb18] sm:$0xff]
        %v3245 = vld [vmem:[%s354 + $0xb20] sm:$0xff]
        %v3246 = vld [vmem:[%s354 + $0xb28] sm:$0xf]
        %v3247 = vld [vmem:[%s354 + $0xb2c] sm:$0xff]
        %v3248 = vld [vmem:[%s354 + $0xb34] sm:$0xff]
        %v3249 = vld [vmem:[%s354 + $0xb3c] sm:$0xff]
        %v3250 = vld [vmem:[%s354 + $0xb44] sm:$0xff]
        %v3251 = vld [vmem:[%s354 + $0xb4c] sm:$0xff]
        %v3252 = vld [vmem:[%s354 + $0xb54] sm:$0xff]
        %v3253 = vld [vmem:[%s354 + $0xb5c] sm:$0xf]
        %v3254 = vld [vmem:[%s354 + $0xb60] sm:$0xff]
        %v3255 = vld [vmem:[%s354 + $0xb68] sm:$0xff]
        %v3256 = vld [vmem:[%s354 + $0xb70] sm:$0xff]
        %v3257 = vld [vmem:[%s354 + $0xb78] sm:$0xff]
        %v3258 = vld [vmem:[%s354 + $0xb80] sm:$0xff]
        %v3259 = vld [vmem:[%s354 + $0xb88] sm:$0xff]
        %v3260 = vld [vmem:[%s354 + $0xb90] sm:$0xf]
        %v3261 = vld [vmem:[%s354 + $0xb94] sm:$0xff]
        %v3262 = vld [vmem:[%s354 + $0xb9c] sm:$0xff]
        %v3263 = vld [vmem:[%s354 + $0xba4] sm:$0xff]
        %v3264 = vld [vmem:[%s354 + $0xbac] sm:$0xff]
        %v3265 = vld [vmem:[%s354 + $0xbb4] sm:$0xff]
        %v3266 = vld [vmem:[%s354 + $0xbbc] sm:$0xff]
        %v3267 = vld [vmem:[%s354 + $0xbc4] sm:$0xf]
        %v3268 = vld [vmem:[%s354 + $0xbc8] sm:$0xff]
        %v3269 = vld [vmem:[%s354 + $0xbd0] sm:$0xff]
        %v3270 = vld [vmem:[%s354 + $0xbd8] sm:$0xff]
        %v3271 = vld [vmem:[%s354 + $0xbe0] sm:$0xff]
        %v3272 = vld [vmem:[%s354 + $0xbe8] sm:$0xff]
        %v3273 = vld [vmem:[%s354 + $0xbf0] sm:$0xff]
        %v3274 = vld [vmem:[%s354 + $0xbf8] sm:$0xf]
        %v3275 = vld [vmem:[%s354 + $0xbfc] sm:$0xff]
        %v3276 = vld [vmem:[%s354 + $0xc04] sm:$0xff]
        %v3277 = vld [vmem:[%s354 + $0xc0c] sm:$0xff]
        %v3278 = vld [vmem:[%s354 + $0xc14] sm:$0xff]
        %v3279 = vld [vmem:[%s354 + $0xc1c] sm:$0xff]
        %v3280 = vld [vmem:[%s354 + $0xc24] sm:$0xff]
        %v3281 = vld [vmem:[%s354 + $0xc2c] sm:$0xf]
        %v3282 = vld [vmem:[%s354 + $0xc30] sm:$0xff]
        %v3283 = vld [vmem:[%s354 + $0xc38] sm:$0xff]
        %v3284 = vld [vmem:[%s354 + $0xc40] sm:$0xff]
        %v3285 = vld [vmem:[%s354 + $0xc48] sm:$0xff]
        %v3286 = vld [vmem:[%s354 + $0xc50] sm:$0xff]
        %v3287 = vld [vmem:[%s354 + $0xc58] sm:$0xff]
        %v3288 = vld [vmem:[%s354 + $0xc60] sm:$0xf]
        %v3289 = vld [vmem:[%s354 + $0xc64] sm:$0xff]
        %v3290 = vld [vmem:[%s354 + $0xc6c] sm:$0xff]
        %v3291 = vld [vmem:[%s354 + $0xc74] sm:$0xff]
        %v3292 = vld [vmem:[%s354 + $0xc7c] sm:$0xff]
        %v3293 = vld [vmem:[%s354 + $0xc84] sm:$0xff]
        %v3294 = vld [vmem:[%s354 + $0xc8c] sm:$0xff]
        %v3295 = vld [vmem:[%s354 + $0xc94] sm:$0xf]
        %v3296 = vld [vmem:[%s354 + $0xc98] sm:$0xff]
        %v3297 = vld [vmem:[%s354 + $0xca0] sm:$0xff]
        %v3298 = vld [vmem:[%s354 + $0xca8] sm:$0xff]
        %v3299 = vld [vmem:[%s354 + $0xcb0] sm:$0xff]
        %v3300 = vld [vmem:[%s354 + $0xcb8] sm:$0xff]
        %v3301 = vld [vmem:[%s354 + $0xcc0] sm:$0xff]
        %v3302 = vld [vmem:[%s354 + $0xcc8] sm:$0xf]
        %v3303 = vld [vmem:[%s354 + $0xccc] sm:$0xff]
        %v3304 = vld [vmem:[%s354 + $0xcd4] sm:$0xff]
        %v3305 = vld [vmem:[%s354 + $0xcdc] sm:$0xff]
        %v3306 = vld [vmem:[%s354 + $0xce4] sm:$0xff]
        %v3307 = vld [vmem:[%s354 + $0xcec] sm:$0xff]
        %v3308 = vld [vmem:[%s354 + $0xcf4] sm:$0xff]
        %v3309 = vld [vmem:[%s354 + $0xcfc] sm:$0xf]
        %v3310 = vld [vmem:[%s354 + $0xd00] sm:$0xff]
        %v3311 = vld [vmem:[%s354 + $0xd08] sm:$0xff]
        %v3312 = vld [vmem:[%s354 + $0xd10] sm:$0xff]
        %v3313 = vld [vmem:[%s354 + $0xd18] sm:$0xff]
        %v3314 = vld [vmem:[%s354 + $0xd20] sm:$0xff]
        %v3315 = vld [vmem:[%s354 + $0xd28] sm:$0xff]
        %v3316 = vld [vmem:[%s354 + $0xd30] sm:$0xf]
        %v3317 = vld [vmem:[%s354 + $0xd34] sm:$0xff]
        %v3318 = vld [vmem:[%s354 + $0xd3c] sm:$0xff]
        %v3319 = vld [vmem:[%s354 + $0xd44] sm:$0xff]
        %v3320 = vld [vmem:[%s354 + $0xd4c] sm:$0xff]
        %v3321 = vld [vmem:[%s354 + $0xd54] sm:$0xff]
        %v3322 = vld [vmem:[%s354 + $0xd5c] sm:$0xff]
        %v3323 = vld [vmem:[%s354 + $0xd64] sm:$0xf]
        %v3324 = vld [vmem:[%s354 + $0xd68] sm:$0xff]
        %v3325 = vld [vmem:[%s354 + $0xd70] sm:$0xff]
        %v3326 = vld [vmem:[%s354 + $0xd78] sm:$0xff]
        %v3327 = vld [vmem:[%s354 + $0xd80] sm:$0xff]
        %v3328 = vld [vmem:[%s354 + $0xd88] sm:$0xff]
        %v3329 = vld [vmem:[%s354 + $0xd90] sm:$0xff]
        %v3330 = vld [vmem:[%s354 + $0xd98] sm:$0xf]
        %v3331 = vld [vmem:[%s354 + $0xd9c] sm:$0xff]
        %v3332 = vld [vmem:[%s354 + $0xda4] sm:$0xff]
        %v3333 = vld [vmem:[%s354 + $0xdac] sm:$0xff]
        %v3334 = vld [vmem:[%s354 + $0xdb4] sm:$0xff]
        %v3335 = vld [vmem:[%s354 + $0xdbc] sm:$0xff]
        %v3336 = vld [vmem:[%s354 + $0xdc4] sm:$0xff]
        %v3337 = vld [vmem:[%s354 + $0xdcc] sm:$0xf]
        %v3338 = vld [vmem:[%s354 + $0xdd0] sm:$0xff]
        %v3339 = vld [vmem:[%s354 + $0xdd8] sm:$0xff]
        %v3340 = vld [vmem:[%s354 + $0xde0] sm:$0xff]
        %v3341 = vld [vmem:[%s354 + $0xde8] sm:$0xff]
        %v3342 = vld [vmem:[%s354 + $0xdf0] sm:$0xff]
        %v3343 = vld [vmem:[%s354 + $0xdf8] sm:$0xff]
        %v3344 = vld [vmem:[%s354 + $0xe00] sm:$0xf]
        %v3345 = vld [vmem:[%s354 + $0xe04] sm:$0xff]
        %v3346 = vld [vmem:[%s354 + $0xe0c] sm:$0xff]
        %v3347 = vld [vmem:[%s354 + $0xe14] sm:$0xff]
        %v3348 = vld [vmem:[%s354 + $0xe1c] sm:$0xff]
        %v3349 = vld [vmem:[%s354 + $0xe24] sm:$0xff]
        %v3350 = vld [vmem:[%s354 + $0xe2c] sm:$0xff]
        %v3351 = vld [vmem:[%s354 + $0xe34] sm:$0xf]
        %v3352 = vld [vmem:[%s354 + $0xe38] sm:$0xff]
        %v3353 = vld [vmem:[%s354 + $0xe40] sm:$0xff]
        %v3354 = vld [vmem:[%s354 + $0xe48] sm:$0xff]
        %v3355 = vld [vmem:[%s354 + $0xe50] sm:$0xff]
        %v3356 = vld [vmem:[%s354 + $0xe58] sm:$0xff]
        %v3357 = vld [vmem:[%s354 + $0xe60] sm:$0xff]
        %v3358 = vld [vmem:[%s354 + $0xe68] sm:$0xf]
        %v3359 = vld [vmem:[%s354 + $0xe6c] sm:$0xff]
        %v3360 = vld [vmem:[%s354 + $0xe74] sm:$0xff]
        %v3361 = vld [vmem:[%s354 + $0xe7c] sm:$0xff]
        %v3362 = vld [vmem:[%s354 + $0xe84] sm:$0xff]
        %v3363 = vld [vmem:[%s354 + $0xe8c] sm:$0xff]
        %v3364 = vld [vmem:[%s354 + $0xe94] sm:$0xff]
        %v3365 = vld [vmem:[%s354 + $0xe9c] sm:$0xf]
        %v3366 = vld [vmem:[%s354 + $0xea0] sm:$0xff]
        %v3367 = vld [vmem:[%s354 + $0xea8] sm:$0xff]
        %v3368 = vld [vmem:[%s354 + $0xeb0] sm:$0xff]
        %v3369 = vld [vmem:[%s354 + $0xeb8] sm:$0xff]
        %v3370 = vld [vmem:[%s354 + $0xec0] sm:$0xff]
        %v3371 = vld [vmem:[%s354 + $0xec8] sm:$0xff]
        %v3372 = vld [vmem:[%s354 + $0xed0] sm:$0xf]
        %v3373 = vld [vmem:[%s354 + $0xed4] sm:$0xff]
        %v3374 = vld [vmem:[%s354 + $0xedc] sm:$0xff]
        %v3375 = vld [vmem:[%s354 + $0xee4] sm:$0xff]
        %v3376 = vld [vmem:[%s354 + $0xeec] sm:$0xff]
        %v3377 = vld [vmem:[%s354 + $0xef4] sm:$0xff]
        %v3378 = vld [vmem:[%s354 + $0xefc] sm:$0xff]
        %v3379 = vld [vmem:[%s354 + $0xf04] sm:$0xf]
        %v3380 = vld [vmem:[%s354 + $0xf08] sm:$0xff]
        %v3381 = vld [vmem:[%s354 + $0xf10] sm:$0xff]
        %v3382 = vld [vmem:[%s354 + $0xf18] sm:$0xff]
        %v3383 = vld [vmem:[%s354 + $0xf20] sm:$0xff]
        %v3384 = vld [vmem:[%s354 + $0xf28] sm:$0xff]
        %v3385 = vld [vmem:[%s354 + $0xf30] sm:$0xff]
        %v3386 = vld [vmem:[%s354 + $0xf38] sm:$0xf]
        %v3387 = vld [vmem:[%s354 + $0xf3c] sm:$0xff]
        %v3388 = vld [vmem:[%s354 + $0xf44] sm:$0xff]
        %v3389 = vld [vmem:[%s354 + $0xf4c] sm:$0xff]
        %v3390 = vld [vmem:[%s354 + $0xf54] sm:$0xff]
        %v3391 = vld [vmem:[%s354 + $0xf5c] sm:$0xff]
        %v3392 = vld [vmem:[%s354 + $0xf64] sm:$0xff]
        %v3393 = vld [vmem:[%s354 + $0xf6c] sm:$0xf]
        %v3394 = vld [vmem:[%s354 + $0xf70] sm:$0xff]
        %v3395 = vld [vmem:[%s354 + $0xf78] sm:$0xff]
        %v3396 = vld [vmem:[%s354 + $0xf80] sm:$0xff]
        %v3397 = vld [vmem:[%s354 + $0xf88] sm:$0xff]
        %v3398 = vld [vmem:[%s354 + $0xf90] sm:$0xff]
        %v3399 = vld [vmem:[%s354 + $0xf98] sm:$0xff]
        %v3400 = vld [vmem:[%s354 + $0xfa0] sm:$0xf]
        %v3401 = vld [vmem:[%s354 + $0xfa4] sm:$0xff]
        %v3402 = vld [vmem:[%s354 + $0xfac] sm:$0xff]
        %v3403 = vld [vmem:[%s354 + $0xfb4] sm:$0xff]
        %v3404 = vld [vmem:[%s354 + $0xfbc] sm:$0xff]
        %v3405 = vld [vmem:[%s354 + $0xfc4] sm:$0xff]
        %v3406 = vld [vmem:[%s354 + $0xfcc] sm:$0xff]
        %v3407 = vld [vmem:[%s354 + $0xfd4] sm:$0xf]
        %v3408 = vld [vmem:[%s354 + $0xfd8] sm:$0xff]
        %v3409 = vld [vmem:[%s354 + $0xfe0] sm:$0xff]
        %v3410 = vld [vmem:[%s354 + $0xfe8] sm:$0xff]
        %v3411 = vld [vmem:[%s354 + $0xff0] sm:$0xff]
        %v3412 = vld [vmem:[%s354 + $0xff8] sm:$0xff]
        %v3413 = vld [vmem:[%s354 + $0x1000] sm:$0xff]
        %v3414 = vld [vmem:[%s354 + $0x1008] sm:$0xf]
        %v3415 = vld [vmem:[%s354 + $0x100c] sm:$0xff]
        %v3416 = vld [vmem:[%s354 + $0x1014] sm:$0xff]
        %v3417 = vld [vmem:[%s354 + $0x101c] sm:$0xff]
        %v3418 = vld [vmem:[%s354 + $0x1024] sm:$0xff]
        %v3419 = vld [vmem:[%s354 + $0x102c] sm:$0xff]
        %v3420 = vld [vmem:[%s354 + $0x1034] sm:$0xff]
        %v3421 = vld [vmem:[%s354 + $0x103c] sm:$0xf]
        %v3422 = vld [vmem:[%s354 + $0x1040] sm:$0xff]
        %v3423 = vld [vmem:[%s354 + $0x1048] sm:$0xff]
        %v3424 = vld [vmem:[%s354 + $0x1050] sm:$0xff]
        %v3425 = vld [vmem:[%s354 + $0x1058] sm:$0xff]
        %v3426 = vld [vmem:[%s354 + $0x1060] sm:$0xff]
        %v3427 = vld [vmem:[%s354 + $0x1068] sm:$0xff]
        %v3428 = vld [vmem:[%s354 + $0x1070] sm:$0xf]
        %v3429 = vld [vmem:[%s354 + $0x1074] sm:$0xff]
        %v3430 = vld [vmem:[%s354 + $0x107c] sm:$0xff]
        %v3431 = vld [vmem:[%s354 + $0x1084] sm:$0xff]
        %v3432 = vld [vmem:[%s354 + $0x108c] sm:$0xff]
        %v3433 = vld [vmem:[%s354 + $0x1094] sm:$0xff]
        %v3434 = vld [vmem:[%s354 + $0x109c] sm:$0xff]
        %v3435 = vld [vmem:[%s354 + $0x10a4] sm:$0xf]
        %v3436 = vld [vmem:[%s354 + $0x10a8] sm:$0xff]
        %v3437 = vld [vmem:[%s354 + $0x10b0] sm:$0xff]
        %v3438 = vld [vmem:[%s354 + $0x10b8] sm:$0xff]
        %v3439 = vld [vmem:[%s354 + $0x10c0] sm:$0xff]
        %v3440 = vld [vmem:[%s354 + $0x10c8] sm:$0xff]
        %v3441 = vld [vmem:[%s354 + $0x10d0] sm:$0xff]
        %v3442 = vld [vmem:[%s354 + $0x10d8] sm:$0xf]
        %v3443 = vld [vmem:[%s354 + $0x10dc] sm:$0xff]
        %v3444 = vld [vmem:[%s354 + $0x10e4] sm:$0xff]
        %v3445 = vld [vmem:[%s354 + $0x10ec] sm:$0xff]
        %v3446 = vld [vmem:[%s354 + $0x10f4] sm:$0xff]
        %v3447 = vld [vmem:[%s354 + $0x10fc] sm:$0xff]
        %v3448 = vld [vmem:[%s354 + $0x1104] sm:$0xff]
        %v3449 = vld [vmem:[%s354 + $0x110c] sm:$0xf]
        %v3450 = vld [vmem:[%s354 + $0x1110] sm:$0xff]
        %v3451 = vld [vmem:[%s354 + $0x1118] sm:$0xff]
        %v3452 = vld [vmem:[%s354 + $0x1120] sm:$0xff]
        %v3453 = vld [vmem:[%s354 + $0x1128] sm:$0xff]
        %v3454 = vld [vmem:[%s354 + $0x1130] sm:$0xff]
        %v3455 = vld [vmem:[%s354 + $0x1138] sm:$0xff]
        %v3456 = vld [vmem:[%s354 + $0x1140] sm:$0xf]
        %v3457 = vld [vmem:[%s354 + $0x1144] sm:$0xff]
        %v3458 = vld [vmem:[%s354 + $0x114c] sm:$0xff]
        %v3459 = vld [vmem:[%s354 + $0x1154] sm:$0xff]
        %v3460 = vld [vmem:[%s354 + $0x115c] sm:$0xff]
        %v3461 = vld [vmem:[%s354 + $0x1164] sm:$0xff]
        %v3462 = vld [vmem:[%s354 + $0x116c] sm:$0xff]
        %v3463 = vld [vmem:[%s354 + $0x1174] sm:$0xf]
        %v3464 = vld [vmem:[%s354 + $0x1178] sm:$0xff]
        %v3465 = vld [vmem:[%s354 + $0x1180] sm:$0xff]
        %v3466 = vld [vmem:[%s354 + $0x1188] sm:$0xff]
        %v3467 = vld [vmem:[%s354 + $0x1190] sm:$0xff]
        %v3468 = vld [vmem:[%s354 + $0x1198] sm:$0xff]
        %v3469 = vld [vmem:[%s354 + $0x11a0] sm:$0xff]
        %v3470 = vld [vmem:[%s354 + $0x11a8] sm:$0xf]
        %v3471 = vld [vmem:[%s354 + $0x11ac] sm:$0xff]
        %v3472 = vld [vmem:[%s354 + $0x11b4] sm:$0xff]
        %v3473 = vld [vmem:[%s354 + $0x11bc] sm:$0xff]
        %v3474 = vld [vmem:[%s354 + $0x11c4] sm:$0xff]
        %v3475 = vld [vmem:[%s354 + $0x11cc] sm:$0xff]
        %v3476 = vld [vmem:[%s354 + $0x11d4] sm:$0xff]
        %v3477 = vld [vmem:[%s354 + $0x11dc] sm:$0xf]
        %v3478 = vld [vmem:[%s354 + $0x11e0] sm:$0xff]
        %v3479 = vld [vmem:[%s354 + $0x11e8] sm:$0xff]
        %v3480 = vld [vmem:[%s354 + $0x11f0] sm:$0xff]
        %v3481 = vld [vmem:[%s354 + $0x11f8] sm:$0xff]
        %v3482 = vld [vmem:[%s354 + $0x1200] sm:$0xff]
        %v3483 = vld [vmem:[%s354 + $0x1208] sm:$0xff]
        %v3484 = vld [vmem:[%s354 + $0x1210] sm:$0xf]
        %v3485 = vld [vmem:[%s354 + $0x1214] sm:$0xff]
        %v3486 = vld [vmem:[%s354 + $0x121c] sm:$0xff]
        %v3487 = vld [vmem:[%s354 + $0x1224] sm:$0xff]
        %v3488 = vld [vmem:[%s354 + $0x122c] sm:$0xff]
        %v3489 = vld [vmem:[%s354 + $0x1234] sm:$0xff]
        %v3490 = vld [vmem:[%s354 + $0x123c] sm:$0xff]
        %v3491 = vld [vmem:[%s354 + $0x1244] sm:$0xf]
        %v3492 = vld [vmem:[%s354 + $0x1248] sm:$0xff]
        %v3493 = vld [vmem:[%s354 + $0x1250] sm:$0xff]
        %v3494 = vld [vmem:[%s354 + $0x1258] sm:$0xff]
        %v3495 = vld [vmem:[%s354 + $0x1260] sm:$0xff]
        %v3496 = vld [vmem:[%s354 + $0x1268] sm:$0xff]
        %v3497 = vld [vmem:[%s354 + $0x1270] sm:$0xff]
        %v3498 = vld [vmem:[%s354 + $0x1278] sm:$0xf]
        %v3499 = vld [vmem:[%s354 + $0x127c] sm:$0xff]
        %v3500 = vld [vmem:[%s354 + $0x1284] sm:$0xff]
        %v3501 = vld [vmem:[%s354 + $0x128c] sm:$0xff]
        %v3502 = vld [vmem:[%s354 + $0x1294] sm:$0xff]
        %v3503 = vld [vmem:[%s354 + $0x129c] sm:$0xff]
        %v3504 = vld [vmem:[%s354 + $0x12a4] sm:$0xff]
        %v3505 = vld [vmem:[%s354 + $0x12ac] sm:$0xf]
        %v3506 = vld [vmem:[%s354 + $0x12b0] sm:$0xff]
        %v3507 = vld [vmem:[%s354 + $0x12b8] sm:$0xff]
        %v3508 = vld [vmem:[%s354 + $0x12c0] sm:$0xff]
        %v3509 = vld [vmem:[%s354 + $0x12c8] sm:$0xff]
        %v3510 = vld [vmem:[%s354 + $0x12d0] sm:$0xff]
        %v3511 = vld [vmem:[%s354 + $0x12d8] sm:$0xff]
        %v3512 = vld [vmem:[%s354 + $0x12e0] sm:$0xf]
        %v3513 = vld [vmem:[%s354 + $0x12e4] sm:$0xff]
        %v3514 = vld [vmem:[%s354 + $0x12ec] sm:$0xff]
        %v3515 = vld [vmem:[%s354 + $0x12f4] sm:$0xff]
        %v3516 = vld [vmem:[%s354 + $0x12fc] sm:$0xff]
        %v3517 = vld [vmem:[%s354 + $0x1304] sm:$0xff]
        %v3518 = vld [vmem:[%s354 + $0x130c] sm:$0xff]
        %v3519 = vld [vmem:[%s354 + $0x1314] sm:$0xf]
        %v3520 = vld [vmem:[%s354 + $0x1318] sm:$0xff]
        %v3521 = vld [vmem:[%s354 + $0x1320] sm:$0xff]
        %v3522 = vld [vmem:[%s354 + $0x1328] sm:$0xff]
        %v3523 = vld [vmem:[%s354 + $0x1330] sm:$0xff]
        %v3524 = vld [vmem:[%s354 + $0x1338] sm:$0xff]
        %v3525 = vld [vmem:[%s354 + $0x1340] sm:$0xff]
        %v3526 = vld [vmem:[%s354 + $0x1348] sm:$0xf]
        %v3527 = vld [vmem:[%s354 + $0x134c] sm:$0xff]
        %v3528 = vld [vmem:[%s354 + $0x1354] sm:$0xff]
        %v3529 = vld [vmem:[%s354 + $0x135c] sm:$0xff]
        %v3530 = vld [vmem:[%s354 + $0x1364] sm:$0xff]
        %v3531 = vld [vmem:[%s354 + $0x136c] sm:$0xff]
        %v3532 = vld [vmem:[%s354 + $0x1374] sm:$0xff]
        %v3533 = vld [vmem:[%s354 + $0x137c] sm:$0xf]
        %v3534 = vld [vmem:[%s354 + $0x1380] sm:$0xff]
        %v3535 = vld [vmem:[%s354 + $0x1388] sm:$0xff]
        %v3536 = vld [vmem:[%s354 + $0x1390] sm:$0xff]
        %v3537 = vld [vmem:[%s354 + $0x1398] sm:$0xff]
        %v3538 = vld [vmem:[%s354 + $0x13a0] sm:$0xff]
        %v3539 = vld [vmem:[%s354 + $0x13a8] sm:$0xff]
        %v3540 = vld [vmem:[%s354 + $0x13b0] sm:$0xf]
        %v3541 = vld [vmem:[%s354 + $0x13b4] sm:$0xff]
        %v3542 = vld [vmem:[%s354 + $0x13bc] sm:$0xff]
        %v3543 = vld [vmem:[%s354 + $0x13c4] sm:$0xff]
        %v3544 = vld [vmem:[%s354 + $0x13cc] sm:$0xff]
        %v3545 = vld [vmem:[%s354 + $0x13d4] sm:$0xff]
        %v3546 = vld [vmem:[%s354 + $0x13dc] sm:$0xff]
        %v3547 = vld [vmem:[%s354 + $0x13e4] sm:$0xf]
        %v3548 = vld [vmem:[%s354 + $0x13e8] sm:$0xff]
        %v3549 = vld [vmem:[%s354 + $0x13f0] sm:$0xff]
        %v3550 = vld [vmem:[%s354 + $0x13f8] sm:$0xff]
        %v3551 = vld [vmem:[%s354 + $0x1400] sm:$0xff]
        %v3552 = vld [vmem:[%s354 + $0x1408] sm:$0xff]
        %v3553 = vld [vmem:[%s354 + $0x1410] sm:$0xff]
        %v3554 = vld [vmem:[%s354 + $0x1418] sm:$0xf]
        %v3555 = vld [vmem:[%s354 + $0x141c] sm:$0xff]
        %v3556 = vld [vmem:[%s354 + $0x1424] sm:$0xff]
        %v3557 = vld [vmem:[%s354 + $0x142c] sm:$0xff]
        %v3558 = vld [vmem:[%s354 + $0x1434] sm:$0xff]
        %v3559 = vld [vmem:[%s354 + $0x143c] sm:$0xff]
        %v3560 = vld [vmem:[%s354 + $0x1444] sm:$0xff]
        %v3561 = vld [vmem:[%s354 + $0x144c] sm:$0xf]
        %v3562 = vld [vmem:[%s354 + $0x1450] sm:$0xff]
        %v3563 = vld [vmem:[%s354 + $0x1458] sm:$0xff]
        %v3564 = vld [vmem:[%s354 + $0x1460] sm:$0xff]
        %v3565 = vld [vmem:[%s354 + $0x1468] sm:$0xff]
        %v3566 = vld [vmem:[%s354 + $0x1470] sm:$0xff]
        %v3567 = vld [vmem:[%s354 + $0x1478] sm:$0xff]
        %v3568 = vld [vmem:[%s354 + $0x1480] sm:$0xf]
        %v3569 = vld [vmem:[%s354 + $0x1484] sm:$0xff]
        %v3570 = vld [vmem:[%s354 + $0x148c] sm:$0xff]
        %v3571 = vld [vmem:[%s354 + $0x1494] sm:$0xff]
        %v3572 = vld [vmem:[%s354 + $0x149c] sm:$0xff]
        %v3573 = vld [vmem:[%s354 + $0x14a4] sm:$0xff]
        %v3574 = vld [vmem:[%s354 + $0x14ac] sm:$0xff]
        %v3575 = vld [vmem:[%s354 + $0x14b4] sm:$0xf]
        %v3576 = vld [vmem:[%s354 + $0x14b8] sm:$0xff]
        %v3577 = vld [vmem:[%s354 + $0x14c0] sm:$0xff]
        %v3578 = vld [vmem:[%s354 + $0x14c8] sm:$0xff]
        %v3579 = vld [vmem:[%s354 + $0x14d0] sm:$0xff]
        %v3580 = vld [vmem:[%s354 + $0x14d8] sm:$0xff]
        %v3581 = vld [vmem:[%s354 + $0x14e0] sm:$0xff]
        %v3582 = vld [vmem:[%s354 + $0x14e8] sm:$0xf]
        %v3583 = vld [vmem:[%s354 + $0x14ec] sm:$0xff]
        %v3584 = vld [vmem:[%s354 + $0x14f4] sm:$0xff]
        %v3585 = vld [vmem:[%s354 + $0x14fc] sm:$0xff]
        %v3586 = vld [vmem:[%s354 + $0x1504] sm:$0xff]
        %v3587 = vld [vmem:[%s354 + $0x150c] sm:$0xff]
        %v3588 = vld [vmem:[%s354 + $0x1514] sm:$0xff]
        %v3589 = vld [vmem:[%s354 + $0x151c] sm:$0xf]
        %v3590 = vld [vmem:[%s354 + $0x1520] sm:$0xff]
        %v3591 = vld [vmem:[%s354 + $0x1528] sm:$0xff]
        %v3592 = vld [vmem:[%s354 + $0x1530] sm:$0xff]
        %v3593 = vld [vmem:[%s354 + $0x1538] sm:$0xff]
        %v3594 = vld [vmem:[%s354 + $0x1540] sm:$0xff]
        %v3595 = vld [vmem:[%s354 + $0x1548] sm:$0xff]
        %v3596 = vld [vmem:[%s354 + $0x1550] sm:$0xf]
        %v3597 = vld [vmem:[%s354 + $0x1554] sm:$0xff]
        %v3598 = vld [vmem:[%s354 + $0x155c] sm:$0xff]
        %v3599 = vld [vmem:[%s354 + $0x1564] sm:$0xff]
        %v3600 = vld [vmem:[%s354 + $0x156c] sm:$0xff]
        %v3601 = vld [vmem:[%s354 + $0x1574] sm:$0xff]
        %v3602 = vld [vmem:[%s354 + $0x157c] sm:$0xff]
        %v3603 = vld [vmem:[%s354 + $0x1584] sm:$0xf]
        %v3604 = vld [vmem:[%s354 + $0x1588] sm:$0xff]
        %v3605 = vld [vmem:[%s354 + $0x1590] sm:$0xff]
        %v3606 = vld [vmem:[%s354 + $0x1598] sm:$0xff]
        %v3607 = vld [vmem:[%s354 + $0x15a0] sm:$0xff]
        %v3608 = vld [vmem:[%s354 + $0x15a8] sm:$0xff]
        %v3609 = vld [vmem:[%s354 + $0x15b0] sm:$0xff]
        %v3610 = vld [vmem:[%s354 + $0x15b8] sm:$0xf]
        %v3611 = vld [vmem:[%s354 + $0x15bc] sm:$0xff]
        %v3612 = vld [vmem:[%s354 + $0x15c4] sm:$0xff]
        %v3613 = vld [vmem:[%s354 + $0x15cc] sm:$0xff]
        %v3614 = vld [vmem:[%s354 + $0x15d4] sm:$0xff]
        %v3615 = vld [vmem:[%s354 + $0x15dc] sm:$0xff]
        %v3616 = vld [vmem:[%s354 + $0x15e4] sm:$0xff]
        %v3617 = vld [vmem:[%s354 + $0x15ec] sm:$0xf]
        %v3618 = vld [vmem:[%s354 + $0x15f0] sm:$0xff]
        %v3619 = vld [vmem:[%s354 + $0x15f8] sm:$0xff]
        %v3620 = vld [vmem:[%s354 + $0x1600] sm:$0xff]
        %v3621 = vld [vmem:[%s354 + $0x1608] sm:$0xff]
        %v3622 = vld [vmem:[%s354 + $0x1610] sm:$0xff]
        %v3623 = vld [vmem:[%s354 + $0x1618] sm:$0xff]
        %v3624 = vld [vmem:[%s354 + $0x1620] sm:$0xf]
        %v3625 = vld [vmem:[%s354 + $0x1624] sm:$0xff]
        %v3626 = vld [vmem:[%s354 + $0x162c] sm:$0xff]
        %v3627 = vld [vmem:[%s354 + $0x1634] sm:$0xff]
        %v3628 = vld [vmem:[%s354 + $0x163c] sm:$0xff]
        %v3629 = vld [vmem:[%s354 + $0x1644] sm:$0xff]
        %v3630 = vld [vmem:[%s354 + $0x164c] sm:$0xff]
        %v3631 = vld [vmem:[%s354 + $0x1654] sm:$0xf]
        %v3632 = vld [vmem:[%s354 + $0x1658] sm:$0xff]
        %v3633 = vld [vmem:[%s354 + $0x1660] sm:$0xff]
        %v3634 = vld [vmem:[%s354 + $0x1668] sm:$0xff]
        %v3635 = vld [vmem:[%s354 + $0x1670] sm:$0xff]
        %v3636 = vld [vmem:[%s354 + $0x1678] sm:$0xff]
        %v3637 = vld [vmem:[%s354 + $0x1680] sm:$0xff]
        %v3638 = vld [vmem:[%s354 + $0x1688] sm:$0xf]
        %v3639 = vld [vmem:[%s354 + $0x168c] sm:$0xff]
        %v3640 = vld [vmem:[%s354 + $0x1694] sm:$0xff]
        %v3641 = vld [vmem:[%s354 + $0x169c] sm:$0xff]
        %v3642 = vld [vmem:[%s354 + $0x16a4] sm:$0xff]
        %v3643 = vld [vmem:[%s354 + $0x16ac] sm:$0xff]
        %v3644 = vld [vmem:[%s354 + $0x16b4] sm:$0xff]
        %v3645 = vld [vmem:[%s354 + $0x16bc] sm:$0xf]
        %v3646 = vld [vmem:[%s354 + $0x16c0] sm:$0xff]
        %v3647 = vld [vmem:[%s354 + $0x16c8] sm:$0xff]
        %v3648 = vld [vmem:[%s354 + $0x16d0] sm:$0xff]
        %v3649 = vld [vmem:[%s354 + $0x16d8] sm:$0xff]
        %v3650 = vld [vmem:[%s354 + $0x16e0] sm:$0xff]
        %v3651 = vld [vmem:[%s354 + $0x16e8] sm:$0xff]
        %v3652 = vld [vmem:[%s354 + $0x16f0] sm:$0xf]
        %v3653 = vld [vmem:[%s354 + $0x16f4] sm:$0xff]
        %v3654 = vld [vmem:[%s354 + $0x16fc] sm:$0xff]
        %v3655 = vld [vmem:[%s354 + $0x1704] sm:$0xff]
        %v3656 = vld [vmem:[%s354 + $0x170c] sm:$0xff]
        %v3657 = vld [vmem:[%s354 + $0x1714] sm:$0xff]
        %v3658 = vld [vmem:[%s354 + $0x171c] sm:$0xff]
        %v3659 = vld [vmem:[%s354 + $0x1724] sm:$0xf]
        %v3660 = vld [vmem:[%s354 + $0x1728] sm:$0xff]
        %v3661 = vld [vmem:[%s354 + $0x1730] sm:$0xff]
        %v3662 = vld [vmem:[%s354 + $0x1738] sm:$0xff]
        %v3663 = vld [vmem:[%s354 + $0x1740] sm:$0xff]
        %v3664 = vld [vmem:[%s354 + $0x1748] sm:$0xff]
        %v3665 = vld [vmem:[%s354 + $0x1750] sm:$0xff]
        %v3666 = vld [vmem:[%s354 + $0x1758] sm:$0xf]
        %v3667 = vld [vmem:[%s354 + $0x175c] sm:$0xff]
        %v3668 = vld [vmem:[%s354 + $0x1764] sm:$0xff]
        %v3669 = vld [vmem:[%s354 + $0x176c] sm:$0xff]
        %v3670 = vld [vmem:[%s354 + $0x1774] sm:$0xff]
        %v3671 = vld [vmem:[%s354 + $0x177c] sm:$0xff]
        %v3672 = vld [vmem:[%s354 + $0x1784] sm:$0xff]
        %v3673 = vld [vmem:[%s354 + $0x178c] sm:$0xf]
        %v3674 = vld [vmem:[%s354 + $0x1790] sm:$0xff]
        %v3675 = vld [vmem:[%s354 + $0x1798] sm:$0xff]
        %v3676 = vld [vmem:[%s354 + $0x17a0] sm:$0xff]
        %v3677 = vld [vmem:[%s354 + $0x17a8] sm:$0xff]
        %v3678 = vld [vmem:[%s354 + $0x17b0] sm:$0xff]
        %v3679 = vld [vmem:[%s354 + $0x17b8] sm:$0xff]
        %v3680 = vld [vmem:[%s354 + $0x17c0] sm:$0xf]
        %v3681 = vld [vmem:[%s354 + $0x17c4] sm:$0xff]
        %v3682 = vld [vmem:[%s354 + $0x17cc] sm:$0xff]
        %v3683 = vld [vmem:[%s354 + $0x17d4] sm:$0xff]
        %v3684 = vld [vmem:[%s354 + $0x17dc] sm:$0xff]
        %v3685 = vld [vmem:[%s354 + $0x17e4] sm:$0xff]
        %v3686 = vld [vmem:[%s354 + $0x17ec] sm:$0xff]
        %v3687 = vld [vmem:[%s354 + $0x17f4] sm:$0xf]
        %v3688 = vld [vmem:[%s354 + $0x17f8] sm:$0xff]
        %v3689 = vld [vmem:[%s354 + $0x1800] sm:$0xff]
        %v3690 = vld [vmem:[%s354 + $0x1808] sm:$0xff]
        %v3691 = vld [vmem:[%s354 + $0x1810] sm:$0xff]
        %v3692 = vld [vmem:[%s354 + $0x1818] sm:$0xff]
        %v3693 = vld [vmem:[%s354 + $0x1820] sm:$0xff]
        %v3694 = vld [vmem:[%s354 + $0x1828] sm:$0xf]
        %v3695 = vld [vmem:[%s354 + $0x182c] sm:$0xff]
        %v3696 = vld [vmem:[%s354 + $0x1834] sm:$0xff]
        %v3697 = vld [vmem:[%s354 + $0x183c] sm:$0xff]
        %v3698 = vld [vmem:[%s354 + $0x1844] sm:$0xff]
        %v3699 = vld [vmem:[%s354 + $0x184c] sm:$0xff]
        %v3700 = vld [vmem:[%s354 + $0x1854] sm:$0xff]
        %v3701 = vld [vmem:[%s354 + $0x185c] sm:$0xf]
        %v3702 = vld [vmem:[%s354 + $0x1860] sm:$0xff]
        %v3703 = vld [vmem:[%s354 + $0x1868] sm:$0xff]
        %v3704 = vld [vmem:[%s354 + $0x1870] sm:$0xff]
        %v3705 = vld [vmem:[%s354 + $0x1878] sm:$0xff]
        %v3706 = vld [vmem:[%s354 + $0x1880] sm:$0xff]
        %v3707 = vld [vmem:[%s354 + $0x1888] sm:$0xff]
        %v3708 = vld [vmem:[%s354 + $0x1890] sm:$0xf]
        %v3709 = vld [vmem:[%s354 + $0x1894] sm:$0xff]
        %v3710 = vld [vmem:[%s354 + $0x189c] sm:$0xff]
        %v3711 = vld [vmem:[%s354 + $0x18a4] sm:$0xff]
        %v3712 = vld [vmem:[%s354 + $0x18ac] sm:$0xff]
        %v3713 = vld [vmem:[%s354 + $0x18b4] sm:$0xff]
        %v3714 = vld [vmem:[%s354 + $0x18bc] sm:$0xff]
        %v3715 = vld [vmem:[%s354 + $0x18c4] sm:$0xf]
        %v3716 = vld [vmem:[%s354 + $0x18c8] sm:$0xff]
        %v3717 = vld [vmem:[%s354 + $0x18d0] sm:$0xff]
        %v3718 = vld [vmem:[%s354 + $0x18d8] sm:$0xff]
        %v3719 = vld [vmem:[%s354 + $0x18e0] sm:$0xff]
        %v3720 = vld [vmem:[%s354 + $0x18e8] sm:$0xff]
        %v3721 = vld [vmem:[%s354 + $0x18f0] sm:$0xff]
        %v3722 = vld [vmem:[%s354 + $0x18f8] sm:$0xf]
        %v3723 = vld [vmem:[%s354 + $0x18fc] sm:$0xff]
        %v3724 = vld [vmem:[%s354 + $0x1904] sm:$0xff]
        %v3725 = vld [vmem:[%s354 + $0x190c] sm:$0xff]
        %v3726 = vld [vmem:[%s354 + $0x1914] sm:$0xff]
        %v3727 = vld [vmem:[%s354 + $0x191c] sm:$0xff]
        %v3728 = vld [vmem:[%s354 + $0x1924] sm:$0xff]
        %v3729 = vld [vmem:[%s354 + $0x192c] sm:$0xf]
        %v3730 = vld [vmem:[%s354 + $0x1930] sm:$0xff]
        %v3731 = vld [vmem:[%s354 + $0x1938] sm:$0xff]
        %v3732 = vld [vmem:[%s354 + $0x1940] sm:$0xff]
        %v3733 = vld [vmem:[%s354 + $0x1948] sm:$0xff]
        %v3734 = vld [vmem:[%s354 + $0x1950] sm:$0xff]
        %v3735 = vld [vmem:[%s354 + $0x1958] sm:$0xff]
        %v3736 = vld [vmem:[%s354 + $0x1960] sm:$0xf]
        %v3737 = vld [vmem:[%s354 + $0x1964] sm:$0xff]
        %v3738 = vld [vmem:[%s354 + $0x196c] sm:$0xff]
        %v3739 = vld [vmem:[%s354 + $0x1974] sm:$0xff]
        %v3740 = vld [vmem:[%s354 + $0x197c] sm:$0xff]
        %v3741 = vld [vmem:[%s354 + $0x1984] sm:$0xff]
        %v3742 = vld [vmem:[%s354 + $0x198c] sm:$0xff]
        %v3743 = vld [vmem:[%s354 + $0x1994] sm:$0xf]
        %v3744 = vld [vmem:[%s354 + $0x1998] sm:$0xff]
        %v3745 = vld [vmem:[%s354 + $0x19a0] sm:$0xff]
        %v3746 = vld [vmem:[%s354 + $0x19a8] sm:$0xff]
        %v3747 = vld [vmem:[%s354 + $0x19b0] sm:$0xff]
        %v3748 = vld [vmem:[%s354 + $0x19b8] sm:$0xff]
        %v3749 = vld [vmem:[%s354 + $0x19c0] sm:$0xff]
        %v3750 = vld [vmem:[%s354 + $0x19c8] sm:$0xf]
        %v3751 = vld [vmem:[%s354 + $0x19cc] sm:$0xff]
        %v3752 = vld [vmem:[%s354 + $0x19d4] sm:$0xff]
        %v3753 = vld [vmem:[%s354 + $0x19dc] sm:$0xff]
        %v3754 = vld [vmem:[%s354 + $0x19e4] sm:$0xff]
        %v3755 = vld [vmem:[%s354 + $0x19ec] sm:$0xff]
        %v3756 = vld [vmem:[%s354 + $0x19f4] sm:$0xff]
        %v3757 = vld [vmem:[%s354 + $0x19fc] sm:$0xf]
        %v3758 = vld [vmem:[%s354 + $0x1a00] sm:$0xff]
        %v3759 = vld [vmem:[%s354 + $0x1a08] sm:$0xff]
        %v3760 = vld [vmem:[%s354 + $0x1a10] sm:$0xff]
        %v3761 = vld [vmem:[%s354 + $0x1a18] sm:$0xff]
        %v3762 = vld [vmem:[%s354 + $0x1a20] sm:$0xff]
        %v3763 = vld [vmem:[%s354 + $0x1a28] sm:$0xff]
        %v3764 = vld [vmem:[%s354 + $0x1a30] sm:$0xf]
        %v3765 = vld [vmem:[%s354 + $0x1a34] sm:$0xff]
        %v3766 = vld [vmem:[%s354 + $0x1a3c] sm:$0xff]
        %v3767 = vld [vmem:[%s354 + $0x1a44] sm:$0xff]
        %v3768 = vld [vmem:[%s354 + $0x1a4c] sm:$0xff]
        %v3769 = vld [vmem:[%s354 + $0x1a54] sm:$0xff]
        %v3770 = vld [vmem:[%s354 + $0x1a5c] sm:$0xff]
        %v3771 = vld [vmem:[%s354 + $0x1a64] sm:$0xf]
        %v3772 = vld [vmem:[%s354 + $0x1a68] sm:$0xff]
        %v3773 = vld [vmem:[%s354 + $0x1a70] sm:$0xff]
        %v3774 = vld [vmem:[%s354 + $0x1a78] sm:$0xff]
        %v3775 = vld [vmem:[%s354 + $0x1a80] sm:$0xff]
        %v3776 = vld [vmem:[%s354 + $0x1a88] sm:$0xff]
        %v3777 = vld [vmem:[%s354 + $0x1a90] sm:$0xff]
        %v3778 = vld [vmem:[%s354 + $0x1a98] sm:$0xf]
        %v3779 = vld [vmem:[%s354 + $0x1a9c] sm:$0xff]
        %v3780 = vld [vmem:[%s354 + $0x1aa4] sm:$0xff]
        %v3781 = vld [vmem:[%s354 + $0x1aac] sm:$0xff]
        %v3782 = vld [vmem:[%s354 + $0x1ab4] sm:$0xff]
        %v3783 = vld [vmem:[%s354 + $0x1abc] sm:$0xff]
        %v3784 = vld [vmem:[%s354 + $0x1ac4] sm:$0xff]
        %v3785 = vld [vmem:[%s354 + $0x1acc] sm:$0xf]
        %v3786 = vld [vmem:[%s354 + $0x1ad0] sm:$0xff]
        %v3787 = vld [vmem:[%s354 + $0x1ad8] sm:$0xff]
        %v3788 = vld [vmem:[%s354 + $0x1ae0] sm:$0xff]
        %v3789 = vld [vmem:[%s354 + $0x1ae8] sm:$0xff]
        %v3790 = vld [vmem:[%s354 + $0x1af0] sm:$0xff]
        %v3791 = vld [vmem:[%s354 + $0x1af8] sm:$0xff]
        %v3792 = vld [vmem:[%s354 + $0x1b00] sm:$0xf]
        %v3793 = vld [vmem:[%s354 + $0x1b04] sm:$0xff]
        %v3794 = vld [vmem:[%s354 + $0x1b0c] sm:$0xff]
        %v3795 = vld [vmem:[%s354 + $0x1b14] sm:$0xff]
        %v3796 = vld [vmem:[%s354 + $0x1b1c] sm:$0xff]
        %v3797 = vld [vmem:[%s354 + $0x1b24] sm:$0xff]
        %v3798 = vld [vmem:[%s354 + $0x1b2c] sm:$0xff]
        %v3799 = vld [vmem:[%s354 + $0x1b34] sm:$0xf]
        %v3800 = vld [vmem:[%s354 + $0x1b38] sm:$0xff]
        %v3801 = vld [vmem:[%s354 + $0x1b40] sm:$0xff]
        %v3802 = vld [vmem:[%s354 + $0x1b48] sm:$0xff]
        %v3803 = vld [vmem:[%s354 + $0x1b50] sm:$0xff]
        %v3804 = vld [vmem:[%s354 + $0x1b58] sm:$0xff]
        %v3805 = vld [vmem:[%s354 + $0x1b60] sm:$0xff]
        %v3806 = vld [vmem:[%s354 + $0x1b68] sm:$0xf]
        %v3807 = vld [vmem:[%s354 + $0x1b6c] sm:$0xff]
        %v3808 = vld [vmem:[%s354 + $0x1b74] sm:$0xff]
        %v3809 = vld [vmem:[%s354 + $0x1b7c] sm:$0xff]
        %v3810 = vld [vmem:[%s354 + $0x1b84] sm:$0xff]
        %v3811 = vld [vmem:[%s354 + $0x1b8c] sm:$0xff]
        %v3812 = vld [vmem:[%s354 + $0x1b94] sm:$0xff]
        %v3813 = vld [vmem:[%s354 + $0x1b9c] sm:$0xf]
        %v3814 = vld [vmem:[%s354 + $0x1ba0] sm:$0xff]
        %v3815 = vld [vmem:[%s354 + $0x1ba8] sm:$0xff]
        %v3816 = vld [vmem:[%s354 + $0x1bb0] sm:$0xff]
        %v3817 = vld [vmem:[%s354 + $0x1bb8] sm:$0xff]
        %v3818 = vld [vmem:[%s354 + $0x1bc0] sm:$0xff]
        %v3819 = vld [vmem:[%s354 + $0x1bc8] sm:$0xff]
        %v3820 = vld [vmem:[%s354 + $0x1bd0] sm:$0xf]
        %v3821 = vld [vmem:[%s354 + $0x1bd4] sm:$0xff]
        %v3822 = vld [vmem:[%s354 + $0x1bdc] sm:$0xff]
        %v3823 = vld [vmem:[%s354 + $0x1be4] sm:$0xff]
        %v3824 = vld [vmem:[%s354 + $0x1bec] sm:$0xff]
        %v3825 = vld [vmem:[%s354 + $0x1bf4] sm:$0xff]
        %v3826 = vld [vmem:[%s354 + $0x1bfc] sm:$0xff]
        %v3827 = vld [vmem:[%s354 + $0x1c04] sm:$0xf]
        %v3828 = vld [vmem:[%s354 + $0x1c08] sm:$0xff]
        %v3829 = vld [vmem:[%s354 + $0x1c10] sm:$0xff]
        %v3830 = vld [vmem:[%s354 + $0x1c18] sm:$0xff]
        %v3831 = vld [vmem:[%s354 + $0x1c20] sm:$0xff]
        %v3832 = vld [vmem:[%s354 + $0x1c28] sm:$0xff]
        %v3833 = vld [vmem:[%s354 + $0x1c30] sm:$0xff]
        %v3834 = vld [vmem:[%s354 + $0x1c38] sm:$0xf]
        %v3835 = vld [vmem:[%s354 + $0x1c3c] sm:$0xff]
        %v3836 = vld [vmem:[%s354 + $0x1c44] sm:$0xff]
        %v3837 = vld [vmem:[%s354 + $0x1c4c] sm:$0xff]
        %v3838 = vld [vmem:[%s354 + $0x1c54] sm:$0xff]
        %v3839 = vld [vmem:[%s354 + $0x1c5c] sm:$0xff]
        %v3840 = vld [vmem:[%s354 + $0x1c64] sm:$0xff]
        %v3841 = vld [vmem:[%s354 + $0x1c6c] sm:$0xf]
        %v3842 = vld [vmem:[%s354 + $0x1c70] sm:$0xff]
        %v3843 = vld [vmem:[%s354 + $0x1c78] sm:$0xff]
        %v3844 = vld [vmem:[%s354 + $0x1c80] sm:$0xff]
        %v3845 = vld [vmem:[%s354 + $0x1c88] sm:$0xff]
        %v3846 = vld [vmem:[%s354 + $0x1c90] sm:$0xff]
        %v3847 = vld [vmem:[%s354 + $0x1c98] sm:$0xff]
        %v3848 = vld [vmem:[%s354 + $0x1ca0] sm:$0xf]
        %v3849 = vld [vmem:[%s354 + $0x1ca4] sm:$0xff]
        %v3850 = vld [vmem:[%s354 + $0x1cac] sm:$0xff]
        %v3851 = vld [vmem:[%s354 + $0x1cb4] sm:$0xff]
        %v3852 = vld [vmem:[%s354 + $0x1cbc] sm:$0xff]
        %v3853 = vld [vmem:[%s354 + $0x1cc4] sm:$0xff]
        %v3854 = vld [vmem:[%s354 + $0x1ccc] sm:$0xff]
        %v3855 = vld [vmem:[%s354 + $0x1cd4] sm:$0xf]
        %v3856 = vld [vmem:[%s354 + $0x1cd8] sm:$0xff]
        %v3857 = vld [vmem:[%s354 + $0x1ce0] sm:$0xff]
        %v3858 = vld [vmem:[%s354 + $0x1ce8] sm:$0xff]
        %v3859 = vld [vmem:[%s354 + $0x1cf0] sm:$0xff]
        %v3860 = vld [vmem:[%s354 + $0x1cf8] sm:$0xff]
        %v3861 = vld [vmem:[%s354 + $0x1d00] sm:$0xff]
        %v3862 = vld [vmem:[%s354 + $0x1d08] sm:$0xf]
        %v3863 = vld [vmem:[%s354 + $0x1d0c] sm:$0xff]
        %v3864 = vld [vmem:[%s354 + $0x1d14] sm:$0xff]
        %v3865 = vld [vmem:[%s354 + $0x1d1c] sm:$0xff]
        %v3866 = vld [vmem:[%s354 + $0x1d24] sm:$0xff]
        %v3867 = vld [vmem:[%s354 + $0x1d2c] sm:$0xff]
        %v3868 = vld [vmem:[%s354 + $0x1d34] sm:$0xff]
        %v3869 = vld [vmem:[%s354 + $0x1d3c] sm:$0xf]
        %v3870 = vld [vmem:[%s363] sm:$0xff]
        %v3871 = vld [vmem:[%s363 + $0x8] sm:$0x1f]
        %v3874 = vlaneseq
        %v3875 = vshrl.u32 %v3874, 7
        %v3876 = vsub.s32 0, %v3875
        %v3877 = vrot.slane %v3870, %v3876
        %v3878 = vlaneseq
        %v3879 = vshrl.u32 %v3878, 7
        %v3880 = vsub.s32 1, %v3879
        %v3881 = vrot.slane %v3870, %v3880
        %v3882 = vlaneseq
        %v3883 = vshrl.u32 %v3882, 7
        %v3884 = vsub.s32 2, %v3883
        %v3885 = vrot.slane %v3870, %v3884
        %v3886 = vlaneseq
        %v3887 = vshrl.u32 %v3886, 7
        %v3888 = vsub.s32 3, %v3887
        %v3889 = vrot.slane %v3870, %v3888
        %v3890 = vlaneseq
        %v3891 = vshrl.u32 %v3890, 7
        %v3892 = vsub.s32 4, %v3891
        %v3893 = vrot.slane %v3870, %v3892
        %v3894 = vlaneseq
        %v3895 = vshrl.u32 %v3894, 7
        %v3896 = vsub.s32 5, %v3895
        %v3897 = vrot.slane %v3870, %v3896
        %v3898 = vlaneseq
        %v3899 = vshrl.u32 %v3898, 7
        %v3900 = vsub.s32 6, %v3899
        %v3901 = vrot.slane %v3870, %v3900
        %v3902 = vlaneseq
        %v3903 = vshrl.u32 %v3902, 7
        %v3904 = vsub.s32 7, %v3903
        %v3905 = vrot.slane %v3870, %v3904
        %v3906 = vlaneseq
        %v3907 = vshrl.u32 %v3906, 7
        %v3908 = vsub.s32 0, %v3907
        %v3909 = vrot.slane %v3871, %v3908
        %v3910 = vlaneseq
        %v3911 = vshrl.u32 %v3910, 7
        %v3912 = vsub.s32 1, %v3911
        %v3913 = vrot.slane %v3871, %v3912
        %v3914 = vlaneseq
        %v3915 = vshrl.u32 %v3914, 7
        %v3916 = vsub.s32 2, %v3915
        %v3917 = vrot.slane %v3871, %v3916
        %v3918 = vlaneseq
        %v3919 = vshrl.u32 %v3918, 7
        %v3920 = vsub.s32 3, %v3919
        %v3921 = vrot.slane %v3871, %v3920
        %v3922 = vlaneseq
        %v3923 = vshrl.u32 %v3922, 7
        %v3924 = vsub.s32 4, %v3923
        %v3925 = vrot.slane %v3871, %v3924
        %v4947 = vunpack.c.l.b16 %v2862
        %v4948 = vunpack.c.h.b16 %v2862
        %v4949 = vunpack.c.l.b16 %v2863
        %v4950 = vunpack.c.h.b16 %v2863
        %v4951 = vunpack.c.l.b16 %v2864
        %v4952 = vunpack.c.h.b16 %v2864
        %v4953 = vunpack.c.l.b16 %v2865
        %v4954 = vunpack.c.h.b16 %v2865
        %v4955 = vunpack.c.l.b16 %v2866
        %v4956 = vunpack.c.h.b16 %v2866
        %v4957 = vunpack.c.l.b16 %v2867
        %v4958 = vunpack.c.h.b16 %v2867
        %v4959 = vunpack.c.l.b16 %v2868
        %v4960 = vunpack.c.l.b16 %v2869
        %v4961 = vunpack.c.h.b16 %v2869
        %v4962 = vunpack.c.l.b16 %v2870
        %v4963 = vunpack.c.h.b16 %v2870
        %v4964 = vunpack.c.l.b16 %v2871
        %v4965 = vunpack.c.h.b16 %v2871
        %v4966 = vunpack.c.l.b16 %v2872
        %v4967 = vunpack.c.h.b16 %v2872
        %v4968 = vunpack.c.l.b16 %v2873
        %v4969 = vunpack.c.h.b16 %v2873
        %v4970 = vunpack.c.l.b16 %v2874
        %v4971 = vunpack.c.h.b16 %v2874
        %v4972 = vunpack.c.l.b16 %v2875
        %v4973 = vunpack.c.l.b16 %v2876
        %v4974 = vunpack.c.h.b16 %v2876
        %v4975 = vunpack.c.l.b16 %v2877
        %v4976 = vunpack.c.h.b16 %v2877
        %v4977 = vunpack.c.l.b16 %v2878
        %v4978 = vunpack.c.h.b16 %v2878
        %v4979 = vunpack.c.l.b16 %v2879
        %v4980 = vunpack.c.h.b16 %v2879
        %v4981 = vunpack.c.l.b16 %v2880
        %v4982 = vunpack.c.h.b16 %v2880
        %v4983 = vunpack.c.l.b16 %v2881
        %v4984 = vunpack.c.h.b16 %v2881
        %v4985 = vunpack.c.l.b16 %v2882
        %v4986 = vunpack.c.l.b16 %v2883
        %v4987 = vunpack.c.h.b16 %v2883
        %v4988 = vunpack.c.l.b16 %v2884
        %v4989 = vunpack.c.h.b16 %v2884
        %v4990 = vunpack.c.l.b16 %v2885
        %v4991 = vunpack.c.h.b16 %v2885
        %v4992 = vunpack.c.l.b16 %v2886
        %v4993 = vunpack.c.h.b16 %v2886
        %v4994 = vunpack.c.l.b16 %v2887
        %v4995 = vunpack.c.h.b16 %v2887
        %v4996 = vunpack.c.l.b16 %v2888
        %v4997 = vunpack.c.h.b16 %v2888
        %v4998 = vunpack.c.l.b16 %v2889
        %v4999 = vunpack.c.l.b16 %v2890
        %v5000 = vunpack.c.h.b16 %v2890
        %v5001 = vunpack.c.l.b16 %v2891
        %v5002 = vunpack.c.h.b16 %v2891
        %v5003 = vunpack.c.l.b16 %v2892
        %v5004 = vunpack.c.h.b16 %v2892
        %v5005 = vunpack.c.l.b16 %v2893
        %v5006 = vunpack.c.h.b16 %v2893
        %v5007 = vunpack.c.l.b16 %v2894
        %v5008 = vunpack.c.h.b16 %v2894
        %v5009 = vunpack.c.l.b16 %v2895
        %v5010 = vunpack.c.h.b16 %v2895
        %v5011 = vunpack.c.l.b16 %v2896
        %v5012 = vunpack.c.l.b16 %v2897
        %v5013 = vunpack.c.h.b16 %v2897
        %v5014 = vunpack.c.l.b16 %v2898
        %v5015 = vunpack.c.h.b16 %v2898
        %v5016 = vunpack.c.l.b16 %v2899
        %v5017 = vunpack.c.h.b16 %v2899
        %v5018 = vunpack.c.l.b16 %v2900
        %v5019 = vunpack.c.h.b16 %v2900
        %v5020 = vunpack.c.l.b16 %v2901
        %v5021 = vunpack.c.h.b16 %v2901
        %v5022 = vunpack.c.l.b16 %v2902
        %v5023 = vunpack.c.h.b16 %v2902
        %v5024 = vunpack.c.l.b16 %v2903
        %v5025 = vunpack.c.l.b16 %v2904
        %v5026 = vunpack.c.h.b16 %v2904
        %v5027 = vunpack.c.l.b16 %v2905
        %v5028 = vunpack.c.h.b16 %v2905
        %v5029 = vunpack.c.l.b16 %v2906
        %v5030 = vunpack.c.h.b16 %v2906
        %v5031 = vunpack.c.l.b16 %v2907
        %v5032 = vunpack.c.h.b16 %v2907
        %v5033 = vunpack.c.l.b16 %v2908
        %v5034 = vunpack.c.h.b16 %v2908
        %v5035 = vunpack.c.l.b16 %v2909
        %v5036 = vunpack.c.h.b16 %v2909
        %v5037 = vunpack.c.l.b16 %v2910
        %v5038 = vunpack.c.l.b16 %v2911
        %v5039 = vunpack.c.h.b16 %v2911
        %v5040 = vunpack.c.l.b16 %v2912
        %v5041 = vunpack.c.h.b16 %v2912
        %v5042 = vunpack.c.l.b16 %v2913
        %v5043 = vunpack.c.h.b16 %v2913
        %v5044 = vunpack.c.l.b16 %v2914
        %v5045 = vunpack.c.h.b16 %v2914
        %v5046 = vunpack.c.l.b16 %v2915
        %v5047 = vunpack.c.h.b16 %v2915
        %v5048 = vunpack.c.l.b16 %v2916
        %v5049 = vunpack.c.h.b16 %v2916
        %v5050 = vunpack.c.l.b16 %v2917
        %v5051 = vunpack.c.l.b16 %v2918
        %v5052 = vunpack.c.h.b16 %v2918
        %v5053 = vunpack.c.l.b16 %v2919
        %v5054 = vunpack.c.h.b16 %v2919
        %v5055 = vunpack.c.l.b16 %v2920
        %v5056 = vunpack.c.h.b16 %v2920
        %v5057 = vunpack.c.l.b16 %v2921
        %v5058 = vunpack.c.h.b16 %v2921
        %v5059 = vunpack.c.l.b16 %v2922
        %v5060 = vunpack.c.h.b16 %v2922
        %v5061 = vunpack.c.l.b16 %v2923
        %v5062 = vunpack.c.h.b16 %v2923
        %v5063 = vunpack.c.l.b16 %v2924
        %v5064 = vunpack.c.l.b16 %v2925
        %v5065 = vunpack.c.h.b16 %v2925
        %v5066 = vunpack.c.l.b16 %v2926
        %v5067 = vunpack.c.h.b16 %v2926
        %v5068 = vunpack.c.l.b16 %v2927
        %v5069 = vunpack.c.h.b16 %v2927
        %v5070 = vunpack.c.l.b16 %v2928
        %v5071 = vunpack.c.h.b16 %v2928
        %v5072 = vunpack.c.l.b16 %v2929
        %v5073 = vunpack.c.h.b16 %v2929
        %v5074 = vunpack.c.l.b16 %v2930
        %v5075 = vunpack.c.h.b16 %v2930
        %v5076 = vunpack.c.l.b16 %v2931
        %v5077 = vunpack.c.l.b16 %v2932
        %v5078 = vunpack.c.h.b16 %v2932
        %v5079 = vunpack.c.l.b16 %v2933
        %v5080 = vunpack.c.h.b16 %v2933
        %v5081 = vunpack.c.l.b16 %v2934
        %v5082 = vunpack.c.h.b16 %v2934
        %v5083 = vunpack.c.l.b16 %v2935
        %v5084 = vunpack.c.h.b16 %v2935
        %v5085 = vunpack.c.l.b16 %v2936
        %v5086 = vunpack.c.h.b16 %v2936
        %v5087 = vunpack.c.l.b16 %v2937
        %v5088 = vunpack.c.h.b16 %v2937
        %v5089 = vunpack.c.l.b16 %v2938
        %v5090 = vunpack.c.l.b16 %v2939
        %v5091 = vunpack.c.h.b16 %v2939
        %v5092 = vunpack.c.l.b16 %v2940
        %v5093 = vunpack.c.h.b16 %v2940
        %v5094 = vunpack.c.l.b16 %v2941
        %v5095 = vunpack.c.h.b16 %v2941
        %v5096 = vunpack.c.l.b16 %v2942
        %v5097 = vunpack.c.h.b16 %v2942
        %v5098 = vunpack.c.l.b16 %v2943
        %v5099 = vunpack.c.h.b16 %v2943
        %v5100 = vunpack.c.l.b16 %v2944
        %v5101 = vunpack.c.h.b16 %v2944
        %v5102 = vunpack.c.l.b16 %v2945
        %v5103 = vunpack.c.l.b16 %v2946
        %v5104 = vunpack.c.h.b16 %v2946
        %v5105 = vunpack.c.l.b16 %v2947
        %v5106 = vunpack.c.h.b16 %v2947
        %v5107 = vunpack.c.l.b16 %v2948
        %v5108 = vunpack.c.h.b16 %v2948
        %v5109 = vunpack.c.l.b16 %v2949
        %v5110 = vunpack.c.h.b16 %v2949
        %v5111 = vunpack.c.l.b16 %v2950
        %v5112 = vunpack.c.h.b16 %v2950
        %v5113 = vunpack.c.l.b16 %v2951
        %v5114 = vunpack.c.h.b16 %v2951
        %v5115 = vunpack.c.l.b16 %v2952
        %v5116 = vunpack.c.l.b16 %v2953
        %v5117 = vunpack.c.h.b16 %v2953
        %v5118 = vunpack.c.l.b16 %v2954
        %v5119 = vunpack.c.h.b16 %v2954
        %v5120 = vunpack.c.l.b16 %v2955
        %v5121 = vunpack.c.h.b16 %v2955
        %v5122 = vunpack.c.l.b16 %v2956
        %v5123 = vunpack.c.h.b16 %v2956
        %v5124 = vunpack.c.l.b16 %v2957
        %v5125 = vunpack.c.h.b16 %v2957
        %v5126 = vunpack.c.l.b16 %v2958
        %v5127 = vunpack.c.h.b16 %v2958
        %v5128 = vunpack.c.l.b16 %v2959
        %v5129 = vunpack.c.l.b16 %v2960
        %v5130 = vunpack.c.h.b16 %v2960
        %v5131 = vunpack.c.l.b16 %v2961
        %v5132 = vunpack.c.h.b16 %v2961
        %v5133 = vunpack.c.l.b16 %v2962
        %v5134 = vunpack.c.h.b16 %v2962
        %v5135 = vunpack.c.l.b16 %v2963
        %v5136 = vunpack.c.h.b16 %v2963
        %v5137 = vunpack.c.l.b16 %v2964
        %v5138 = vunpack.c.h.b16 %v2964
        %v5139 = vunpack.c.l.b16 %v2965
        %v5140 = vunpack.c.h.b16 %v2965
        %v5141 = vunpack.c.l.b16 %v2966
        %v5142 = vunpack.c.l.b16 %v2967
        %v5143 = vunpack.c.h.b16 %v2967
        %v5144 = vunpack.c.l.b16 %v2968
        %v5145 = vunpack.c.h.b16 %v2968
        %v5146 = vunpack.c.l.b16 %v2969
        %v5147 = vunpack.c.h.b16 %v2969
        %v5148 = vunpack.c.l.b16 %v2970
        %v5149 = vunpack.c.h.b16 %v2970
        %v5150 = vunpack.c.l.b16 %v2971
        %v5151 = vunpack.c.h.b16 %v2971
        %v5152 = vunpack.c.l.b16 %v2972
        %v5153 = vunpack.c.h.b16 %v2972
        %v5154 = vunpack.c.l.b16 %v2973
        %v5155 = vunpack.c.l.b16 %v2974
        %v5156 = vunpack.c.h.b16 %v2974
        %v5157 = vunpack.c.l.b16 %v2975
        %v5158 = vunpack.c.h.b16 %v2975
        %v5159 = vunpack.c.l.b16 %v2976
        %v5160 = vunpack.c.h.b16 %v2976
        %v5161 = vunpack.c.l.b16 %v2977
        %v5162 = vunpack.c.h.b16 %v2977
        %v5163 = vunpack.c.l.b16 %v2978
        %v5164 = vunpack.c.h.b16 %v2978
        %v5165 = vunpack.c.l.b16 %v2979
        %v5166 = vunpack.c.h.b16 %v2979
        %v5167 = vunpack.c.l.b16 %v2980
        %v5168 = vunpack.c.l.b16 %v2981
        %v5169 = vunpack.c.h.b16 %v2981
        %v5170 = vunpack.c.l.b16 %v2982
        %v5171 = vunpack.c.h.b16 %v2982
        %v5172 = vunpack.c.l.b16 %v2983
        %v5173 = vunpack.c.h.b16 %v2983
        %v5174 = vunpack.c.l.b16 %v2984
        %v5175 = vunpack.c.h.b16 %v2984
        %v5176 = vunpack.c.l.b16 %v2985
        %v5177 = vunpack.c.h.b16 %v2985
        %v5178 = vunpack.c.l.b16 %v2986
        %v5179 = vunpack.c.h.b16 %v2986
        %v5180 = vunpack.c.l.b16 %v2987
        %v5181 = vunpack.c.l.b16 %v2988
        %v5182 = vunpack.c.h.b16 %v2988
        %v5183 = vunpack.c.l.b16 %v2989
        %v5184 = vunpack.c.h.b16 %v2989
        %v5185 = vunpack.c.l.b16 %v2990
        %v5186 = vunpack.c.h.b16 %v2990
        %v5187 = vunpack.c.l.b16 %v2991
        %v5188 = vunpack.c.h.b16 %v2991
        %v5189 = vunpack.c.l.b16 %v2992
        %v5190 = vunpack.c.h.b16 %v2992
        %v5191 = vunpack.c.l.b16 %v2993
        %v5192 = vunpack.c.h.b16 %v2993
        %v5193 = vunpack.c.l.b16 %v2994
        %v5194 = vunpack.c.l.b16 %v2995
        %v5195 = vunpack.c.h.b16 %v2995
        %v5196 = vunpack.c.l.b16 %v2996
        %v5197 = vunpack.c.h.b16 %v2996
        %v5198 = vunpack.c.l.b16 %v2997
        %v5199 = vunpack.c.h.b16 %v2997
        %v5200 = vunpack.c.l.b16 %v2998
        %v5201 = vunpack.c.h.b16 %v2998
        %v5202 = vunpack.c.l.b16 %v2999
        %v5203 = vunpack.c.h.b16 %v2999
        %v5204 = vunpack.c.l.b16 %v3000
        %v5205 = vunpack.c.h.b16 %v3000
        %v5206 = vunpack.c.l.b16 %v3001
        %v5207 = vunpack.c.l.b16 %v3002
        %v5208 = vunpack.c.h.b16 %v3002
        %v5209 = vunpack.c.l.b16 %v3003
        %v5210 = vunpack.c.h.b16 %v3003
        %v5211 = vunpack.c.l.b16 %v3004
        %v5212 = vunpack.c.h.b16 %v3004
        %v5213 = vunpack.c.l.b16 %v3005
        %v5214 = vunpack.c.h.b16 %v3005
        %v5215 = vunpack.c.l.b16 %v3006
        %v5216 = vunpack.c.h.b16 %v3006
        %v5217 = vunpack.c.l.b16 %v3007
        %v5218 = vunpack.c.h.b16 %v3007
        %v5219 = vunpack.c.l.b16 %v3008
        %v5220 = vunpack.c.l.b16 %v3009
        %v5221 = vunpack.c.h.b16 %v3009
        %v5222 = vunpack.c.l.b16 %v3010
        %v5223 = vunpack.c.h.b16 %v3010
        %v5224 = vunpack.c.l.b16 %v3011
        %v5225 = vunpack.c.h.b16 %v3011
        %v5226 = vunpack.c.l.b16 %v3012
        %v5227 = vunpack.c.h.b16 %v3012
        %v5228 = vunpack.c.l.b16 %v3013
        %v5229 = vunpack.c.h.b16 %v3013
        %v5230 = vunpack.c.l.b16 %v3014
        %v5231 = vunpack.c.h.b16 %v3014
        %v5232 = vunpack.c.l.b16 %v3015
        %v5233 = vunpack.c.l.b16 %v3016
        %v5234 = vunpack.c.h.b16 %v3016
        %v5235 = vunpack.c.l.b16 %v3017
        %v5236 = vunpack.c.h.b16 %v3017
        %v5237 = vunpack.c.l.b16 %v3018
        %v5238 = vunpack.c.h.b16 %v3018
        %v5239 = vunpack.c.l.b16 %v3019
        %v5240 = vunpack.c.h.b16 %v3019
        %v5241 = vunpack.c.l.b16 %v3020
        %v5242 = vunpack.c.h.b16 %v3020
        %v5243 = vunpack.c.l.b16 %v3021
        %v5244 = vunpack.c.h.b16 %v3021
        %v5245 = vunpack.c.l.b16 %v3022
        %v5246 = vunpack.c.l.b16 %v3023
        %v5247 = vunpack.c.h.b16 %v3023
        %v5248 = vunpack.c.l.b16 %v3024
        %v5249 = vunpack.c.h.b16 %v3024
        %v5250 = vunpack.c.l.b16 %v3025
        %v5251 = vunpack.c.h.b16 %v3025
        %v5252 = vunpack.c.l.b16 %v3026
        %v5253 = vunpack.c.h.b16 %v3026
        %v5254 = vunpack.c.l.b16 %v3027
        %v5255 = vunpack.c.h.b16 %v3027
        %v5256 = vunpack.c.l.b16 %v3028
        %v5257 = vunpack.c.h.b16 %v3028
        %v5258 = vunpack.c.l.b16 %v3029
        %v5259 = vunpack.c.l.b16 %v3030
        %v5260 = vunpack.c.h.b16 %v3030
        %v5261 = vunpack.c.l.b16 %v3031
        %v5262 = vunpack.c.h.b16 %v3031
        %v5263 = vunpack.c.l.b16 %v3032
        %v5264 = vunpack.c.h.b16 %v3032
        %v5265 = vunpack.c.l.b16 %v3033
        %v5266 = vunpack.c.h.b16 %v3033
        %v5267 = vunpack.c.l.b16 %v3034
        %v5268 = vunpack.c.h.b16 %v3034
        %v5269 = vunpack.c.l.b16 %v3035
        %v5270 = vunpack.c.h.b16 %v3035
        %v5271 = vunpack.c.l.b16 %v3036
        %v5272 = vunpack.c.l.b16 %v3037
        %v5273 = vunpack.c.h.b16 %v3037
        %v5274 = vunpack.c.l.b16 %v3038
        %v5275 = vunpack.c.h.b16 %v3038
        %v5276 = vunpack.c.l.b16 %v3039
        %v5277 = vunpack.c.h.b16 %v3039
        %v5278 = vunpack.c.l.b16 %v3040
        %v5279 = vunpack.c.h.b16 %v3040
        %v5280 = vunpack.c.l.b16 %v3041
        %v5281 = vunpack.c.h.b16 %v3041
        %v5282 = vunpack.c.l.b16 %v3042
        %v5283 = vunpack.c.h.b16 %v3042
        %v5284 = vunpack.c.l.b16 %v3043
        %v5285 = vunpack.c.l.b16 %v3044
        %v5286 = vunpack.c.h.b16 %v3044
        %v5287 = vunpack.c.l.b16 %v3045
        %v5288 = vunpack.c.h.b16 %v3045
        %v5289 = vunpack.c.l.b16 %v3046
        %v5290 = vunpack.c.h.b16 %v3046
        %v5291 = vunpack.c.l.b16 %v3047
        %v5292 = vunpack.c.h.b16 %v3047
        %v5293 = vunpack.c.l.b16 %v3048
        %v5294 = vunpack.c.h.b16 %v3048
        %v5295 = vunpack.c.l.b16 %v3049
        %v5296 = vunpack.c.h.b16 %v3049
        %v5297 = vunpack.c.l.b16 %v3050
        %v5298 = vunpack.c.l.b16 %v3051
        %v5299 = vunpack.c.h.b16 %v3051
        %v5300 = vunpack.c.l.b16 %v3052
        %v5301 = vunpack.c.h.b16 %v3052
        %v5302 = vunpack.c.l.b16 %v3053
        %v5303 = vunpack.c.h.b16 %v3053
        %v5304 = vunpack.c.l.b16 %v3054
        %v5305 = vunpack.c.h.b16 %v3054
        %v5306 = vunpack.c.l.b16 %v3055
        %v5307 = vunpack.c.h.b16 %v3055
        %v5308 = vunpack.c.l.b16 %v3056
        %v5309 = vunpack.c.h.b16 %v3056
        %v5310 = vunpack.c.l.b16 %v3057
        %v5311 = vunpack.c.l.b16 %v3058
        %v5312 = vunpack.c.h.b16 %v3058
        %v5313 = vunpack.c.l.b16 %v3059
        %v5314 = vunpack.c.h.b16 %v3059
        %v5315 = vunpack.c.l.b16 %v3060
        %v5316 = vunpack.c.h.b16 %v3060
        %v5317 = vunpack.c.l.b16 %v3061
        %v5318 = vunpack.c.h.b16 %v3061
        %v5319 = vunpack.c.l.b16 %v3062
        %v5320 = vunpack.c.h.b16 %v3062
        %v5321 = vunpack.c.l.b16 %v3063
        %v5322 = vunpack.c.h.b16 %v3063
        %v5323 = vunpack.c.l.b16 %v3064
        %v5324 = vunpack.c.l.b16 %v3065
        %v5325 = vunpack.c.h.b16 %v3065
        %v5326 = vunpack.c.l.b16 %v3066
        %v5327 = vunpack.c.h.b16 %v3066
        %v5328 = vunpack.c.l.b16 %v3067
        %v5329 = vunpack.c.h.b16 %v3067
        %v5330 = vunpack.c.l.b16 %v3068
        %v5331 = vunpack.c.h.b16 %v3068
        %v5332 = vunpack.c.l.b16 %v3069
        %v5333 = vunpack.c.h.b16 %v3069
        %v5334 = vunpack.c.l.b16 %v3070
        %v5335 = vunpack.c.h.b16 %v3070
        %v5336 = vunpack.c.l.b16 %v3071
        %v5337 = vunpack.c.l.b16 %v3072
        %v5338 = vunpack.c.h.b16 %v3072
        %v5339 = vunpack.c.l.b16 %v3073
        %v5340 = vunpack.c.h.b16 %v3073
        %v5341 = vunpack.c.l.b16 %v3074
        %v5342 = vunpack.c.h.b16 %v3074
        %v5343 = vunpack.c.l.b16 %v3075
        %v5344 = vunpack.c.h.b16 %v3075
        %v5345 = vunpack.c.l.b16 %v3076
        %v5346 = vunpack.c.h.b16 %v3076
        %v5347 = vunpack.c.l.b16 %v3077
        %v5348 = vunpack.c.h.b16 %v3077
        %v5349 = vunpack.c.l.b16 %v3078
        %v5350 = vunpack.c.l.b16 %v3079
        %v5351 = vunpack.c.h.b16 %v3079
        %v5352 = vunpack.c.l.b16 %v3080
        %v5353 = vunpack.c.h.b16 %v3080
        %v5354 = vunpack.c.l.b16 %v3081
        %v5355 = vunpack.c.h.b16 %v3081
        %v5356 = vunpack.c.l.b16 %v3082
        %v5357 = vunpack.c.h.b16 %v3082
        %v5358 = vunpack.c.l.b16 %v3083
        %v5359 = vunpack.c.h.b16 %v3083
        %v5360 = vunpack.c.l.b16 %v3084
        %v5361 = vunpack.c.h.b16 %v3084
        %v5362 = vunpack.c.l.b16 %v3085
        %v5363 = vunpack.c.l.b16 %v3086
        %v5364 = vunpack.c.h.b16 %v3086
        %v5365 = vunpack.c.l.b16 %v3087
        %v5366 = vunpack.c.h.b16 %v3087
        %v5367 = vunpack.c.l.b16 %v3088
        %v5368 = vunpack.c.h.b16 %v3088
        %v5369 = vunpack.c.l.b16 %v3089
        %v5370 = vunpack.c.h.b16 %v3089
        %v5371 = vunpack.c.l.b16 %v3090
        %v5372 = vunpack.c.h.b16 %v3090
        %v5373 = vunpack.c.l.b16 %v3091
        %v5374 = vunpack.c.h.b16 %v3091
        %v5375 = vunpack.c.l.b16 %v3092
        %v5376 = vunpack.c.l.b16 %v3093
        %v5377 = vunpack.c.h.b16 %v3093
        %v5378 = vunpack.c.l.b16 %v3094
        %v5379 = vunpack.c.h.b16 %v3094
        %v5380 = vunpack.c.l.b16 %v3095
        %v5381 = vunpack.c.h.b16 %v3095
        %v5382 = vunpack.c.l.b16 %v3096
        %v5383 = vunpack.c.h.b16 %v3096
        %v5384 = vunpack.c.l.b16 %v3097
        %v5385 = vunpack.c.h.b16 %v3097
        %v5386 = vunpack.c.l.b16 %v3098
        %v5387 = vunpack.c.h.b16 %v3098
        %v5388 = vunpack.c.l.b16 %v3099
        %v5389 = vunpack.c.l.b16 %v3100
        %v5390 = vunpack.c.h.b16 %v3100
        %v5391 = vunpack.c.l.b16 %v3101
        %v5392 = vunpack.c.h.b16 %v3101
        %v5393 = vunpack.c.l.b16 %v3102
        %v5394 = vunpack.c.h.b16 %v3102
        %v5395 = vunpack.c.l.b16 %v3103
        %v5396 = vunpack.c.h.b16 %v3103
        %v5397 = vunpack.c.l.b16 %v3104
        %v5398 = vunpack.c.h.b16 %v3104
        %v5399 = vunpack.c.l.b16 %v3105
        %v5400 = vunpack.c.h.b16 %v3105
        %v5401 = vunpack.c.l.b16 %v3106
        %v5402 = vunpack.c.l.b16 %v3107
        %v5403 = vunpack.c.h.b16 %v3107
        %v5404 = vunpack.c.l.b16 %v3108
        %v5405 = vunpack.c.h.b16 %v3108
        %v5406 = vunpack.c.l.b16 %v3109
        %v5407 = vunpack.c.h.b16 %v3109
        %v5408 = vunpack.c.l.b16 %v3110
        %v5409 = vunpack.c.h.b16 %v3110
        %v5410 = vunpack.c.l.b16 %v3111
        %v5411 = vunpack.c.h.b16 %v3111
        %v5412 = vunpack.c.l.b16 %v3112
        %v5413 = vunpack.c.h.b16 %v3112
        %v5414 = vunpack.c.l.b16 %v3113
        %v5415 = vunpack.c.l.b16 %v3114
        %v5416 = vunpack.c.h.b16 %v3114
        %v5417 = vunpack.c.l.b16 %v3115
        %v5418 = vunpack.c.h.b16 %v3115
        %v5419 = vunpack.c.l.b16 %v3116
        %v5420 = vunpack.c.h.b16 %v3116
        %v5421 = vunpack.c.l.b16 %v3117
        %v5422 = vunpack.c.h.b16 %v3117
        %v5423 = vunpack.c.l.b16 %v3118
        %v5424 = vunpack.c.h.b16 %v3118
        %v5425 = vunpack.c.l.b16 %v3119
        %v5426 = vunpack.c.h.b16 %v3119
        %v5427 = vunpack.c.l.b16 %v3120
        %v5428 = vunpack.c.l.b16 %v3121
        %v5429 = vunpack.c.h.b16 %v3121
        %v5430 = vunpack.c.l.b16 %v3122
        %v5431 = vunpack.c.h.b16 %v3122
        %v5432 = vunpack.c.l.b16 %v3123
        %v5433 = vunpack.c.h.b16 %v3123
        %v5434 = vunpack.c.l.b16 %v3124
        %v5435 = vunpack.c.h.b16 %v3124
        %v5436 = vunpack.c.l.b16 %v3125
        %v5437 = vunpack.c.h.b16 %v3125
        %v5438 = vunpack.c.l.b16 %v3126
        %v5439 = vunpack.c.h.b16 %v3126
        %v5440 = vunpack.c.l.b16 %v3127
        %v5441 = vunpack.c.l.b16 %v3128
        %v5442 = vunpack.c.h.b16 %v3128
        %v5443 = vunpack.c.l.b16 %v3129
        %v5444 = vunpack.c.h.b16 %v3129
        %v5445 = vunpack.c.l.b16 %v3130
        %v5446 = vunpack.c.h.b16 %v3130
        %v5447 = vunpack.c.l.b16 %v3131
        %v5448 = vunpack.c.h.b16 %v3131
        %v5449 = vunpack.c.l.b16 %v3132
        %v5450 = vunpack.c.h.b16 %v3132
        %v5451 = vunpack.c.l.b16 %v3133
        %v5452 = vunpack.c.h.b16 %v3133
        %v5453 = vunpack.c.l.b16 %v3134
        %v5454 = vunpack.c.l.b16 %v3135
        %v5455 = vunpack.c.h.b16 %v3135
        %v5456 = vunpack.c.l.b16 %v3136
        %v5457 = vunpack.c.h.b16 %v3136
        %v5458 = vunpack.c.l.b16 %v3137
        %v5459 = vunpack.c.h.b16 %v3137
        %v5460 = vunpack.c.l.b16 %v3138
        %v5461 = vunpack.c.h.b16 %v3138
        %v5462 = vunpack.c.l.b16 %v3139
        %v5463 = vunpack.c.h.b16 %v3139
        %v5464 = vunpack.c.l.b16 %v3140
        %v5465 = vunpack.c.h.b16 %v3140
        %v5466 = vunpack.c.l.b16 %v3141
        %v5467 = vunpack.c.l.b16 %v3142
        %v5468 = vunpack.c.h.b16 %v3142
        %v5469 = vunpack.c.l.b16 %v3143
        %v5470 = vunpack.c.h.b16 %v3143
        %v5471 = vunpack.c.l.b16 %v3144
        %v5472 = vunpack.c.h.b16 %v3144
        %v5473 = vunpack.c.l.b16 %v3145
        %v5474 = vunpack.c.h.b16 %v3145
        %v5475 = vunpack.c.l.b16 %v3146
        %v5476 = vunpack.c.h.b16 %v3146
        %v5477 = vunpack.c.l.b16 %v3147
        %v5478 = vunpack.c.h.b16 %v3147
        %v5479 = vunpack.c.l.b16 %v3148
        %v5480 = vunpack.c.l.b16 %v3149
        %v5481 = vunpack.c.h.b16 %v3149
        %v5482 = vunpack.c.l.b16 %v3150
        %v5483 = vunpack.c.h.b16 %v3150
        %v5484 = vunpack.c.l.b16 %v3151
        %v5485 = vunpack.c.h.b16 %v3151
        %v5486 = vunpack.c.l.b16 %v3152
        %v5487 = vunpack.c.h.b16 %v3152
        %v5488 = vunpack.c.l.b16 %v3153
        %v5489 = vunpack.c.h.b16 %v3153
        %v5490 = vunpack.c.l.b16 %v3154
        %v5491 = vunpack.c.h.b16 %v3154
        %v5492 = vunpack.c.l.b16 %v3155
        %v5493 = vunpack.c.l.b16 %v3156
        %v5494 = vunpack.c.h.b16 %v3156
        %v5495 = vunpack.c.l.b16 %v3157
        %v5496 = vunpack.c.h.b16 %v3157
        %v5497 = vunpack.c.l.b16 %v3158
        %v5498 = vunpack.c.h.b16 %v3158
        %v5499 = vunpack.c.l.b16 %v3159
        %v5500 = vunpack.c.h.b16 %v3159
        %v5501 = vunpack.c.l.b16 %v3160
        %v5502 = vunpack.c.h.b16 %v3160
        %v5503 = vunpack.c.l.b16 %v3161
        %v5504 = vunpack.c.h.b16 %v3161
        %v5505 = vunpack.c.l.b16 %v3162
        %v5506 = vunpack.c.l.b16 %v3163
        %v5507 = vunpack.c.h.b16 %v3163
        %v5508 = vunpack.c.l.b16 %v3164
        %v5509 = vunpack.c.h.b16 %v3164
        %v5510 = vunpack.c.l.b16 %v3165
        %v5511 = vunpack.c.h.b16 %v3165
        %v5512 = vunpack.c.l.b16 %v3166
        %v5513 = vunpack.c.h.b16 %v3166
        %v5514 = vunpack.c.l.b16 %v3167
        %v5515 = vunpack.c.h.b16 %v3167
        %v5516 = vunpack.c.l.b16 %v3168
        %v5517 = vunpack.c.h.b16 %v3168
        %v5518 = vunpack.c.l.b16 %v3169
        %v5519 = vunpack.c.l.b16 %v3170
        %v5520 = vunpack.c.h.b16 %v3170
        %v5521 = vunpack.c.l.b16 %v3171
        %v5522 = vunpack.c.h.b16 %v3171
        %v5523 = vunpack.c.l.b16 %v3172
        %v5524 = vunpack.c.h.b16 %v3172
        %v5525 = vunpack.c.l.b16 %v3173
        %v5526 = vunpack.c.h.b16 %v3173
        %v5527 = vunpack.c.l.b16 %v3174
        %v5528 = vunpack.c.h.b16 %v3174
        %v5529 = vunpack.c.l.b16 %v3175
        %v5530 = vunpack.c.h.b16 %v3175
        %v5531 = vunpack.c.l.b16 %v3176
        %v5532 = vunpack.c.l.b16 %v3177
        %v5533 = vunpack.c.h.b16 %v3177
        %v5534 = vunpack.c.l.b16 %v3178
        %v5535 = vunpack.c.h.b16 %v3178
        %v5536 = vunpack.c.l.b16 %v3179
        %v5537 = vunpack.c.h.b16 %v3179
        %v5538 = vunpack.c.l.b16 %v3180
        %v5539 = vunpack.c.h.b16 %v3180
        %v5540 = vunpack.c.l.b16 %v3181
        %v5541 = vunpack.c.h.b16 %v3181
        %v5542 = vunpack.c.l.b16 %v3182
        %v5543 = vunpack.c.h.b16 %v3182
        %v5544 = vunpack.c.l.b16 %v3183
        %v5545 = vunpack.c.l.b16 %v3184
        %v5546 = vunpack.c.h.b16 %v3184
        %v5547 = vunpack.c.l.b16 %v3185
        %v5548 = vunpack.c.h.b16 %v3185
        %v5549 = vunpack.c.l.b16 %v3186
        %v5550 = vunpack.c.h.b16 %v3186
        %v5551 = vunpack.c.l.b16 %v3187
        %v5552 = vunpack.c.h.b16 %v3187
        %v5553 = vunpack.c.l.b16 %v3188
        %v5554 = vunpack.c.h.b16 %v3188
        %v5555 = vunpack.c.l.b16 %v3189
        %v5556 = vunpack.c.h.b16 %v3189
        %v5557 = vunpack.c.l.b16 %v3190
        %v5558 = vunpack.c.l.b16 %v3191
        %v5559 = vunpack.c.h.b16 %v3191
        %v5560 = vunpack.c.l.b16 %v3192
        %v5561 = vunpack.c.h.b16 %v3192
        %v5562 = vunpack.c.l.b16 %v3193
        %v5563 = vunpack.c.h.b16 %v3193
        %v5564 = vunpack.c.l.b16 %v3194
        %v5565 = vunpack.c.h.b16 %v3194
        %v5566 = vunpack.c.l.b16 %v3195
        %v5567 = vunpack.c.h.b16 %v3195
        %v5568 = vunpack.c.l.b16 %v3196
        %v5569 = vunpack.c.h.b16 %v3196
        %v5570 = vunpack.c.l.b16 %v3197
        %v5571 = vunpack.c.l.b16 %v3198
        %v5572 = vunpack.c.h.b16 %v3198
        %v5573 = vunpack.c.l.b16 %v3199
        %v5574 = vunpack.c.h.b16 %v3199
        %v5575 = vunpack.c.l.b16 %v3200
        %v5576 = vunpack.c.h.b16 %v3200
        %v5577 = vunpack.c.l.b16 %v3201
        %v5578 = vunpack.c.h.b16 %v3201
        %v5579 = vunpack.c.l.b16 %v3202
        %v5580 = vunpack.c.h.b16 %v3202
        %v5581 = vunpack.c.l.b16 %v3203
        %v5582 = vunpack.c.h.b16 %v3203
        %v5583 = vunpack.c.l.b16 %v3204
        %v5584 = vunpack.c.l.b16 %v3205
        %v5585 = vunpack.c.h.b16 %v3205
        %v5586 = vunpack.c.l.b16 %v3206
        %v5587 = vunpack.c.h.b16 %v3206
        %v5588 = vunpack.c.l.b16 %v3207
        %v5589 = vunpack.c.h.b16 %v3207
        %v5590 = vunpack.c.l.b16 %v3208
        %v5591 = vunpack.c.h.b16 %v3208
        %v5592 = vunpack.c.l.b16 %v3209
        %v5593 = vunpack.c.h.b16 %v3209
        %v5594 = vunpack.c.l.b16 %v3210
        %v5595 = vunpack.c.h.b16 %v3210
        %v5596 = vunpack.c.l.b16 %v3211
        %v5597 = vunpack.c.l.b16 %v3212
        %v5598 = vunpack.c.h.b16 %v3212
        %v5599 = vunpack.c.l.b16 %v3213
        %v5600 = vunpack.c.h.b16 %v3213
        %v5601 = vunpack.c.l.b16 %v3214
        %v5602 = vunpack.c.h.b16 %v3214
        %v5603 = vunpack.c.l.b16 %v3215
        %v5604 = vunpack.c.h.b16 %v3215
        %v5605 = vunpack.c.l.b16 %v3216
        %v5606 = vunpack.c.h.b16 %v3216
        %v5607 = vunpack.c.l.b16 %v3217
        %v5608 = vunpack.c.h.b16 %v3217
        %v5609 = vunpack.c.l.b16 %v3218
        %v5610 = vunpack.c.l.b16 %v3219
        %v5611 = vunpack.c.h.b16 %v3219
        %v5612 = vunpack.c.l.b16 %v3220
        %v5613 = vunpack.c.h.b16 %v3220
        %v5614 = vunpack.c.l.b16 %v3221
        %v5615 = vunpack.c.h.b16 %v3221
        %v5616 = vunpack.c.l.b16 %v3222
        %v5617 = vunpack.c.h.b16 %v3222
        %v5618 = vunpack.c.l.b16 %v3223
        %v5619 = vunpack.c.h.b16 %v3223
        %v5620 = vunpack.c.l.b16 %v3224
        %v5621 = vunpack.c.h.b16 %v3224
        %v5622 = vunpack.c.l.b16 %v3225
        %v5623 = vunpack.c.l.b16 %v3226
        %v5624 = vunpack.c.h.b16 %v3226
        %v5625 = vunpack.c.l.b16 %v3227
        %v5626 = vunpack.c.h.b16 %v3227
        %v5627 = vunpack.c.l.b16 %v3228
        %v5628 = vunpack.c.h.b16 %v3228
        %v5629 = vunpack.c.l.b16 %v3229
        %v5630 = vunpack.c.h.b16 %v3229
        %v5631 = vunpack.c.l.b16 %v3230
        %v5632 = vunpack.c.h.b16 %v3230
        %v5633 = vunpack.c.l.b16 %v3231
        %v5634 = vunpack.c.h.b16 %v3231
        %v5635 = vunpack.c.l.b16 %v3232
        %v5636 = vunpack.c.l.b16 %v3233
        %v5637 = vunpack.c.h.b16 %v3233
        %v5638 = vunpack.c.l.b16 %v3234
        %v5639 = vunpack.c.h.b16 %v3234
        %v5640 = vunpack.c.l.b16 %v3235
        %v5641 = vunpack.c.h.b16 %v3235
        %v5642 = vunpack.c.l.b16 %v3236
        %v5643 = vunpack.c.h.b16 %v3236
        %v5644 = vunpack.c.l.b16 %v3237
        %v5645 = vunpack.c.h.b16 %v3237
        %v5646 = vunpack.c.l.b16 %v3238
        %v5647 = vunpack.c.h.b16 %v3238
        %v5648 = vunpack.c.l.b16 %v3239
        %v5649 = vunpack.c.l.b16 %v3240
        %v5650 = vunpack.c.h.b16 %v3240
        %v5651 = vunpack.c.l.b16 %v3241
        %v5652 = vunpack.c.h.b16 %v3241
        %v5653 = vunpack.c.l.b16 %v3242
        %v5654 = vunpack.c.h.b16 %v3242
        %v5655 = vunpack.c.l.b16 %v3243
        %v5656 = vunpack.c.h.b16 %v3243
        %v5657 = vunpack.c.l.b16 %v3244
        %v5658 = vunpack.c.h.b16 %v3244
        %v5659 = vunpack.c.l.b16 %v3245
        %v5660 = vunpack.c.h.b16 %v3245
        %v5661 = vunpack.c.l.b16 %v3246
        %v5662 = vunpack.c.l.b16 %v3247
        %v5663 = vunpack.c.h.b16 %v3247
        %v5664 = vunpack.c.l.b16 %v3248
        %v5665 = vunpack.c.h.b16 %v3248
        %v5666 = vunpack.c.l.b16 %v3249
        %v5667 = vunpack.c.h.b16 %v3249
        %v5668 = vunpack.c.l.b16 %v3250
        %v5669 = vunpack.c.h.b16 %v3250
        %v5670 = vunpack.c.l.b16 %v3251
        %v5671 = vunpack.c.h.b16 %v3251
        %v5672 = vunpack.c.l.b16 %v3252
        %v5673 = vunpack.c.h.b16 %v3252
        %v5674 = vunpack.c.l.b16 %v3253
        %v5675 = vunpack.c.l.b16 %v3254
        %v5676 = vunpack.c.h.b16 %v3254
        %v5677 = vunpack.c.l.b16 %v3255
        %v5678 = vunpack.c.h.b16 %v3255
        %v5679 = vunpack.c.l.b16 %v3256
        %v5680 = vunpack.c.h.b16 %v3256
        %v5681 = vunpack.c.l.b16 %v3257
        %v5682 = vunpack.c.h.b16 %v3257
        %v5683 = vunpack.c.l.b16 %v3258
        %v5684 = vunpack.c.h.b16 %v3258
        %v5685 = vunpack.c.l.b16 %v3259
        %v5686 = vunpack.c.h.b16 %v3259
        %v5687 = vunpack.c.l.b16 %v3260
        %v5688 = vunpack.c.l.b16 %v3261
        %v5689 = vunpack.c.h.b16 %v3261
        %v5690 = vunpack.c.l.b16 %v3262
        %v5691 = vunpack.c.h.b16 %v3262
        %v5692 = vunpack.c.l.b16 %v3263
        %v5693 = vunpack.c.h.b16 %v3263
        %v5694 = vunpack.c.l.b16 %v3264
        %v5695 = vunpack.c.h.b16 %v3264
        %v5696 = vunpack.c.l.b16 %v3265
        %v5697 = vunpack.c.h.b16 %v3265
        %v5698 = vunpack.c.l.b16 %v3266
        %v5699 = vunpack.c.h.b16 %v3266
        %v5700 = vunpack.c.l.b16 %v3267
        %v5701 = vunpack.c.l.b16 %v3268
        %v5702 = vunpack.c.h.b16 %v3268
        %v5703 = vunpack.c.l.b16 %v3269
        %v5704 = vunpack.c.h.b16 %v3269
        %v5705 = vunpack.c.l.b16 %v3270
        %v5706 = vunpack.c.h.b16 %v3270
        %v5707 = vunpack.c.l.b16 %v3271
        %v5708 = vunpack.c.h.b16 %v3271
        %v5709 = vunpack.c.l.b16 %v3272
        %v5710 = vunpack.c.h.b16 %v3272
        %v5711 = vunpack.c.l.b16 %v3273
        %v5712 = vunpack.c.h.b16 %v3273
        %v5713 = vunpack.c.l.b16 %v3274
        %v5714 = vunpack.c.l.b16 %v3275
        %v5715 = vunpack.c.h.b16 %v3275
        %v5716 = vunpack.c.l.b16 %v3276
        %v5717 = vunpack.c.h.b16 %v3276
        %v5718 = vunpack.c.l.b16 %v3277
        %v5719 = vunpack.c.h.b16 %v3277
        %v5720 = vunpack.c.l.b16 %v3278
        %v5721 = vunpack.c.h.b16 %v3278
        %v5722 = vunpack.c.l.b16 %v3279
        %v5723 = vunpack.c.h.b16 %v3279
        %v5724 = vunpack.c.l.b16 %v3280
        %v5725 = vunpack.c.h.b16 %v3280
        %v5726 = vunpack.c.l.b16 %v3281
        %v5727 = vunpack.c.l.b16 %v3282
        %v5728 = vunpack.c.h.b16 %v3282
        %v5729 = vunpack.c.l.b16 %v3283
        %v5730 = vunpack.c.h.b16 %v3283
        %v5731 = vunpack.c.l.b16 %v3284
        %v5732 = vunpack.c.h.b16 %v3284
        %v5733 = vunpack.c.l.b16 %v3285
        %v5734 = vunpack.c.h.b16 %v3285
        %v5735 = vunpack.c.l.b16 %v3286
        %v5736 = vunpack.c.h.b16 %v3286
        %v5737 = vunpack.c.l.b16 %v3287
        %v5738 = vunpack.c.h.b16 %v3287
        %v5739 = vunpack.c.l.b16 %v3288
        %v5740 = vunpack.c.l.b16 %v3289
        %v5741 = vunpack.c.h.b16 %v3289
        %v5742 = vunpack.c.l.b16 %v3290
        %v5743 = vunpack.c.h.b16 %v3290
        %v5744 = vunpack.c.l.b16 %v3291
        %v5745 = vunpack.c.h.b16 %v3291
        %v5746 = vunpack.c.l.b16 %v3292
        %v5747 = vunpack.c.h.b16 %v3292
        %v5748 = vunpack.c.l.b16 %v3293
        %v5749 = vunpack.c.h.b16 %v3293
        %v5750 = vunpack.c.l.b16 %v3294
        %v5751 = vunpack.c.h.b16 %v3294
        %v5752 = vunpack.c.l.b16 %v3295
        %v5753 = vunpack.c.l.b16 %v3296
        %v5754 = vunpack.c.h.b16 %v3296
        %v5755 = vunpack.c.l.b16 %v3297
        %v5756 = vunpack.c.h.b16 %v3297
        %v5757 = vunpack.c.l.b16 %v3298
        %v5758 = vunpack.c.h.b16 %v3298
        %v5759 = vunpack.c.l.b16 %v3299
        %v5760 = vunpack.c.h.b16 %v3299
        %v5761 = vunpack.c.l.b16 %v3300
        %v5762 = vunpack.c.h.b16 %v3300
        %v5763 = vunpack.c.l.b16 %v3301
        %v5764 = vunpack.c.h.b16 %v3301
        %v5765 = vunpack.c.l.b16 %v3302
        %v5766 = vunpack.c.l.b16 %v3303
        %v5767 = vunpack.c.h.b16 %v3303
        %v5768 = vunpack.c.l.b16 %v3304
        %v5769 = vunpack.c.h.b16 %v3304
        %v5770 = vunpack.c.l.b16 %v3305
        %v5771 = vunpack.c.h.b16 %v3305
        %v5772 = vunpack.c.l.b16 %v3306
        %v5773 = vunpack.c.h.b16 %v3306
        %v5774 = vunpack.c.l.b16 %v3307
        %v5775 = vunpack.c.h.b16 %v3307
        %v5776 = vunpack.c.l.b16 %v3308
        %v5777 = vunpack.c.h.b16 %v3308
        %v5778 = vunpack.c.l.b16 %v3309
        %v5779 = vunpack.c.l.b16 %v3310
        %v5780 = vunpack.c.h.b16 %v3310
        %v5781 = vunpack.c.l.b16 %v3311
        %v5782 = vunpack.c.h.b16 %v3311
        %v5783 = vunpack.c.l.b16 %v3312
        %v5784 = vunpack.c.h.b16 %v3312
        %v5785 = vunpack.c.l.b16 %v3313
        %v5786 = vunpack.c.h.b16 %v3313
        %v5787 = vunpack.c.l.b16 %v3314
        %v5788 = vunpack.c.h.b16 %v3314
        %v5789 = vunpack.c.l.b16 %v3315
        %v5790 = vunpack.c.h.b16 %v3315
        %v5791 = vunpack.c.l.b16 %v3316
        %v5792 = vunpack.c.l.b16 %v3317
        %v5793 = vunpack.c.h.b16 %v3317
        %v5794 = vunpack.c.l.b16 %v3318
        %v5795 = vunpack.c.h.b16 %v3318
        %v5796 = vunpack.c.l.b16 %v3319
        %v5797 = vunpack.c.h.b16 %v3319
        %v5798 = vunpack.c.l.b16 %v3320
        %v5799 = vunpack.c.h.b16 %v3320
        %v5800 = vunpack.c.l.b16 %v3321
        %v5801 = vunpack.c.h.b16 %v3321
        %v5802 = vunpack.c.l.b16 %v3322
        %v5803 = vunpack.c.h.b16 %v3322
        %v5804 = vunpack.c.l.b16 %v3323
        %v5805 = vunpack.c.l.b16 %v3324
        %v5806 = vunpack.c.h.b16 %v3324
        %v5807 = vunpack.c.l.b16 %v3325
        %v5808 = vunpack.c.h.b16 %v3325
        %v5809 = vunpack.c.l.b16 %v3326
        %v5810 = vunpack.c.h.b16 %v3326
        %v5811 = vunpack.c.l.b16 %v3327
        %v5812 = vunpack.c.h.b16 %v3327
        %v5813 = vunpack.c.l.b16 %v3328
        %v5814 = vunpack.c.h.b16 %v3328
        %v5815 = vunpack.c.l.b16 %v3329
        %v5816 = vunpack.c.h.b16 %v3329
        %v5817 = vunpack.c.l.b16 %v3330
        %v5818 = vunpack.c.l.b16 %v3331
        %v5819 = vunpack.c.h.b16 %v3331
        %v5820 = vunpack.c.l.b16 %v3332
        %v5821 = vunpack.c.h.b16 %v3332
        %v5822 = vunpack.c.l.b16 %v3333
        %v5823 = vunpack.c.h.b16 %v3333
        %v5824 = vunpack.c.l.b16 %v3334
        %v5825 = vunpack.c.h.b16 %v3334
        %v5826 = vunpack.c.l.b16 %v3335
        %v5827 = vunpack.c.h.b16 %v3335
        %v5828 = vunpack.c.l.b16 %v3336
        %v5829 = vunpack.c.h.b16 %v3336
        %v5830 = vunpack.c.l.b16 %v3337
        %v5831 = vunpack.c.l.b16 %v3338
        %v5832 = vunpack.c.h.b16 %v3338
        %v5833 = vunpack.c.l.b16 %v3339
        %v5834 = vunpack.c.h.b16 %v3339
        %v5835 = vunpack.c.l.b16 %v3340
        %v5836 = vunpack.c.h.b16 %v3340
        %v5837 = vunpack.c.l.b16 %v3341
        %v5838 = vunpack.c.h.b16 %v3341
        %v5839 = vunpack.c.l.b16 %v3342
        %v5840 = vunpack.c.h.b16 %v3342
        %v5841 = vunpack.c.l.b16 %v3343
        %v5842 = vunpack.c.h.b16 %v3343
        %v5843 = vunpack.c.l.b16 %v3344
        %v5844 = vunpack.c.l.b16 %v3345
        %v5845 = vunpack.c.h.b16 %v3345
        %v5846 = vunpack.c.l.b16 %v3346
        %v5847 = vunpack.c.h.b16 %v3346
        %v5848 = vunpack.c.l.b16 %v3347
        %v5849 = vunpack.c.h.b16 %v3347
        %v5850 = vunpack.c.l.b16 %v3348
        %v5851 = vunpack.c.h.b16 %v3348
        %v5852 = vunpack.c.l.b16 %v3349
        %v5853 = vunpack.c.h.b16 %v3349
        %v5854 = vunpack.c.l.b16 %v3350
        %v5855 = vunpack.c.h.b16 %v3350
        %v5856 = vunpack.c.l.b16 %v3351
        %v5857 = vunpack.c.l.b16 %v3352
        %v5858 = vunpack.c.h.b16 %v3352
        %v5859 = vunpack.c.l.b16 %v3353
        %v5860 = vunpack.c.h.b16 %v3353
        %v5861 = vunpack.c.l.b16 %v3354
        %v5862 = vunpack.c.h.b16 %v3354
        %v5863 = vunpack.c.l.b16 %v3355
        %v5864 = vunpack.c.h.b16 %v3355
        %v5865 = vunpack.c.l.b16 %v3356
        %v5866 = vunpack.c.h.b16 %v3356
        %v5867 = vunpack.c.l.b16 %v3357
        %v5868 = vunpack.c.h.b16 %v3357
        %v5869 = vunpack.c.l.b16 %v3358
        %v5870 = vunpack.c.l.b16 %v3359
        %v5871 = vunpack.c.h.b16 %v3359
        %v5872 = vunpack.c.l.b16 %v3360
        %v5873 = vunpack.c.h.b16 %v3360
        %v5874 = vunpack.c.l.b16 %v3361
        %v5875 = vunpack.c.h.b16 %v3361
        %v5876 = vunpack.c.l.b16 %v3362
        %v5877 = vunpack.c.h.b16 %v3362
        %v5878 = vunpack.c.l.b16 %v3363
        %v5879 = vunpack.c.h.b16 %v3363
        %v5880 = vunpack.c.l.b16 %v3364
        %v5881 = vunpack.c.h.b16 %v3364
        %v5882 = vunpack.c.l.b16 %v3365
        %v5883 = vunpack.c.l.b16 %v3366
        %v5884 = vunpack.c.h.b16 %v3366
        %v5885 = vunpack.c.l.b16 %v3367
        %v5886 = vunpack.c.h.b16 %v3367
        %v5887 = vunpack.c.l.b16 %v3368
        %v5888 = vunpack.c.h.b16 %v3368
        %v5889 = vunpack.c.l.b16 %v3369
        %v5890 = vunpack.c.h.b16 %v3369
        %v5891 = vunpack.c.l.b16 %v3370
        %v5892 = vunpack.c.h.b16 %v3370
        %v5893 = vunpack.c.l.b16 %v3371
        %v5894 = vunpack.c.h.b16 %v3371
        %v5895 = vunpack.c.l.b16 %v3372
        %v5896 = vunpack.c.l.b16 %v3373
        %v5897 = vunpack.c.h.b16 %v3373
        %v5898 = vunpack.c.l.b16 %v3374
        %v5899 = vunpack.c.h.b16 %v3374
        %v5900 = vunpack.c.l.b16 %v3375
        %v5901 = vunpack.c.h.b16 %v3375
        %v5902 = vunpack.c.l.b16 %v3376
        %v5903 = vunpack.c.h.b16 %v3376
        %v5904 = vunpack.c.l.b16 %v3377
        %v5905 = vunpack.c.h.b16 %v3377
        %v5906 = vunpack.c.l.b16 %v3378
        %v5907 = vunpack.c.h.b16 %v3378
        %v5908 = vunpack.c.l.b16 %v3379
        %v5909 = vunpack.c.l.b16 %v3380
        %v5910 = vunpack.c.h.b16 %v3380
        %v5911 = vunpack.c.l.b16 %v3381
        %v5912 = vunpack.c.h.b16 %v3381
        %v5913 = vunpack.c.l.b16 %v3382
        %v5914 = vunpack.c.h.b16 %v3382
        %v5915 = vunpack.c.l.b16 %v3383
        %v5916 = vunpack.c.h.b16 %v3383
        %v5917 = vunpack.c.l.b16 %v3384
        %v5918 = vunpack.c.h.b16 %v3384
        %v5919 = vunpack.c.l.b16 %v3385
        %v5920 = vunpack.c.h.b16 %v3385
        %v5921 = vunpack.c.l.b16 %v3386
        %v5922 = vunpack.c.l.b16 %v3387
        %v5923 = vunpack.c.h.b16 %v3387
        %v5924 = vunpack.c.l.b16 %v3388
        %v5925 = vunpack.c.h.b16 %v3388
        %v5926 = vunpack.c.l.b16 %v3389
        %v5927 = vunpack.c.h.b16 %v3389
        %v5928 = vunpack.c.l.b16 %v3390
        %v5929 = vunpack.c.h.b16 %v3390
        %v5930 = vunpack.c.l.b16 %v3391
        %v5931 = vunpack.c.h.b16 %v3391
        %v5932 = vunpack.c.l.b16 %v3392
        %v5933 = vunpack.c.h.b16 %v3392
        %v5934 = vunpack.c.l.b16 %v3393
        %v5935 = vunpack.c.l.b16 %v3394
        %v5936 = vunpack.c.h.b16 %v3394
        %v5937 = vunpack.c.l.b16 %v3395
        %v5938 = vunpack.c.h.b16 %v3395
        %v5939 = vunpack.c.l.b16 %v3396
        %v5940 = vunpack.c.h.b16 %v3396
        %v5941 = vunpack.c.l.b16 %v3397
        %v5942 = vunpack.c.h.b16 %v3397
        %v5943 = vunpack.c.l.b16 %v3398
        %v5944 = vunpack.c.h.b16 %v3398
        %v5945 = vunpack.c.l.b16 %v3399
        %v5946 = vunpack.c.h.b16 %v3399
        %v5947 = vunpack.c.l.b16 %v3400
        %v5948 = vunpack.c.l.b16 %v3401
        %v5949 = vunpack.c.h.b16 %v3401
        %v5950 = vunpack.c.l.b16 %v3402
        %v5951 = vunpack.c.h.b16 %v3402
        %v5952 = vunpack.c.l.b16 %v3403
        %v5953 = vunpack.c.h.b16 %v3403
        %v5954 = vunpack.c.l.b16 %v3404
        %v5955 = vunpack.c.h.b16 %v3404
        %v5956 = vunpack.c.l.b16 %v3405
        %v5957 = vunpack.c.h.b16 %v3405
        %v5958 = vunpack.c.l.b16 %v3406
        %v5959 = vunpack.c.h.b16 %v3406
        %v5960 = vunpack.c.l.b16 %v3407
        %v5961 = vunpack.c.l.b16 %v3408
        %v5962 = vunpack.c.h.b16 %v3408
        %v5963 = vunpack.c.l.b16 %v3409
        %v5964 = vunpack.c.h.b16 %v3409
        %v5965 = vunpack.c.l.b16 %v3410
        %v5966 = vunpack.c.h.b16 %v3410
        %v5967 = vunpack.c.l.b16 %v3411
        %v5968 = vunpack.c.h.b16 %v3411
        %v5969 = vunpack.c.l.b16 %v3412
        %v5970 = vunpack.c.h.b16 %v3412
        %v5971 = vunpack.c.l.b16 %v3413
        %v5972 = vunpack.c.h.b16 %v3413
        %v5973 = vunpack.c.l.b16 %v3414
        %v5974 = vunpack.c.l.b16 %v3415
        %v5975 = vunpack.c.h.b16 %v3415
        %v5976 = vunpack.c.l.b16 %v3416
        %v5977 = vunpack.c.h.b16 %v3416
        %v5978 = vunpack.c.l.b16 %v3417
        %v5979 = vunpack.c.h.b16 %v3417
        %v5980 = vunpack.c.l.b16 %v3418
        %v5981 = vunpack.c.h.b16 %v3418
        %v5982 = vunpack.c.l.b16 %v3419
        %v5983 = vunpack.c.h.b16 %v3419
        %v5984 = vunpack.c.l.b16 %v3420
        %v5985 = vunpack.c.h.b16 %v3420
        %v5986 = vunpack.c.l.b16 %v3421
        %v5987 = vunpack.c.l.b16 %v3422
        %v5988 = vunpack.c.h.b16 %v3422
        %v5989 = vunpack.c.l.b16 %v3423
        %v5990 = vunpack.c.h.b16 %v3423
        %v5991 = vunpack.c.l.b16 %v3424
        %v5992 = vunpack.c.h.b16 %v3424
        %v5993 = vunpack.c.l.b16 %v3425
        %v5994 = vunpack.c.h.b16 %v3425
        %v5995 = vunpack.c.l.b16 %v3426
        %v5996 = vunpack.c.h.b16 %v3426
        %v5997 = vunpack.c.l.b16 %v3427
        %v5998 = vunpack.c.h.b16 %v3427
        %v5999 = vunpack.c.l.b16 %v3428
        %v6000 = vunpack.c.l.b16 %v3429
        %v6001 = vunpack.c.h.b16 %v3429
        %v6002 = vunpack.c.l.b16 %v3430
        %v6003 = vunpack.c.h.b16 %v3430
        %v6004 = vunpack.c.l.b16 %v3431
        %v6005 = vunpack.c.h.b16 %v3431
        %v6006 = vunpack.c.l.b16 %v3432
        %v6007 = vunpack.c.h.b16 %v3432
        %v6008 = vunpack.c.l.b16 %v3433
        %v6009 = vunpack.c.h.b16 %v3433
        %v6010 = vunpack.c.l.b16 %v3434
        %v6011 = vunpack.c.h.b16 %v3434
        %v6012 = vunpack.c.l.b16 %v3435
        %v6013 = vunpack.c.l.b16 %v3436
        %v6014 = vunpack.c.h.b16 %v3436
        %v6015 = vunpack.c.l.b16 %v3437
        %v6016 = vunpack.c.h.b16 %v3437
        %v6017 = vunpack.c.l.b16 %v3438
        %v6018 = vunpack.c.h.b16 %v3438
        %v6019 = vunpack.c.l.b16 %v3439
        %v6020 = vunpack.c.h.b16 %v3439
        %v6021 = vunpack.c.l.b16 %v3440
        %v6022 = vunpack.c.h.b16 %v3440
        %v6023 = vunpack.c.l.b16 %v3441
        %v6024 = vunpack.c.h.b16 %v3441
        %v6025 = vunpack.c.l.b16 %v3442
        %v6026 = vunpack.c.l.b16 %v3443
        %v6027 = vunpack.c.h.b16 %v3443
        %v6028 = vunpack.c.l.b16 %v3444
        %v6029 = vunpack.c.h.b16 %v3444
        %v6030 = vunpack.c.l.b16 %v3445
        %v6031 = vunpack.c.h.b16 %v3445
        %v6032 = vunpack.c.l.b16 %v3446
        %v6033 = vunpack.c.h.b16 %v3446
        %v6034 = vunpack.c.l.b16 %v3447
        %v6035 = vunpack.c.h.b16 %v3447
        %v6036 = vunpack.c.l.b16 %v3448
        %v6037 = vunpack.c.h.b16 %v3448
        %v6038 = vunpack.c.l.b16 %v3449
        %v6039 = vunpack.c.l.b16 %v3450
        %v6040 = vunpack.c.h.b16 %v3450
        %v6041 = vunpack.c.l.b16 %v3451
        %v6042 = vunpack.c.h.b16 %v3451
        %v6043 = vunpack.c.l.b16 %v3452
        %v6044 = vunpack.c.h.b16 %v3452
        %v6045 = vunpack.c.l.b16 %v3453
        %v6046 = vunpack.c.h.b16 %v3453
        %v6047 = vunpack.c.l.b16 %v3454
        %v6048 = vunpack.c.h.b16 %v3454
        %v6049 = vunpack.c.l.b16 %v3455
        %v6050 = vunpack.c.h.b16 %v3455
        %v6051 = vunpack.c.l.b16 %v3456
        %v6052 = vunpack.c.l.b16 %v3457
        %v6053 = vunpack.c.h.b16 %v3457
        %v6054 = vunpack.c.l.b16 %v3458
        %v6055 = vunpack.c.h.b16 %v3458
        %v6056 = vunpack.c.l.b16 %v3459
        %v6057 = vunpack.c.h.b16 %v3459
        %v6058 = vunpack.c.l.b16 %v3460
        %v6059 = vunpack.c.h.b16 %v3460
        %v6060 = vunpack.c.l.b16 %v3461
        %v6061 = vunpack.c.h.b16 %v3461
        %v6062 = vunpack.c.l.b16 %v3462
        %v6063 = vunpack.c.h.b16 %v3462
        %v6064 = vunpack.c.l.b16 %v3463
        %v6065 = vunpack.c.l.b16 %v3464
        %v6066 = vunpack.c.h.b16 %v3464
        %v6067 = vunpack.c.l.b16 %v3465
        %v6068 = vunpack.c.h.b16 %v3465
        %v6069 = vunpack.c.l.b16 %v3466
        %v6070 = vunpack.c.h.b16 %v3466
        %v6071 = vunpack.c.l.b16 %v3467
        %v6072 = vunpack.c.h.b16 %v3467
        %v6073 = vunpack.c.l.b16 %v3468
        %v6074 = vunpack.c.h.b16 %v3468
        %v6075 = vunpack.c.l.b16 %v3469
        %v6076 = vunpack.c.h.b16 %v3469
        %v6077 = vunpack.c.l.b16 %v3470
        %v6078 = vunpack.c.l.b16 %v3471
        %v6079 = vunpack.c.h.b16 %v3471
        %v6080 = vunpack.c.l.b16 %v3472
        %v6081 = vunpack.c.h.b16 %v3472
        %v6082 = vunpack.c.l.b16 %v3473
        %v6083 = vunpack.c.h.b16 %v3473
        %v6084 = vunpack.c.l.b16 %v3474
        %v6085 = vunpack.c.h.b16 %v3474
        %v6086 = vunpack.c.l.b16 %v3475
        %v6087 = vunpack.c.h.b16 %v3475
        %v6088 = vunpack.c.l.b16 %v3476
        %v6089 = vunpack.c.h.b16 %v3476
        %v6090 = vunpack.c.l.b16 %v3477
        %v6091 = vunpack.c.l.b16 %v3478
        %v6092 = vunpack.c.h.b16 %v3478
        %v6093 = vunpack.c.l.b16 %v3479
        %v6094 = vunpack.c.h.b16 %v3479
        %v6095 = vunpack.c.l.b16 %v3480
        %v6096 = vunpack.c.h.b16 %v3480
        %v6097 = vunpack.c.l.b16 %v3481
        %v6098 = vunpack.c.h.b16 %v3481
        %v6099 = vunpack.c.l.b16 %v3482
        %v6100 = vunpack.c.h.b16 %v3482
        %v6101 = vunpack.c.l.b16 %v3483
        %v6102 = vunpack.c.h.b16 %v3483
        %v6103 = vunpack.c.l.b16 %v3484
        %v6104 = vunpack.c.l.b16 %v3485
        %v6105 = vunpack.c.h.b16 %v3485
        %v6106 = vunpack.c.l.b16 %v3486
        %v6107 = vunpack.c.h.b16 %v3486
        %v6108 = vunpack.c.l.b16 %v3487
        %v6109 = vunpack.c.h.b16 %v3487
        %v6110 = vunpack.c.l.b16 %v3488
        %v6111 = vunpack.c.h.b16 %v3488
        %v6112 = vunpack.c.l.b16 %v3489
        %v6113 = vunpack.c.h.b16 %v3489
        %v6114 = vunpack.c.l.b16 %v3490
        %v6115 = vunpack.c.h.b16 %v3490
        %v6116 = vunpack.c.l.b16 %v3491
        %v6117 = vunpack.c.l.b16 %v3492
        %v6118 = vunpack.c.h.b16 %v3492
        %v6119 = vunpack.c.l.b16 %v3493
        %v6120 = vunpack.c.h.b16 %v3493
        %v6121 = vunpack.c.l.b16 %v3494
        %v6122 = vunpack.c.h.b16 %v3494
        %v6123 = vunpack.c.l.b16 %v3495
        %v6124 = vunpack.c.h.b16 %v3495
        %v6125 = vunpack.c.l.b16 %v3496
        %v6126 = vunpack.c.h.b16 %v3496
        %v6127 = vunpack.c.l.b16 %v3497
        %v6128 = vunpack.c.h.b16 %v3497
        %v6129 = vunpack.c.l.b16 %v3498
        %v6130 = vunpack.c.l.b16 %v3499
        %v6131 = vunpack.c.h.b16 %v3499
        %v6132 = vunpack.c.l.b16 %v3500
        %v6133 = vunpack.c.h.b16 %v3500
        %v6134 = vunpack.c.l.b16 %v3501
        %v6135 = vunpack.c.h.b16 %v3501
        %v6136 = vunpack.c.l.b16 %v3502
        %v6137 = vunpack.c.h.b16 %v3502
        %v6138 = vunpack.c.l.b16 %v3503
        %v6139 = vunpack.c.h.b16 %v3503
        %v6140 = vunpack.c.l.b16 %v3504
        %v6141 = vunpack.c.h.b16 %v3504
        %v6142 = vunpack.c.l.b16 %v3505
        %v6143 = vunpack.c.l.b16 %v3506
        %v6144 = vunpack.c.h.b16 %v3506
        %v6145 = vunpack.c.l.b16 %v3507
        %v6146 = vunpack.c.h.b16 %v3507
        %v6147 = vunpack.c.l.b16 %v3508
        %v6148 = vunpack.c.h.b16 %v3508
        %v6149 = vunpack.c.l.b16 %v3509
        %v6150 = vunpack.c.h.b16 %v3509
        %v6151 = vunpack.c.l.b16 %v3510
        %v6152 = vunpack.c.h.b16 %v3510
        %v6153 = vunpack.c.l.b16 %v3511
        %v6154 = vunpack.c.h.b16 %v3511
        %v6155 = vunpack.c.l.b16 %v3512
        %v6156 = vunpack.c.l.b16 %v3513
        %v6157 = vunpack.c.h.b16 %v3513
        %v6158 = vunpack.c.l.b16 %v3514
        %v6159 = vunpack.c.h.b16 %v3514
        %v6160 = vunpack.c.l.b16 %v3515
        %v6161 = vunpack.c.h.b16 %v3515
        %v6162 = vunpack.c.l.b16 %v3516
        %v6163 = vunpack.c.h.b16 %v3516
        %v6164 = vunpack.c.l.b16 %v3517
        %v6165 = vunpack.c.h.b16 %v3517
        %v6166 = vunpack.c.l.b16 %v3518
        %v6167 = vunpack.c.h.b16 %v3518
        %v6168 = vunpack.c.l.b16 %v3519
        %v6169 = vunpack.c.l.b16 %v3520
        %v6170 = vunpack.c.h.b16 %v3520
        %v6171 = vunpack.c.l.b16 %v3521
        %v6172 = vunpack.c.h.b16 %v3521
        %v6173 = vunpack.c.l.b16 %v3522
        %v6174 = vunpack.c.h.b16 %v3522
        %v6175 = vunpack.c.l.b16 %v3523
        %v6176 = vunpack.c.h.b16 %v3523
        %v6177 = vunpack.c.l.b16 %v3524
        %v6178 = vunpack.c.h.b16 %v3524
        %v6179 = vunpack.c.l.b16 %v3525
        %v6180 = vunpack.c.h.b16 %v3525
        %v6181 = vunpack.c.l.b16 %v3526
        %v6182 = vunpack.c.l.b16 %v3527
        %v6183 = vunpack.c.h.b16 %v3527
        %v6184 = vunpack.c.l.b16 %v3528
        %v6185 = vunpack.c.h.b16 %v3528
        %v6186 = vunpack.c.l.b16 %v3529
        %v6187 = vunpack.c.h.b16 %v3529
        %v6188 = vunpack.c.l.b16 %v3530
        %v6189 = vunpack.c.h.b16 %v3530
        %v6190 = vunpack.c.l.b16 %v3531
        %v6191 = vunpack.c.h.b16 %v3531
        %v6192 = vunpack.c.l.b16 %v3532
        %v6193 = vunpack.c.h.b16 %v3532
        %v6194 = vunpack.c.l.b16 %v3533
        %v6195 = vunpack.c.l.b16 %v3534
        %v6196 = vunpack.c.h.b16 %v3534
        %v6197 = vunpack.c.l.b16 %v3535
        %v6198 = vunpack.c.h.b16 %v3535
        %v6199 = vunpack.c.l.b16 %v3536
        %v6200 = vunpack.c.h.b16 %v3536
        %v6201 = vunpack.c.l.b16 %v3537
        %v6202 = vunpack.c.h.b16 %v3537
        %v6203 = vunpack.c.l.b16 %v3538
        %v6204 = vunpack.c.h.b16 %v3538
        %v6205 = vunpack.c.l.b16 %v3539
        %v6206 = vunpack.c.h.b16 %v3539
        %v6207 = vunpack.c.l.b16 %v3540
        %v6208 = vunpack.c.l.b16 %v3541
        %v6209 = vunpack.c.h.b16 %v3541
        %v6210 = vunpack.c.l.b16 %v3542
        %v6211 = vunpack.c.h.b16 %v3542
        %v6212 = vunpack.c.l.b16 %v3543
        %v6213 = vunpack.c.h.b16 %v3543
        %v6214 = vunpack.c.l.b16 %v3544
        %v6215 = vunpack.c.h.b16 %v3544
        %v6216 = vunpack.c.l.b16 %v3545
        %v6217 = vunpack.c.h.b16 %v3545
        %v6218 = vunpack.c.l.b16 %v3546
        %v6219 = vunpack.c.h.b16 %v3546
        %v6220 = vunpack.c.l.b16 %v3547
        %v6221 = vunpack.c.l.b16 %v3548
        %v6222 = vunpack.c.h.b16 %v3548
        %v6223 = vunpack.c.l.b16 %v3549
        %v6224 = vunpack.c.h.b16 %v3549
        %v6225 = vunpack.c.l.b16 %v3550
        %v6226 = vunpack.c.h.b16 %v3550
        %v6227 = vunpack.c.l.b16 %v3551
        %v6228 = vunpack.c.h.b16 %v3551
        %v6229 = vunpack.c.l.b16 %v3552
        %v6230 = vunpack.c.h.b16 %v3552
        %v6231 = vunpack.c.l.b16 %v3553
        %v6232 = vunpack.c.h.b16 %v3553
        %v6233 = vunpack.c.l.b16 %v3554
        %v6234 = vunpack.c.l.b16 %v3555
        %v6235 = vunpack.c.h.b16 %v3555
        %v6236 = vunpack.c.l.b16 %v3556
        %v6237 = vunpack.c.h.b16 %v3556
        %v6238 = vunpack.c.l.b16 %v3557
        %v6239 = vunpack.c.h.b16 %v3557
        %v6240 = vunpack.c.l.b16 %v3558
        %v6241 = vunpack.c.h.b16 %v3558
        %v6242 = vunpack.c.l.b16 %v3559
        %v6243 = vunpack.c.h.b16 %v3559
        %v6244 = vunpack.c.l.b16 %v3560
        %v6245 = vunpack.c.h.b16 %v3560
        %v6246 = vunpack.c.l.b16 %v3561
        %v6247 = vunpack.c.l.b16 %v3562
        %v6248 = vunpack.c.h.b16 %v3562
        %v6249 = vunpack.c.l.b16 %v3563
        %v6250 = vunpack.c.h.b16 %v3563
        %v6251 = vunpack.c.l.b16 %v3564
        %v6252 = vunpack.c.h.b16 %v3564
        %v6253 = vunpack.c.l.b16 %v3565
        %v6254 = vunpack.c.h.b16 %v3565
        %v6255 = vunpack.c.l.b16 %v3566
        %v6256 = vunpack.c.h.b16 %v3566
        %v6257 = vunpack.c.l.b16 %v3567
        %v6258 = vunpack.c.h.b16 %v3567
        %v6259 = vunpack.c.l.b16 %v3568
        %v6260 = vunpack.c.l.b16 %v3569
        %v6261 = vunpack.c.h.b16 %v3569
        %v6262 = vunpack.c.l.b16 %v3570
        %v6263 = vunpack.c.h.b16 %v3570
        %v6264 = vunpack.c.l.b16 %v3571
        %v6265 = vunpack.c.h.b16 %v3571
        %v6266 = vunpack.c.l.b16 %v3572
        %v6267 = vunpack.c.h.b16 %v3572
        %v6268 = vunpack.c.l.b16 %v3573
        %v6269 = vunpack.c.h.b16 %v3573
        %v6270 = vunpack.c.l.b16 %v3574
        %v6271 = vunpack.c.h.b16 %v3574
        %v6272 = vunpack.c.l.b16 %v3575
        %v6273 = vunpack.c.l.b16 %v3576
        %v6274 = vunpack.c.h.b16 %v3576
        %v6275 = vunpack.c.l.b16 %v3577
        %v6276 = vunpack.c.h.b16 %v3577
        %v6277 = vunpack.c.l.b16 %v3578
        %v6278 = vunpack.c.h.b16 %v3578
        %v6279 = vunpack.c.l.b16 %v3579
        %v6280 = vunpack.c.h.b16 %v3579
        %v6281 = vunpack.c.l.b16 %v3580
        %v6282 = vunpack.c.h.b16 %v3580
        %v6283 = vunpack.c.l.b16 %v3581
        %v6284 = vunpack.c.h.b16 %v3581
        %v6285 = vunpack.c.l.b16 %v3582
        %v6286 = vunpack.c.l.b16 %v3583
        %v6287 = vunpack.c.h.b16 %v3583
        %v6288 = vunpack.c.l.b16 %v3584
        %v6289 = vunpack.c.h.b16 %v3584
        %v6290 = vunpack.c.l.b16 %v3585
        %v6291 = vunpack.c.h.b16 %v3585
        %v6292 = vunpack.c.l.b16 %v3586
        %v6293 = vunpack.c.h.b16 %v3586
        %v6294 = vunpack.c.l.b16 %v3587
        %v6295 = vunpack.c.h.b16 %v3587
        %v6296 = vunpack.c.l.b16 %v3588
        %v6297 = vunpack.c.h.b16 %v3588
        %v6298 = vunpack.c.l.b16 %v3589
        %v6299 = vunpack.c.l.b16 %v3590
        %v6300 = vunpack.c.h.b16 %v3590
        %v6301 = vunpack.c.l.b16 %v3591
        %v6302 = vunpack.c.h.b16 %v3591
        %v6303 = vunpack.c.l.b16 %v3592
        %v6304 = vunpack.c.h.b16 %v3592
        %v6305 = vunpack.c.l.b16 %v3593
        %v6306 = vunpack.c.h.b16 %v3593
        %v6307 = vunpack.c.l.b16 %v3594
        %v6308 = vunpack.c.h.b16 %v3594
        %v6309 = vunpack.c.l.b16 %v3595
        %v6310 = vunpack.c.h.b16 %v3595
        %v6311 = vunpack.c.l.b16 %v3596
        %v6312 = vunpack.c.l.b16 %v3597
        %v6313 = vunpack.c.h.b16 %v3597
        %v6314 = vunpack.c.l.b16 %v3598
        %v6315 = vunpack.c.h.b16 %v3598
        %v6316 = vunpack.c.l.b16 %v3599
        %v6317 = vunpack.c.h.b16 %v3599
        %v6318 = vunpack.c.l.b16 %v3600
        %v6319 = vunpack.c.h.b16 %v3600
        %v6320 = vunpack.c.l.b16 %v3601
        %v6321 = vunpack.c.h.b16 %v3601
        %v6322 = vunpack.c.l.b16 %v3602
        %v6323 = vunpack.c.h.b16 %v3602
        %v6324 = vunpack.c.l.b16 %v3603
        %v6325 = vunpack.c.l.b16 %v3604
        %v6326 = vunpack.c.h.b16 %v3604
        %v6327 = vunpack.c.l.b16 %v3605
        %v6328 = vunpack.c.h.b16 %v3605
        %v6329 = vunpack.c.l.b16 %v3606
        %v6330 = vunpack.c.h.b16 %v3606
        %v6331 = vunpack.c.l.b16 %v3607
        %v6332 = vunpack.c.h.b16 %v3607
        %v6333 = vunpack.c.l.b16 %v3608
        %v6334 = vunpack.c.h.b16 %v3608
        %v6335 = vunpack.c.l.b16 %v3609
        %v6336 = vunpack.c.h.b16 %v3609
        %v6337 = vunpack.c.l.b16 %v3610
        %v6338 = vunpack.c.l.b16 %v3611
        %v6339 = vunpack.c.h.b16 %v3611
        %v6340 = vunpack.c.l.b16 %v3612
        %v6341 = vunpack.c.h.b16 %v3612
        %v6342 = vunpack.c.l.b16 %v3613
        %v6343 = vunpack.c.h.b16 %v3613
        %v6344 = vunpack.c.l.b16 %v3614
        %v6345 = vunpack.c.h.b16 %v3614
        %v6346 = vunpack.c.l.b16 %v3615
        %v6347 = vunpack.c.h.b16 %v3615
        %v6348 = vunpack.c.l.b16 %v3616
        %v6349 = vunpack.c.h.b16 %v3616
        %v6350 = vunpack.c.l.b16 %v3617
        %v6351 = vunpack.c.l.b16 %v3618
        %v6352 = vunpack.c.h.b16 %v3618
        %v6353 = vunpack.c.l.b16 %v3619
        %v6354 = vunpack.c.h.b16 %v3619
        %v6355 = vunpack.c.l.b16 %v3620
        %v6356 = vunpack.c.h.b16 %v3620
        %v6357 = vunpack.c.l.b16 %v3621
        %v6358 = vunpack.c.h.b16 %v3621
        %v6359 = vunpack.c.l.b16 %v3622
        %v6360 = vunpack.c.h.b16 %v3622
        %v6361 = vunpack.c.l.b16 %v3623
        %v6362 = vunpack.c.h.b16 %v3623
        %v6363 = vunpack.c.l.b16 %v3624
        %v6364 = vunpack.c.l.b16 %v3625
        %v6365 = vunpack.c.h.b16 %v3625
        %v6366 = vunpack.c.l.b16 %v3626
        %v6367 = vunpack.c.h.b16 %v3626
        %v6368 = vunpack.c.l.b16 %v3627
        %v6369 = vunpack.c.h.b16 %v3627
        %v6370 = vunpack.c.l.b16 %v3628
        %v6371 = vunpack.c.h.b16 %v3628
        %v6372 = vunpack.c.l.b16 %v3629
        %v6373 = vunpack.c.h.b16 %v3629
        %v6374 = vunpack.c.l.b16 %v3630
        %v6375 = vunpack.c.h.b16 %v3630
        %v6376 = vunpack.c.l.b16 %v3631
        %v6377 = vunpack.c.l.b16 %v3632
        %v6378 = vunpack.c.h.b16 %v3632
        %v6379 = vunpack.c.l.b16 %v3633
        %v6380 = vunpack.c.h.b16 %v3633
        %v6381 = vunpack.c.l.b16 %v3634
        %v6382 = vunpack.c.h.b16 %v3634
        %v6383 = vunpack.c.l.b16 %v3635
        %v6384 = vunpack.c.h.b16 %v3635
        %v6385 = vunpack.c.l.b16 %v3636
        %v6386 = vunpack.c.h.b16 %v3636
        %v6387 = vunpack.c.l.b16 %v3637
        %v6388 = vunpack.c.h.b16 %v3637
        %v6389 = vunpack.c.l.b16 %v3638
        %v6390 = vunpack.c.l.b16 %v3639
        %v6391 = vunpack.c.h.b16 %v3639
        %v6392 = vunpack.c.l.b16 %v3640
        %v6393 = vunpack.c.h.b16 %v3640
        %v6394 = vunpack.c.l.b16 %v3641
        %v6395 = vunpack.c.h.b16 %v3641
        %v6396 = vunpack.c.l.b16 %v3642
        %v6397 = vunpack.c.h.b16 %v3642
        %v6398 = vunpack.c.l.b16 %v3643
        %v6399 = vunpack.c.h.b16 %v3643
        %v6400 = vunpack.c.l.b16 %v3644
        %v6401 = vunpack.c.h.b16 %v3644
        %v6402 = vunpack.c.l.b16 %v3645
        %v6403 = vunpack.c.l.b16 %v3646
        %v6404 = vunpack.c.h.b16 %v3646
        %v6405 = vunpack.c.l.b16 %v3647
        %v6406 = vunpack.c.h.b16 %v3647
        %v6407 = vunpack.c.l.b16 %v3648
        %v6408 = vunpack.c.h.b16 %v3648
        %v6409 = vunpack.c.l.b16 %v3649
        %v6410 = vunpack.c.h.b16 %v3649
        %v6411 = vunpack.c.l.b16 %v3650
        %v6412 = vunpack.c.h.b16 %v3650
        %v6413 = vunpack.c.l.b16 %v3651
        %v6414 = vunpack.c.h.b16 %v3651
        %v6415 = vunpack.c.l.b16 %v3652
        %v6416 = vunpack.c.l.b16 %v3653
        %v6417 = vunpack.c.h.b16 %v3653
        %v6418 = vunpack.c.l.b16 %v3654
        %v6419 = vunpack.c.h.b16 %v3654
        %v6420 = vunpack.c.l.b16 %v3655
        %v6421 = vunpack.c.h.b16 %v3655
        %v6422 = vunpack.c.l.b16 %v3656
        %v6423 = vunpack.c.h.b16 %v3656
        %v6424 = vunpack.c.l.b16 %v3657
        %v6425 = vunpack.c.h.b16 %v3657
        %v6426 = vunpack.c.l.b16 %v3658
        %v6427 = vunpack.c.h.b16 %v3658
        %v6428 = vunpack.c.l.b16 %v3659
        %v6429 = vunpack.c.l.b16 %v3660
        %v6430 = vunpack.c.h.b16 %v3660
        %v6431 = vunpack.c.l.b16 %v3661
        %v6432 = vunpack.c.h.b16 %v3661
        %v6433 = vunpack.c.l.b16 %v3662
        %v6434 = vunpack.c.h.b16 %v3662
        %v6435 = vunpack.c.l.b16 %v3663
        %v6436 = vunpack.c.h.b16 %v3663
        %v6437 = vunpack.c.l.b16 %v3664
        %v6438 = vunpack.c.h.b16 %v3664
        %v6439 = vunpack.c.l.b16 %v3665
        %v6440 = vunpack.c.h.b16 %v3665
        %v6441 = vunpack.c.l.b16 %v3666
        %v6442 = vunpack.c.l.b16 %v3667
        %v6443 = vunpack.c.h.b16 %v3667
        %v6444 = vunpack.c.l.b16 %v3668
        %v6445 = vunpack.c.h.b16 %v3668
        %v6446 = vunpack.c.l.b16 %v3669
        %v6447 = vunpack.c.h.b16 %v3669
        %v6448 = vunpack.c.l.b16 %v3670
        %v6449 = vunpack.c.h.b16 %v3670
        %v6450 = vunpack.c.l.b16 %v3671
        %v6451 = vunpack.c.h.b16 %v3671
        %v6452 = vunpack.c.l.b16 %v3672
        %v6453 = vunpack.c.h.b16 %v3672
        %v6454 = vunpack.c.l.b16 %v3673
        %v6455 = vunpack.c.l.b16 %v3674
        %v6456 = vunpack.c.h.b16 %v3674
        %v6457 = vunpack.c.l.b16 %v3675
        %v6458 = vunpack.c.h.b16 %v3675
        %v6459 = vunpack.c.l.b16 %v3676
        %v6460 = vunpack.c.h.b16 %v3676
        %v6461 = vunpack.c.l.b16 %v3677
        %v6462 = vunpack.c.h.b16 %v3677
        %v6463 = vunpack.c.l.b16 %v3678
        %v6464 = vunpack.c.h.b16 %v3678
        %v6465 = vunpack.c.l.b16 %v3679
        %v6466 = vunpack.c.h.b16 %v3679
        %v6467 = vunpack.c.l.b16 %v3680
        %v6468 = vunpack.c.l.b16 %v3681
        %v6469 = vunpack.c.h.b16 %v3681
        %v6470 = vunpack.c.l.b16 %v3682
        %v6471 = vunpack.c.h.b16 %v3682
        %v6472 = vunpack.c.l.b16 %v3683
        %v6473 = vunpack.c.h.b16 %v3683
        %v6474 = vunpack.c.l.b16 %v3684
        %v6475 = vunpack.c.h.b16 %v3684
        %v6476 = vunpack.c.l.b16 %v3685
        %v6477 = vunpack.c.h.b16 %v3685
        %v6478 = vunpack.c.l.b16 %v3686
        %v6479 = vunpack.c.h.b16 %v3686
        %v6480 = vunpack.c.l.b16 %v3687
        %v6481 = vunpack.c.l.b16 %v3688
        %v6482 = vunpack.c.h.b16 %v3688
        %v6483 = vunpack.c.l.b16 %v3689
        %v6484 = vunpack.c.h.b16 %v3689
        %v6485 = vunpack.c.l.b16 %v3690
        %v6486 = vunpack.c.h.b16 %v3690
        %v6487 = vunpack.c.l.b16 %v3691
        %v6488 = vunpack.c.h.b16 %v3691
        %v6489 = vunpack.c.l.b16 %v3692
        %v6490 = vunpack.c.h.b16 %v3692
        %v6491 = vunpack.c.l.b16 %v3693
        %v6492 = vunpack.c.h.b16 %v3693
        %v6493 = vunpack.c.l.b16 %v3694
        %v6494 = vunpack.c.l.b16 %v3695
        %v6495 = vunpack.c.h.b16 %v3695
        %v6496 = vunpack.c.l.b16 %v3696
        %v6497 = vunpack.c.h.b16 %v3696
        %v6498 = vunpack.c.l.b16 %v3697
        %v6499 = vunpack.c.h.b16 %v3697
        %v6500 = vunpack.c.l.b16 %v3698
        %v6501 = vunpack.c.h.b16 %v3698
        %v6502 = vunpack.c.l.b16 %v3699
        %v6503 = vunpack.c.h.b16 %v3699
        %v6504 = vunpack.c.l.b16 %v3700
        %v6505 = vunpack.c.h.b16 %v3700
        %v6506 = vunpack.c.l.b16 %v3701
        %v6507 = vunpack.c.l.b16 %v3702
        %v6508 = vunpack.c.h.b16 %v3702
        %v6509 = vunpack.c.l.b16 %v3703
        %v6510 = vunpack.c.h.b16 %v3703
        %v6511 = vunpack.c.l.b16 %v3704
        %v6512 = vunpack.c.h.b16 %v3704
        %v6513 = vunpack.c.l.b16 %v3705
        %v6514 = vunpack.c.h.b16 %v3705
        %v6515 = vunpack.c.l.b16 %v3706
        %v6516 = vunpack.c.h.b16 %v3706
        %v6517 = vunpack.c.l.b16 %v3707
        %v6518 = vunpack.c.h.b16 %v3707
        %v6519 = vunpack.c.l.b16 %v3708
        %v6520 = vunpack.c.l.b16 %v3709
        %v6521 = vunpack.c.h.b16 %v3709
        %v6522 = vunpack.c.l.b16 %v3710
        %v6523 = vunpack.c.h.b16 %v3710
        %v6524 = vunpack.c.l.b16 %v3711
        %v6525 = vunpack.c.h.b16 %v3711
        %v6526 = vunpack.c.l.b16 %v3712
        %v6527 = vunpack.c.h.b16 %v3712
        %v6528 = vunpack.c.l.b16 %v3713
        %v6529 = vunpack.c.h.b16 %v3713
        %v6530 = vunpack.c.l.b16 %v3714
        %v6531 = vunpack.c.h.b16 %v3714
        %v6532 = vunpack.c.l.b16 %v3715
        %v6533 = vunpack.c.l.b16 %v3716
        %v6534 = vunpack.c.h.b16 %v3716
        %v6535 = vunpack.c.l.b16 %v3717
        %v6536 = vunpack.c.h.b16 %v3717
        %v6537 = vunpack.c.l.b16 %v3718
        %v6538 = vunpack.c.h.b16 %v3718
        %v6539 = vunpack.c.l.b16 %v3719
        %v6540 = vunpack.c.h.b16 %v3719
        %v6541 = vunpack.c.l.b16 %v3720
        %v6542 = vunpack.c.h.b16 %v3720
        %v6543 = vunpack.c.l.b16 %v3721
        %v6544 = vunpack.c.h.b16 %v3721
        %v6545 = vunpack.c.l.b16 %v3722
        %v6546 = vunpack.c.l.b16 %v3723
        %v6547 = vunpack.c.h.b16 %v3723
        %v6548 = vunpack.c.l.b16 %v3724
        %v6549 = vunpack.c.h.b16 %v3724
        %v6550 = vunpack.c.l.b16 %v3725
        %v6551 = vunpack.c.h.b16 %v3725
        %v6552 = vunpack.c.l.b16 %v3726
        %v6553 = vunpack.c.h.b16 %v3726
        %v6554 = vunpack.c.l.b16 %v3727
        %v6555 = vunpack.c.h.b16 %v3727
        %v6556 = vunpack.c.l.b16 %v3728
        %v6557 = vunpack.c.h.b16 %v3728
        %v6558 = vunpack.c.l.b16 %v3729
        %v6559 = vunpack.c.l.b16 %v3730
        %v6560 = vunpack.c.h.b16 %v3730
        %v6561 = vunpack.c.l.b16 %v3731
        %v6562 = vunpack.c.h.b16 %v3731
        %v6563 = vunpack.c.l.b16 %v3732
        %v6564 = vunpack.c.h.b16 %v3732
        %v6565 = vunpack.c.l.b16 %v3733
        %v6566 = vunpack.c.h.b16 %v3733
        %v6567 = vunpack.c.l.b16 %v3734
        %v6568 = vunpack.c.h.b16 %v3734
        %v6569 = vunpack.c.l.b16 %v3735
        %v6570 = vunpack.c.h.b16 %v3735
        %v6571 = vunpack.c.l.b16 %v3736
        %v6572 = vunpack.c.l.b16 %v3737
        %v6573 = vunpack.c.h.b16 %v3737
        %v6574 = vunpack.c.l.b16 %v3738
        %v6575 = vunpack.c.h.b16 %v3738
        %v6576 = vunpack.c.l.b16 %v3739
        %v6577 = vunpack.c.h.b16 %v3739
        %v6578 = vunpack.c.l.b16 %v3740
        %v6579 = vunpack.c.h.b16 %v3740
        %v6580 = vunpack.c.l.b16 %v3741
        %v6581 = vunpack.c.h.b16 %v3741
        %v6582 = vunpack.c.l.b16 %v3742
        %v6583 = vunpack.c.h.b16 %v3742
        %v6584 = vunpack.c.l.b16 %v3743
        %v6585 = vunpack.c.l.b16 %v3744
        %v6586 = vunpack.c.h.b16 %v3744
        %v6587 = vunpack.c.l.b16 %v3745
        %v6588 = vunpack.c.h.b16 %v3745
        %v6589 = vunpack.c.l.b16 %v3746
        %v6590 = vunpack.c.h.b16 %v3746
        %v6591 = vunpack.c.l.b16 %v3747
        %v6592 = vunpack.c.h.b16 %v3747
        %v6593 = vunpack.c.l.b16 %v3748
        %v6594 = vunpack.c.h.b16 %v3748
        %v6595 = vunpack.c.l.b16 %v3749
        %v6596 = vunpack.c.h.b16 %v3749
        %v6597 = vunpack.c.l.b16 %v3750
        %v6598 = vunpack.c.l.b16 %v3751
        %v6599 = vunpack.c.h.b16 %v3751
        %v6600 = vunpack.c.l.b16 %v3752
        %v6601 = vunpack.c.h.b16 %v3752
        %v6602 = vunpack.c.l.b16 %v3753
        %v6603 = vunpack.c.h.b16 %v3753
        %v6604 = vunpack.c.l.b16 %v3754
        %v6605 = vunpack.c.h.b16 %v3754
        %v6606 = vunpack.c.l.b16 %v3755
        %v6607 = vunpack.c.h.b16 %v3755
        %v6608 = vunpack.c.l.b16 %v3756
        %v6609 = vunpack.c.h.b16 %v3756
        %v6610 = vunpack.c.l.b16 %v3757
        %v6611 = vunpack.c.l.b16 %v3758
        %v6612 = vunpack.c.h.b16 %v3758
        %v6613 = vunpack.c.l.b16 %v3759
        %v6614 = vunpack.c.h.b16 %v3759
        %v6615 = vunpack.c.l.b16 %v3760
        %v6616 = vunpack.c.h.b16 %v3760
        %v6617 = vunpack.c.l.b16 %v3761
        %v6618 = vunpack.c.h.b16 %v3761
        %v6619 = vunpack.c.l.b16 %v3762
        %v6620 = vunpack.c.h.b16 %v3762
        %v6621 = vunpack.c.l.b16 %v3763
        %v6622 = vunpack.c.h.b16 %v3763
        %v6623 = vunpack.c.l.b16 %v3764
        %v6624 = vunpack.c.l.b16 %v3765
        %v6625 = vunpack.c.h.b16 %v3765
        %v6626 = vunpack.c.l.b16 %v3766
        %v6627 = vunpack.c.h.b16 %v3766
        %v6628 = vunpack.c.l.b16 %v3767
        %v6629 = vunpack.c.h.b16 %v3767
        %v6630 = vunpack.c.l.b16 %v3768
        %v6631 = vunpack.c.h.b16 %v3768
        %v6632 = vunpack.c.l.b16 %v3769
        %v6633 = vunpack.c.h.b16 %v3769
        %v6634 = vunpack.c.l.b16 %v3770
        %v6635 = vunpack.c.h.b16 %v3770
        %v6636 = vunpack.c.l.b16 %v3771
        %v6637 = vunpack.c.l.b16 %v3772
        %v6638 = vunpack.c.h.b16 %v3772
        %v6639 = vunpack.c.l.b16 %v3773
        %v6640 = vunpack.c.h.b16 %v3773
        %v6641 = vunpack.c.l.b16 %v3774
        %v6642 = vunpack.c.h.b16 %v3774
        %v6643 = vunpack.c.l.b16 %v3775
        %v6644 = vunpack.c.h.b16 %v3775
        %v6645 = vunpack.c.l.b16 %v3776
        %v6646 = vunpack.c.h.b16 %v3776
        %v6647 = vunpack.c.l.b16 %v3777
        %v6648 = vunpack.c.h.b16 %v3777
        %v6649 = vunpack.c.l.b16 %v3778
        %v6650 = vunpack.c.l.b16 %v3779
        %v6651 = vunpack.c.h.b16 %v3779
        %v6652 = vunpack.c.l.b16 %v3780
        %v6653 = vunpack.c.h.b16 %v3780
        %v6654 = vunpack.c.l.b16 %v3781
        %v6655 = vunpack.c.h.b16 %v3781
        %v6656 = vunpack.c.l.b16 %v3782
        %v6657 = vunpack.c.h.b16 %v3782
        %v6658 = vunpack.c.l.b16 %v3783
        %v6659 = vunpack.c.h.b16 %v3783
        %v6660 = vunpack.c.l.b16 %v3784
        %v6661 = vunpack.c.h.b16 %v3784
        %v6662 = vunpack.c.l.b16 %v3785
        %v6663 = vunpack.c.l.b16 %v3786
        %v6664 = vunpack.c.h.b16 %v3786
        %v6665 = vunpack.c.l.b16 %v3787
        %v6666 = vunpack.c.h.b16 %v3787
        %v6667 = vunpack.c.l.b16 %v3788
        %v6668 = vunpack.c.h.b16 %v3788
        %v6669 = vunpack.c.l.b16 %v3789
        %v6670 = vunpack.c.h.b16 %v3789
        %v6671 = vunpack.c.l.b16 %v3790
        %v6672 = vunpack.c.h.b16 %v3790
        %v6673 = vunpack.c.l.b16 %v3791
        %v6674 = vunpack.c.h.b16 %v3791
        %v6675 = vunpack.c.l.b16 %v3792
        %v6676 = vunpack.c.l.b16 %v3793
        %v6677 = vunpack.c.h.b16 %v3793
        %v6678 = vunpack.c.l.b16 %v3794
        %v6679 = vunpack.c.h.b16 %v3794
        %v6680 = vunpack.c.l.b16 %v3795
        %v6681 = vunpack.c.h.b16 %v3795
        %v6682 = vunpack.c.l.b16 %v3796
        %v6683 = vunpack.c.h.b16 %v3796
        %v6684 = vunpack.c.l.b16 %v3797
        %v6685 = vunpack.c.h.b16 %v3797
        %v6686 = vunpack.c.l.b16 %v3798
        %v6687 = vunpack.c.h.b16 %v3798
        %v6688 = vunpack.c.l.b16 %v3799
        %v6689 = vunpack.c.l.b16 %v3800
        %v6690 = vunpack.c.h.b16 %v3800
        %v6691 = vunpack.c.l.b16 %v3801
        %v6692 = vunpack.c.h.b16 %v3801
        %v6693 = vunpack.c.l.b16 %v3802
        %v6694 = vunpack.c.h.b16 %v3802
        %v6695 = vunpack.c.l.b16 %v3803
        %v6696 = vunpack.c.h.b16 %v3803
        %v6697 = vunpack.c.l.b16 %v3804
        %v6698 = vunpack.c.h.b16 %v3804
        %v6699 = vunpack.c.l.b16 %v3805
        %v6700 = vunpack.c.h.b16 %v3805
        %v6701 = vunpack.c.l.b16 %v3806
        %v6702 = vunpack.c.l.b16 %v3807
        %v6703 = vunpack.c.h.b16 %v3807
        %v6704 = vunpack.c.l.b16 %v3808
        %v6705 = vunpack.c.h.b16 %v3808
        %v6706 = vunpack.c.l.b16 %v3809
        %v6707 = vunpack.c.h.b16 %v3809
        %v6708 = vunpack.c.l.b16 %v3810
        %v6709 = vunpack.c.h.b16 %v3810
        %v6710 = vunpack.c.l.b16 %v3811
        %v6711 = vunpack.c.h.b16 %v3811
        %v6712 = vunpack.c.l.b16 %v3812
        %v6713 = vunpack.c.h.b16 %v3812
        %v6714 = vunpack.c.l.b16 %v3813
        %v6715 = vunpack.c.l.b16 %v3814
        %v6716 = vunpack.c.h.b16 %v3814
        %v6717 = vunpack.c.l.b16 %v3815
        %v6718 = vunpack.c.h.b16 %v3815
        %v6719 = vunpack.c.l.b16 %v3816
        %v6720 = vunpack.c.h.b16 %v3816
        %v6721 = vunpack.c.l.b16 %v3817
        %v6722 = vunpack.c.h.b16 %v3817
        %v6723 = vunpack.c.l.b16 %v3818
        %v6724 = vunpack.c.h.b16 %v3818
        %v6725 = vunpack.c.l.b16 %v3819
        %v6726 = vunpack.c.h.b16 %v3819
        %v6727 = vunpack.c.l.b16 %v3820
        %v6728 = vunpack.c.l.b16 %v3821
        %v6729 = vunpack.c.h.b16 %v3821
        %v6730 = vunpack.c.l.b16 %v3822
        %v6731 = vunpack.c.h.b16 %v3822
        %v6732 = vunpack.c.l.b16 %v3823
        %v6733 = vunpack.c.h.b16 %v3823
        %v6734 = vunpack.c.l.b16 %v3824
        %v6735 = vunpack.c.h.b16 %v3824
        %v6736 = vunpack.c.l.b16 %v3825
        %v6737 = vunpack.c.h.b16 %v3825
        %v6738 = vunpack.c.l.b16 %v3826
        %v6739 = vunpack.c.h.b16 %v3826
        %v6740 = vunpack.c.l.b16 %v3827
        %v6741 = vunpack.c.l.b16 %v3828
        %v6742 = vunpack.c.h.b16 %v3828
        %v6743 = vunpack.c.l.b16 %v3829
        %v6744 = vunpack.c.h.b16 %v3829
        %v6745 = vunpack.c.l.b16 %v3830
        %v6746 = vunpack.c.h.b16 %v3830
        %v6747 = vunpack.c.l.b16 %v3831
        %v6748 = vunpack.c.h.b16 %v3831
        %v6749 = vunpack.c.l.b16 %v3832
        %v6750 = vunpack.c.h.b16 %v3832
        %v6751 = vunpack.c.l.b16 %v3833
        %v6752 = vunpack.c.h.b16 %v3833
        %v6753 = vunpack.c.l.b16 %v3834
        %v6754 = vunpack.c.l.b16 %v3835
        %v6755 = vunpack.c.h.b16 %v3835
        %v6756 = vunpack.c.l.b16 %v3836
        %v6757 = vunpack.c.h.b16 %v3836
        %v6758 = vunpack.c.l.b16 %v3837
        %v6759 = vunpack.c.h.b16 %v3837
        %v6760 = vunpack.c.l.b16 %v3838
        %v6761 = vunpack.c.h.b16 %v3838
        %v6762 = vunpack.c.l.b16 %v3839
        %v6763 = vunpack.c.h.b16 %v3839
        %v6764 = vunpack.c.l.b16 %v3840
        %v6765 = vunpack.c.h.b16 %v3840
        %v6766 = vunpack.c.l.b16 %v3841
        %v6767 = vunpack.c.l.b16 %v3842
        %v6768 = vunpack.c.h.b16 %v3842
        %v6769 = vunpack.c.l.b16 %v3843
        %v6770 = vunpack.c.h.b16 %v3843
        %v6771 = vunpack.c.l.b16 %v3844
        %v6772 = vunpack.c.h.b16 %v3844
        %v6773 = vunpack.c.l.b16 %v3845
        %v6774 = vunpack.c.h.b16 %v3845
        %v6775 = vunpack.c.l.b16 %v3846
        %v6776 = vunpack.c.h.b16 %v3846
        %v6777 = vunpack.c.l.b16 %v3847
        %v6778 = vunpack.c.h.b16 %v3847
        %v6779 = vunpack.c.l.b16 %v3848
        %v6780 = vunpack.c.l.b16 %v3849
        %v6781 = vunpack.c.h.b16 %v3849
        %v6782 = vunpack.c.l.b16 %v3850
        %v6783 = vunpack.c.h.b16 %v3850
        %v6784 = vunpack.c.l.b16 %v3851
        %v6785 = vunpack.c.h.b16 %v3851
        %v6786 = vunpack.c.l.b16 %v3852
        %v6787 = vunpack.c.h.b16 %v3852
        %v6788 = vunpack.c.l.b16 %v3853
        %v6789 = vunpack.c.h.b16 %v3853
        %v6790 = vunpack.c.l.b16 %v3854
        %v6791 = vunpack.c.h.b16 %v3854
        %v6792 = vunpack.c.l.b16 %v3855
        %v6793 = vunpack.c.l.b16 %v3856
        %v6794 = vunpack.c.h.b16 %v3856
        %v6795 = vunpack.c.l.b16 %v3857
        %v6796 = vunpack.c.h.b16 %v3857
        %v6797 = vunpack.c.l.b16 %v3858
        %v6798 = vunpack.c.h.b16 %v3858
        %v6799 = vunpack.c.l.b16 %v3859
        %v6800 = vunpack.c.h.b16 %v3859
        %v6801 = vunpack.c.l.b16 %v3860
        %v6802 = vunpack.c.h.b16 %v3860
        %v6803 = vunpack.c.l.b16 %v3861
        %v6804 = vunpack.c.h.b16 %v3861
        %v6805 = vunpack.c.l.b16 %v3862
        %v6806 = vunpack.c.l.b16 %v3863
        %v6807 = vunpack.c.h.b16 %v3863
        %v6808 = vunpack.c.l.b16 %v3864
        %v6809 = vunpack.c.h.b16 %v3864
        %v6810 = vunpack.c.l.b16 %v3865
        %v6811 = vunpack.c.h.b16 %v3865
        %v6812 = vunpack.c.l.b16 %v3866
        %v6813 = vunpack.c.h.b16 %v3866
        %v6814 = vunpack.c.l.b16 %v3867
        %v6815 = vunpack.c.h.b16 %v3867
        %v6816 = vunpack.c.l.b16 %v3868
        %v6817 = vunpack.c.h.b16 %v3868
        %v6818 = vunpack.c.l.b16 %v3869
        %v6819 = vpack.c.b16 %v4960, %v4947
        %v6820 = vpack.c.b16 %v4961, %v4948
        %v6821 = vpack.c.b16 %v4962, %v4949
        %v6822 = vpack.c.b16 %v4963, %v4950
        %v6823 = vpack.c.b16 %v4964, %v4951
        %v6824 = vpack.c.b16 %v4965, %v4952
        %v6825 = vpack.c.b16 %v4966, %v4953
        %v6826 = vpack.c.b16 %v4967, %v4954
        %v6827 = vpack.c.b16 %v4968, %v4955
        %v6828 = vpack.c.b16 %v4969, %v4956
        %v6829 = vpack.c.b16 %v4970, %v4957
        %v6830 = vpack.c.b16 %v4971, %v4958
        %v6831 = vpack.c.b16 %v4972, %v4959
        %v6832 = vpack.c.b16 %v4986, %v4973
        %v6833 = vpack.c.b16 %v4987, %v4974
        %v6834 = vpack.c.b16 %v4988, %v4975
        %v6835 = vpack.c.b16 %v4989, %v4976
        %v6836 = vpack.c.b16 %v4990, %v4977
        %v6837 = vpack.c.b16 %v4991, %v4978
        %v6838 = vpack.c.b16 %v4992, %v4979
        %v6839 = vpack.c.b16 %v4993, %v4980
        %v6840 = vpack.c.b16 %v4994, %v4981
        %v6841 = vpack.c.b16 %v4995, %v4982
        %v6842 = vpack.c.b16 %v4996, %v4983
        %v6843 = vpack.c.b16 %v4997, %v4984
        %v6844 = vpack.c.b16 %v4998, %v4985
        %v6845 = vpack.c.b16 %v5012, %v4999
        %v6846 = vpack.c.b16 %v5013, %v5000
        %v6847 = vpack.c.b16 %v5014, %v5001
        %v6848 = vpack.c.b16 %v5015, %v5002
        %v6849 = vpack.c.b16 %v5016, %v5003
        %v6850 = vpack.c.b16 %v5017, %v5004
        %v6851 = vpack.c.b16 %v5018, %v5005
        %v6852 = vpack.c.b16 %v5019, %v5006
        %v6853 = vpack.c.b16 %v5020, %v5007
        %v6854 = vpack.c.b16 %v5021, %v5008
        %v6855 = vpack.c.b16 %v5022, %v5009
        %v6856 = vpack.c.b16 %v5023, %v5010
        %v6857 = vpack.c.b16 %v5024, %v5011
        %v6858 = vpack.c.b16 %v5038, %v5025
        %v6859 = vpack.c.b16 %v5039, %v5026
        %v6860 = vpack.c.b16 %v5040, %v5027
        %v6861 = vpack.c.b16 %v5041, %v5028
        %v6862 = vpack.c.b16 %v5042, %v5029
        %v6863 = vpack.c.b16 %v5043, %v5030
        %v6864 = vpack.c.b16 %v5044, %v5031
        %v6865 = vpack.c.b16 %v5045, %v5032
        %v6866 = vpack.c.b16 %v5046, %v5033
        %v6867 = vpack.c.b16 %v5047, %v5034
        %v6868 = vpack.c.b16 %v5048, %v5035
        %v6869 = vpack.c.b16 %v5049, %v5036
        %v6870 = vpack.c.b16 %v5050, %v5037
        %v6871 = vpack.c.b16 %v5064, %v5051
        %v6872 = vpack.c.b16 %v5065, %v5052
        %v6873 = vpack.c.b16 %v5066, %v5053
        %v6874 = vpack.c.b16 %v5067, %v5054
        %v6875 = vpack.c.b16 %v5068, %v5055
        %v6876 = vpack.c.b16 %v5069, %v5056
        %v6877 = vpack.c.b16 %v5070, %v5057
        %v6878 = vpack.c.b16 %v5071, %v5058
        %v6879 = vpack.c.b16 %v5072, %v5059
        %v6880 = vpack.c.b16 %v5073, %v5060
        %v6881 = vpack.c.b16 %v5074, %v5061
        %v6882 = vpack.c.b16 %v5075, %v5062
        %v6883 = vpack.c.b16 %v5076, %v5063
        %v6884 = vpack.c.b16 %v5090, %v5077
        %v6885 = vpack.c.b16 %v5091, %v5078
        %v6886 = vpack.c.b16 %v5092, %v5079
        %v6887 = vpack.c.b16 %v5093, %v5080
        %v6888 = vpack.c.b16 %v5094, %v5081
        %v6889 = vpack.c.b16 %v5095, %v5082
        %v6890 = vpack.c.b16 %v5096, %v5083
        %v6891 = vpack.c.b16 %v5097, %v5084
        %v6892 = vpack.c.b16 %v5098, %v5085
        %v6893 = vpack.c.b16 %v5099, %v5086
        %v6894 = vpack.c.b16 %v5100, %v5087
        %v6895 = vpack.c.b16 %v5101, %v5088
        %v6896 = vpack.c.b16 %v5102, %v5089
        %v6897 = vpack.c.b16 %v5116, %v5103
        %v6898 = vpack.c.b16 %v5117, %v5104
        %v6899 = vpack.c.b16 %v5118, %v5105
        %v6900 = vpack.c.b16 %v5119, %v5106
        %v6901 = vpack.c.b16 %v5120, %v5107
        %v6902 = vpack.c.b16 %v5121, %v5108
        %v6903 = vpack.c.b16 %v5122, %v5109
        %v6904 = vpack.c.b16 %v5123, %v5110
        %v6905 = vpack.c.b16 %v5124, %v5111
        %v6906 = vpack.c.b16 %v5125, %v5112
        %v6907 = vpack.c.b16 %v5126, %v5113
        %v6908 = vpack.c.b16 %v5127, %v5114
        %v6909 = vpack.c.b16 %v5128, %v5115
        %v6910 = vpack.c.b16 %v5142, %v5129
        %v6911 = vpack.c.b16 %v5143, %v5130
        %v6912 = vpack.c.b16 %v5144, %v5131
        %v6913 = vpack.c.b16 %v5145, %v5132
        %v6914 = vpack.c.b16 %v5146, %v5133
        %v6915 = vpack.c.b16 %v5147, %v5134
        %v6916 = vpack.c.b16 %v5148, %v5135
        %v6917 = vpack.c.b16 %v5149, %v5136
        %v6918 = vpack.c.b16 %v5150, %v5137
        %v6919 = vpack.c.b16 %v5151, %v5138
        %v6920 = vpack.c.b16 %v5152, %v5139
        %v6921 = vpack.c.b16 %v5153, %v5140
        %v6922 = vpack.c.b16 %v5154, %v5141
        %v6923 = vpack.c.b16 %v5168, %v5155
        %v6924 = vpack.c.b16 %v5169, %v5156
        %v6925 = vpack.c.b16 %v5170, %v5157
        %v6926 = vpack.c.b16 %v5171, %v5158
        %v6927 = vpack.c.b16 %v5172, %v5159
        %v6928 = vpack.c.b16 %v5173, %v5160
        %v6929 = vpack.c.b16 %v5174, %v5161
        %v6930 = vpack.c.b16 %v5175, %v5162
        %v6931 = vpack.c.b16 %v5176, %v5163
        %v6932 = vpack.c.b16 %v5177, %v5164
        %v6933 = vpack.c.b16 %v5178, %v5165
        %v6934 = vpack.c.b16 %v5179, %v5166
        %v6935 = vpack.c.b16 %v5180, %v5167
        %v6936 = vpack.c.b16 %v5194, %v5181
        %v6937 = vpack.c.b16 %v5195, %v5182
        %v6938 = vpack.c.b16 %v5196, %v5183
        %v6939 = vpack.c.b16 %v5197, %v5184
        %v6940 = vpack.c.b16 %v5198, %v5185
        %v6941 = vpack.c.b16 %v5199, %v5186
        %v6942 = vpack.c.b16 %v5200, %v5187
        %v6943 = vpack.c.b16 %v5201, %v5188
        %v6944 = vpack.c.b16 %v5202, %v5189
        %v6945 = vpack.c.b16 %v5203, %v5190
        %v6946 = vpack.c.b16 %v5204, %v5191
        %v6947 = vpack.c.b16 %v5205, %v5192
        %v6948 = vpack.c.b16 %v5206, %v5193
        %v6949 = vpack.c.b16 %v5220, %v5207
        %v6950 = vpack.c.b16 %v5221, %v5208
        %v6951 = vpack.c.b16 %v5222, %v5209
        %v6952 = vpack.c.b16 %v5223, %v5210
        %v6953 = vpack.c.b16 %v5224, %v5211
        %v6954 = vpack.c.b16 %v5225, %v5212
        %v6955 = vpack.c.b16 %v5226, %v5213
        %v6956 = vpack.c.b16 %v5227, %v5214
        %v6957 = vpack.c.b16 %v5228, %v5215
        %v6958 = vpack.c.b16 %v5229, %v5216
        %v6959 = vpack.c.b16 %v5230, %v5217
        %v6960 = vpack.c.b16 %v5231, %v5218
        %v6961 = vpack.c.b16 %v5232, %v5219
        %v6962 = vpack.c.b16 %v5246, %v5233
        %v6963 = vpack.c.b16 %v5247, %v5234
        %v6964 = vpack.c.b16 %v5248, %v5235
        %v6965 = vpack.c.b16 %v5249, %v5236
        %v6966 = vpack.c.b16 %v5250, %v5237
        %v6967 = vpack.c.b16 %v5251, %v5238
        %v6968 = vpack.c.b16 %v5252, %v5239
        %v6969 = vpack.c.b16 %v5253, %v5240
        %v6970 = vpack.c.b16 %v5254, %v5241
        %v6971 = vpack.c.b16 %v5255, %v5242
        %v6972 = vpack.c.b16 %v5256, %v5243
        %v6973 = vpack.c.b16 %v5257, %v5244
        %v6974 = vpack.c.b16 %v5258, %v5245
        %v6975 = vpack.c.b16 %v5272, %v5259
        %v6976 = vpack.c.b16 %v5273, %v5260
        %v6977 = vpack.c.b16 %v5274, %v5261
        %v6978 = vpack.c.b16 %v5275, %v5262
        %v6979 = vpack.c.b16 %v5276, %v5263
        %v6980 = vpack.c.b16 %v5277, %v5264
        %v6981 = vpack.c.b16 %v5278, %v5265
        %v6982 = vpack.c.b16 %v5279, %v5266
        %v6983 = vpack.c.b16 %v5280, %v5267
        %v6984 = vpack.c.b16 %v5281, %v5268
        %v6985 = vpack.c.b16 %v5282, %v5269
        %v6986 = vpack.c.b16 %v5283, %v5270
        %v6987 = vpack.c.b16 %v5284, %v5271
        %v6988 = vpack.c.b16 %v5298, %v5285
        %v6989 = vpack.c.b16 %v5299, %v5286
        %v6990 = vpack.c.b16 %v5300, %v5287
        %v6991 = vpack.c.b16 %v5301, %v5288
        %v6992 = vpack.c.b16 %v5302, %v5289
        %v6993 = vpack.c.b16 %v5303, %v5290
        %v6994 = vpack.c.b16 %v5304, %v5291
        %v6995 = vpack.c.b16 %v5305, %v5292
        %v6996 = vpack.c.b16 %v5306, %v5293
        %v6997 = vpack.c.b16 %v5307, %v5294
        %v6998 = vpack.c.b16 %v5308, %v5295
        %v6999 = vpack.c.b16 %v5309, %v5296
        %v7000 = vpack.c.b16 %v5310, %v5297
        %v7001 = vpack.c.b16 %v5324, %v5311
        %v7002 = vpack.c.b16 %v5325, %v5312
        %v7003 = vpack.c.b16 %v5326, %v5313
        %v7004 = vpack.c.b16 %v5327, %v5314
        %v7005 = vpack.c.b16 %v5328, %v5315
        %v7006 = vpack.c.b16 %v5329, %v5316
        %v7007 = vpack.c.b16 %v5330, %v5317
        %v7008 = vpack.c.b16 %v5331, %v5318
        %v7009 = vpack.c.b16 %v5332, %v5319
        %v7010 = vpack.c.b16 %v5333, %v5320
        %v7011 = vpack.c.b16 %v5334, %v5321
        %v7012 = vpack.c.b16 %v5335, %v5322
        %v7013 = vpack.c.b16 %v5336, %v5323
        %v7014 = vpack.c.b16 %v5350, %v5337
        %v7015 = vpack.c.b16 %v5351, %v5338
        %v7016 = vpack.c.b16 %v5352, %v5339
        %v7017 = vpack.c.b16 %v5353, %v5340
        %v7018 = vpack.c.b16 %v5354, %v5341
        %v7019 = vpack.c.b16 %v5355, %v5342
        %v7020 = vpack.c.b16 %v5356, %v5343
        %v7021 = vpack.c.b16 %v5357, %v5344
        %v7022 = vpack.c.b16 %v5358, %v5345
        %v7023 = vpack.c.b16 %v5359, %v5346
        %v7024 = vpack.c.b16 %v5360, %v5347
        %v7025 = vpack.c.b16 %v5361, %v5348
        %v7026 = vpack.c.b16 %v5362, %v5349
        %v7027 = vpack.c.b16 %v5376, %v5363
        %v7028 = vpack.c.b16 %v5377, %v5364
        %v7029 = vpack.c.b16 %v5378, %v5365
        %v7030 = vpack.c.b16 %v5379, %v5366
        %v7031 = vpack.c.b16 %v5380, %v5367
        %v7032 = vpack.c.b16 %v5381, %v5368
        %v7033 = vpack.c.b16 %v5382, %v5369
        %v7034 = vpack.c.b16 %v5383, %v5370
        %v7035 = vpack.c.b16 %v5384, %v5371
        %v7036 = vpack.c.b16 %v5385, %v5372
        %v7037 = vpack.c.b16 %v5386, %v5373
        %v7038 = vpack.c.b16 %v5387, %v5374
        %v7039 = vpack.c.b16 %v5388, %v5375
        %v7040 = vpack.c.b16 %v5402, %v5389
        %v7041 = vpack.c.b16 %v5403, %v5390
        %v7042 = vpack.c.b16 %v5404, %v5391
        %v7043 = vpack.c.b16 %v5405, %v5392
        %v7044 = vpack.c.b16 %v5406, %v5393
        %v7045 = vpack.c.b16 %v5407, %v5394
        %v7046 = vpack.c.b16 %v5408, %v5395
        %v7047 = vpack.c.b16 %v5409, %v5396
        %v7048 = vpack.c.b16 %v5410, %v5397
        %v7049 = vpack.c.b16 %v5411, %v5398
        %v7050 = vpack.c.b16 %v5412, %v5399
        %v7051 = vpack.c.b16 %v5413, %v5400
        %v7052 = vpack.c.b16 %v5414, %v5401
        %v7053 = vpack.c.b16 %v5428, %v5415
        %v7054 = vpack.c.b16 %v5429, %v5416
        %v7055 = vpack.c.b16 %v5430, %v5417
        %v7056 = vpack.c.b16 %v5431, %v5418
        %v7057 = vpack.c.b16 %v5432, %v5419
        %v7058 = vpack.c.b16 %v5433, %v5420
        %v7059 = vpack.c.b16 %v5434, %v5421
        %v7060 = vpack.c.b16 %v5435, %v5422
        %v7061 = vpack.c.b16 %v5436, %v5423
        %v7062 = vpack.c.b16 %v5437, %v5424
        %v7063 = vpack.c.b16 %v5438, %v5425
        %v7064 = vpack.c.b16 %v5439, %v5426
        %v7065 = vpack.c.b16 %v5440, %v5427
        %v7066 = vpack.c.b16 %v5454, %v5441
        %v7067 = vpack.c.b16 %v5455, %v5442
        %v7068 = vpack.c.b16 %v5456, %v5443
        %v7069 = vpack.c.b16 %v5457, %v5444
        %v7070 = vpack.c.b16 %v5458, %v5445
        %v7071 = vpack.c.b16 %v5459, %v5446
        %v7072 = vpack.c.b16 %v5460, %v5447
        %v7073 = vpack.c.b16 %v5461, %v5448
        %v7074 = vpack.c.b16 %v5462, %v5449
        %v7075 = vpack.c.b16 %v5463, %v5450
        %v7076 = vpack.c.b16 %v5464, %v5451
        %v7077 = vpack.c.b16 %v5465, %v5452
        %v7078 = vpack.c.b16 %v5466, %v5453
        %v7079 = vpack.c.b16 %v5480, %v5467
        %v7080 = vpack.c.b16 %v5481, %v5468
        %v7081 = vpack.c.b16 %v5482, %v5469
        %v7082 = vpack.c.b16 %v5483, %v5470
        %v7083 = vpack.c.b16 %v5484, %v5471
        %v7084 = vpack.c.b16 %v5485, %v5472
        %v7085 = vpack.c.b16 %v5486, %v5473
        %v7086 = vpack.c.b16 %v5487, %v5474
        %v7087 = vpack.c.b16 %v5488, %v5475
        %v7088 = vpack.c.b16 %v5489, %v5476
        %v7089 = vpack.c.b16 %v5490, %v5477
        %v7090 = vpack.c.b16 %v5491, %v5478
        %v7091 = vpack.c.b16 %v5492, %v5479
        %v7092 = vpack.c.b16 %v5506, %v5493
        %v7093 = vpack.c.b16 %v5507, %v5494
        %v7094 = vpack.c.b16 %v5508, %v5495
        %v7095 = vpack.c.b16 %v5509, %v5496
        %v7096 = vpack.c.b16 %v5510, %v5497
        %v7097 = vpack.c.b16 %v5511, %v5498
        %v7098 = vpack.c.b16 %v5512, %v5499
        %v7099 = vpack.c.b16 %v5513, %v5500
        %v7100 = vpack.c.b16 %v5514, %v5501
        %v7101 = vpack.c.b16 %v5515, %v5502
        %v7102 = vpack.c.b16 %v5516, %v5503
        %v7103 = vpack.c.b16 %v5517, %v5504
        %v7104 = vpack.c.b16 %v5518, %v5505
        %v7105 = vpack.c.b16 %v5532, %v5519
        %v7106 = vpack.c.b16 %v5533, %v5520
        %v7107 = vpack.c.b16 %v5534, %v5521
        %v7108 = vpack.c.b16 %v5535, %v5522
        %v7109 = vpack.c.b16 %v5536, %v5523
        %v7110 = vpack.c.b16 %v5537, %v5524
        %v7111 = vpack.c.b16 %v5538, %v5525
        %v7112 = vpack.c.b16 %v5539, %v5526
        %v7113 = vpack.c.b16 %v5540, %v5527
        %v7114 = vpack.c.b16 %v5541, %v5528
        %v7115 = vpack.c.b16 %v5542, %v5529
        %v7116 = vpack.c.b16 %v5543, %v5530
        %v7117 = vpack.c.b16 %v5544, %v5531
        %v7118 = vpack.c.b16 %v5558, %v5545
        %v7119 = vpack.c.b16 %v5559, %v5546
        %v7120 = vpack.c.b16 %v5560, %v5547
        %v7121 = vpack.c.b16 %v5561, %v5548
        %v7122 = vpack.c.b16 %v5562, %v5549
        %v7123 = vpack.c.b16 %v5563, %v5550
        %v7124 = vpack.c.b16 %v5564, %v5551
        %v7125 = vpack.c.b16 %v5565, %v5552
        %v7126 = vpack.c.b16 %v5566, %v5553
        %v7127 = vpack.c.b16 %v5567, %v5554
        %v7128 = vpack.c.b16 %v5568, %v5555
        %v7129 = vpack.c.b16 %v5569, %v5556
        %v7130 = vpack.c.b16 %v5570, %v5557
        %v7131 = vpack.c.b16 %v5584, %v5571
        %v7132 = vpack.c.b16 %v5585, %v5572
        %v7133 = vpack.c.b16 %v5586, %v5573
        %v7134 = vpack.c.b16 %v5587, %v5574
        %v7135 = vpack.c.b16 %v5588, %v5575
        %v7136 = vpack.c.b16 %v5589, %v5576
        %v7137 = vpack.c.b16 %v5590, %v5577
        %v7138 = vpack.c.b16 %v5591, %v5578
        %v7139 = vpack.c.b16 %v5592, %v5579
        %v7140 = vpack.c.b16 %v5593, %v5580
        %v7141 = vpack.c.b16 %v5594, %v5581
        %v7142 = vpack.c.b16 %v5595, %v5582
        %v7143 = vpack.c.b16 %v5596, %v5583
        %v7144 = vpack.c.b16 %v5610, %v5597
        %v7145 = vpack.c.b16 %v5611, %v5598
        %v7146 = vpack.c.b16 %v5612, %v5599
        %v7147 = vpack.c.b16 %v5613, %v5600
        %v7148 = vpack.c.b16 %v5614, %v5601
        %v7149 = vpack.c.b16 %v5615, %v5602
        %v7150 = vpack.c.b16 %v5616, %v5603
        %v7151 = vpack.c.b16 %v5617, %v5604
        %v7152 = vpack.c.b16 %v5618, %v5605
        %v7153 = vpack.c.b16 %v5619, %v5606
        %v7154 = vpack.c.b16 %v5620, %v5607
        %v7155 = vpack.c.b16 %v5621, %v5608
        %v7156 = vpack.c.b16 %v5622, %v5609
        %v7157 = vpack.c.b16 %v5636, %v5623
        %v7158 = vpack.c.b16 %v5637, %v5624
        %v7159 = vpack.c.b16 %v5638, %v5625
        %v7160 = vpack.c.b16 %v5639, %v5626
        %v7161 = vpack.c.b16 %v5640, %v5627
        %v7162 = vpack.c.b16 %v5641, %v5628
        %v7163 = vpack.c.b16 %v5642, %v5629
        %v7164 = vpack.c.b16 %v5643, %v5630
        %v7165 = vpack.c.b16 %v5644, %v5631
        %v7166 = vpack.c.b16 %v5645, %v5632
        %v7167 = vpack.c.b16 %v5646, %v5633
        %v7168 = vpack.c.b16 %v5647, %v5634
        %v7169 = vpack.c.b16 %v5648, %v5635
        %v7170 = vpack.c.b16 %v5662, %v5649
        %v7171 = vpack.c.b16 %v5663, %v5650
        %v7172 = vpack.c.b16 %v5664, %v5651
        %v7173 = vpack.c.b16 %v5665, %v5652
        %v7174 = vpack.c.b16 %v5666, %v5653
        %v7175 = vpack.c.b16 %v5667, %v5654
        %v7176 = vpack.c.b16 %v5668, %v5655
        %v7177 = vpack.c.b16 %v5669, %v5656
        %v7178 = vpack.c.b16 %v5670, %v5657
        %v7179 = vpack.c.b16 %v5671, %v5658
        %v7180 = vpack.c.b16 %v5672, %v5659
        %v7181 = vpack.c.b16 %v5673, %v5660
        %v7182 = vpack.c.b16 %v5674, %v5661
        %v7183 = vpack.c.b16 %v5688, %v5675
        %v7184 = vpack.c.b16 %v5689, %v5676
        %v7185 = vpack.c.b16 %v5690, %v5677
        %v7186 = vpack.c.b16 %v5691, %v5678
        %v7187 = vpack.c.b16 %v5692, %v5679
        %v7188 = vpack.c.b16 %v5693, %v5680
        %v7189 = vpack.c.b16 %v5694, %v5681
        %v7190 = vpack.c.b16 %v5695, %v5682
        %v7191 = vpack.c.b16 %v5696, %v5683
        %v7192 = vpack.c.b16 %v5697, %v5684
        %v7193 = vpack.c.b16 %v5698, %v5685
        %v7194 = vpack.c.b16 %v5699, %v5686
        %v7195 = vpack.c.b16 %v5700, %v5687
        %v7196 = vpack.c.b16 %v5714, %v5701
        %v7197 = vpack.c.b16 %v5715, %v5702
        %v7198 = vpack.c.b16 %v5716, %v5703
        %v7199 = vpack.c.b16 %v5717, %v5704
        %v7200 = vpack.c.b16 %v5718, %v5705
        %v7201 = vpack.c.b16 %v5719, %v5706
        %v7202 = vpack.c.b16 %v5720, %v5707
        %v7203 = vpack.c.b16 %v5721, %v5708
        %v7204 = vpack.c.b16 %v5722, %v5709
        %v7205 = vpack.c.b16 %v5723, %v5710
        %v7206 = vpack.c.b16 %v5724, %v5711
        %v7207 = vpack.c.b16 %v5725, %v5712
        %v7208 = vpack.c.b16 %v5726, %v5713
        %v7209 = vpack.c.b16 %v5740, %v5727
        %v7210 = vpack.c.b16 %v5741, %v5728
        %v7211 = vpack.c.b16 %v5742, %v5729
        %v7212 = vpack.c.b16 %v5743, %v5730
        %v7213 = vpack.c.b16 %v5744, %v5731
        %v7214 = vpack.c.b16 %v5745, %v5732
        %v7215 = vpack.c.b16 %v5746, %v5733
        %v7216 = vpack.c.b16 %v5747, %v5734
        %v7217 = vpack.c.b16 %v5748, %v5735
        %v7218 = vpack.c.b16 %v5749, %v5736
        %v7219 = vpack.c.b16 %v5750, %v5737
        %v7220 = vpack.c.b16 %v5751, %v5738
        %v7221 = vpack.c.b16 %v5752, %v5739
        %v7222 = vpack.c.b16 %v5766, %v5753
        %v7223 = vpack.c.b16 %v5767, %v5754
        %v7224 = vpack.c.b16 %v5768, %v5755
        %v7225 = vpack.c.b16 %v5769, %v5756
        %v7226 = vpack.c.b16 %v5770, %v5757
        %v7227 = vpack.c.b16 %v5771, %v5758
        %v7228 = vpack.c.b16 %v5772, %v5759
        %v7229 = vpack.c.b16 %v5773, %v5760
        %v7230 = vpack.c.b16 %v5774, %v5761
        %v7231 = vpack.c.b16 %v5775, %v5762
        %v7232 = vpack.c.b16 %v5776, %v5763
        %v7233 = vpack.c.b16 %v5777, %v5764
        %v7234 = vpack.c.b16 %v5778, %v5765
        %v7235 = vpack.c.b16 %v5792, %v5779
        %v7236 = vpack.c.b16 %v5793, %v5780
        %v7237 = vpack.c.b16 %v5794, %v5781
        %v7238 = vpack.c.b16 %v5795, %v5782
        %v7239 = vpack.c.b16 %v5796, %v5783
        %v7240 = vpack.c.b16 %v5797, %v5784
        %v7241 = vpack.c.b16 %v5798, %v5785
        %v7242 = vpack.c.b16 %v5799, %v5786
        %v7243 = vpack.c.b16 %v5800, %v5787
        %v7244 = vpack.c.b16 %v5801, %v5788
        %v7245 = vpack.c.b16 %v5802, %v5789
        %v7246 = vpack.c.b16 %v5803, %v5790
        %v7247 = vpack.c.b16 %v5804, %v5791
        %v7248 = vpack.c.b16 %v5818, %v5805
        %v7249 = vpack.c.b16 %v5819, %v5806
        %v7250 = vpack.c.b16 %v5820, %v5807
        %v7251 = vpack.c.b16 %v5821, %v5808
        %v7252 = vpack.c.b16 %v5822, %v5809
        %v7253 = vpack.c.b16 %v5823, %v5810
        %v7254 = vpack.c.b16 %v5824, %v5811
        %v7255 = vpack.c.b16 %v5825, %v5812
        %v7256 = vpack.c.b16 %v5826, %v5813
        %v7257 = vpack.c.b16 %v5827, %v5814
        %v7258 = vpack.c.b16 %v5828, %v5815
        %v7259 = vpack.c.b16 %v5829, %v5816
        %v7260 = vpack.c.b16 %v5830, %v5817
        %v7261 = vpack.c.b16 %v5844, %v5831
        %v7262 = vpack.c.b16 %v5845, %v5832
        %v7263 = vpack.c.b16 %v5846, %v5833
        %v7264 = vpack.c.b16 %v5847, %v5834
        %v7265 = vpack.c.b16 %v5848, %v5835
        %v7266 = vpack.c.b16 %v5849, %v5836
        %v7267 = vpack.c.b16 %v5850, %v5837
        %v7268 = vpack.c.b16 %v5851, %v5838
        %v7269 = vpack.c.b16 %v5852, %v5839
        %v7270 = vpack.c.b16 %v5853, %v5840
        %v7271 = vpack.c.b16 %v5854, %v5841
        %v7272 = vpack.c.b16 %v5855, %v5842
        %v7273 = vpack.c.b16 %v5856, %v5843
        %v7274 = vpack.c.b16 %v5870, %v5857
        %v7275 = vpack.c.b16 %v5871, %v5858
        %v7276 = vpack.c.b16 %v5872, %v5859
        %v7277 = vpack.c.b16 %v5873, %v5860
        %v7278 = vpack.c.b16 %v5874, %v5861
        %v7279 = vpack.c.b16 %v5875, %v5862
        %v7280 = vpack.c.b16 %v5876, %v5863
        %v7281 = vpack.c.b16 %v5877, %v5864
        %v7282 = vpack.c.b16 %v5878, %v5865
        %v7283 = vpack.c.b16 %v5879, %v5866
        %v7284 = vpack.c.b16 %v5880, %v5867
        %v7285 = vpack.c.b16 %v5881, %v5868
        %v7286 = vpack.c.b16 %v5882, %v5869
        %v7287 = vpack.c.b16 %v5896, %v5883
        %v7288 = vpack.c.b16 %v5897, %v5884
        %v7289 = vpack.c.b16 %v5898, %v5885
        %v7290 = vpack.c.b16 %v5899, %v5886
        %v7291 = vpack.c.b16 %v5900, %v5887
        %v7292 = vpack.c.b16 %v5901, %v5888
        %v7293 = vpack.c.b16 %v5902, %v5889
        %v7294 = vpack.c.b16 %v5903, %v5890
        %v7295 = vpack.c.b16 %v5904, %v5891
        %v7296 = vpack.c.b16 %v5905, %v5892
        %v7297 = vpack.c.b16 %v5906, %v5893
        %v7298 = vpack.c.b16 %v5907, %v5894
        %v7299 = vpack.c.b16 %v5908, %v5895
        %v7300 = vpack.c.b16 %v5922, %v5909
        %v7301 = vpack.c.b16 %v5923, %v5910
        %v7302 = vpack.c.b16 %v5924, %v5911
        %v7303 = vpack.c.b16 %v5925, %v5912
        %v7304 = vpack.c.b16 %v5926, %v5913
        %v7305 = vpack.c.b16 %v5927, %v5914
        %v7306 = vpack.c.b16 %v5928, %v5915
        %v7307 = vpack.c.b16 %v5929, %v5916
        %v7308 = vpack.c.b16 %v5930, %v5917
        %v7309 = vpack.c.b16 %v5931, %v5918
        %v7310 = vpack.c.b16 %v5932, %v5919
        %v7311 = vpack.c.b16 %v5933, %v5920
        %v7312 = vpack.c.b16 %v5934, %v5921
        %v7313 = vpack.c.b16 %v5948, %v5935
        %v7314 = vpack.c.b16 %v5949, %v5936
        %v7315 = vpack.c.b16 %v5950, %v5937
        %v7316 = vpack.c.b16 %v5951, %v5938
        %v7317 = vpack.c.b16 %v5952, %v5939
        %v7318 = vpack.c.b16 %v5953, %v5940
        %v7319 = vpack.c.b16 %v5954, %v5941
        %v7320 = vpack.c.b16 %v5955, %v5942
        %v7321 = vpack.c.b16 %v5956, %v5943
        %v7322 = vpack.c.b16 %v5957, %v5944
        %v7323 = vpack.c.b16 %v5958, %v5945
        %v7324 = vpack.c.b16 %v5959, %v5946
        %v7325 = vpack.c.b16 %v5960, %v5947
        %v7326 = vpack.c.b16 %v5974, %v5961
        %v7327 = vpack.c.b16 %v5975, %v5962
        %v7328 = vpack.c.b16 %v5976, %v5963
        %v7329 = vpack.c.b16 %v5977, %v5964
        %v7330 = vpack.c.b16 %v5978, %v5965
        %v7331 = vpack.c.b16 %v5979, %v5966
        %v7332 = vpack.c.b16 %v5980, %v5967
        %v7333 = vpack.c.b16 %v5981, %v5968
        %v7334 = vpack.c.b16 %v5982, %v5969
        %v7335 = vpack.c.b16 %v5983, %v5970
        %v7336 = vpack.c.b16 %v5984, %v5971
        %v7337 = vpack.c.b16 %v5985, %v5972
        %v7338 = vpack.c.b16 %v5986, %v5973
        %v7339 = vpack.c.b16 %v6000, %v5987
        %v7340 = vpack.c.b16 %v6001, %v5988
        %v7341 = vpack.c.b16 %v6002, %v5989
        %v7342 = vpack.c.b16 %v6003, %v5990
        %v7343 = vpack.c.b16 %v6004, %v5991
        %v7344 = vpack.c.b16 %v6005, %v5992
        %v7345 = vpack.c.b16 %v6006, %v5993
        %v7346 = vpack.c.b16 %v6007, %v5994
        %v7347 = vpack.c.b16 %v6008, %v5995
        %v7348 = vpack.c.b16 %v6009, %v5996
        %v7349 = vpack.c.b16 %v6010, %v5997
        %v7350 = vpack.c.b16 %v6011, %v5998
        %v7351 = vpack.c.b16 %v6012, %v5999
        %v7352 = vpack.c.b16 %v6026, %v6013
        %v7353 = vpack.c.b16 %v6027, %v6014
        %v7354 = vpack.c.b16 %v6028, %v6015
        %v7355 = vpack.c.b16 %v6029, %v6016
        %v7356 = vpack.c.b16 %v6030, %v6017
        %v7357 = vpack.c.b16 %v6031, %v6018
        %v7358 = vpack.c.b16 %v6032, %v6019
        %v7359 = vpack.c.b16 %v6033, %v6020
        %v7360 = vpack.c.b16 %v6034, %v6021
        %v7361 = vpack.c.b16 %v6035, %v6022
        %v7362 = vpack.c.b16 %v6036, %v6023
        %v7363 = vpack.c.b16 %v6037, %v6024
        %v7364 = vpack.c.b16 %v6038, %v6025
        %v7365 = vpack.c.b16 %v6052, %v6039
        %v7366 = vpack.c.b16 %v6053, %v6040
        %v7367 = vpack.c.b16 %v6054, %v6041
        %v7368 = vpack.c.b16 %v6055, %v6042
        %v7369 = vpack.c.b16 %v6056, %v6043
        %v7370 = vpack.c.b16 %v6057, %v6044
        %v7371 = vpack.c.b16 %v6058, %v6045
        %v7372 = vpack.c.b16 %v6059, %v6046
        %v7373 = vpack.c.b16 %v6060, %v6047
        %v7374 = vpack.c.b16 %v6061, %v6048
        %v7375 = vpack.c.b16 %v6062, %v6049
        %v7376 = vpack.c.b16 %v6063, %v6050
        %v7377 = vpack.c.b16 %v6064, %v6051
        %v7378 = vpack.c.b16 %v6078, %v6065
        %v7379 = vpack.c.b16 %v6079, %v6066
        %v7380 = vpack.c.b16 %v6080, %v6067
        %v7381 = vpack.c.b16 %v6081, %v6068
        %v7382 = vpack.c.b16 %v6082, %v6069
        %v7383 = vpack.c.b16 %v6083, %v6070
        %v7384 = vpack.c.b16 %v6084, %v6071
        %v7385 = vpack.c.b16 %v6085, %v6072
        %v7386 = vpack.c.b16 %v6086, %v6073
        %v7387 = vpack.c.b16 %v6087, %v6074
        %v7388 = vpack.c.b16 %v6088, %v6075
        %v7389 = vpack.c.b16 %v6089, %v6076
        %v7390 = vpack.c.b16 %v6090, %v6077
        %v7391 = vpack.c.b16 %v6104, %v6091
        %v7392 = vpack.c.b16 %v6105, %v6092
        %v7393 = vpack.c.b16 %v6106, %v6093
        %v7394 = vpack.c.b16 %v6107, %v6094
        %v7395 = vpack.c.b16 %v6108, %v6095
        %v7396 = vpack.c.b16 %v6109, %v6096
        %v7397 = vpack.c.b16 %v6110, %v6097
        %v7398 = vpack.c.b16 %v6111, %v6098
        %v7399 = vpack.c.b16 %v6112, %v6099
        %v7400 = vpack.c.b16 %v6113, %v6100
        %v7401 = vpack.c.b16 %v6114, %v6101
        %v7402 = vpack.c.b16 %v6115, %v6102
        %v7403 = vpack.c.b16 %v6116, %v6103
        %v7404 = vpack.c.b16 %v6130, %v6117
        %v7405 = vpack.c.b16 %v6131, %v6118
        %v7406 = vpack.c.b16 %v6132, %v6119
        %v7407 = vpack.c.b16 %v6133, %v6120
        %v7408 = vpack.c.b16 %v6134, %v6121
        %v7409 = vpack.c.b16 %v6135, %v6122
        %v7410 = vpack.c.b16 %v6136, %v6123
        %v7411 = vpack.c.b16 %v6137, %v6124
        %v7412 = vpack.c.b16 %v6138, %v6125
        %v7413 = vpack.c.b16 %v6139, %v6126
        %v7414 = vpack.c.b16 %v6140, %v6127
        %v7415 = vpack.c.b16 %v6141, %v6128
        %v7416 = vpack.c.b16 %v6142, %v6129
        %v7417 = vpack.c.b16 %v6156, %v6143
        %v7418 = vpack.c.b16 %v6157, %v6144
        %v7419 = vpack.c.b16 %v6158, %v6145
        %v7420 = vpack.c.b16 %v6159, %v6146
        %v7421 = vpack.c.b16 %v6160, %v6147
        %v7422 = vpack.c.b16 %v6161, %v6148
        %v7423 = vpack.c.b16 %v6162, %v6149
        %v7424 = vpack.c.b16 %v6163, %v6150
        %v7425 = vpack.c.b16 %v6164, %v6151
        %v7426 = vpack.c.b16 %v6165, %v6152
        %v7427 = vpack.c.b16 %v6166, %v6153
        %v7428 = vpack.c.b16 %v6167, %v6154
        %v7429 = vpack.c.b16 %v6168, %v6155
        %v7430 = vpack.c.b16 %v6182, %v6169
        %v7431 = vpack.c.b16 %v6183, %v6170
        %v7432 = vpack.c.b16 %v6184, %v6171
        %v7433 = vpack.c.b16 %v6185, %v6172
        %v7434 = vpack.c.b16 %v6186, %v6173
        %v7435 = vpack.c.b16 %v6187, %v6174
        %v7436 = vpack.c.b16 %v6188, %v6175
        %v7437 = vpack.c.b16 %v6189, %v6176
        %v7438 = vpack.c.b16 %v6190, %v6177
        %v7439 = vpack.c.b16 %v6191, %v6178
        %v7440 = vpack.c.b16 %v6192, %v6179
        %v7441 = vpack.c.b16 %v6193, %v6180
        %v7442 = vpack.c.b16 %v6194, %v6181
        %v7443 = vpack.c.b16 %v6208, %v6195
        %v7444 = vpack.c.b16 %v6209, %v6196
        %v7445 = vpack.c.b16 %v6210, %v6197
        %v7446 = vpack.c.b16 %v6211, %v6198
        %v7447 = vpack.c.b16 %v6212, %v6199
        %v7448 = vpack.c.b16 %v6213, %v6200
        %v7449 = vpack.c.b16 %v6214, %v6201
        %v7450 = vpack.c.b16 %v6215, %v6202
        %v7451 = vpack.c.b16 %v6216, %v6203
        %v7452 = vpack.c.b16 %v6217, %v6204
        %v7453 = vpack.c.b16 %v6218, %v6205
        %v7454 = vpack.c.b16 %v6219, %v6206
        %v7455 = vpack.c.b16 %v6220, %v6207
        %v7456 = vpack.c.b16 %v6234, %v6221
        %v7457 = vpack.c.b16 %v6235, %v6222
        %v7458 = vpack.c.b16 %v6236, %v6223
        %v7459 = vpack.c.b16 %v6237, %v6224
        %v7460 = vpack.c.b16 %v6238, %v6225
        %v7461 = vpack.c.b16 %v6239, %v6226
        %v7462 = vpack.c.b16 %v6240, %v6227
        %v7463 = vpack.c.b16 %v6241, %v6228
        %v7464 = vpack.c.b16 %v6242, %v6229
        %v7465 = vpack.c.b16 %v6243, %v6230
        %v7466 = vpack.c.b16 %v6244, %v6231
        %v7467 = vpack.c.b16 %v6245, %v6232
        %v7468 = vpack.c.b16 %v6246, %v6233
        %v7469 = vpack.c.b16 %v6260, %v6247
        %v7470 = vpack.c.b16 %v6261, %v6248
        %v7471 = vpack.c.b16 %v6262, %v6249
        %v7472 = vpack.c.b16 %v6263, %v6250
        %v7473 = vpack.c.b16 %v6264, %v6251
        %v7474 = vpack.c.b16 %v6265, %v6252
        %v7475 = vpack.c.b16 %v6266, %v6253
        %v7476 = vpack.c.b16 %v6267, %v6254
        %v7477 = vpack.c.b16 %v6268, %v6255
        %v7478 = vpack.c.b16 %v6269, %v6256
        %v7479 = vpack.c.b16 %v6270, %v6257
        %v7480 = vpack.c.b16 %v6271, %v6258
        %v7481 = vpack.c.b16 %v6272, %v6259
        %v7482 = vpack.c.b16 %v6286, %v6273
        %v7483 = vpack.c.b16 %v6287, %v6274
        %v7484 = vpack.c.b16 %v6288, %v6275
        %v7485 = vpack.c.b16 %v6289, %v6276
        %v7486 = vpack.c.b16 %v6290, %v6277
        %v7487 = vpack.c.b16 %v6291, %v6278
        %v7488 = vpack.c.b16 %v6292, %v6279
        %v7489 = vpack.c.b16 %v6293, %v6280
        %v7490 = vpack.c.b16 %v6294, %v6281
        %v7491 = vpack.c.b16 %v6295, %v6282
        %v7492 = vpack.c.b16 %v6296, %v6283
        %v7493 = vpack.c.b16 %v6297, %v6284
        %v7494 = vpack.c.b16 %v6298, %v6285
        %v7495 = vpack.c.b16 %v6312, %v6299
        %v7496 = vpack.c.b16 %v6313, %v6300
        %v7497 = vpack.c.b16 %v6314, %v6301
        %v7498 = vpack.c.b16 %v6315, %v6302
        %v7499 = vpack.c.b16 %v6316, %v6303
        %v7500 = vpack.c.b16 %v6317, %v6304
        %v7501 = vpack.c.b16 %v6318, %v6305
        %v7502 = vpack.c.b16 %v6319, %v6306
        %v7503 = vpack.c.b16 %v6320, %v6307
        %v7504 = vpack.c.b16 %v6321, %v6308
        %v7505 = vpack.c.b16 %v6322, %v6309
        %v7506 = vpack.c.b16 %v6323, %v6310
        %v7507 = vpack.c.b16 %v6324, %v6311
        %v7508 = vpack.c.b16 %v6338, %v6325
        %v7509 = vpack.c.b16 %v6339, %v6326
        %v7510 = vpack.c.b16 %v6340, %v6327
        %v7511 = vpack.c.b16 %v6341, %v6328
        %v7512 = vpack.c.b16 %v6342, %v6329
        %v7513 = vpack.c.b16 %v6343, %v6330
        %v7514 = vpack.c.b16 %v6344, %v6331
        %v7515 = vpack.c.b16 %v6345, %v6332
        %v7516 = vpack.c.b16 %v6346, %v6333
        %v7517 = vpack.c.b16 %v6347, %v6334
        %v7518 = vpack.c.b16 %v6348, %v6335
        %v7519 = vpack.c.b16 %v6349, %v6336
        %v7520 = vpack.c.b16 %v6350, %v6337
        %v7521 = vpack.c.b16 %v6364, %v6351
        %v7522 = vpack.c.b16 %v6365, %v6352
        %v7523 = vpack.c.b16 %v6366, %v6353
        %v7524 = vpack.c.b16 %v6367, %v6354
        %v7525 = vpack.c.b16 %v6368, %v6355
        %v7526 = vpack.c.b16 %v6369, %v6356
        %v7527 = vpack.c.b16 %v6370, %v6357
        %v7528 = vpack.c.b16 %v6371, %v6358
        %v7529 = vpack.c.b16 %v6372, %v6359
        %v7530 = vpack.c.b16 %v6373, %v6360
        %v7531 = vpack.c.b16 %v6374, %v6361
        %v7532 = vpack.c.b16 %v6375, %v6362
        %v7533 = vpack.c.b16 %v6376, %v6363
        %v7534 = vpack.c.b16 %v6390, %v6377
        %v7535 = vpack.c.b16 %v6391, %v6378
        %v7536 = vpack.c.b16 %v6392, %v6379
        %v7537 = vpack.c.b16 %v6393, %v6380
        %v7538 = vpack.c.b16 %v6394, %v6381
        %v7539 = vpack.c.b16 %v6395, %v6382
        %v7540 = vpack.c.b16 %v6396, %v6383
        %v7541 = vpack.c.b16 %v6397, %v6384
        %v7542 = vpack.c.b16 %v6398, %v6385
        %v7543 = vpack.c.b16 %v6399, %v6386
        %v7544 = vpack.c.b16 %v6400, %v6387
        %v7545 = vpack.c.b16 %v6401, %v6388
        %v7546 = vpack.c.b16 %v6402, %v6389
        %v7547 = vpack.c.b16 %v6416, %v6403
        %v7548 = vpack.c.b16 %v6417, %v6404
        %v7549 = vpack.c.b16 %v6418, %v6405
        %v7550 = vpack.c.b16 %v6419, %v6406
        %v7551 = vpack.c.b16 %v6420, %v6407
        %v7552 = vpack.c.b16 %v6421, %v6408
        %v7553 = vpack.c.b16 %v6422, %v6409
        %v7554 = vpack.c.b16 %v6423, %v6410
        %v7555 = vpack.c.b16 %v6424, %v6411
        %v7556 = vpack.c.b16 %v6425, %v6412
        %v7557 = vpack.c.b16 %v6426, %v6413
        %v7558 = vpack.c.b16 %v6427, %v6414
        %v7559 = vpack.c.b16 %v6428, %v6415
        %v7560 = vpack.c.b16 %v6442, %v6429
        %v7561 = vpack.c.b16 %v6443, %v6430
        %v7562 = vpack.c.b16 %v6444, %v6431
        %v7563 = vpack.c.b16 %v6445, %v6432
        %v7564 = vpack.c.b16 %v6446, %v6433
        %v7565 = vpack.c.b16 %v6447, %v6434
        %v7566 = vpack.c.b16 %v6448, %v6435
        %v7567 = vpack.c.b16 %v6449, %v6436
        %v7568 = vpack.c.b16 %v6450, %v6437
        %v7569 = vpack.c.b16 %v6451, %v6438
        %v7570 = vpack.c.b16 %v6452, %v6439
        %v7571 = vpack.c.b16 %v6453, %v6440
        %v7572 = vpack.c.b16 %v6454, %v6441
        %v7573 = vpack.c.b16 %v6468, %v6455
        %v7574 = vpack.c.b16 %v6469, %v6456
        %v7575 = vpack.c.b16 %v6470, %v6457
        %v7576 = vpack.c.b16 %v6471, %v6458
        %v7577 = vpack.c.b16 %v6472, %v6459
        %v7578 = vpack.c.b16 %v6473, %v6460
        %v7579 = vpack.c.b16 %v6474, %v6461
        %v7580 = vpack.c.b16 %v6475, %v6462
        %v7581 = vpack.c.b16 %v6476, %v6463
        %v7582 = vpack.c.b16 %v6477, %v6464
        %v7583 = vpack.c.b16 %v6478, %v6465
        %v7584 = vpack.c.b16 %v6479, %v6466
        %v7585 = vpack.c.b16 %v6480, %v6467
        %v7586 = vpack.c.b16 %v6494, %v6481
        %v7587 = vpack.c.b16 %v6495, %v6482
        %v7588 = vpack.c.b16 %v6496, %v6483
        %v7589 = vpack.c.b16 %v6497, %v6484
        %v7590 = vpack.c.b16 %v6498, %v6485
        %v7591 = vpack.c.b16 %v6499, %v6486
        %v7592 = vpack.c.b16 %v6500, %v6487
        %v7593 = vpack.c.b16 %v6501, %v6488
        %v7594 = vpack.c.b16 %v6502, %v6489
        %v7595 = vpack.c.b16 %v6503, %v6490
        %v7596 = vpack.c.b16 %v6504, %v6491
        %v7597 = vpack.c.b16 %v6505, %v6492
        %v7598 = vpack.c.b16 %v6506, %v6493
        %v7599 = vpack.c.b16 %v6520, %v6507
        %v7600 = vpack.c.b16 %v6521, %v6508
        %v7601 = vpack.c.b16 %v6522, %v6509
        %v7602 = vpack.c.b16 %v6523, %v6510
        %v7603 = vpack.c.b16 %v6524, %v6511
        %v7604 = vpack.c.b16 %v6525, %v6512
        %v7605 = vpack.c.b16 %v6526, %v6513
        %v7606 = vpack.c.b16 %v6527, %v6514
        %v7607 = vpack.c.b16 %v6528, %v6515
        %v7608 = vpack.c.b16 %v6529, %v6516
        %v7609 = vpack.c.b16 %v6530, %v6517
        %v7610 = vpack.c.b16 %v6531, %v6518
        %v7611 = vpack.c.b16 %v6532, %v6519
        %v7612 = vpack.c.b16 %v6546, %v6533
        %v7613 = vpack.c.b16 %v6547, %v6534
        %v7614 = vpack.c.b16 %v6548, %v6535
        %v7615 = vpack.c.b16 %v6549, %v6536
        %v7616 = vpack.c.b16 %v6550, %v6537
        %v7617 = vpack.c.b16 %v6551, %v6538
        %v7618 = vpack.c.b16 %v6552, %v6539
        %v7619 = vpack.c.b16 %v6553, %v6540
        %v7620 = vpack.c.b16 %v6554, %v6541
        %v7621 = vpack.c.b16 %v6555, %v6542
        %v7622 = vpack.c.b16 %v6556, %v6543
        %v7623 = vpack.c.b16 %v6557, %v6544
        %v7624 = vpack.c.b16 %v6558, %v6545
        %v7625 = vpack.c.b16 %v6572, %v6559
        %v7626 = vpack.c.b16 %v6573, %v6560
        %v7627 = vpack.c.b16 %v6574, %v6561
        %v7628 = vpack.c.b16 %v6575, %v6562
        %v7629 = vpack.c.b16 %v6576, %v6563
        %v7630 = vpack.c.b16 %v6577, %v6564
        %v7631 = vpack.c.b16 %v6578, %v6565
        %v7632 = vpack.c.b16 %v6579, %v6566
        %v7633 = vpack.c.b16 %v6580, %v6567
        %v7634 = vpack.c.b16 %v6581, %v6568
        %v7635 = vpack.c.b16 %v6582, %v6569
        %v7636 = vpack.c.b16 %v6583, %v6570
        %v7637 = vpack.c.b16 %v6584, %v6571
        %v7638 = vpack.c.b16 %v6598, %v6585
        %v7639 = vpack.c.b16 %v6599, %v6586
        %v7640 = vpack.c.b16 %v6600, %v6587
        %v7641 = vpack.c.b16 %v6601, %v6588
        %v7642 = vpack.c.b16 %v6602, %v6589
        %v7643 = vpack.c.b16 %v6603, %v6590
        %v7644 = vpack.c.b16 %v6604, %v6591
        %v7645 = vpack.c.b16 %v6605, %v6592
        %v7646 = vpack.c.b16 %v6606, %v6593
        %v7647 = vpack.c.b16 %v6607, %v6594
        %v7648 = vpack.c.b16 %v6608, %v6595
        %v7649 = vpack.c.b16 %v6609, %v6596
        %v7650 = vpack.c.b16 %v6610, %v6597
        %v7651 = vpack.c.b16 %v6624, %v6611
        %v7652 = vpack.c.b16 %v6625, %v6612
        %v7653 = vpack.c.b16 %v6626, %v6613
        %v7654 = vpack.c.b16 %v6627, %v6614
        %v7655 = vpack.c.b16 %v6628, %v6615
        %v7656 = vpack.c.b16 %v6629, %v6616
        %v7657 = vpack.c.b16 %v6630, %v6617
        %v7658 = vpack.c.b16 %v6631, %v6618
        %v7659 = vpack.c.b16 %v6632, %v6619
        %v7660 = vpack.c.b16 %v6633, %v6620
        %v7661 = vpack.c.b16 %v6634, %v6621
        %v7662 = vpack.c.b16 %v6635, %v6622
        %v7663 = vpack.c.b16 %v6636, %v6623
        %v7664 = vpack.c.b16 %v6650, %v6637
        %v7665 = vpack.c.b16 %v6651, %v6638
        %v7666 = vpack.c.b16 %v6652, %v6639
        %v7667 = vpack.c.b16 %v6653, %v6640
        %v7668 = vpack.c.b16 %v6654, %v6641
        %v7669 = vpack.c.b16 %v6655, %v6642
        %v7670 = vpack.c.b16 %v6656, %v6643
        %v7671 = vpack.c.b16 %v6657, %v6644
        %v7672 = vpack.c.b16 %v6658, %v6645
        %v7673 = vpack.c.b16 %v6659, %v6646
        %v7674 = vpack.c.b16 %v6660, %v6647
        %v7675 = vpack.c.b16 %v6661, %v6648
        %v7676 = vpack.c.b16 %v6662, %v6649
        %v7677 = vpack.c.b16 %v6676, %v6663
        %v7678 = vpack.c.b16 %v6677, %v6664
        %v7679 = vpack.c.b16 %v6678, %v6665
        %v7680 = vpack.c.b16 %v6679, %v6666
        %v7681 = vpack.c.b16 %v6680, %v6667
        %v7682 = vpack.c.b16 %v6681, %v6668
        %v7683 = vpack.c.b16 %v6682, %v6669
        %v7684 = vpack.c.b16 %v6683, %v6670
        %v7685 = vpack.c.b16 %v6684, %v6671
        %v7686 = vpack.c.b16 %v6685, %v6672
        %v7687 = vpack.c.b16 %v6686, %v6673
        %v7688 = vpack.c.b16 %v6687, %v6674
        %v7689 = vpack.c.b16 %v6688, %v6675
        %v7690 = vpack.c.b16 %v6702, %v6689
        %v7691 = vpack.c.b16 %v6703, %v6690
        %v7692 = vpack.c.b16 %v6704, %v6691
        %v7693 = vpack.c.b16 %v6705, %v6692
        %v7694 = vpack.c.b16 %v6706, %v6693
        %v7695 = vpack.c.b16 %v6707, %v6694
        %v7696 = vpack.c.b16 %v6708, %v6695
        %v7697 = vpack.c.b16 %v6709, %v6696
        %v7698 = vpack.c.b16 %v6710, %v6697
        %v7699 = vpack.c.b16 %v6711, %v6698
        %v7700 = vpack.c.b16 %v6712, %v6699
        %v7701 = vpack.c.b16 %v6713, %v6700
        %v7702 = vpack.c.b16 %v6714, %v6701
        %v7703 = vpack.c.b16 %v6728, %v6715
        %v7704 = vpack.c.b16 %v6729, %v6716
        %v7705 = vpack.c.b16 %v6730, %v6717
        %v7706 = vpack.c.b16 %v6731, %v6718
        %v7707 = vpack.c.b16 %v6732, %v6719
        %v7708 = vpack.c.b16 %v6733, %v6720
        %v7709 = vpack.c.b16 %v6734, %v6721
        %v7710 = vpack.c.b16 %v6735, %v6722
        %v7711 = vpack.c.b16 %v6736, %v6723
        %v7712 = vpack.c.b16 %v6737, %v6724
        %v7713 = vpack.c.b16 %v6738, %v6725
        %v7714 = vpack.c.b16 %v6739, %v6726
        %v7715 = vpack.c.b16 %v6740, %v6727
        %v7716 = vpack.c.b16 %v6754, %v6741
        %v7717 = vpack.c.b16 %v6755, %v6742
        %v7718 = vpack.c.b16 %v6756, %v6743
        %v7719 = vpack.c.b16 %v6757, %v6744
        %v7720 = vpack.c.b16 %v6758, %v6745
        %v7721 = vpack.c.b16 %v6759, %v6746
        %v7722 = vpack.c.b16 %v6760, %v6747
        %v7723 = vpack.c.b16 %v6761, %v6748
        %v7724 = vpack.c.b16 %v6762, %v6749
        %v7725 = vpack.c.b16 %v6763, %v6750
        %v7726 = vpack.c.b16 %v6764, %v6751
        %v7727 = vpack.c.b16 %v6765, %v6752
        %v7728 = vpack.c.b16 %v6766, %v6753
        %v7729 = vpack.c.b16 %v6780, %v6767
        %v7730 = vpack.c.b16 %v6781, %v6768
        %v7731 = vpack.c.b16 %v6782, %v6769
        %v7732 = vpack.c.b16 %v6783, %v6770
        %v7733 = vpack.c.b16 %v6784, %v6771
        %v7734 = vpack.c.b16 %v6785, %v6772
        %v7735 = vpack.c.b16 %v6786, %v6773
        %v7736 = vpack.c.b16 %v6787, %v6774
        %v7737 = vpack.c.b16 %v6788, %v6775
        %v7738 = vpack.c.b16 %v6789, %v6776
        %v7739 = vpack.c.b16 %v6790, %v6777
        %v7740 = vpack.c.b16 %v6791, %v6778
        %v7741 = vpack.c.b16 %v6792, %v6779
        %v7742 = vpack.c.b16 %v6806, %v6793
        %v7743 = vpack.c.b16 %v6807, %v6794
        %v7744 = vpack.c.b16 %v6808, %v6795
        %v7745 = vpack.c.b16 %v6809, %v6796
        %v7746 = vpack.c.b16 %v6810, %v6797
        %v7747 = vpack.c.b16 %v6811, %v6798
        %v7748 = vpack.c.b16 %v6812, %v6799
        %v7749 = vpack.c.b16 %v6813, %v6800
        %v7750 = vpack.c.b16 %v6814, %v6801
        %v7751 = vpack.c.b16 %v6815, %v6802
        %v7752 = vpack.c.b16 %v6816, %v6803
        %v7753 = vpack.c.b16 %v6817, %v6804
        %v7754 = vpack.c.b16 %v6818, %v6805
        %8691 = vmatprep.subr.bf16.mxu0 %v6820
        %8692 = vmatpush1.bf16.msra.mxu0 %v6819
        %8693 = vmatprep.subr.bf16.mxu0 %v6833
        %8694 = vmatpush1.bf16.msra.mxu0 %v6832
        %8695 = vmatprep.subr.bf16.mxu0 %v6846
        %8696 = vmatpush1.bf16.msra.mxu0 %v6845
        %8697 = vmatprep.subr.bf16.mxu0 %v6859
        %8698 = vmatpush1.bf16.msra.mxu0 %v6858
        %8699 = vmatprep.subr.bf16.mxu0 %v6872
        %8700 = vmatpush1.bf16.msra.mxu0 %v6871
        %8701 = vmatprep.subr.bf16.mxu0 %v6885
        %8702 = vmatpush1.bf16.msra.mxu0 %v6884
        %8703 = vmatprep.subr.bf16.mxu0 %v6898
        %8704 = vmatpush1.bf16.msra.mxu0 %v6897
        %8705 = vmatprep.subr.bf16.mxu0 %v6911
        %8706 = vmatpush1.bf16.msra.mxu0 %v6910
        %8707 = vmatprep.subr.bf16.mxu0 %v6924
        %8708 = vmatpush1.bf16.msra.mxu0 %v6923
        %8709 = vmatprep.subr.bf16.mxu0 %v6937
        %8710 = vmatpush1.bf16.msra.mxu0 %v6936
        %8711 = vmatprep.subr.bf16.mxu0 %v6950
        %8712 = vmatpush1.bf16.msra.mxu0 %v6949
        %8713 = vmatprep.subr.bf16.mxu0 %v6963
        %8714 = vmatpush1.bf16.msra.mxu0 %v6962
        %8715 = vmatprep.subr.bf16.mxu0 %v6976
        %8716 = vmatpush1.bf16.msra.mxu0 %v6975
        %8717 = vmatprep.subr.bf16.mxu0 %v6989
        %8718 = vmatpush1.bf16.msra.mxu0 %v6988
        %8719 = vmatprep.subr.bf16.mxu0 %v7002
        %8720 = vmatpush1.bf16.msra.mxu0 %v7001
        %8721 = vmatprep.subr.bf16.mxu0 %v7015
        %8722 = vmatpush1.bf16.msra.mxu0 %v7014
        %8723 = vmatprep.mubr.bf16.mxu0 %v2854
        %8724 = vmatmul.mubr.bf16.gmra.mrb[0].mxu0 %v2853
        %v8725 = vpop.f32.mrb[0].mxu0
        %v8726 = vadd.f32 %v3877, %v8725
        %v8727 = vpop.f32.mrb[0].mxu0
        %v8728 = vadd.f32 %v3881, %v8727
        %v8729 = vpop.f32.mrb[0].mxu0
        %v8730 = vpop.f32.mrb[0].mxu0
        %8731 = vdwg.mxu0
        %8732 = vmatprep.subr.bf16.mxu0 %v7028
        %8733 = vmatpush1.bf16.msra.mxu0 %v7027
        %8734 = vmatprep.subr.bf16.mxu0 %v7041
        %8735 = vmatpush1.bf16.msra.mxu0 %v7040
        %8736 = vmatprep.subr.bf16.mxu0 %v7054
        %8737 = vmatpush1.bf16.msra.mxu0 %v7053
        %8738 = vmatprep.subr.bf16.mxu0 %v7067
        %8739 = vmatpush1.bf16.msra.mxu0 %v7066
        %8740 = vmatprep.subr.bf16.mxu0 %v7080
        %8741 = vmatpush1.bf16.msra.mxu0 %v7079
        %8742 = vmatprep.subr.bf16.mxu0 %v7093
        %8743 = vmatpush1.bf16.msra.mxu0 %v7092
        %8744 = vmatprep.subr.bf16.mxu0 %v7106
        %8745 = vmatpush1.bf16.msra.mxu0 %v7105
        %8746 = vmatprep.subr.bf16.mxu0 %v7119
        %8747 = vmatpush1.bf16.msra.mxu0 %v7118
        %8748 = vmatprep.subr.bf16.mxu0 %v7132
        %8749 = vmatpush1.bf16.msra.mxu0 %v7131
        %8750 = vmatprep.subr.bf16.mxu0 %v7145
        %8751 = vmatpush1.bf16.msra.mxu0 %v7144
        %8752 = vmatprep.subr.bf16.mxu0 %v7158
        %8753 = vmatpush1.bf16.msra.mxu0 %v7157
        %8754 = vmatprep.subr.bf16.mxu0 %v7171
        %8755 = vmatpush1.bf16.msra.mxu0 %v7170
        %8756 = vmatprep.subr.bf16.mxu0 %v7184
        %8757 = vmatpush1.bf16.msra.mxu0 %v7183
        %8758 = vmatprep.subr.bf16.mxu0 %v7197
        %8759 = vmatpush1.bf16.msra.mxu0 %v7196
        %8760 = vmatprep.subr.bf16.mxu0 %v7210
        %8761 = vmatpush1.bf16.msra.mxu0 %v7209
        %8762 = vmatprep.subr.bf16.mxu0 %v7223
        %8763 = vmatpush1.bf16.msra.mxu0 %v7222
        %8764 = vmatprep.mubr.bf16.mxu0 %v2856
        %8765 = vmatmul.mubr.bf16.gmra.mrb[0].mxu0 %v2855
        %v8766 = vpop.f32.mrb[0].mxu0
        %v8767 = vadd.f32 %v8726, %v8766
        %v8768 = vpop.f32.mrb[0].mxu0
        %v8769 = vadd.f32 %v8728, %v8768
        %v8770 = vpop.f32.mrb[0].mxu0
        %v8771 = vpop.f32.mrb[0].mxu0
        %8772 = vdwg.mxu0
        %8773 = vmatprep.subr.bf16.mxu0 %v7236
        %8774 = vmatpush1.bf16.msra.mxu0 %v7235
        %8775 = vmatprep.subr.bf16.mxu0 %v7249
        %8776 = vmatpush1.bf16.msra.mxu0 %v7248
        %8777 = vmatprep.subr.bf16.mxu0 %v7262
        %8778 = vmatpush1.bf16.msra.mxu0 %v7261
        %8779 = vmatprep.subr.bf16.mxu0 %v7275
        %8780 = vmatpush1.bf16.msra.mxu0 %v7274
        %8781 = vmatprep.subr.bf16.mxu0 %v7288
        %8782 = vmatpush1.bf16.msra.mxu0 %v7287
        %8783 = vmatprep.subr.bf16.mxu0 %v7301
        %8784 = vmatpush1.bf16.msra.mxu0 %v7300
        %8785 = vmatprep.subr.bf16.mxu0 %v7314
        %8786 = vmatpush1.bf16.msra.mxu0 %v7313
        %8787 = vmatprep.subr.bf16.mxu0 %v7327
        %8788 = vmatpush1.bf16.msra.mxu0 %v7326
        %8789 = vmatprep.subr.bf16.mxu0 %v7340
        %8790 = vmatpush1.bf16.msra.mxu0 %v7339
        %8791 = vmatprep.subr.bf16.mxu0 %v7353
        %8792 = vmatpush1.bf16.msra.mxu0 %v7352
        %8793 = vmatprep.subr.bf16.mxu0 %v7366
        %8794 = vmatpush1.bf16.msra.mxu0 %v7365
        %8795 = vmatprep.subr.bf16.mxu0 %v7379
        %8796 = vmatpush1.bf16.msra.mxu0 %v7378
        %8797 = vmatprep.subr.bf16.mxu0 %v7392
        %8798 = vmatpush1.bf16.msra.mxu0 %v7391
        %8799 = vmatprep.subr.bf16.mxu0 %v7405
        %8800 = vmatpush1.bf16.msra.mxu0 %v7404
        %8801 = vmatprep.subr.bf16.mxu0 %v7418
        %8802 = vmatpush1.bf16.msra.mxu0 %v7417
        %8803 = vmatprep.subr.bf16.mxu0 %v7431
        %8804 = vmatpush1.bf16.msra.mxu0 %v7430
        %8805 = vmatprep.mubr.bf16.mxu0 %v2858
        %8806 = vmatmul.mubr.bf16.gmra.mrb[0].mxu0 %v2857
        %v8807 = vpop.f32.mrb[0].mxu0
        %v8808 = vadd.f32 %v8767, %v8807
        %v8809 = vpop.f32.mrb[0].mxu0
        %v8810 = vadd.f32 %v8769, %v8809
        %v8811 = vpop.f32.mrb[0].mxu0
        %v8812 = vpop.f32.mrb[0].mxu0
        %8813 = vdwg.mxu0
        %8814 = vmatprep.subr.bf16.mxu0 %v7444
        %8815 = vmatpush1.bf16.msra.mxu0 %v7443
        %8816 = vmatprep.subr.bf16.mxu0 %v7457
        %8817 = vmatpush1.bf16.msra.mxu0 %v7456
        %8818 = vmatprep.subr.bf16.mxu0 %v7470
        %8819 = vmatpush1.bf16.msra.mxu0 %v7469
        %8820 = vmatprep.subr.bf16.mxu0 %v7483
        %8821 = vmatpush1.bf16.msra.mxu0 %v7482
        %8822 = vmatprep.subr.bf16.mxu0 %v7496
        %8823 = vmatpush1.bf16.msra.mxu0 %v7495
        %8824 = vmatprep.subr.bf16.mxu0 %v7509
        %8825 = vmatpush1.bf16.msra.mxu0 %v7508
        %8826 = vmatprep.subr.bf16.mxu0 %v7522
        %8827 = vmatpush1.bf16.msra.mxu0 %v7521
        %8828 = vmatprep.subr.bf16.mxu0 %v7535
        %8829 = vmatpush1.bf16.msra.mxu0 %v7534
        %8830 = vmatprep.subr.bf16.mxu0 %v7548
        %8831 = vmatpush1.bf16.msra.mxu0 %v7547
        %8832 = vmatprep.subr.bf16.mxu0 %v7561
        %8833 = vmatpush1.bf16.msra.mxu0 %v7560
        %8834 = vmatprep.subr.bf16.mxu0 %v7574
        %8835 = vmatpush1.bf16.msra.mxu0 %v7573
        %8836 = vmatprep.subr.bf16.mxu0 %v7587
        %8837 = vmatpush1.bf16.msra.mxu0 %v7586
        %8838 = vmatprep.subr.bf16.mxu0 %v7600
        %8839 = vmatpush1.bf16.msra.mxu0 %v7599
        %8840 = vmatprep.subr.bf16.mxu0 %v7613
        %8841 = vmatpush1.bf16.msra.mxu0 %v7612
        %8842 = vmatprep.subr.bf16.mxu0 %v7626
        %8843 = vmatpush1.bf16.msra.mxu0 %v7625
        %8844 = vmatprep.subr.bf16.mxu0 %v7639
        %8845 = vmatpush1.bf16.msra.mxu0 %v7638
        %8846 = vmatprep.mubr.bf16.mxu0 %v2860
        %8847 = vmatmul.mubr.bf16.gmra.mrb[0].mxu0 %v2859
        %v8848 = vpop.f32.mrb[0].mxu0
        %v8849 = vadd.f32 %v8808, %v8848
        %v8850 = vpop.f32.mrb[0].mxu0
        %v8851 = vadd.f32 %v8810, %v8850
        %v8852 = vpop.f32.mrb[0].mxu0
        %v8853 = vpop.f32.mrb[0].mxu0
        %8854 = vdwg.mxu0
        %8855 = vmatprep.subr.bf16.mxu0 %v7652
        %8856 = vmatpush1.bf16.msra.mxu0 %v7651
        %8857 = vmatprep.subr.bf16.mxu0 %v7665
        %8858 = vmatpush1.bf16.msra.mxu0 %v7664
        %8859 = vmatprep.subr.bf16.mxu0 %v7678
        %8860 = vmatpush1.bf16.msra.mxu0 %v7677
        %8861 = vmatprep.subr.bf16.mxu0 %v7691
        %8862 = vmatpush1.bf16.msra.mxu0 %v7690
        %8863 = vmatprep.subr.bf16.mxu0 %v7704
        %8864 = vmatpush1.bf16.msra.mxu0 %v7703
        %8865 = vmatprep.subr.bf16.mxu0 %v7717
        %8866 = vmatpush1.bf16.msra.mxu0 %v7716
        %8867 = vmatprep.subr.bf16.mxu0 %v7730
        %8868 = vmatpush1.bf16.msra.mxu0 %v7729
        %8869 = vmatprep.subr.bf16.mxu0 %v7743
        %8870 = vmatpush1.bf16.msra.mxu0 %v7742
        %8871 = vmatprep.subr.bf16.mxu0 0
        %8872 = vmatpush1.bf16.msra.mxu0 0
        %8873 = vmatprep.subr.bf16.mxu0 0
        %8874 = vmatpush1.bf16.msra.mxu0 0
        %8875 = vmatprep.subr.bf16.mxu0 0
        %8876 = vmatpush1.bf16.msra.mxu0 0
        %8877 = vmatprep.subr.bf16.mxu0 0
        %8878 = vmatpush1.bf16.msra.mxu0 0
        %8879 = vmatprep.subr.bf16.mxu0 0
        %8880 = vmatpush1.bf16.msra.mxu0 0
        %8881 = vmatprep.subr.bf16.mxu0 0
        %8882 = vmatpush1.bf16.msra.mxu0 0
        %8883 = vmatprep.subr.bf16.mxu0 0
        %8884 = vmatpush1.bf16.msra.mxu0 0
        %8885 = vmatprep.subr.bf16.mxu0 0
        %8886 = vmatpush1.bf16.msra.mxu0 0
        %8887 = vmatprep.mubr.bf16.mxu0 0
        %8888 = vmatmul.mubr.bf16.gmra.mrb[0].mxu0 %v2861
        %v8889 = vpop.f32.mrb[0].mxu0
        %v8890 = vadd.f32 %v8849, %v8889
        %v8891 = vpop.f32.mrb[0].mxu0
        %v8892 = vadd.f32 %v8851, %v8891
        %v8893 = vpop.f32.mrb[0].mxu0
        %v8894 = vpop.f32.mrb[0].mxu0
        %8895 = vdwg.mxu0
        %8896 = vmatprep.subr.bf16.mxu0 %v6822
        %8897 = vmatpush1.bf16.msra.mxu0 %v6821
        %8898 = vmatprep.subr.bf16.mxu0 %v6835
        %8899 = vmatpush1.bf16.msra.mxu0 %v6834
        %8900 = vmatprep.subr.bf16.mxu0 %v6848
        %8901 = vmatpush1.bf16.msra.mxu0 %v6847
        %8902 = vmatprep.subr.bf16.mxu0 %v6861
        %8903 = vmatpush1.bf16.msra.mxu0 %v6860
        %8904 = vmatprep.subr.bf16.mxu0 %v6874
        %8905 = vmatpush1.bf16.msra.mxu0 %v6873
        %8906 = vmatprep.subr.bf16.mxu0 %v6887
        %8907 = vmatpush1.bf16.msra.mxu0 %v6886
        %8908 = vmatprep.subr.bf16.mxu0 %v6900
        %8909 = vmatpush1.bf16.msra.mxu0 %v6899
        %8910 = vmatprep.subr.bf16.mxu0 %v6913
        %8911 = vmatpush1.bf16.msra.mxu0 %v6912
        %8912 = vmatprep.subr.bf16.mxu0 %v6926
        %8913 = vmatpush1.bf16.msra.mxu0 %v6925
        %8914 = vmatprep.subr.bf16.mxu0 %v6939
        %8915 = vmatpush1.bf16.msra.mxu0 %v6938
        %8916 = vmatprep.subr.bf16.mxu0 %v6952
        %8917 = vmatpush1.bf16.msra.mxu0 %v6951
        %8918 = vmatprep.subr.bf16.mxu0 %v6965
        %8919 = vmatpush1.bf16.msra.mxu0 %v6964
        %8920 = vmatprep.subr.bf16.mxu0 %v6978
        %8921 = vmatpush1.bf16.msra.mxu0 %v6977
        %8922 = vmatprep.subr.bf16.mxu0 %v6991
        %8923 = vmatpush1.bf16.msra.mxu0 %v6990
        %8924 = vmatprep.subr.bf16.mxu0 %v7004
        %8925 = vmatpush1.bf16.msra.mxu0 %v7003
        %8926 = vmatprep.subr.bf16.mxu0 %v7017
        %8927 = vmatpush1.bf16.msra.mxu0 %v7016
        %8928 = vmatprep.mubr.bf16.mxu0 %v2854
        %8929 = vmatmul.mubr.bf16.gmra.mrb[0].mxu0 %v2853
        %v8930 = vpop.f32.mrb[0].mxu0
        %v8931 = vadd.f32 %v3885, %v8930
        %v8932 = vpop.f32.mrb[0].mxu0
        %v8933 = vadd.f32 %v3889, %v8932
        %v8934 = vpop.f32.mrb[0].mxu0
        %v8935 = vpop.f32.mrb[0].mxu0
        %8936 = vdwg.mxu0
        %8937 = vmatprep.subr.bf16.mxu0 %v7030
        %8938 = vmatpush1.bf16.msra.mxu0 %v7029
        %8939 = vmatprep.subr.bf16.mxu0 %v7043
        %8940 = vmatpush1.bf16.msra.mxu0 %v7042
        %8941 = vmatprep.subr.bf16.mxu0 %v7056
        %8942 = vmatpush1.bf16.msra.mxu0 %v7055
        %8943 = vmatprep.subr.bf16.mxu0 %v7069
        %8944 = vmatpush1.bf16.msra.mxu0 %v7068
        %8945 = vmatprep.subr.bf16.mxu0 %v7082
        %8946 = vmatpush1.bf16.msra.mxu0 %v7081
        %8947 = vmatprep.subr.bf16.mxu0 %v7095
        %8948 = vmatpush1.bf16.msra.mxu0 %v7094
        %8949 = vmatprep.subr.bf16.mxu0 %v7108
        %8950 = vmatpush1.bf16.msra.mxu0 %v7107
        %8951 = vmatprep.subr.bf16.mxu0 %v7121
        %8952 = vmatpush1.bf16.msra.mxu0 %v7120
        %8953 = vmatprep.subr.bf16.mxu0 %v7134
        %8954 = vmatpush1.bf16.msra.mxu0 %v7133
        %8955 = vmatprep.subr.bf16.mxu0 %v7147
        %8956 = vmatpush1.bf16.msra.mxu0 %v7146
        %8957 = vmatprep.subr.bf16.mxu0 %v7160
        %8958 = vmatpush1.bf16.msra.mxu0 %v7159
        %8959 = vmatprep.subr.bf16.mxu0 %v7173
        %8960 = vmatpush1.bf16.msra.mxu0 %v7172
        %8961 = vmatprep.subr.bf16.mxu0 %v7186
        %8962 = vmatpush1.bf16.msra.mxu0 %v7185
        %8963 = vmatprep.subr.bf16.mxu0 %v7199
        %8964 = vmatpush1.bf16.msra.mxu0 %v7198
        %8965 = vmatprep.subr.bf16.mxu0 %v7212
        %8966 = vmatpush1.bf16.msra.mxu0 %v7211
        %8967 = vmatprep.subr.bf16.mxu0 %v7225
        %8968 = vmatpush1.bf16.msra.mxu0 %v7224
        %8969 = vmatprep.mubr.bf16.mxu0 %v2856
        %8970 = vmatmul.mubr.bf16.gmra.mrb[0].mxu0 %v2855
        %v8971 = vpop.f32.mrb[0].mxu0
        %v8972 = vadd.f32 %v8931, %v8971
        %v8973 = vpop.f32.mrb[0].mxu0
        %v8974 = vadd.f32 %v8933, %v8973
        %v8975 = vpop.f32.mrb[0].mxu0
        %v8976 = vpop.f32.mrb[0].mxu0
        %8977 = vdwg.mxu0
        %8978 = vmatprep.subr.bf16.mxu0 %v7238
        %8979 = vmatpush1.bf16.msra.mxu0 %v7237
        %8980 = vmatprep.subr.bf16.mxu0 %v7251
        %8981 = vmatpush1.bf16.msra.mxu0 %v7250
        %8982 = vmatprep.subr.bf16.mxu0 %v7264
        %8983 = vmatpush1.bf16.msra.mxu0 %v7263
        %8984 = vmatprep.subr.bf16.mxu0 %v7277
        %8985 = vmatpush1.bf16.msra.mxu0 %v7276
        %8986 = vmatprep.subr.bf16.mxu0 %v7290
        %8987 = vmatpush1.bf16.msra.mxu0 %v7289
        %8988 = vmatprep.subr.bf16.mxu0 %v7303
        %8989 = vmatpush1.bf16.msra.mxu0 %v7302
        %8990 = vmatprep.subr.bf16.mxu0 %v7316
        %8991 = vmatpush1.bf16.msra.mxu0 %v7315
        %8992 = vmatprep.subr.bf16.mxu0 %v7329
        %8993 = vmatpush1.bf16.msra.mxu0 %v7328
        %8994 = vmatprep.subr.bf16.mxu0 %v7342
        %8995 = vmatpush1.bf16.msra.mxu0 %v7341
        %8996 = vmatprep.subr.bf16.mxu0 %v7355
        %8997 = vmatpush1.bf16.msra.mxu0 %v7354
        %8998 = vmatprep.subr.bf16.mxu0 %v7368
        %8999 = vmatpush1.bf16.msra.mxu0 %v7367
        %9000 = vmatprep.subr.bf16.mxu0 %v7381
        %9001 = vmatpush1.bf16.msra.mxu0 %v7380
        %9002 = vmatprep.subr.bf16.mxu0 %v7394
        %9003 = vmatpush1.bf16.msra.mxu0 %v7393
        %9004 = vmatprep.subr.bf16.mxu0 %v7407
        %9005 = vmatpush1.bf16.msra.mxu0 %v7406
        %9006 = vmatprep.subr.bf16.mxu0 %v7420
        %9007 = vmatpush1.bf16.msra.mxu0 %v7419
        %9008 = vmatprep.subr.bf16.mxu0 %v7433
        %9009 = vmatpush1.bf16.msra.mxu0 %v7432
        %9010 = vmatprep.mubr.bf16.mxu0 %v2858
        %9011 = vmatmul.mubr.bf16.gmra.mrb[0].mxu0 %v2857
        %v9012 = vpop.f32.mrb[0].mxu0
        %v9013 = vadd.f32 %v8972, %v9012
        %v9014 = vpop.f32.mrb[0].mxu0
        %v9015 = vadd.f32 %v8974, %v9014
        %v9016 = vpop.f32.mrb[0].mxu0
        %v9017 = vpop.f32.mrb[0].mxu0
        %9018 = vdwg.mxu0
        %9019 = vmatprep.subr.bf16.mxu0 %v7446
        %9020 = vmatpush1.bf16.msra.mxu0 %v7445
        %9021 = vmatprep.subr.bf16.mxu0 %v7459
        %9022 = vmatpush1.bf16.msra.mxu0 %v7458
        %9023 = vmatprep.subr.bf16.mxu0 %v7472
        %9024 = vmatpush1.bf16.msra.mxu0 %v7471
        %9025 = vmatprep.subr.bf16.mxu0 %v7485
        %9026 = vmatpush1.bf16.msra.mxu0 %v7484
        %9027 = vmatprep.subr.bf16.mxu0 %v7498
        %9028 = vmatpush1.bf16.msra.mxu0 %v7497
        %9029 = vmatprep.subr.bf16.mxu0 %v7511
        %9030 = vmatpush1.bf16.msra.mxu0 %v7510
        %9031 = vmatprep.subr.bf16.mxu0 %v7524
        %9032 = vmatpush1.bf16.msra.mxu0 %v7523
        %9033 = vmatprep.subr.bf16.mxu0 %v7537
        %9034 = vmatpush1.bf16.msra.mxu0 %v7536
        %9035 = vmatprep.subr.bf16.mxu0 %v7550
        %9036 = vmatpush1.bf16.msra.mxu0 %v7549
        %9037 = vmatprep.subr.bf16.mxu0 %v7563
        %9038 = vmatpush1.bf16.msra.mxu0 %v7562
        %9039 = vmatprep.subr.bf16.mxu0 %v7576
        %9040 = vmatpush1.bf16.msra.mxu0 %v7575
        %9041 = vmatprep.subr.bf16.mxu0 %v7589
        %9042 = vmatpush1.bf16.msra.mxu0 %v7588
        %9043 = vmatprep.subr.bf16.mxu0 %v7602
        %9044 = vmatpush1.bf16.msra.mxu0 %v7601
        %9045 = vmatprep.subr.bf16.mxu0 %v7615
        %9046 = vmatpush1.bf16.msra.mxu0 %v7614
        %9047 = vmatprep.subr.bf16.mxu0 %v7628
        %9048 = vmatpush1.bf16.msra.mxu0 %v7627
        %9049 = vmatprep.subr.bf16.mxu0 %v7641
        %9050 = vmatpush1.bf16.msra.mxu0 %v7640
        %9051 = vmatprep.mubr.bf16.mxu0 %v2860
        %9052 = vmatmul.mubr.bf16.gmra.mrb[0].mxu0 %v2859
        %v9053 = vpop.f32.mrb[0].mxu0
        %v9054 = vadd.f32 %v9013, %v9053
        %v9055 = vpop.f32.mrb[0].mxu0
        %v9056 = vadd.f32 %v9015, %v9055
        %v9057 = vpop.f32.mrb[0].mxu0
        %v9058 = vpop.f32.mrb[0].mxu0
        %9059 = vdwg.mxu0
        %9060 = vmatprep.subr.bf16.mxu0 %v7654
        %9061 = vmatpush1.bf16.msra.mxu0 %v7653
        %9062 = vmatprep.subr.bf16.mxu0 %v7667
        %9063 = vmatpush1.bf16.msra.mxu0 %v7666
        %9064 = vmatprep.subr.bf16.mxu0 %v7680
        %9065 = vmatpush1.bf16.msra.mxu0 %v7679
        %9066 = vmatprep.subr.bf16.mxu0 %v7693
        %9067 = vmatpush1.bf16.msra.mxu0 %v7692
        %9068 = vmatprep.subr.bf16.mxu0 %v7706
        %9069 = vmatpush1.bf16.msra.mxu0 %v7705
        %9070 = vmatprep.subr.bf16.mxu0 %v7719
        %9071 = vmatpush1.bf16.msra.mxu0 %v7718
        %9072 = vmatprep.subr.bf16.mxu0 %v7732
        %9073 = vmatpush1.bf16.msra.mxu0 %v7731
        %9074 = vmatprep.subr.bf16.mxu0 %v7745
        %9075 = vmatpush1.bf16.msra.mxu0 %v7744
        %9076 = vmatprep.subr.bf16.mxu0 0
        %9077 = vmatpush1.bf16.msra.mxu0 0
        %9078 = vmatprep.subr.bf16.mxu0 0
        %9079 = vmatpush1.bf16.msra.mxu0 0
        %9080 = vmatprep.subr.bf16.mxu0 0
        %9081 = vmatpush1.bf16.msra.mxu0 0
        %9082 = vmatprep.subr.bf16.mxu0 0
        %9083 = vmatpush1.bf16.msra.mxu0 0
        %9084 = vmatprep.subr.bf16.mxu0 0
        %9085 = vmatpush1.bf16.msra.mxu0 0
        %9086 = vmatprep.subr.bf16.mxu0 0
        %9087 = vmatpush1.bf16.msra.mxu0 0
        %9088 = vmatprep.subr.bf16.mxu0 0
        %9089 = vmatpush1.bf16.msra.mxu0 0
        %9090 = vmatprep.subr.bf16.mxu0 0
        %9091 = vmatpush1.bf16.msra.mxu0 0
        %9092 = vmatprep.mubr.bf16.mxu0 0
        %9093 = vmatmul.mubr.bf16.gmra.mrb[0].mxu0 %v2861
        %v9094 = vpop.f32.mrb[0].mxu0
        %v9095 = vadd.f32 %v9054, %v9094
        %v9096 = vpop.f32.mrb[0].mxu0
        %v9097 = vadd.f32 %v9056, %v9096
        %v9098 = vpop.f32.mrb[0].mxu0
        %v9099 = vpop.f32.mrb[0].mxu0
        %9100 = vdwg.mxu0
        %9101 = vmatprep.subr.bf16.mxu0 %v6824
        %9102 = vmatpush1.bf16.msra.mxu0 %v6823
        %9103 = vmatprep.subr.bf16.mxu0 %v6837
        %9104 = vmatpush1.bf16.msra.mxu0 %v6836
        %9105 = vmatprep.subr.bf16.mxu0 %v6850
        %9106 = vmatpush1.bf16.msra.mxu0 %v6849
        %9107 = vmatprep.subr.bf16.mxu0 %v6863
        %9108 = vmatpush1.bf16.msra.mxu0 %v6862
        %9109 = vmatprep.subr.bf16.mxu0 %v6876
        %9110 = vmatpush1.bf16.msra.mxu0 %v6875
        %9111 = vmatprep.subr.bf16.mxu0 %v6889
        %9112 = vmatpush1.bf16.msra.mxu0 %v6888
        %9113 = vmatprep.subr.bf16.mxu0 %v6902
        %9114 = vmatpush1.bf16.msra.mxu0 %v6901
        %9115 = vmatprep.subr.bf16.mxu0 %v6915
        %9116 = vmatpush1.bf16.msra.mxu0 %v6914
        %9117 = vmatprep.subr.bf16.mxu0 %v6928
        %9118 = vmatpush1.bf16.msra.mxu0 %v6927
        %9119 = vmatprep.subr.bf16.mxu0 %v6941
        %9120 = vmatpush1.bf16.msra.mxu0 %v6940
        %9121 = vmatprep.subr.bf16.mxu0 %v6954
        %9122 = vmatpush1.bf16.msra.mxu0 %v6953
        %9123 = vmatprep.subr.bf16.mxu0 %v6967
        %9124 = vmatpush1.bf16.msra.mxu0 %v6966
        %9125 = vmatprep.subr.bf16.mxu0 %v6980
        %9126 = vmatpush1.bf16.msra.mxu0 %v6979
        %9127 = vmatprep.subr.bf16.mxu0 %v6993
        %9128 = vmatpush1.bf16.msra.mxu0 %v6992
        %9129 = vmatprep.subr.bf16.mxu0 %v7006
        %9130 = vmatpush1.bf16.msra.mxu0 %v7005
        %9131 = vmatprep.subr.bf16.mxu0 %v7019
        %9132 = vmatpush1.bf16.msra.mxu0 %v7018
        %9133 = vmatprep.mubr.bf16.mxu0 %v2854
        %9134 = vmatmul.mubr.bf16.gmra.mrb[0].mxu0 %v2853
        %v9135 = vpop.f32.mrb[0].mxu0
        %v9136 = vadd.f32 %v3893, %v9135
        %v9137 = vpop.f32.mrb[0].mxu0
        %v9138 = vadd.f32 %v3897, %v9137
        %v9139 = vpop.f32.mrb[0].mxu0
        %v9140 = vpop.f32.mrb[0].mxu0
        %9141 = vdwg.mxu0
        %9142 = vmatprep.subr.bf16.mxu0 %v7032
        %9143 = vmatpush1.bf16.msra.mxu0 %v7031
        %9144 = vmatprep.subr.bf16.mxu0 %v7045
        %9145 = vmatpush1.bf16.msra.mxu0 %v7044
        %9146 = vmatprep.subr.bf16.mxu0 %v7058
        %9147 = vmatpush1.bf16.msra.mxu0 %v7057
        %9148 = vmatprep.subr.bf16.mxu0 %v7071
        %9149 = vmatpush1.bf16.msra.mxu0 %v7070
        %9150 = vmatprep.subr.bf16.mxu0 %v7084
        %9151 = vmatpush1.bf16.msra.mxu0 %v7083
        %9152 = vmatprep.subr.bf16.mxu0 %v7097
        %9153 = vmatpush1.bf16.msra.mxu0 %v7096
        %9154 = vmatprep.subr.bf16.mxu0 %v7110
        %9155 = vmatpush1.bf16.msra.mxu0 %v7109
        %9156 = vmatprep.subr.bf16.mxu0 %v7123
        %9157 = vmatpush1.bf16.msra.mxu0 %v7122
        %9158 = vmatprep.subr.bf16.mxu0 %v7136
        %9159 = vmatpush1.bf16.msra.mxu0 %v7135
        %9160 = vmatprep.subr.bf16.mxu0 %v7149
        %9161 = vmatpush1.bf16.msra.mxu0 %v7148
        %9162 = vmatprep.subr.bf16.mxu0 %v7162
        %9163 = vmatpush1.bf16.msra.mxu0 %v7161
        %9164 = vmatprep.subr.bf16.mxu0 %v7175
        %9165 = vmatpush1.bf16.msra.mxu0 %v7174
        %9166 = vmatprep.subr.bf16.mxu0 %v7188
        %9167 = vmatpush1.bf16.msra.mxu0 %v7187
        %9168 = vmatprep.subr.bf16.mxu0 %v7201
        %9169 = vmatpush1.bf16.msra.mxu0 %v7200
        %9170 = vmatprep.subr.bf16.mxu0 %v7214
        %9171 = vmatpush1.bf16.msra.mxu0 %v7213
        %9172 = vmatprep.subr.bf16.mxu0 %v7227
        %9173 = vmatpush1.bf16.msra.mxu0 %v7226
        %9174 = vmatprep.mubr.bf16.mxu0 %v2856
        %9175 = vmatmul.mubr.bf16.gmra.mrb[0].mxu0 %v2855
        %v9176 = vpop.f32.mrb[0].mxu0
        %v9177 = vadd.f32 %v9136, %v9176
        %v9178 = vpop.f32.mrb[0].mxu0
        %v9179 = vadd.f32 %v9138, %v9178
        %v9180 = vpop.f32.mrb[0].mxu0
        %v9181 = vpop.f32.mrb[0].mxu0
        %9182 = vdwg.mxu0
        %9183 = vmatprep.subr.bf16.mxu0 %v7240
        %9184 = vmatpush1.bf16.msra.mxu0 %v7239
        %9185 = vmatprep.subr.bf16.mxu0 %v7253
        %9186 = vmatpush1.bf16.msra.mxu0 %v7252
        %9187 = vmatprep.subr.bf16.mxu0 %v7266
        %9188 = vmatpush1.bf16.msra.mxu0 %v7265
        %9189 = vmatprep.subr.bf16.mxu0 %v7279
        %9190 = vmatpush1.bf16.msra.mxu0 %v7278
        %9191 = vmatprep.subr.bf16.mxu0 %v7292
        %9192 = vmatpush1.bf16.msra.mxu0 %v7291
        %9193 = vmatprep.subr.bf16.mxu0 %v7305
        %9194 = vmatpush1.bf16.msra.mxu0 %v7304
        %9195 = vmatprep.subr.bf16.mxu0 %v7318
        %9196 = vmatpush1.bf16.msra.mxu0 %v7317
        %9197 = vmatprep.subr.bf16.mxu0 %v7331
        %9198 = vmatpush1.bf16.msra.mxu0 %v7330
        %9199 = vmatprep.subr.bf16.mxu0 %v7344
        %9200 = vmatpush1.bf16.msra.mxu0 %v7343
        %9201 = vmatprep.subr.bf16.mxu0 %v7357
        %9202 = vmatpush1.bf16.msra.mxu0 %v7356
        %9203 = vmatprep.subr.bf16.mxu0 %v7370
        %9204 = vmatpush1.bf16.msra.mxu0 %v7369
        %9205 = vmatprep.subr.bf16.mxu0 %v7383
        %9206 = vmatpush1.bf16.msra.mxu0 %v7382
        %9207 = vmatprep.subr.bf16.mxu0 %v7396
        %9208 = vmatpush1.bf16.msra.mxu0 %v7395
        %9209 = vmatprep.subr.bf16.mxu0 %v7409
        %9210 = vmatpush1.bf16.msra.mxu0 %v7408
        %9211 = vmatprep.subr.bf16.mxu0 %v7422
        %9212 = vmatpush1.bf16.msra.mxu0 %v7421
        %9213 = vmatprep.subr.bf16.mxu0 %v7435
        %9214 = vmatpush1.bf16.msra.mxu0 %v7434
        %9215 = vmatprep.mubr.bf16.mxu0 %v2858
        %9216 = vmatmul.mubr.bf16.gmra.mrb[0].mxu0 %v2857
        %v9217 = vpop.f32.mrb[0].mxu0
        %v9218 = vadd.f32 %v9177, %v9217
        %v9219 = vpop.f32.mrb[0].mxu0
        %v9220 = vadd.f32 %v9179, %v9219
        %v9221 = vpop.f32.mrb[0].mxu0
        %v9222 = vpop.f32.mrb[0].mxu0
        %9223 = vdwg.mxu0
        %9224 = vmatprep.subr.bf16.mxu0 %v7448
        %9225 = vmatpush1.bf16.msra.mxu0 %v7447
        %9226 = vmatprep.subr.bf16.mxu0 %v7461
        %9227 = vmatpush1.bf16.msra.mxu0 %v7460
        %9228 = vmatprep.subr.bf16.mxu0 %v7474
        %9229 = vmatpush1.bf16.msra.mxu0 %v7473
        %9230 = vmatprep.subr.bf16.mxu0 %v7487
        %9231 = vmatpush1.bf16.msra.mxu0 %v7486
        %9232 = vmatprep.subr.bf16.mxu0 %v7500
        %9233 = vmatpush1.bf16.msra.mxu0 %v7499
        %9234 = vmatprep.subr.bf16.mxu0 %v7513
        %9235 = vmatpush1.bf16.msra.mxu0 %v7512
        %9236 = vmatprep.subr.bf16.mxu0 %v7526
        %9237 = vmatpush1.bf16.msra.mxu0 %v7525
        %9238 = vmatprep.subr.bf16.mxu0 %v7539
        %9239 = vmatpush1.bf16.msra.mxu0 %v7538
        %9240 = vmatprep.subr.bf16.mxu0 %v7552
        %9241 = vmatpush1.bf16.msra.mxu0 %v7551
        %9242 = vmatprep.subr.bf16.mxu0 %v7565
        %9243 = vmatpush1.bf16.msra.mxu0 %v7564
        %9244 = vmatprep.subr.bf16.mxu0 %v7578
        %9245 = vmatpush1.bf16.msra.mxu0 %v7577
        %9246 = vmatprep.subr.bf16.mxu0 %v7591
        %9247 = vmatpush1.bf16.msra.mxu0 %v7590
        %9248 = vmatprep.subr.bf16.mxu0 %v7604
        %9249 = vmatpush1.bf16.msra.mxu0 %v7603
        %9250 = vmatprep.subr.bf16.mxu0 %v7617
        %9251 = vmatpush1.bf16.msra.mxu0 %v7616
        %9252 = vmatprep.subr.bf16.mxu0 %v7630
        %9253 = vmatpush1.bf16.msra.mxu0 %v7629
        %9254 = vmatprep.subr.bf16.mxu0 %v7643
        %9255 = vmatpush1.bf16.msra.mxu0 %v7642
        %9256 = vmatprep.mubr.bf16.mxu0 %v2860
        %9257 = vmatmul.mubr.bf16.gmra.mrb[0].mxu0 %v2859
        %v9258 = vpop.f32.mrb[0].mxu0
        %v9259 = vadd.f32 %v9218, %v9258
        %v9260 = vpop.f32.mrb[0].mxu0
        %v9261 = vadd.f32 %v9220, %v9260
        %v9262 = vpop.f32.mrb[0].mxu0
        %v9263 = vpop.f32.mrb[0].mxu0
        %9264 = vdwg.mxu0
        %9265 = vmatprep.subr.bf16.mxu0 %v7656
        %9266 = vmatpush1.bf16.msra.mxu0 %v7655
        %9267 = vmatprep.subr.bf16.mxu0 %v7669
        %9268 = vmatpush1.bf16.msra.mxu0 %v7668
        %9269 = vmatprep.subr.bf16.mxu0 %v7682
        %9270 = vmatpush1.bf16.msra.mxu0 %v7681
        %9271 = vmatprep.subr.bf16.mxu0 %v7695
        %9272 = vmatpush1.bf16.msra.mxu0 %v7694
        %9273 = vmatprep.subr.bf16.mxu0 %v7708
        %9274 = vmatpush1.bf16.msra.mxu0 %v7707
        %9275 = vmatprep.subr.bf16.mxu0 %v7721
        %9276 = vmatpush1.bf16.msra.mxu0 %v7720
        %9277 = vmatprep.subr.bf16.mxu0 %v7734
        %9278 = vmatpush1.bf16.msra.mxu0 %v7733
        %9279 = vmatprep.subr.bf16.mxu0 %v7747
        %9280 = vmatpush1.bf16.msra.mxu0 %v7746
        %9281 = vmatprep.subr.bf16.mxu0 0
        %9282 = vmatpush1.bf16.msra.mxu0 0
        %9283 = vmatprep.subr.bf16.mxu0 0
        %9284 = vmatpush1.bf16.msra.mxu0 0
        %9285 = vmatprep.subr.bf16.mxu0 0
        %9286 = vmatpush1.bf16.msra.mxu0 0
        %9287 = vmatprep.subr.bf16.mxu0 0
        %9288 = vmatpush1.bf16.msra.mxu0 0
        %9289 = vmatprep.subr.bf16.mxu0 0
        %9290 = vmatpush1.bf16.msra.mxu0 0
        %9291 = vmatprep.subr.bf16.mxu0 0
        %9292 = vmatpush1.bf16.msra.mxu0 0
        %9293 = vmatprep.subr.bf16.mxu0 0
        %9294 = vmatpush1.bf16.msra.mxu0 0
        %9295 = vmatprep.subr.bf16.mxu0 0
        %9296 = vmatpush1.bf16.msra.mxu0 0
        %9297 = vmatprep.mubr.bf16.mxu0 0
        %9298 = vmatmul.mubr.bf16.gmra.mrb[0].mxu0 %v2861
        %v9299 = vpop.f32.mrb[0].mxu0
        %v9300 = vadd.f32 %v9259, %v9299
        %v9301 = vpop.f32.mrb[0].mxu0
        %v9302 = vadd.f32 %v9261, %v9301
        %v9303 = vpop.f32.mrb[0].mxu0
        %v9304 = vpop.f32.mrb[0].mxu0
        %9305 = vdwg.mxu0
        %9306 = vmatprep.subr.bf16.mxu0 %v6826
        %9307 = vmatpush1.bf16.msra.mxu0 %v6825
        %9308 = vmatprep.subr.bf16.mxu0 %v6839
        %9309 = vmatpush1.bf16.msra.mxu0 %v6838
        %9310 = vmatprep.subr.bf16.mxu0 %v6852
        %9311 = vmatpush1.bf16.msra.mxu0 %v6851
        %9312 = vmatprep.subr.bf16.mxu0 %v6865
        %9313 = vmatpush1.bf16.msra.mxu0 %v6864
        %9314 = vmatprep.subr.bf16.mxu0 %v6878
        %9315 = vmatpush1.bf16.msra.mxu0 %v6877
        %9316 = vmatprep.subr.bf16.mxu0 %v6891
        %9317 = vmatpush1.bf16.msra.mxu0 %v6890
        %9318 = vmatprep.subr.bf16.mxu0 %v6904
        %9319 = vmatpush1.bf16.msra.mxu0 %v6903
        %9320 = vmatprep.subr.bf16.mxu0 %v6917
        %9321 = vmatpush1.bf16.msra.mxu0 %v6916
        %9322 = vmatprep.subr.bf16.mxu0 %v6930
        %9323 = vmatpush1.bf16.msra.mxu0 %v6929
        %9324 = vmatprep.subr.bf16.mxu0 %v6943
        %9325 = vmatpush1.bf16.msra.mxu0 %v6942
        %9326 = vmatprep.subr.bf16.mxu0 %v6956
        %9327 = vmatpush1.bf16.msra.mxu0 %v6955
        %9328 = vmatprep.subr.bf16.mxu0 %v6969
        %9329 = vmatpush1.bf16.msra.mxu0 %v6968
        %9330 = vmatprep.subr.bf16.mxu0 %v6982
        %9331 = vmatpush1.bf16.msra.mxu0 %v6981
        %9332 = vmatprep.subr.bf16.mxu0 %v6995
        %9333 = vmatpush1.bf16.msra.mxu0 %v6994
        %9334 = vmatprep.subr.bf16.mxu0 %v7008
        %9335 = vmatpush1.bf16.msra.mxu0 %v7007
        %9336 = vmatprep.subr.bf16.mxu0 %v7021
        %9337 = vmatpush1.bf16.msra.mxu0 %v7020
        %9338 = vmatprep.mubr.bf16.mxu0 %v2854
        %9339 = vmatmul.mubr.bf16.gmra.mrb[0].mxu0 %v2853
        %v9340 = vpop.f32.mrb[0].mxu0
        %v9341 = vadd.f32 %v3901, %v9340
        %v9342 = vpop.f32.mrb[0].mxu0
        %v9343 = vadd.f32 %v3905, %v9342
        %v9344 = vpop.f32.mrb[0].mxu0
        %v9345 = vpop.f32.mrb[0].mxu0
        %9346 = vdwg.mxu0
        %9347 = vmatprep.subr.bf16.mxu0 %v7034
        %9348 = vmatpush1.bf16.msra.mxu0 %v7033
        %9349 = vmatprep.subr.bf16.mxu0 %v7047
        %9350 = vmatpush1.bf16.msra.mxu0 %v7046
        %9351 = vmatprep.subr.bf16.mxu0 %v7060
        %9352 = vmatpush1.bf16.msra.mxu0 %v7059
        %9353 = vmatprep.subr.bf16.mxu0 %v7073
        %9354 = vmatpush1.bf16.msra.mxu0 %v7072
        %9355 = vmatprep.subr.bf16.mxu0 %v7086
        %9356 = vmatpush1.bf16.msra.mxu0 %v7085
        %9357 = vmatprep.subr.bf16.mxu0 %v7099
        %9358 = vmatpush1.bf16.msra.mxu0 %v7098
        %9359 = vmatprep.subr.bf16.mxu0 %v7112
        %9360 = vmatpush1.bf16.msra.mxu0 %v7111
        %9361 = vmatprep.subr.bf16.mxu0 %v7125
        %9362 = vmatpush1.bf16.msra.mxu0 %v7124
        %9363 = vmatprep.subr.bf16.mxu0 %v7138
        %9364 = vmatpush1.bf16.msra.mxu0 %v7137
        %9365 = vmatprep.subr.bf16.mxu0 %v7151
        %9366 = vmatpush1.bf16.msra.mxu0 %v7150
        %9367 = vmatprep.subr.bf16.mxu0 %v7164
        %9368 = vmatpush1.bf16.msra.mxu0 %v7163
        %9369 = vmatprep.subr.bf16.mxu0 %v7177
        %9370 = vmatpush1.bf16.msra.mxu0 %v7176
        %9371 = vmatprep.subr.bf16.mxu0 %v7190
        %9372 = vmatpush1.bf16.msra.mxu0 %v7189
        %9373 = vmatprep.subr.bf16.mxu0 %v7203
        %9374 = vmatpush1.bf16.msra.mxu0 %v7202
        %9375 = vmatprep.subr.bf16.mxu0 %v7216
        %9376 = vmatpush1.bf16.msra.mxu0 %v7215
        %9377 = vmatprep.subr.bf16.mxu0 %v7229
        %9378 = vmatpush1.bf16.msra.mxu0 %v7228
        %9379 = vmatprep.mubr.bf16.mxu0 %v2856
        %9380 = vmatmul.mubr.bf16.gmra.mrb[0].mxu0 %v2855
        %v9381 = vpop.f32.mrb[0].mxu0
        %v9382 = vadd.f32 %v9341, %v9381
        %v9383 = vpop.f32.mrb[0].mxu0
        %v9384 = vadd.f32 %v9343, %v9383
        %v9385 = vpop.f32.mrb[0].mxu0
        %v9386 = vpop.f32.mrb[0].mxu0
        %9387 = vdwg.mxu0
        %9388 = vmatprep.subr.bf16.mxu0 %v7242
        %9389 = vmatpush1.bf16.msra.mxu0 %v7241
        %9390 = vmatprep.subr.bf16.mxu0 %v7255
        %9391 = vmatpush1.bf16.msra.mxu0 %v7254
        %9392 = vmatprep.subr.bf16.mxu0 %v7268
        %9393 = vmatpush1.bf16.msra.mxu0 %v7267
        %9394 = vmatprep.subr.bf16.mxu0 %v7281
        %9395 = vmatpush1.bf16.msra.mxu0 %v7280
        %9396 = vmatprep.subr.bf16.mxu0 %v7294
        %9397 = vmatpush1.bf16.msra.mxu0 %v7293
        %9398 = vmatprep.subr.bf16.mxu0 %v7307
        %9399 = vmatpush1.bf16.msra.mxu0 %v7306
        %9400 = vmatprep.subr.bf16.mxu0 %v7320
        %9401 = vmatpush1.bf16.msra.mxu0 %v7319
        %9402 = vmatprep.subr.bf16.mxu0 %v7333
        %9403 = vmatpush1.bf16.msra.mxu0 %v7332
        %9404 = vmatprep.subr.bf16.mxu0 %v7346
        %9405 = vmatpush1.bf16.msra.mxu0 %v7345
        %9406 = vmatprep.subr.bf16.mxu0 %v7359
        %9407 = vmatpush1.bf16.msra.mxu0 %v7358
        %9408 = vmatprep.subr.bf16.mxu0 %v7372
        %9409 = vmatpush1.bf16.msra.mxu0 %v7371
        %9410 = vmatprep.subr.bf16.mxu0 %v7385
        %9411 = vmatpush1.bf16.msra.mxu0 %v7384
        %9412 = vmatprep.subr.bf16.mxu0 %v7398
        %9413 = vmatpush1.bf16.msra.mxu0 %v7397
        %9414 = vmatprep.subr.bf16.mxu0 %v7411
        %9415 = vmatpush1.bf16.msra.mxu0 %v7410
        %9416 = vmatprep.subr.bf16.mxu0 %v7424
        %9417 = vmatpush1.bf16.msra.mxu0 %v7423
        %9418 = vmatprep.subr.bf16.mxu0 %v7437
        %9419 = vmatpush1.bf16.msra.mxu0 %v7436
        %9420 = vmatprep.mubr.bf16.mxu0 %v2858
        %9421 = vmatmul.mubr.bf16.gmra.mrb[0].mxu0 %v2857
        %v9422 = vpop.f32.mrb[0].mxu0
        %v9423 = vadd.f32 %v9382, %v9422
        %v9424 = vpop.f32.mrb[0].mxu0
        %v9425 = vadd.f32 %v9384, %v9424
        %v9426 = vpop.f32.mrb[0].mxu0
        %v9427 = vpop.f32.mrb[0].mxu0
        %9428 = vdwg.mxu0
        %9429 = vmatprep.subr.bf16.mxu0 %v7450
        %9430 = vmatpush1.bf16.msra.mxu0 %v7449
        %9431 = vmatprep.subr.bf16.mxu0 %v7463
        %9432 = vmatpush1.bf16.msra.mxu0 %v7462
        %9433 = vmatprep.subr.bf16.mxu0 %v7476
        %9434 = vmatpush1.bf16.msra.mxu0 %v7475
        %9435 = vmatprep.subr.bf16.mxu0 %v7489
        %9436 = vmatpush1.bf16.msra.mxu0 %v7488
        %9437 = vmatprep.subr.bf16.mxu0 %v7502
        %9438 = vmatpush1.bf16.msra.mxu0 %v7501
        %9439 = vmatprep.subr.bf16.mxu0 %v7515
        %9440 = vmatpush1.bf16.msra.mxu0 %v7514
        %9441 = vmatprep.subr.bf16.mxu0 %v7528
        %9442 = vmatpush1.bf16.msra.mxu0 %v7527
        %9443 = vmatprep.subr.bf16.mxu0 %v7541
        %9444 = vmatpush1.bf16.msra.mxu0 %v7540
        %9445 = vmatprep.subr.bf16.mxu0 %v7554
        %9446 = vmatpush1.bf16.msra.mxu0 %v7553
        %9447 = vmatprep.subr.bf16.mxu0 %v7567
        %9448 = vmatpush1.bf16.msra.mxu0 %v7566
        %9449 = vmatprep.subr.bf16.mxu0 %v7580
        %9450 = vmatpush1.bf16.msra.mxu0 %v7579
        %9451 = vmatprep.subr.bf16.mxu0 %v7593
        %9452 = vmatpush1.bf16.msra.mxu0 %v7592
        %9453 = vmatprep.subr.bf16.mxu0 %v7606
        %9454 = vmatpush1.bf16.msra.mxu0 %v7605
        %9455 = vmatprep.subr.bf16.mxu0 %v7619
        %9456 = vmatpush1.bf16.msra.mxu0 %v7618
        %9457 = vmatprep.subr.bf16.mxu0 %v7632
        %9458 = vmatpush1.bf16.msra.mxu0 %v7631
        %9459 = vmatprep.subr.bf16.mxu0 %v7645
        %9460 = vmatpush1.bf16.msra.mxu0 %v7644
        %9461 = vmatprep.mubr.bf16.mxu0 %v2860
        %9462 = vmatmul.mubr.bf16.gmra.mrb[0].mxu0 %v2859
        %v9463 = vpop.f32.mrb[0].mxu0
        %v9464 = vadd.f32 %v9423, %v9463
        %v9465 = vpop.f32.mrb[0].mxu0
        %v9466 = vadd.f32 %v9425, %v9465
        %v9467 = vpop.f32.mrb[0].mxu0
        %v9468 = vpop.f32.mrb[0].mxu0
        %9469 = vdwg.mxu0
        %9470 = vmatprep.subr.bf16.mxu0 %v7658
        %9471 = vmatpush1.bf16.msra.mxu0 %v7657
        %9472 = vmatprep.subr.bf16.mxu0 %v7671
        %9473 = vmatpush1.bf16.msra.mxu0 %v7670
        %9474 = vmatprep.subr.bf16.mxu0 %v7684
        %9475 = vmatpush1.bf16.msra.mxu0 %v7683
        %9476 = vmatprep.subr.bf16.mxu0 %v7697
        %9477 = vmatpush1.bf16.msra.mxu0 %v7696
        %9478 = vmatprep.subr.bf16.mxu0 %v7710
        %9479 = vmatpush1.bf16.msra.mxu0 %v7709
        %9480 = vmatprep.subr.bf16.mxu0 %v7723
        %9481 = vmatpush1.bf16.msra.mxu0 %v7722
        %9482 = vmatprep.subr.bf16.mxu0 %v7736
        %9483 = vmatpush1.bf16.msra.mxu0 %v7735
        %9484 = vmatprep.subr.bf16.mxu0 %v7749
        %9485 = vmatpush1.bf16.msra.mxu0 %v7748
        %9486 = vmatprep.subr.bf16.mxu0 0
        %9487 = vmatpush1.bf16.msra.mxu0 0
        %9488 = vmatprep.subr.bf16.mxu0 0
        %9489 = vmatpush1.bf16.msra.mxu0 0
        %9490 = vmatprep.subr.bf16.mxu0 0
        %9491 = vmatpush1.bf16.msra.mxu0 0
        %9492 = vmatprep.subr.bf16.mxu0 0
        %9493 = vmatpush1.bf16.msra.mxu0 0
        %9494 = vmatprep.subr.bf16.mxu0 0
        %9495 = vmatpush1.bf16.msra.mxu0 0
        %9496 = vmatprep.subr.bf16.mxu0 0
        %9497 = vmatpush1.bf16.msra.mxu0 0
        %9498 = vmatprep.subr.bf16.mxu0 0
        %9499 = vmatpush1.bf16.msra.mxu0 0
        %9500 = vmatprep.subr.bf16.mxu0 0
        %9501 = vmatpush1.bf16.msra.mxu0 0
        %9502 = vmatprep.mubr.bf16.mxu0 0
        %9503 = vmatmul.mubr.bf16.gmra.mrb[0].mxu0 %v2861
        %v9504 = vpop.f32.mrb[0].mxu0
        %v9505 = vadd.f32 %v9464, %v9504
        %v9506 = vpop.f32.mrb[0].mxu0
        %v9507 = vadd.f32 %v9466, %v9506
        %v9508 = vpop.f32.mrb[0].mxu0
        %v9509 = vpop.f32.mrb[0].mxu0
        %9510 = vdwg.mxu0
        %9511 = vmatprep.subr.bf16.mxu0 %v6828
        %9512 = vmatpush1.bf16.msra.mxu0 %v6827
        %9513 = vmatprep.subr.bf16.mxu0 %v6841
        %9514 = vmatpush1.bf16.msra.mxu0 %v6840
        %9515 = vmatprep.subr.bf16.mxu0 %v6854
        %9516 = vmatpush1.bf16.msra.mxu0 %v6853
        %9517 = vmatprep.subr.bf16.mxu0 %v6867
        %9518 = vmatpush1.bf16.msra.mxu0 %v6866
        %9519 = vmatprep.subr.bf16.mxu0 %v6880
        %9520 = vmatpush1.bf16.msra.mxu0 %v6879
        %9521 = vmatprep.subr.bf16.mxu0 %v6893
        %9522 = vmatpush1.bf16.msra.mxu0 %v6892
        %9523 = vmatprep.subr.bf16.mxu0 %v6906
        %9524 = vmatpush1.bf16.msra.mxu0 %v6905
        %9525 = vmatprep.subr.bf16.mxu0 %v6919
        %9526 = vmatpush1.bf16.msra.mxu0 %v6918
        %9527 = vmatprep.subr.bf16.mxu0 %v6932
        %9528 = vmatpush1.bf16.msra.mxu0 %v6931
        %9529 = vmatprep.subr.bf16.mxu0 %v6945
        %9530 = vmatpush1.bf16.msra.mxu0 %v6944
        %9531 = vmatprep.subr.bf16.mxu0 %v6958
        %9532 = vmatpush1.bf16.msra.mxu0 %v6957
        %9533 = vmatprep.subr.bf16.mxu0 %v6971
        %9534 = vmatpush1.bf16.msra.mxu0 %v6970
        %9535 = vmatprep.subr.bf16.mxu0 %v6984
        %9536 = vmatpush1.bf16.msra.mxu0 %v6983
        %9537 = vmatprep.subr.bf16.mxu0 %v6997
        %9538 = vmatpush1.bf16.msra.mxu0 %v6996
        %9539 = vmatprep.subr.bf16.mxu0 %v7010
        %9540 = vmatpush1.bf16.msra.mxu0 %v7009
        %9541 = vmatprep.subr.bf16.mxu0 %v7023
        %9542 = vmatpush1.bf16.msra.mxu0 %v7022
        %9543 = vmatprep.mubr.bf16.mxu0 %v2854
        %9544 = vmatmul.mubr.bf16.gmra.mrb[0].mxu0 %v2853
        %v9545 = vpop.f32.mrb[0].mxu0
        %v9546 = vadd.f32 %v3909, %v9545
        %v9547 = vpop.f32.mrb[0].mxu0
        %v9548 = vadd.f32 %v3913, %v9547
        %v9549 = vpop.f32.mrb[0].mxu0
        %v9550 = vpop.f32.mrb[0].mxu0
        %9551 = vdwg.mxu0
        %9552 = vmatprep.subr.bf16.mxu0 %v7036
        %9553 = vmatpush1.bf16.msra.mxu0 %v7035
        %9554 = vmatprep.subr.bf16.mxu0 %v7049
        %9555 = vmatpush1.bf16.msra.mxu0 %v7048
        %9556 = vmatprep.subr.bf16.mxu0 %v7062
        %9557 = vmatpush1.bf16.msra.mxu0 %v7061
        %9558 = vmatprep.subr.bf16.mxu0 %v7075
        %9559 = vmatpush1.bf16.msra.mxu0 %v7074
        %9560 = vmatprep.subr.bf16.mxu0 %v7088
        %9561 = vmatpush1.bf16.msra.mxu0 %v7087
        %9562 = vmatprep.subr.bf16.mxu0 %v7101
        %9563 = vmatpush1.bf16.msra.mxu0 %v7100
        %9564 = vmatprep.subr.bf16.mxu0 %v7114
        %9565 = vmatpush1.bf16.msra.mxu0 %v7113
        %9566 = vmatprep.subr.bf16.mxu0 %v7127
        %9567 = vmatpush1.bf16.msra.mxu0 %v7126
        %9568 = vmatprep.subr.bf16.mxu0 %v7140
        %9569 = vmatpush1.bf16.msra.mxu0 %v7139
        %9570 = vmatprep.subr.bf16.mxu0 %v7153
        %9571 = vmatpush1.bf16.msra.mxu0 %v7152
        %9572 = vmatprep.subr.bf16.mxu0 %v7166
        %9573 = vmatpush1.bf16.msra.mxu0 %v7165
        %9574 = vmatprep.subr.bf16.mxu0 %v7179
        %9575 = vmatpush1.bf16.msra.mxu0 %v7178
        %9576 = vmatprep.subr.bf16.mxu0 %v7192
        %9577 = vmatpush1.bf16.msra.mxu0 %v7191
        %9578 = vmatprep.subr.bf16.mxu0 %v7205
        %9579 = vmatpush1.bf16.msra.mxu0 %v7204
        %9580 = vmatprep.subr.bf16.mxu0 %v7218
        %9581 = vmatpush1.bf16.msra.mxu0 %v7217
        %9582 = vmatprep.subr.bf16.mxu0 %v7231
        %9583 = vmatpush1.bf16.msra.mxu0 %v7230
        %9584 = vmatprep.mubr.bf16.mxu0 %v2856
        %9585 = vmatmul.mubr.bf16.gmra.mrb[0].mxu0 %v2855
        %v9586 = vpop.f32.mrb[0].mxu0
        %v9587 = vadd.f32 %v9546, %v9586
        %v9588 = vpop.f32.mrb[0].mxu0
        %v9589 = vadd.f32 %v9548, %v9588
        %v9590 = vpop.f32.mrb[0].mxu0
        %v9591 = vpop.f32.mrb[0].mxu0
        %9592 = vdwg.mxu0
        %9593 = vmatprep.subr.bf16.mxu0 %v7244
        %9594 = vmatpush1.bf16.msra.mxu0 %v7243
        %9595 = vmatprep.subr.bf16.mxu0 %v7257
        %9596 = vmatpush1.bf16.msra.mxu0 %v7256
        %9597 = vmatprep.subr.bf16.mxu0 %v7270
        %9598 = vmatpush1.bf16.msra.mxu0 %v7269
        %9599 = vmatprep.subr.bf16.mxu0 %v7283
        %9600 = vmatpush1.bf16.msra.mxu0 %v7282
        %9601 = vmatprep.subr.bf16.mxu0 %v7296
        %9602 = vmatpush1.bf16.msra.mxu0 %v7295
        %9603 = vmatprep.subr.bf16.mxu0 %v7309
        %9604 = vmatpush1.bf16.msra.mxu0 %v7308
        %9605 = vmatprep.subr.bf16.mxu0 %v7322
        %9606 = vmatpush1.bf16.msra.mxu0 %v7321
        %9607 = vmatprep.subr.bf16.mxu0 %v7335
        %9608 = vmatpush1.bf16.msra.mxu0 %v7334
        %9609 = vmatprep.subr.bf16.mxu0 %v7348
        %9610 = vmatpush1.bf16.msra.mxu0 %v7347
        %9611 = vmatprep.subr.bf16.mxu0 %v7361
        %9612 = vmatpush1.bf16.msra.mxu0 %v7360
        %9613 = vmatprep.subr.bf16.mxu0 %v7374
        %9614 = vmatpush1.bf16.msra.mxu0 %v7373
        %9615 = vmatprep.subr.bf16.mxu0 %v7387
        %9616 = vmatpush1.bf16.msra.mxu0 %v7386
        %9617 = vmatprep.subr.bf16.mxu0 %v7400
        %9618 = vmatpush1.bf16.msra.mxu0 %v7399
        %9619 = vmatprep.subr.bf16.mxu0 %v7413
        %9620 = vmatpush1.bf16.msra.mxu0 %v7412
        %9621 = vmatprep.subr.bf16.mxu0 %v7426
        %9622 = vmatpush1.bf16.msra.mxu0 %v7425
        %9623 = vmatprep.subr.bf16.mxu0 %v7439
        %9624 = vmatpush1.bf16.msra.mxu0 %v7438
        %9625 = vmatprep.mubr.bf16.mxu0 %v2858
        %9626 = vmatmul.mubr.bf16.gmra.mrb[0].mxu0 %v2857
        %v9627 = vpop.f32.mrb[0].mxu0
        %v9628 = vadd.f32 %v9587, %v9627
        %v9629 = vpop.f32.mrb[0].mxu0
        %v9630 = vadd.f32 %v9589, %v9629
        %v9631 = vpop.f32.mrb[0].mxu0
        %v9632 = vpop.f32.mrb[0].mxu0
        %9633 = vdwg.mxu0
        %9634 = vmatprep.subr.bf16.mxu0 %v7452
        %9635 = vmatpush1.bf16.msra.mxu0 %v7451
        %9636 = vmatprep.subr.bf16.mxu0 %v7465
        %9637 = vmatpush1.bf16.msra.mxu0 %v7464
        %9638 = vmatprep.subr.bf16.mxu0 %v7478
        %9639 = vmatpush1.bf16.msra.mxu0 %v7477
        %9640 = vmatprep.subr.bf16.mxu0 %v7491
        %9641 = vmatpush1.bf16.msra.mxu0 %v7490
        %9642 = vmatprep.subr.bf16.mxu0 %v7504
        %9643 = vmatpush1.bf16.msra.mxu0 %v7503
        %9644 = vmatprep.subr.bf16.mxu0 %v7517
        %9645 = vmatpush1.bf16.msra.mxu0 %v7516
        %9646 = vmatprep.subr.bf16.mxu0 %v7530
        %9647 = vmatpush1.bf16.msra.mxu0 %v7529
        %9648 = vmatprep.subr.bf16.mxu0 %v7543
        %9649 = vmatpush1.bf16.msra.mxu0 %v7542
        %9650 = vmatprep.subr.bf16.mxu0 %v7556
        %9651 = vmatpush1.bf16.msra.mxu0 %v7555
        %9652 = vmatprep.subr.bf16.mxu0 %v7569
        %9653 = vmatpush1.bf16.msra.mxu0 %v7568
        %9654 = vmatprep.subr.bf16.mxu0 %v7582
        %9655 = vmatpush1.bf16.msra.mxu0 %v7581
        %9656 = vmatprep.subr.bf16.mxu0 %v7595
        %9657 = vmatpush1.bf16.msra.mxu0 %v7594
        %9658 = vmatprep.subr.bf16.mxu0 %v7608
        %9659 = vmatpush1.bf16.msra.mxu0 %v7607
        %9660 = vmatprep.subr.bf16.mxu0 %v7621
        %9661 = vmatpush1.bf16.msra.mxu0 %v7620
        %9662 = vmatprep.subr.bf16.mxu0 %v7634
        %9663 = vmatpush1.bf16.msra.mxu0 %v7633
        %9664 = vmatprep.subr.bf16.mxu0 %v7647
        %9665 = vmatpush1.bf16.msra.mxu0 %v7646
        %9666 = vmatprep.mubr.bf16.mxu0 %v2860
        %9667 = vmatmul.mubr.bf16.gmra.mrb[0].mxu0 %v2859
        %v9668 = vpop.f32.mrb[0].mxu0
        %v9669 = vadd.f32 %v9628, %v9668
        %v9670 = vpop.f32.mrb[0].mxu0
        %v9671 = vadd.f32 %v9630, %v9670
        %v9672 = vpop.f32.mrb[0].mxu0
        %v9673 = vpop.f32.mrb[0].mxu0
        %9674 = vdwg.mxu0
        %9675 = vmatprep.subr.bf16.mxu0 %v7660
        %9676 = vmatpush1.bf16.msra.mxu0 %v7659
        %9677 = vmatprep.subr.bf16.mxu0 %v7673
        %9678 = vmatpush1.bf16.msra.mxu0 %v7672
        %9679 = vmatprep.subr.bf16.mxu0 %v7686
        %9680 = vmatpush1.bf16.msra.mxu0 %v7685
        %9681 = vmatprep.subr.bf16.mxu0 %v7699
        %9682 = vmatpush1.bf16.msra.mxu0 %v7698
        %9683 = vmatprep.subr.bf16.mxu0 %v7712
        %9684 = vmatpush1.bf16.msra.mxu0 %v7711
        %9685 = vmatprep.subr.bf16.mxu0 %v7725
        %9686 = vmatpush1.bf16.msra.mxu0 %v7724
        %9687 = vmatprep.subr.bf16.mxu0 %v7738
        %9688 = vmatpush1.bf16.msra.mxu0 %v7737
        %9689 = vmatprep.subr.bf16.mxu0 %v7751
        %9690 = vmatpush1.bf16.msra.mxu0 %v7750
        %9691 = vmatprep.subr.bf16.mxu0 0
        %9692 = vmatpush1.bf16.msra.mxu0 0
        %9693 = vmatprep.subr.bf16.mxu0 0
        %9694 = vmatpush1.bf16.msra.mxu0 0
        %9695 = vmatprep.subr.bf16.mxu0 0
        %9696 = vmatpush1.bf16.msra.mxu0 0
        %9697 = vmatprep.subr.bf16.mxu0 0
        %9698 = vmatpush1.bf16.msra.mxu0 0
        %9699 = vmatprep.subr.bf16.mxu0 0
        %9700 = vmatpush1.bf16.msra.mxu0 0
        %9701 = vmatprep.subr.bf16.mxu0 0
        %9702 = vmatpush1.bf16.msra.mxu0 0
        %9703 = vmatprep.subr.bf16.mxu0 0
        %9704 = vmatpush1.bf16.msra.mxu0 0
        %9705 = vmatprep.subr.bf16.mxu0 0
        %9706 = vmatpush1.bf16.msra.mxu0 0
        %9707 = vmatprep.mubr.bf16.mxu0 0
        %9708 = vmatmul.mubr.bf16.gmra.mrb[0].mxu0 %v2861
        %v9709 = vpop.f32.mrb[0].mxu0
        %v9710 = vadd.f32 %v9669, %v9709
        %v9711 = vpop.f32.mrb[0].mxu0
        %v9712 = vadd.f32 %v9671, %v9711
        %v9713 = vpop.f32.mrb[0].mxu0
        %v9714 = vpop.f32.mrb[0].mxu0
        %9715 = vdwg.mxu0
        %9716 = vmatprep.subr.bf16.mxu0 %v6830
        %9717 = vmatpush1.bf16.msra.mxu0 %v6829
        %9718 = vmatprep.subr.bf16.mxu0 %v6843
        %9719 = vmatpush1.bf16.msra.mxu0 %v6842
        %9720 = vmatprep.subr.bf16.mxu0 %v6856
        %9721 = vmatpush1.bf16.msra.mxu0 %v6855
        %9722 = vmatprep.subr.bf16.mxu0 %v6869
        %9723 = vmatpush1.bf16.msra.mxu0 %v6868
        %9724 = vmatprep.subr.bf16.mxu0 %v6882
        %9725 = vmatpush1.bf16.msra.mxu0 %v6881
        %9726 = vmatprep.subr.bf16.mxu0 %v6895
        %9727 = vmatpush1.bf16.msra.mxu0 %v6894
        %9728 = vmatprep.subr.bf16.mxu0 %v6908
        %9729 = vmatpush1.bf16.msra.mxu0 %v6907
        %9730 = vmatprep.subr.bf16.mxu0 %v6921
        %9731 = vmatpush1.bf16.msra.mxu0 %v6920
        %9732 = vmatprep.subr.bf16.mxu0 %v6934
        %9733 = vmatpush1.bf16.msra.mxu0 %v6933
        %9734 = vmatprep.subr.bf16.mxu0 %v6947
        %9735 = vmatpush1.bf16.msra.mxu0 %v6946
        %9736 = vmatprep.subr.bf16.mxu0 %v6960
        %9737 = vmatpush1.bf16.msra.mxu0 %v6959
        %9738 = vmatprep.subr.bf16.mxu0 %v6973
        %9739 = vmatpush1.bf16.msra.mxu0 %v6972
        %9740 = vmatprep.subr.bf16.mxu0 %v6986
        %9741 = vmatpush1.bf16.msra.mxu0 %v6985
        %9742 = vmatprep.subr.bf16.mxu0 %v6999
        %9743 = vmatpush1.bf16.msra.mxu0 %v6998
        %9744 = vmatprep.subr.bf16.mxu0 %v7012
        %9745 = vmatpush1.bf16.msra.mxu0 %v7011
        %9746 = vmatprep.subr.bf16.mxu0 %v7025
        %9747 = vmatpush1.bf16.msra.mxu0 %v7024
        %9748 = vmatprep.mubr.bf16.mxu0 %v2854
        %9749 = vmatmul.mubr.bf16.gmra.mrb[0].mxu0 %v2853
        %v9750 = vpop.f32.mrb[0].mxu0
        %v9751 = vadd.f32 %v3917, %v9750
        %v9752 = vpop.f32.mrb[0].mxu0
        %v9753 = vadd.f32 %v3921, %v9752
        %v9754 = vpop.f32.mrb[0].mxu0
        %v9755 = vpop.f32.mrb[0].mxu0
        %9756 = vdwg.mxu0
        %9757 = vmatprep.subr.bf16.mxu0 %v7038
        %9758 = vmatpush1.bf16.msra.mxu0 %v7037
        %9759 = vmatprep.subr.bf16.mxu0 %v7051
        %9760 = vmatpush1.bf16.msra.mxu0 %v7050
        %9761 = vmatprep.subr.bf16.mxu0 %v7064
        %9762 = vmatpush1.bf16.msra.mxu0 %v7063
        %9763 = vmatprep.subr.bf16.mxu0 %v7077
        %9764 = vmatpush1.bf16.msra.mxu0 %v7076
        %9765 = vmatprep.subr.bf16.mxu0 %v7090
        %9766 = vmatpush1.bf16.msra.mxu0 %v7089
        %9767 = vmatprep.subr.bf16.mxu0 %v7103
        %9768 = vmatpush1.bf16.msra.mxu0 %v7102
        %9769 = vmatprep.subr.bf16.mxu0 %v7116
        %9770 = vmatpush1.bf16.msra.mxu0 %v7115
        %9771 = vmatprep.subr.bf16.mxu0 %v7129
        %9772 = vmatpush1.bf16.msra.mxu0 %v7128
        %9773 = vmatprep.subr.bf16.mxu0 %v7142
        %9774 = vmatpush1.bf16.msra.mxu0 %v7141
        %9775 = vmatprep.subr.bf16.mxu0 %v7155
        %9776 = vmatpush1.bf16.msra.mxu0 %v7154
        %9777 = vmatprep.subr.bf16.mxu0 %v7168
        %9778 = vmatpush1.bf16.msra.mxu0 %v7167
        %9779 = vmatprep.subr.bf16.mxu0 %v7181
        %9780 = vmatpush1.bf16.msra.mxu0 %v7180
        %9781 = vmatprep.subr.bf16.mxu0 %v7194
        %9782 = vmatpush1.bf16.msra.mxu0 %v7193
        %9783 = vmatprep.subr.bf16.mxu0 %v7207
        %9784 = vmatpush1.bf16.msra.mxu0 %v7206
        %9785 = vmatprep.subr.bf16.mxu0 %v7220
        %9786 = vmatpush1.bf16.msra.mxu0 %v7219
        %9787 = vmatprep.subr.bf16.mxu0 %v7233
        %9788 = vmatpush1.bf16.msra.mxu0 %v7232
        %9789 = vmatprep.mubr.bf16.mxu0 %v2856
        %9790 = vmatmul.mubr.bf16.gmra.mrb[0].mxu0 %v2855
        %v9791 = vpop.f32.mrb[0].mxu0
        %v9792 = vadd.f32 %v9751, %v9791
        %v9793 = vpop.f32.mrb[0].mxu0
        %v9794 = vadd.f32 %v9753, %v9793
        %v9795 = vpop.f32.mrb[0].mxu0
        %v9796 = vpop.f32.mrb[0].mxu0
        %9797 = vdwg.mxu0
        %9798 = vmatprep.subr.bf16.mxu0 %v7246
        %9799 = vmatpush1.bf16.msra.mxu0 %v7245
        %9800 = vmatprep.subr.bf16.mxu0 %v7259
        %9801 = vmatpush1.bf16.msra.mxu0 %v7258
        %9802 = vmatprep.subr.bf16.mxu0 %v7272
        %9803 = vmatpush1.bf16.msra.mxu0 %v7271
        %9804 = vmatprep.subr.bf16.mxu0 %v7285
        %9805 = vmatpush1.bf16.msra.mxu0 %v7284
        %9806 = vmatprep.subr.bf16.mxu0 %v7298
        %9807 = vmatpush1.bf16.msra.mxu0 %v7297
        %9808 = vmatprep.subr.bf16.mxu0 %v7311
        %9809 = vmatpush1.bf16.msra.mxu0 %v7310
        %9810 = vmatprep.subr.bf16.mxu0 %v7324
        %9811 = vmatpush1.bf16.msra.mxu0 %v7323
        %9812 = vmatprep.subr.bf16.mxu0 %v7337
        %9813 = vmatpush1.bf16.msra.mxu0 %v7336
        %9814 = vmatprep.subr.bf16.mxu0 %v7350
        %9815 = vmatpush1.bf16.msra.mxu0 %v7349
        %9816 = vmatprep.subr.bf16.mxu0 %v7363
        %9817 = vmatpush1.bf16.msra.mxu0 %v7362
        %9818 = vmatprep.subr.bf16.mxu0 %v7376
        %9819 = vmatpush1.bf16.msra.mxu0 %v7375
        %9820 = vmatprep.subr.bf16.mxu0 %v7389
        %9821 = vmatpush1.bf16.msra.mxu0 %v7388
        %9822 = vmatprep.subr.bf16.mxu0 %v7402
        %9823 = vmatpush1.bf16.msra.mxu0 %v7401
        %9824 = vmatprep.subr.bf16.mxu0 %v7415
        %9825 = vmatpush1.bf16.msra.mxu0 %v7414
        %9826 = vmatprep.subr.bf16.mxu0 %v7428
        %9827 = vmatpush1.bf16.msra.mxu0 %v7427
        %9828 = vmatprep.subr.bf16.mxu0 %v7441
        %9829 = vmatpush1.bf16.msra.mxu0 %v7440
        %9830 = vmatprep.mubr.bf16.mxu0 %v2858
        %9831 = vmatmul.mubr.bf16.gmra.mrb[0].mxu0 %v2857
        %v9832 = vpop.f32.mrb[0].mxu0
        %v9833 = vadd.f32 %v9792, %v9832
        %v9834 = vpop.f32.mrb[0].mxu0
        %v9835 = vadd.f32 %v9794, %v9834
        %v9836 = vpop.f32.mrb[0].mxu0
        %v9837 = vpop.f32.mrb[0].mxu0
        %9838 = vdwg.mxu0
        %9839 = vmatprep.subr.bf16.mxu0 %v7454
        %9840 = vmatpush1.bf16.msra.mxu0 %v7453
        %9841 = vmatprep.subr.bf16.mxu0 %v7467
        %9842 = vmatpush1.bf16.msra.mxu0 %v7466
        %9843 = vmatprep.subr.bf16.mxu0 %v7480
        %9844 = vmatpush1.bf16.msra.mxu0 %v7479
        %9845 = vmatprep.subr.bf16.mxu0 %v7493
        %9846 = vmatpush1.bf16.msra.mxu0 %v7492
        %9847 = vmatprep.subr.bf16.mxu0 %v7506
        %9848 = vmatpush1.bf16.msra.mxu0 %v7505
        %9849 = vmatprep.subr.bf16.mxu0 %v7519
        %9850 = vmatpush1.bf16.msra.mxu0 %v7518
        %9851 = vmatprep.subr.bf16.mxu0 %v7532
        %9852 = vmatpush1.bf16.msra.mxu0 %v7531
        %9853 = vmatprep.subr.bf16.mxu0 %v7545
        %9854 = vmatpush1.bf16.msra.mxu0 %v7544
        %9855 = vmatprep.subr.bf16.mxu0 %v7558
        %9856 = vmatpush1.bf16.msra.mxu0 %v7557
        %9857 = vmatprep.subr.bf16.mxu0 %v7571
        %9858 = vmatpush1.bf16.msra.mxu0 %v7570
        %9859 = vmatprep.subr.bf16.mxu0 %v7584
        %9860 = vmatpush1.bf16.msra.mxu0 %v7583
        %9861 = vmatprep.subr.bf16.mxu0 %v7597
        %9862 = vmatpush1.bf16.msra.mxu0 %v7596
        %9863 = vmatprep.subr.bf16.mxu0 %v7610
        %9864 = vmatpush1.bf16.msra.mxu0 %v7609
        %9865 = vmatprep.subr.bf16.mxu0 %v7623
        %9866 = vmatpush1.bf16.msra.mxu0 %v7622
        %9867 = vmatprep.subr.bf16.mxu0 %v7636
        %9868 = vmatpush1.bf16.msra.mxu0 %v7635
        %9869 = vmatprep.subr.bf16.mxu0 %v7649
        %9870 = vmatpush1.bf16.msra.mxu0 %v7648
        %9871 = vmatprep.mubr.bf16.mxu0 %v2860
        %9872 = vmatmul.mubr.bf16.gmra.mrb[0].mxu0 %v2859
        %v9873 = vpop.f32.mrb[0].mxu0
        %v9874 = vadd.f32 %v9833, %v9873
        %v9875 = vpop.f32.mrb[0].mxu0
        %v9876 = vadd.f32 %v9835, %v9875
        %v9877 = vpop.f32.mrb[0].mxu0
        %v9878 = vpop.f32.mrb[0].mxu0
        %9879 = vdwg.mxu0
        %9880 = vmatprep.subr.bf16.mxu0 %v7662
        %9881 = vmatpush1.bf16.msra.mxu0 %v7661
        %9882 = vmatprep.subr.bf16.mxu0 %v7675
        %9883 = vmatpush1.bf16.msra.mxu0 %v7674
        %9884 = vmatprep.subr.bf16.mxu0 %v7688
        %9885 = vmatpush1.bf16.msra.mxu0 %v7687
        %9886 = vmatprep.subr.bf16.mxu0 %v7701
        %9887 = vmatpush1.bf16.msra.mxu0 %v7700
        %9888 = vmatprep.subr.bf16.mxu0 %v7714
        %9889 = vmatpush1.bf16.msra.mxu0 %v7713
        %9890 = vmatprep.subr.bf16.mxu0 %v7727
        %9891 = vmatpush1.bf16.msra.mxu0 %v7726
        %9892 = vmatprep.subr.bf16.mxu0 %v7740
        %9893 = vmatpush1.bf16.msra.mxu0 %v7739
        %9894 = vmatprep.subr.bf16.mxu0 %v7753
        %9895 = vmatpush1.bf16.msra.mxu0 %v7752
        %9896 = vmatprep.subr.bf16.mxu0 0
        %9897 = vmatpush1.bf16.msra.mxu0 0
        %9898 = vmatprep.subr.bf16.mxu0 0
        %9899 = vmatpush1.bf16.msra.mxu0 0
        %9900 = vmatprep.subr.bf16.mxu0 0
        %9901 = vmatpush1.bf16.msra.mxu0 0
        %9902 = vmatprep.subr.bf16.mxu0 0
        %9903 = vmatpush1.bf16.msra.mxu0 0
        %9904 = vmatprep.subr.bf16.mxu0 0
        %9905 = vmatpush1.bf16.msra.mxu0 0
        %9906 = vmatprep.subr.bf16.mxu0 0
        %9907 = vmatpush1.bf16.msra.mxu0 0
        %9908 = vmatprep.subr.bf16.mxu0 0
        %9909 = vmatpush1.bf16.msra.mxu0 0
        %9910 = vmatprep.subr.bf16.mxu0 0
        %9911 = vmatpush1.bf16.msra.mxu0 0
        %9912 = vmatprep.mubr.bf16.mxu0 0
        %9913 = vmatmul.mubr.bf16.gmra.mrb[0].mxu0 %v2861
        %v9914 = vpop.f32.mrb[0].mxu0
        %v9915 = vadd.f32 %v9874, %v9914
        %v9916 = vpop.f32.mrb[0].mxu0
        %v9917 = vadd.f32 %v9876, %v9916
        %v9918 = vpop.f32.mrb[0].mxu0
        %v9919 = vpop.f32.mrb[0].mxu0
        %9920 = vdwg.mxu0
        %9921 = vmatprep.subr.bf16.mxu0 0
        %9922 = vmatpush1.bf16.msra.mxu0 %v6831
        %9923 = vmatprep.subr.bf16.mxu0 0
        %9924 = vmatpush1.bf16.msra.mxu0 %v6844
        %9925 = vmatprep.subr.bf16.mxu0 0
        %9926 = vmatpush1.bf16.msra.mxu0 %v6857
        %9927 = vmatprep.subr.bf16.mxu0 0
        %9928 = vmatpush1.bf16.msra.mxu0 %v6870
        %9929 = vmatprep.subr.bf16.mxu0 0
        %9930 = vmatpush1.bf16.msra.mxu0 %v6883
        %9931 = vmatprep.subr.bf16.mxu0 0
        %9932 = vmatpush1.bf16.msra.mxu0 %v6896
        %9933 = vmatprep.subr.bf16.mxu0 0
        %9934 = vmatpush1.bf16.msra.mxu0 %v6909
        %9935 = vmatprep.subr.bf16.mxu0 0
        %9936 = vmatpush1.bf16.msra.mxu0 %v6922
        %9937 = vmatprep.subr.bf16.mxu0 0
        %9938 = vmatpush1.bf16.msra.mxu0 %v6935
        %9939 = vmatprep.subr.bf16.mxu0 0
        %9940 = vmatpush1.bf16.msra.mxu0 %v6948
        %9941 = vmatprep.subr.bf16.mxu0 0
        %9942 = vmatpush1.bf16.msra.mxu0 %v6961
        %9943 = vmatprep.subr.bf16.mxu0 0
        %9944 = vmatpush1.bf16.msra.mxu0 %v6974
        %9945 = vmatprep.subr.bf16.mxu0 0
        %9946 = vmatpush1.bf16.msra.mxu0 %v6987
        %9947 = vmatprep.subr.bf16.mxu0 0
        %9948 = vmatpush1.bf16.msra.mxu0 %v7000
        %9949 = vmatprep.subr.bf16.mxu0 0
        %9950 = vmatpush1.bf16.msra.mxu0 %v7013
        %9951 = vmatprep.subr.bf16.mxu0 0
        %9952 = vmatpush1.bf16.msra.mxu0 %v7026
        %9953 = vmatprep.mubr.bf16.mxu0 %v2854
        %9954 = vmatmul.mubr.bf16.gmra.mrb[0].mxu0 %v2853
        %v9955 = vpop.f32.mrb[0].mxu0
        %v9956 = vadd.f32 %v3925, %v9955
        %v9957 = vpop.f32.mrb[0].mxu0
        %v9958 = vpop.f32.mrb[0].mxu0
        %v9959 = vpop.f32.mrb[0].mxu0
        %9960 = vdwg.mxu0
        %9961 = vmatprep.subr.bf16.mxu0 0
        %9962 = vmatpush1.bf16.msra.mxu0 %v7039
        %9963 = vmatprep.subr.bf16.mxu0 0
        %9964 = vmatpush1.bf16.msra.mxu0 %v7052
        %9965 = vmatprep.subr.bf16.mxu0 0
        %9966 = vmatpush1.bf16.msra.mxu0 %v7065
        %9967 = vmatprep.subr.bf16.mxu0 0
        %9968 = vmatpush1.bf16.msra.mxu0 %v7078
        %9969 = vmatprep.subr.bf16.mxu0 0
        %9970 = vmatpush1.bf16.msra.mxu0 %v7091
        %9971 = vmatprep.subr.bf16.mxu0 0
        %9972 = vmatpush1.bf16.msra.mxu0 %v7104
        %9973 = vmatprep.subr.bf16.mxu0 0
        %9974 = vmatpush1.bf16.msra.mxu0 %v7117
        %9975 = vmatprep.subr.bf16.mxu0 0
        %9976 = vmatpush1.bf16.msra.mxu0 %v7130
        %9977 = vmatprep.subr.bf16.mxu0 0
        %9978 = vmatpush1.bf16.msra.mxu0 %v7143
        %9979 = vmatprep.subr.bf16.mxu0 0
        %9980 = vmatpush1.bf16.msra.mxu0 %v7156
        %9981 = vmatprep.subr.bf16.mxu0 0
        %9982 = vmatpush1.bf16.msra.mxu0 %v7169
        %9983 = vmatprep.subr.bf16.mxu0 0
        %9984 = vmatpush1.bf16.msra.mxu0 %v7182
        %9985 = vmatprep.subr.bf16.mxu0 0
        %9986 = vmatpush1.bf16.msra.mxu0 %v7195
        %9987 = vmatprep.subr.bf16.mxu0 0
        %9988 = vmatpush1.bf16.msra.mxu0 %v7208
        %9989 = vmatprep.subr.bf16.mxu0 0
        %9990 = vmatpush1.bf16.msra.mxu0 %v7221
        %9991 = vmatprep.subr.bf16.mxu0 0
        %9992 = vmatpush1.bf16.msra.mxu0 %v7234
        %9993 = vmatprep.mubr.bf16.mxu0 %v2856
        %9994 = vmatmul.mubr.bf16.gmra.mrb[0].mxu0 %v2855
        %v9995 = vpop.f32.mrb[0].mxu0
        %v9996 = vadd.f32 %v9956, %v9995
        %v9997 = vpop.f32.mrb[0].mxu0
        %v9998 = vpop.f32.mrb[0].mxu0
        %v9999 = vpop.f32.mrb[0].mxu0
        %10000 = vdwg.mxu0
        %10001 = vmatprep.subr.bf16.mxu0 0
        %10002 = vmatpush1.bf16.msra.mxu0 %v7247
        %10003 = vmatprep.subr.bf16.mxu0 0
        %10004 = vmatpush1.bf16.msra.mxu0 %v7260
        %10005 = vmatprep.subr.bf16.mxu0 0
        %10006 = vmatpush1.bf16.msra.mxu0 %v7273
        %10007 = vmatprep.subr.bf16.mxu0 0
        %10008 = vmatpush1.bf16.msra.mxu0 %v7286
        %10009 = vmatprep.subr.bf16.mxu0 0
        %10010 = vmatpush1.bf16.msra.mxu0 %v7299
        %10011 = vmatprep.subr.bf16.mxu0 0
        %10012 = vmatpush1.bf16.msra.mxu0 %v7312
        %10013 = vmatprep.subr.bf16.mxu0 0
        %10014 = vmatpush1.bf16.msra.mxu0 %v7325
        %10015 = vmatprep.subr.bf16.mxu0 0
        %10016 = vmatpush1.bf16.msra.mxu0 %v7338
        %10017 = vmatprep.subr.bf16.mxu0 0
        %10018 = vmatpush1.bf16.msra.mxu0 %v7351
        %10019 = vmatprep.subr.bf16.mxu0 0
        %10020 = vmatpush1.bf16.msra.mxu0 %v7364
        %10021 = vmatprep.subr.bf16.mxu0 0
        %10022 = vmatpush1.bf16.msra.mxu0 %v7377
        %10023 = vmatprep.subr.bf16.mxu0 0
        %10024 = vmatpush1.bf16.msra.mxu0 %v7390
        %10025 = vmatprep.subr.bf16.mxu0 0
        %10026 = vmatpush1.bf16.msra.mxu0 %v7403
        %10027 = vmatprep.subr.bf16.mxu0 0
        %10028 = vmatpush1.bf16.msra.mxu0 %v7416
        %10029 = vmatprep.subr.bf16.mxu0 0
        %10030 = vmatpush1.bf16.msra.mxu0 %v7429
        %10031 = vmatprep.subr.bf16.mxu0 0
        %10032 = vmatpush1.bf16.msra.mxu0 %v7442
        %10033 = vmatprep.mubr.bf16.mxu0 %v2858
        %10034 = vmatmul.mubr.bf16.gmra.mrb[0].mxu0 %v2857
        %v10035 = vpop.f32.mrb[0].mxu0
        %v10036 = vadd.f32 %v9996, %v10035
        %v10037 = vpop.f32.mrb[0].mxu0
        %v10038 = vpop.f32.mrb[0].mxu0
        %v10039 = vpop.f32.mrb[0].mxu0
        %10040 = vdwg.mxu0
        %10041 = vmatprep.subr.bf16.mxu0 0
        %10042 = vmatpush1.bf16.msra.mxu0 %v7455
        %10043 = vmatprep.subr.bf16.mxu0 0
        %10044 = vmatpush1.bf16.msra.mxu0 %v7468
        %10045 = vmatprep.subr.bf16.mxu0 0
        %10046 = vmatpush1.bf16.msra.mxu0 %v7481
        %10047 = vmatprep.subr.bf16.mxu0 0
        %10048 = vmatpush1.bf16.msra.mxu0 %v7494
        %10049 = vmatprep.subr.bf16.mxu0 0
        %10050 = vmatpush1.bf16.msra.mxu0 %v7507
        %10051 = vmatprep.subr.bf16.mxu0 0
        %10052 = vmatpush1.bf16.msra.mxu0 %v7520
        %10053 = vmatprep.subr.bf16.mxu0 0
        %10054 = vmatpush1.bf16.msra.mxu0 %v7533
        %10055 = vmatprep.subr.bf16.mxu0 0
        %10056 = vmatpush1.bf16.msra.mxu0 %v7546
        %10057 = vmatprep.subr.bf16.mxu0 0
        %10058 = vmatpush1.bf16.msra.mxu0 %v7559
        %10059 = vmatprep.subr.bf16.mxu0 0
        %10060 = vmatpush1.bf16.msra.mxu0 %v7572
        %10061 = vmatprep.subr.bf16.mxu0 0
        %10062 = vmatpush1.bf16.msra.mxu0 %v7585
        %10063 = vmatprep.subr.bf16.mxu0 0
        %10064 = vmatpush1.bf16.msra.mxu0 %v7598
        %10065 = vmatprep.subr.bf16.mxu0 0
        %10066 = vmatpush1.bf16.msra.mxu0 %v7611
        %10067 = vmatprep.subr.bf16.mxu0 0
        %10068 = vmatpush1.bf16.msra.mxu0 %v7624
        %10069 = vmatprep.subr.bf16.mxu0 0
        %10070 = vmatpush1.bf16.msra.mxu0 %v7637
        %10071 = vmatprep.subr.bf16.mxu0 0
        %10072 = vmatpush1.bf16.msra.mxu0 %v7650
        %10073 = vmatprep.mubr.bf16.mxu0 %v2860
        %10074 = vmatmul.mubr.bf16.gmra.mrb[0].mxu0 %v2859
        %v10075 = vpop.f32.mrb[0].mxu0
        %v10076 = vadd.f32 %v10036, %v10075
        %v10077 = vpop.f32.mrb[0].mxu0
        %v10078 = vpop.f32.mrb[0].mxu0
        %v10079 = vpop.f32.mrb[0].mxu0
        %10080 = vdwg.mxu0
        %10081 = vmatprep.subr.bf16.mxu0 0
        %10082 = vmatpush1.bf16.msra.mxu0 %v7663
        %10083 = vmatprep.subr.bf16.mxu0 0
        %10084 = vmatpush1.bf16.msra.mxu0 %v7676
        %10085 = vmatprep.subr.bf16.mxu0 0
        %10086 = vmatpush1.bf16.msra.mxu0 %v7689
        %10087 = vmatprep.subr.bf16.mxu0 0
        %10088 = vmatpush1.bf16.msra.mxu0 %v7702
        %10089 = vmatprep.subr.bf16.mxu0 0
        %10090 = vmatpush1.bf16.msra.mxu0 %v7715
        %10091 = vmatprep.subr.bf16.mxu0 0
        %10092 = vmatpush1.bf16.msra.mxu0 %v7728
        %10093 = vmatprep.subr.bf16.mxu0 0
        %10094 = vmatpush1.bf16.msra.mxu0 %v7741
        %10095 = vmatprep.subr.bf16.mxu0 0
        %10096 = vmatpush1.bf16.msra.mxu0 %v7754
        %10097 = vmatprep.subr.bf16.mxu0 0
        %10098 = vmatpush1.bf16.msra.mxu0 0
        %10099 = vmatprep.subr.bf16.mxu0 0
        %10100 = vmatpush1.bf16.msra.mxu0 0
        %10101 = vmatprep.subr.bf16.mxu0 0
        %10102 = vmatpush1.bf16.msra.mxu0 0
        %10103 = vmatprep.subr.bf16.mxu0 0
        %10104 = vmatpush1.bf16.msra.mxu0 0
        %10105 = vmatprep.subr.bf16.mxu0 0
        %10106 = vmatpush1.bf16.msra.mxu0 0
        %10107 = vmatprep.subr.bf16.mxu0 0
        %10108 = vmatpush1.bf16.msra.mxu0 0
        %10109 = vmatprep.subr.bf16.mxu0 0
        %10110 = vmatpush1.bf16.msra.mxu0 0
        %10111 = vmatprep.subr.bf16.mxu0 0
        %10112 = vmatpush1.bf16.msra.mxu0 0
        %10113 = vmatprep.mubr.bf16.mxu0 0
        %10114 = vmatmul.mubr.bf16.gmra.mrb[0].mxu0 %v2861
        %v10115 = vpop.f32.mrb[0].mxu0
        %v10116 = vadd.f32 %v10076, %v10115
        %v10117 = vpop.f32.mrb[0].mxu0
        %v10118 = vpop.f32.mrb[0].mxu0
        %v10119 = vpop.f32.mrb[0].mxu0
        %10120 = vdwg.mxu0
        %v10134 = vcombine.low %v8890, %v8892
        %v10135 = vcombine.low %v9095, %v9097
        %v10137 = vunpack.c.l.s4 1983009808
        %v10138 = vunpack.c.0.s8 %v10137
        %v10139 = vlaneseq
        %v10140 = vshrl.u32 %v10139, 7
        %v10141 = vsub.s32 %v10138, %v10140
        %v10142 = vrot.slane %v10134, %v10141
        %v10144 = vunpack.c.l.s4 1983009808
        %v10145 = vunpack.c.0.s8 %v10144
        %v10146 = vlaneseq
        %v10147 = vshrl.u32 %v10146, 7
        %v10148 = vsub.s32 %v10145, %v10147
        %v10149 = vrot.slane %v10135, %v10148
        %v10150 = vcombine.low %v10142, %v10149
        %v10151 = vcombine.low %v9300, %v9302
        %v10152 = vcombine.low %v9505, %v9507
        %v10154 = vunpack.c.l.s4 1983009808
        %v10155 = vunpack.c.0.s8 %v10154
        %v10156 = vlaneseq
        %v10157 = vshrl.u32 %v10156, 7
        %v10158 = vsub.s32 %v10155, %v10157
        %v10159 = vrot.slane %v10151, %v10158
        %v10161 = vunpack.c.l.s4 1983009808
        %v10162 = vunpack.c.0.s8 %v10161
        %v10163 = vlaneseq
        %v10164 = vshrl.u32 %v10163, 7
        %v10165 = vsub.s32 %v10162, %v10164
        %v10166 = vrot.slane %v10152, %v10165
        %v10167 = vcombine.low %v10159, %v10166
        %v10168 = vcombine.low %v9710, %v9712
        %v10169 = vcombine.low %v9915, %v9917
        %v10171 = vunpack.c.l.s4 1983009808
        %v10172 = vunpack.c.0.s8 %v10171
        %v10173 = vlaneseq
        %v10174 = vshrl.u32 %v10173, 7
        %v10175 = vsub.s32 %v10172, %v10174
        %v10176 = vrot.slane %v10168, %v10175
        %v10178 = vunpack.c.l.s4 1983009808
        %v10179 = vunpack.c.0.s8 %v10178
        %v10180 = vlaneseq
        %v10181 = vshrl.u32 %v10180, 7
        %v10182 = vsub.s32 %v10179, %v10181
        %v10183 = vrot.slane %v10169, %v10182
        %v10184 = vcombine.low %v10176, %v10183
        %v10186 = vunpack.c.l.s4 1983009808
        %v10187 = vunpack.c.0.s8 %v10186
        %v10188 = vlaneseq
        %v10189 = vshrl.u32 %v10188, 7
        %v10190 = vsub.s32 %v10187, %v10189
        %v10191 = vrot.slane %v10116, %v10190
        %10196 = vst [vmem:[%s398] sm:$0xff] %v10150
        %10197 = vst [vmem:[%s398 + $0x8] sm:$0xff] %v10167
        %10198 = vst [vmem:[%s398 + $0x10] sm:$0xff] %v10184
        %10199 = vst [vmem:[%s398 + $0x18] sm:$0x3] %v10191
        %s10200 = sand.u32 %s192, 1
        %s10201 = scalar_lea.sflag [#allocation4], %s10200
        %s10202 = sand.u32 %s192, 1
        %s10203 = smul.addr %s10202, 26
        %s10204 = scalar_lea.vmem [#allocation14], %s10203
        // Predicated region
        $region77: #{mlp_forward.1} parent=47 // pred_check
          %p10205 = pneg %p202
        $region78: #{mlp_forward.1} parent=47 // pred_check_branch
          %10207 = sbr.rel (%p10205) target = $region80
        $region79: #{mlp_forward.1} parent=47 // pred_region
          %s10208 = smul.u32 13, %s27
          %s10210 = ssub.s32 416, 416
          %10211 = vsyncadd %s10201, %s10210
          %s10212 = smul.addr %s10208, 32
          %s10213 = scalar_lea.hbm %s7, %s10212
          %s10215 = sshll.u32 %s10204, 4
          %s10216 = int_to_ptr.vmem [resolvable:$true] %s10215
          %10218 = dma.vmem_to_hbm [thread:$0]  %s10216, 416, %s10213, %s10201
        $region80: #{mlp_forward.1} parent=47 // pred_fallthru
          _
      $region48: #{mlp_forward.1} parent=5 // pred_fallthru
        _
      %p10219 = scmp.le.s32.totalorder 2, %s22
      // Predicated region
      $region81: #{mlp_forward.1} parent=5 // pred_check
        %p10220 = pneg %p10219
      $region82: #{mlp_forward.1} parent=5 // pred_check_branch
        %10222 = sbr.rel (%p10220) target = $region84
      $region83: #{mlp_forward.1} parent=5 // pred_region
        %s10223 = ssub.s32 %s22, 2
        // Predicated region
        $region85: #{mlp_forward.1} parent=83 // pred_check
          %p10224 = pneg %p208
        $region86: #{mlp_forward.1} parent=83 // pred_check_branch
          %10226 = sbr.rel (%p10224) target = $region88
        $region87: #{mlp_forward.1} parent=83 // pred_region
          %s10227 = sand.u32 %s193, 1
          %s10228 = scalar_lea.sflag [#allocation4], %s10227
          %s10229 = sand.u32 %s193, 1
          %s10230 = smul.addr %s10229, 26
          %s10231 = scalar_lea.vmem [#allocation14], %s10230
          %10232 = dma.done %s10228, 416
        $region88: #{mlp_forward.1} parent=83 // pred_fallthru
          _
      $region84: #{mlp_forward.1} parent=5 // pred_fallthru
        _
    $region6: #{mlp_forward.1} parent=1 // loop_footer
      %s26 = sadd.s32 1, %s22
    $region7: #{mlp_forward.1} parent=1 // loop_footer_branch
      %21 = sbr.rel target = $region3
    $region8: #{mlp_forward.1} parent=1 // loop_exit
      _
    %10233 = vsyncpa [#allocation3], 1
    %s10234 = scalar_lea.sflag [#allocation3], 1
    %10235 = vsyncpa %s10234, 1
    %10236 = vsyncpa [#allocation6], 1
    %10237 = vsyncpa [#allocation9], 1
    %10238 = vsyncpa [#allocation12], 1
    %s10239 = scalar_lea.sflag [#allocation12], 1
    %10240 = vsyncpa %s10239, 1
    %10241 = vsyncpa [#allocation4], 1
    %s10242 = scalar_lea.sflag [#allocation4], 1
    %10243 = vsyncpa %s10242, 1

</llo_original>
